<compile_context>
chip_gen: v5e
topology: v5e:2x2
jax: 0.10.0
libtpu: 0.0.40
codegen_flags: <defaults>
</compile_context>

<pallas_src>
import functools

import jax
import jax.numpy as jnp
from jax.experimental import pallas as pl
from jax.experimental.pallas import tpu as pltpu


# ----------------------------------------------------------------------------
# Pallas kernels
# ----------------------------------------------------------------------------
def _silu(y):
    return y * jax.nn.sigmoid(y)


def _cv12_kernel(x_ref, w1_ref, b1_ref, w2_ref, b2_ref, y1_ref, y2_ref):
    # One read of x feeds BOTH 1x1 convs (cv1 & cv2).  BN scale is pre-folded
    # into the weights, so the epilogue is bias-add + SiLU only.
    x = x_ref[...]
    a = jnp.dot(x, w1_ref[...], preferred_element_type=jnp.float32) + b1_ref[...]
    y1_ref[...] = _silu(a).astype(y1_ref.dtype)
    b = jnp.dot(x, w2_ref[...], preferred_element_type=jnp.float32) + b2_ref[...]
    y2_ref[...] = _silu(b).astype(y2_ref.dtype)


def _cv3_kernel(a_ref, b_ref, wa_ref, wb_ref, bias_ref, o_ref):
    # Fused "channel concat + 1x1 conv": cat([a, b]) @ [[wa],[wb]] = a@wa + b@wb.
    acc = jnp.dot(a_ref[...], wa_ref[...], preferred_element_type=jnp.float32)
    acc = acc + jnp.dot(b_ref[...], wb_ref[...],
                        preferred_element_type=jnp.float32)
    o_ref[...] = _silu(acc + bias_ref[...]).astype(o_ref.dtype)


def _bottleneck_kernel(x_ref, w1_ref, b1_ref, w3_ref, b3_ref, o_ref,
                       slab_ref, acc_ref, *, H, W, Wpad, add):
    # Fused Bottleneck: h = SiLU(x @ w1 + b1) (1x1), then a 3x3 'same' conv of
    # h, bias + SiLU, optional shortcut add of x.  Everything stays in VMEM.
    Cout = w3_ref.shape[-1]
    x = x_ref[0]                                                   # (H*W, Cin)
    h = jnp.dot(x, w1_ref[...], preferred_element_type=jnp.float32) + b1_ref[...]
    h = _silu(h)                                                   # (H*W, Cmid)

    # Zero-padded slab: flat ((H+4)*Wpad, Cmid) with the image at rows
    # [2, H+2), cols [0, W).  Wpad >= W+2 and Wpad % 8 == 0, so the per-row
    # stores are sublane-aligned and the spare zero columns at the end of each
    # row double as the left/right 'same' padding for the flat-offset taps.
    slab_ref[...] = jnp.zeros_like(slab_ref)
    for y in range(H):
        slab_ref[(y + 2) * Wpad:(y + 2) * Wpad + W, :] = h[y * W:(y + 1) * W, :]

    # 9 taps = contiguous flat slices of the slab.  Group the 3 taps of each
    # kernel row so the f32 accumulator is read-modify-written only 3 times.
    L = H * Wpad
    for dy in range(3):
        part = None
        for dx in range(3):
            off = (dy + 1) * Wpad + dx - 1
            tap = jnp.dot(slab_ref[off:off + L, :], w3_ref[3 * dy + dx],
                          preferred_element_type=jnp.float32)
            part = tap if part is None else part + tap
        if dy == 0:
            acc_ref[...] = part
        else:
            acc_ref[...] += part

    y = _silu(acc_ref[...] + b3_ref[...])                          # (H*Wpad, Cout)
    y = y.reshape(H, Wpad, Cout)[:, :W, :].reshape(H * W, Cout)    # drop wrap cols
    if add:                                                        # shortcut
        y = y + x.astype(jnp.float32)
    o_ref[0] = y.astype(o_ref.dtype)


# ----------------------------------------------------------------------------
# Tiling helper
# ----------------------------------------------------------------------------
def _pick_tile_m(M, bytes_per_row, vmem_budget=8 * 1024 * 1024, max_rows=32768):
    """Largest multiple-of-16 divisor of M whose double-buffered in+out tiles
    stay under `vmem_budget` (safe for v7x's 64 MiB VMEM and v5e's default
    scoped limit), preferring an even number of grid steps (v7x megacore) and
    >= 2 steps so the BlockSpec DMA pipeline actually overlaps."""
    cap = max(16, vmem_budget // max(1, 2 * bytes_per_row))
    target = min(M, max_rows, cap)
    if M >= 32:
        target = min(target, M // 2)

    def _best(step_ok):
        t = (target // 16) * 16
        while t >= 16:
            if M % t == 0 and step_ok(M // t):
                return t
            t -= 16
        return None

    tm = _best(lambda s: s % 2 == 0) or _best(lambda s: True)
    return tm if tm is not None else M      # fallback: single block


# ----------------------------------------------------------------------------
# pallas_call wrappers
# ----------------------------------------------------------------------------
def conv1x1_pair(x2, p1, p2):
    """(y1, y2) = SiLU(x2 @ w1 + b1), SiLU(x2 @ w2 + b2) with ONE read of x2."""
    M, Cin = x2.shape
    Co1 = p1["w"].shape[1]
    Co2 = p2["w"].shape[1]
    TM = _pick_tile_m(M, 4 * (Cin + Co1 + Co2))
    return pl.pallas_call(
        _cv12_kernel,
        out_shape=(jax.ShapeDtypeStruct((M, Co1), x2.dtype),
                   jax.ShapeDtypeStruct((M, Co2), x2.dtype)),
        grid=(M // TM,),
        in_specs=[
            pl.BlockSpec((TM, Cin), lambda i: (i, 0)),
            pl.BlockSpec((Cin, Co1), lambda i: (0, 0)),
            pl.BlockSpec((1, Co1), lambda i: (0, 0)),
            pl.BlockSpec((Cin, Co2), lambda i: (0, 0)),
            pl.BlockSpec((1, Co2), lambda i: (0, 0)),
        ],
        out_specs=(pl.BlockSpec((TM, Co1), lambda i: (i, 0)),
                   pl.BlockSpec((TM, Co2), lambda i: (i, 0))),
        compiler_params=pltpu.CompilerParams(
            dimension_semantics=("parallel",)),
    )(x2, p1["w"], p1["bias"].reshape(1, Co1),
      p2["w"], p2["bias"].reshape(1, Co2))


def conv1x1_concat(a2, b2, wa, wb, bias):
    """SiLU(cat([a2, b2], -1) @ [[wa],[wb]] + bias), concat never materialized."""
    M, Ca = a2.shape
    Cb = b2.shape[1]
    Cout = wa.shape[1]
    TM = _pick_tile_m(M, 4 * (Ca + Cb + Cout))
    return pl.pallas_call(
        _cv3_kernel,
        out_shape=jax.ShapeDtypeStruct((M, Cout), a2.dtype),
        grid=(M // TM,),
        in_specs=[
            pl.BlockSpec((TM, Ca), lambda i: (i, 0)),
            pl.BlockSpec((TM, Cb), lambda i: (i, 0)),
            pl.BlockSpec((Ca, Cout), lambda i: (0, 0)),
            pl.BlockSpec((Cb, Cout), lambda i: (0, 0)),
            pl.BlockSpec((1, Cout), lambda i: (0, 0)),
        ],
        out_specs=pl.BlockSpec((TM, Cout), lambda i: (i, 0)),
        compiler_params=pltpu.CompilerParams(
            dimension_semantics=("parallel",)),
    )(a2, b2, wa, wb, bias.reshape(1, Cout))


def bottleneck_block(x3, bp, H, W, shortcut=True):
    """Fused Bottleneck(c_, c_, shortcut, k=((1,1),(3,3)), e=1.0) on (N, H*W, C)."""
    N, HW, Cin = x3.shape
    Cmid = bp["cv1"]["w"].shape[1]
    Cout = bp["cv2"]["w"].shape[-1]
    if shortcut:
        assert Cin == Cout
    Wpad = ((W + 2 + 7) // 8) * 8            # row pitch: >= W+2 and 8-aligned
    slab_rows = (H + 4) * Wpad
    kernel = functools.partial(_bottleneck_kernel, H=H, W=W, Wpad=Wpad,
                               add=shortcut)
    return pl.pallas_call(
        kernel,
        out_shape=jax.ShapeDtypeStruct((N, HW, Cout), x3.dtype),
        grid=(N,),
        in_specs=[
            pl.BlockSpec((1, HW, Cin), lambda n: (n, 0, 0)),
            pl.BlockSpec((Cin, Cmid), lambda n: (0, 0)),
            pl.BlockSpec((1, Cmid), lambda n: (0, 0)),
            pl.BlockSpec((9, Cmid, Cout), lambda n: (0, 0, 0)),
            pl.BlockSpec((1, Cout), lambda n: (0, 0)),
        ],
        out_specs=pl.BlockSpec((1, HW, Cout), lambda n: (n, 0, 0)),
        scratch_shapes=[pltpu.VMEM((slab_rows, Cmid), jnp.float32),
                        pltpu.VMEM((H * Wpad, Cout), jnp.float32)],
        compiler_params=pltpu.CompilerParams(
            dimension_semantics=("parallel",)),
    )(x3, bp["cv1"]["w"], bp["cv1"]["bias"].reshape(1, Cmid),
      bp["cv2"]["w"], bp["cv2"]["bias"].reshape(1, Cout))


# ----------------------------------------------------------------------------
# Deterministic parameter construction (Conv2d weight + folded BatchNorm)
# ----------------------------------------------------------------------------
def make_conv_params(key, cin, cout, k):
    k1, k2, k3, k4, k5 = jax.random.split(key, 5)
    # PyTorch Conv2d weight layout: (Cout, Cin, kH, kW), bias=False.
    w = jax.random.normal(k1, (cout, cin, k, k), jnp.float32)
    w = w / jnp.sqrt(float(cin * k * k))
    # BatchNorm2d (inference): fold gamma/beta/mean/var into scale & bias,
    # then fold the scale straight into the conv weight.
    gamma = 1.0 + 0.1 * jax.random.normal(k2, (cout,), jnp.float32)
    beta = 0.1 * jax.random.normal(k3, (cout,), jnp.float32)
    mean = 0.1 * jax.random.normal(k4, (cout,), jnp.float32)
    var = 1.0 + 0.1 * jnp.abs(jax.random.normal(k5, (cout,), jnp.float32))
    eps = 1e-5
    scale = gamma / jnp.sqrt(var + eps)
    bias = beta - mean * scale
    if k == 1:
        w_k = jnp.transpose(w[:, :, 0, 0], (1, 0)) * scale[None, :]      # (Cin, Cout)
    else:
        # (kH, kW, Cin, Cout) -> (k*k, Cin, Cout), row-major over (dy, dx)
        w_k = jnp.transpose(w, (2, 3, 1, 0)).reshape(k * k, cin, cout)
        w_k = w_k * scale[None, None, :]
    return dict(w=w_k, bias=bias)


def make_c3_params(key, c1, c2, n=1, e=0.5):
    c_ = int(c2 * e)
    keys = jax.random.split(key, 3 + 2 * n)
    cv1 = make_conv_params(keys[0], c1, c_, 1)
    cv2 = make_conv_params(keys[1], c1, c_, 1)
    cv3 = make_conv_params(keys[2], 2 * c_, c2, 1)
    params = {
        "c_": c_,
        "cv1": cv1,
        "cv2": cv2,
        # cv3 split into the half acting on the bottleneck branch and on y2.
        "cv3": dict(wa=cv3["w"][:c_, :], wb=cv3["w"][c_:, :], bias=cv3["bias"]),
        "m": [],
    }
    for i in range(n):
        # Bottleneck(c_, c_, shortcut, g=1, k=((1,1),(3,3)), e=1.0)
        params["m"].append({
            "cv1": make_conv_params(keys[3 + 2 * i], c_, c_, 1),
            "cv2": make_conv_params(keys[4 + 2 * i], c_, c_, 3),
        })
    return params


# ----------------------------------------------------------------------------
# C3 forward (NCHW in / NCHW out, matching PyTorch)
# ----------------------------------------------------------------------------
def c3_forward(x_nchw, params, shortcut=True):
    x = jnp.transpose(x_nchw, (0, 2, 3, 1))            # NCHW -> NHWC
    N, H, W, C1 = x.shape
    M = N * H * W
    c_ = params["c_"]

    # cv1 & cv2 from one read of x; two separate lane-dense outputs.
    y1, y2 = conv1x1_pair(x.reshape(M, C1), params["cv1"], params["cv2"])

    # Bottleneck chain on the cv1 branch (each block fully fused in VMEM).
    b = y1.reshape(N, H * W, c_)
    for bp in params["m"]:
        b = bottleneck_block(b, bp, H=H, W=W, shortcut=shortcut)

    # cv3 over the (never materialized) channel concat [m(cv1(x)) | cv2(x)].
    p3 = params["cv3"]
    out2 = conv1x1_concat(b.reshape(M, c_), y2, p3["wa"], p3["wb"], p3["bias"])
    C2 = p3["wa"].shape[1]
    return jnp.transpose(out2.reshape(N, H, W, C2), (0, 3, 1, 2))  # -> NCHW


# ----------------------------------------------------------------------------
# Pure-JAX reference (same folded parameters) for a correctness check
# ----------------------------------------------------------------------------
def _ref_conv1x1(x, w, bias):
    y = jnp.einsum("nhwc,cd->nhwd", x, w,
                   precision=jax.lax.Precision.HIGHEST) + bias
    return jax.nn.silu(y)


def _ref_conv3x3(x, w9, bias):
    k = w9.reshape(3, 3, w9.shape[1], w9.shape[2])      # HWIO
    y = jax.lax.conv_general_dilated(
        x, k, window_strides=(1, 1), padding="SAME",
        dimension_numbers=("NHWC", "HWIO", "NHWC"),
        precision=jax.lax.Precision.HIGHEST) + bias
    return jax.nn.silu(y)


def c3_reference(x_nchw, params, shortcut=True):
    x = jnp.transpose(x_nchw, (0, 2, 3, 1))
    y1 = _ref_conv1x1(x, params["cv1"]["w"], params["cv1"]["bias"])
    y2 = _ref_conv1x1(x, params["cv2"]["w"], params["cv2"]["bias"])
    b = y1
    for bp in params["m"]:
        h = _ref_conv1x1(b, bp["cv1"]["w"], bp["cv1"]["bias"])
        c = _ref_conv3x3(h, bp["cv2"]["w"], bp["cv2"]["bias"])
        b = b + c if shortcut else c
    w3 = jnp.concatenate([params["cv3"]["wa"], params["cv3"]["wb"]], axis=0)
    out = _ref_conv1x1(jnp.concatenate([b, y2], axis=-1), w3,
                       params["cv3"]["bias"])
    return jnp.transpose(out, (0, 3, 1, 2))


if __name__ == "__main__":
    key = jax.random.PRNGKey(0)
    kx, kp = jax.random.split(key)

    N, C1, H, W = 2, 8, 16, 16
    C2 = 8
    x = jax.random.normal(kx, (N, C1, H, W), jnp.float32)
    params = make_c3_params(kp, C1, C2, n=1, e=0.5)

    out = jax.jit(lambda v: c3_forward(v, params))(x)
    out = jax.block_until_ready(out)
    assert out.shape == (N, C2, H, W), out.shape
    assert bool(jnp.all(jnp.isfinite(out)))

    ref = jax.block_until_ready(jax.jit(lambda v: c3_reference(v, params))(x))
    err = float(jnp.max(jnp.abs(out - ref)))
    assert err < 5e-2, f"mismatch vs reference: max abs err {err}"
    print("KERNEL_OK")
</pallas_src>

<mosaic_0001>
module attributes {stable_mosaic.version = 11 : i64} {
  func.func @_cv12_kernel(%arg0: i32, %arg1: memref<256x8xf32, #tpu.memory_space<vmem>>, %arg2: memref<8x4xf32, #tpu.memory_space<vmem>>, %arg3: memref<1x4xf32, #tpu.memory_space<vmem>>, %arg4: memref<8x4xf32, #tpu.memory_space<vmem>>, %arg5: memref<1x4xf32, #tpu.memory_space<vmem>>, %arg6: memref<256x4xf32, #tpu.memory_space<vmem>>, %arg7: memref<256x4xf32, #tpu.memory_space<vmem>>) attributes {dimension_semantics = [#tpu.dimension_semantics<parallel>], iteration_bounds = array<i64: 2>, scalar_prefetch = 0 : i64, scratch_operands = 0 : i64, tpu.core_type = #tpu.core_type<tc>, window_params = [{transform_indices = @transform_0, window_bounds = array<i64: 256, 8>}, {pipeline_mode = #tpu.pipeline_mode<synchronous>, transform_indices = @transform_1, window_bounds = array<i64: 8, 4>}, {pipeline_mode = #tpu.pipeline_mode<synchronous>, transform_indices = @transform_2, window_bounds = array<i64: 1, 4>}, {pipeline_mode = #tpu.pipeline_mode<synchronous>, transform_indices = @transform_3, window_bounds = array<i64: 8, 4>}, {pipeline_mode = #tpu.pipeline_mode<synchronous>, transform_indices = @transform_4, window_bounds = array<i64: 1, 4>}, {transform_indices = @transform_5, window_bounds = array<i64: 256, 4>}, {transform_indices = @transform_6, window_bounds = array<i64: 256, 4>}]} {
    %c0 = arith.constant 0 : index
    %c0_0 = arith.constant 0 : index
    %0 = vector.load %arg1[%c0, %c0_0] : memref<256x8xf32, #tpu.memory_space<vmem>>, vector<256x8xf32>
    %c0_1 = arith.constant 0 : index
    %c0_2 = arith.constant 0 : index
    %1 = vector.load %arg2[%c0_1, %c0_2] : memref<8x4xf32, #tpu.memory_space<vmem>>, vector<8x4xf32>
    %cst = arith.constant dense<0.000000e+00> : vector<256x4xf32>
    %2 = tpu.matmul %0, %1, %cst {dimension_numbers = #tpu.dot_dimension_numbers<[1], [0], [0], [1], [0, 0, 1, 1], [], []>} : vector<256x8xf32>, vector<8x4xf32>, vector<256x4xf32> -> vector<256x4xf32>
    %c0_3 = arith.constant 0 : index
    %c0_4 = arith.constant 0 : index
    %3 = vector.load %arg3[%c0_3, %c0_4] : memref<1x4xf32, #tpu.memory_space<vmem>>, vector<1x4xf32>
    %4 = vector.broadcast %3 : vector<1x4xf32> to vector<256x4xf32>
    %5 = arith.addf %2, %4 : vector<256x4xf32>
    %6 = arith.negf %5 : vector<256x4xf32>
    %7 = math.exp %6 : vector<256x4xf32>
    %cst_5 = arith.constant 1.000000e+00 : f32
    %8 = vector.broadcast %cst_5 : f32 to vector<256x4xf32>
    %9 = arith.addf %8, %7 : vector<256x4xf32>
    %10 = arith.divf %8, %9 : vector<256x4xf32>
    %11 = arith.mulf %5, %10 : vector<256x4xf32>
    %c0_6 = arith.constant 0 : index
    %c0_7 = arith.constant 0 : index
    %12 = vector.load %arg6[%c0_6, %c0_7] : memref<256x4xf32, #tpu.memory_space<vmem>>, vector<256x4xf32>
    tpu.vector_store %arg6[%c0_6, %c0_7], %11 {strides = array<i32>} : memref<256x4xf32, #tpu.memory_space<vmem>>, vector<256x4xf32>,
    %c0_8 = arith.constant 0 : index
    %c0_9 = arith.constant 0 : index
    %13 = vector.load %arg4[%c0_8, %c0_9] : memref<8x4xf32, #tpu.memory_space<vmem>>, vector<8x4xf32>
    %cst_10 = arith.constant dense<0.000000e+00> : vector<256x4xf32>
    %14 = tpu.matmul %0, %13, %cst_10 {dimension_numbers = #tpu.dot_dimension_numbers<[1], [0], [0], [1], [0, 0, 1, 1], [], []>} : vector<256x8xf32>, vector<8x4xf32>, vector<256x4xf32> -> vector<256x4xf32>
    %c0_11 = arith.constant 0 : index
    %c0_12 = arith.constant 0 : index
    %15 = vector.load %arg5[%c0_11, %c0_12] : memref<1x4xf32, #tpu.memory_space<vmem>>, vector<1x4xf32>
    %16 = vector.broadcast %15 : vector<1x4xf32> to vector<256x4xf32>
    %17 = arith.addf %14, %16 : vector<256x4xf32>
    %18 = arith.negf %17 : vector<256x4xf32>
    %19 = math.exp %18 : vector<256x4xf32>
    %cst_13 = arith.constant 1.000000e+00 : f32
    %20 = vector.broadcast %cst_13 : f32 to vector<256x4xf32>
    %21 = arith.addf %20, %19 : vector<256x4xf32>
    %22 = arith.divf %20, %21 : vector<256x4xf32>
    %23 = arith.mulf %17, %22 : vector<256x4xf32>
    %c0_14 = arith.constant 0 : index
    %c0_15 = arith.constant 0 : index
    %24 = vector.load %arg7[%c0_14, %c0_15] : memref<256x4xf32, #tpu.memory_space<vmem>>, vector<256x4xf32>
    tpu.vector_store %arg7[%c0_14, %c0_15], %23 {strides = array<i32>} : memref<256x4xf32, #tpu.memory_space<vmem>>, vector<256x4xf32>,
    return
  }
  func.func @transform_0(%arg0: i32) -> (i32, i32) {
    %c0_i32 = arith.constant 0 : i32
    %c0_i32_0 = arith.constant 0 : i32
    return %arg0, %c0_i32 : i32, i32
  }
  func.func @transform_1(%arg0: i32) -> (i32, i32) {
    %c0_i32 = arith.constant 0 : i32
    %c0_i32_0 = arith.constant 0 : i32
    %c0_i32_1 = arith.constant 0 : i32
    return %c0_i32, %c0_i32_0 : i32, i32
  }
  func.func @transform_2(%arg0: i32) -> (i32, i32) {
    %c0_i32 = arith.constant 0 : i32
    %c0_i32_0 = arith.constant 0 : i32
    %c0_i32_1 = arith.constant 0 : i32
    return %c0_i32, %c0_i32_0 : i32, i32
  }
  func.func @transform_3(%arg0: i32) -> (i32, i32) {
    %c0_i32 = arith.constant 0 : i32
    %c0_i32_0 = arith.constant 0 : i32
    %c0_i32_1 = arith.constant 0 : i32
    return %c0_i32, %c0_i32_0 : i32, i32
  }
  func.func @transform_4(%arg0: i32) -> (i32, i32) {
    %c0_i32 = arith.constant 0 : i32
    %c0_i32_0 = arith.constant 0 : i32
    %c0_i32_1 = arith.constant 0 : i32
    return %c0_i32, %c0_i32_0 : i32, i32
  }
  func.func @transform_5(%arg0: i32) -> (i32, i32) {
    %c0_i32 = arith.constant 0 : i32
    %c0_i32_0 = arith.constant 0 : i32
    return %arg0, %c0_i32 : i32, i32
  }
  func.func @transform_6(%arg0: i32) -> (i32, i32) {
    %c0_i32 = arith.constant 0 : i32
    %c0_i32_0 = arith.constant 0 : i32
    return %arg0, %c0_i32 : i32, i32
  }
}

module attributes {stable_mosaic.version = 11 : i64} {
  func.func @_cv3_kernel(%arg0: i32, %arg1: memref<256x4xf32, #tpu.memory_space<vmem>>, %arg2: memref<256x4xf32, #tpu.memory_space<vmem>>, %arg3: memref<4x8xf32, #tpu.memory_space<vmem>>, %arg4: memref<4x8xf32, #tpu.memory_space<vmem>>, %arg5: memref<1x8xf32, #tpu.memory_space<vmem>>, %arg6: memref<256x8xf32, #tpu.memory_space<vmem>>) attributes {dimension_semantics = [#tpu.dimension_semantics<parallel>], iteration_bounds = array<i64: 2>, scalar_prefetch = 0 : i64, scratch_operands = 0 : i64, tpu.core_type = #tpu.core_type<tc>, window_params = [{transform_indices = @transform_0, window_bounds = array<i64: 256, 4>}, {transform_indices = @transform_1, window_bounds = array<i64: 256, 4>}, {pipeline_mode = #tpu.pipeline_mode<synchronous>, transform_indices = @transform_2, window_bounds = array<i64: 4, 8>}, {pipeline_mode = #tpu.pipeline_mode<synchronous>, transform_indices = @transform_3, window_bounds = array<i64: 4, 8>}, {pipeline_mode = #tpu.pipeline_mode<synchronous>, transform_indices = @transform_4, window_bounds = array<i64: 1, 8>}, {transform_indices = @transform_5, window_bounds = array<i64: 256, 8>}]} {
    %c0 = arith.constant 0 : index
    %c0_0 = arith.constant 0 : index
    %0 = vector.load %arg1[%c0, %c0_0] : memref<256x4xf32, #tpu.memory_space<vmem>>, vector<256x4xf32>
    %c0_1 = arith.constant 0 : index
    %c0_2 = arith.constant 0 : index
    %1 = vector.load %arg3[%c0_1, %c0_2] : memref<4x8xf32, #tpu.memory_space<vmem>>, vector<4x8xf32>
    %cst = arith.constant dense<0.000000e+00> : vector<256x8xf32>
    %2 = tpu.matmul %0, %1, %cst {dimension_numbers = #tpu.dot_dimension_numbers<[1], [0], [0], [1], [0, 0, 1, 1], [], []>} : vector<256x4xf32>, vector<4x8xf32>, vector<256x8xf32> -> vector<256x8xf32>
    %c0_3 = arith.constant 0 : index
    %c0_4 = arith.constant 0 : index
    %3 = vector.load %arg2[%c0_3, %c0_4] : memref<256x4xf32, #tpu.memory_space<vmem>>, vector<256x4xf32>
    %c0_5 = arith.constant 0 : index
    %c0_6 = arith.constant 0 : index
    %4 = vector.load %arg4[%c0_5, %c0_6] : memref<4x8xf32, #tpu.memory_space<vmem>>, vector<4x8xf32>
    %cst_7 = arith.constant dense<0.000000e+00> : vector<256x8xf32>
    %5 = tpu.matmul %3, %4, %cst_7 {dimension_numbers = #tpu.dot_dimension_numbers<[1], [0], [0], [1], [0, 0, 1, 1], [], []>} : vector<256x4xf32>, vector<4x8xf32>, vector<256x8xf32> -> vector<256x8xf32>
    %6 = arith.addf %2, %5 : vector<256x8xf32>
    %c0_8 = arith.constant 0 : index
    %c0_9 = arith.constant 0 : index
    %7 = vector.load %arg5[%c0_8, %c0_9] : memref<1x8xf32, #tpu.memory_space<vmem>>, vector<1x8xf32>
    %8 = vector.broadcast %7 : vector<1x8xf32> to vector<256x8xf32>
    %9 = arith.addf %6, %8 : vector<256x8xf32>
    %10 = arith.negf %9 : vector<256x8xf32>
    %11 = math.exp %10 : vector<256x8xf32>
    %cst_10 = arith.constant 1.000000e+00 : f32
    %12 = vector.broadcast %cst_10 : f32 to vector<256x8xf32>
    %13 = arith.addf %12, %11 : vector<256x8xf32>
    %14 = arith.divf %12, %13 : vector<256x8xf32>
    %15 = arith.mulf %9, %14 : vector<256x8xf32>
    %c0_11 = arith.constant 0 : index
    %c0_12 = arith.constant 0 : index
    %16 = vector.load %arg6[%c0_11, %c0_12] : memref<256x8xf32, #tpu.memory_space<vmem>>, vector<256x8xf32>
    tpu.vector_store %arg6[%c0_11, %c0_12], %15 {strides = array<i32>} : memref<256x8xf32, #tpu.memory_space<vmem>>, vector<256x8xf32>,
    return
  }
  func.func @transform_0(%arg0: i32) -> (i32, i32) {
    %c0_i32 = arith.constant 0 : i32
    %c0_i32_0 = arith.constant 0 : i32
    return %arg0, %c0_i32 : i32, i32
  }
  func.func @transform_1(%arg0: i32) -> (i32, i32) {
    %c0_i32 = arith.constant 0 : i32
    %c0_i32_0 = arith.constant 0 : i32
    return %arg0, %c0_i32 : i32, i32
  }
  func.func @transform_2(%arg0: i32) -> (i32, i32) {
    %c0_i32 = arith.constant 0 : i32
    %c0_i32_0 = arith.constant 0 : i32
    %c0_i32_1 = arith.constant 0 : i32
    return %c0_i32, %c0_i32_0 : i32, i32
  }
  func.func @transform_3(%arg0: i32) -> (i32, i32) {
    %c0_i32 = arith.constant 0 : i32
    %c0_i32_0 = arith.constant 0 : i32
    %c0_i32_1 = arith.constant 0 : i32
    return %c0_i32, %c0_i32_0 : i32, i32
  }
  func.func @transform_4(%arg0: i32) -> (i32, i32) {
    %c0_i32 = arith.constant 0 : i32
    %c0_i32_0 = arith.constant 0 : i32
    %c0_i32_1 = arith.constant 0 : i32
    return %c0_i32, %c0_i32_0 : i32, i32
  }
  func.func @transform_5(%arg0: i32) -> (i32, i32) {
    %c0_i32 = arith.constant 0 : i32
    %c0_i32_0 = arith.constant 0 : i32
    return %arg0, %c0_i32 : i32, i32
  }
}

module attributes {stable_mosaic.version = 11 : i64} {
  func.func @_bottleneck_kernel(%arg0: i32, %arg1: memref<1x256x4xf32, #tpu.memory_space<vmem>>, %arg2: memref<4x4xf32, #tpu.memory_space<vmem>>, %arg3: memref<1x4xf32, #tpu.memory_space<vmem>>, %arg4: memref<9x4x4xf32, #tpu.memory_space<vmem>>, %arg5: memref<1x4xf32, #tpu.memory_space<vmem>>, %arg6: memref<1x256x4xf32, #tpu.memory_space<vmem>>, %arg7: memref<480x4xf32, #tpu.memory_space<vmem>>, %arg8: memref<384x4xf32, #tpu.memory_space<vmem>>) attributes {dimension_semantics = [#tpu.dimension_semantics<parallel>], iteration_bounds = array<i64: 2>, scalar_prefetch = 0 : i64, scratch_operands = 2 : i64, tpu.core_type = #tpu.core_type<tc>, window_params = [{transform_indices = @transform_0, window_bounds = array<i64: 1, 256, 4>}, {pipeline_mode = #tpu.pipeline_mode<synchronous>, transform_indices = @transform_1, window_bounds = array<i64: 4, 4>}, {pipeline_mode = #tpu.pipeline_mode<synchronous>, transform_indices = @transform_2, window_bounds = array<i64: 1, 4>}, {pipeline_mode = #tpu.pipeline_mode<synchronous>, transform_indices = @transform_3, window_bounds = array<i64: 9, 4, 4>}, {pipeline_mode = #tpu.pipeline_mode<synchronous>, transform_indices = @transform_4, window_bounds = array<i64: 1, 4>}, {transform_indices = @transform_5, window_bounds = array<i64: 1, 256, 4>}]} {
    %c0 = arith.constant 0 : index
    %c0_0 = arith.constant 0 : index
    %c0_1 = arith.constant 0 : index
    %0 = vector.load %arg1[%c0, %c0_0, %c0_1] : memref<1x256x4xf32, #tpu.memory_space<vmem>>, vector<1x256x4xf32>
    %1 = vector.shape_cast %0 : vector<1x256x4xf32> to vector<256x4xf32>
    %c0_2 = arith.constant 0 : index
    %c0_3 = arith.constant 0 : index
    %2 = vector.load %arg2[%c0_2, %c0_3] : memref<4x4xf32, #tpu.memory_space<vmem>>, vector<4x4xf32>
    %cst = arith.constant dense<0.000000e+00> : vector<256x4xf32>
    %3 = tpu.matmul %1, %2, %cst {dimension_numbers = #tpu.dot_dimension_numbers<[1], [0], [0], [1], [0, 0, 1, 1], [], []>} : vector<256x4xf32>, vector<4x4xf32>, vector<256x4xf32> -> vector<256x4xf32>
    %c0_4 = arith.constant 0 : index
    %c0_5 = arith.constant 0 : index
    %4 = vector.load %arg3[%c0_4, %c0_5] : memref<1x4xf32, #tpu.memory_space<vmem>>, vector<1x4xf32>
    %5 = vector.broadcast %4 : vector<1x4xf32> to vector<256x4xf32>
    %6 = arith.addf %3, %5 : vector<256x4xf32>
    %7 = arith.negf %6 : vector<256x4xf32>
    %8 = math.exp %7 : vector<256x4xf32>
    %cst_6 = arith.constant 1.000000e+00 : f32
    %9 = vector.broadcast %cst_6 : f32 to vector<256x4xf32>
    %10 = arith.addf %9, %8 : vector<256x4xf32>
    %11 = arith.divf %9, %10 : vector<256x4xf32>
    %12 = arith.mulf %6, %11 : vector<256x4xf32>
    %cst_7 = arith.constant 0.000000e+00 : f32
    %13 = vector.broadcast %cst_7 : f32 to vector<480x4xf32>
    %c0_8 = arith.constant 0 : index
    %c0_9 = arith.constant 0 : index
    %14 = vector.load %arg7[%c0_8, %c0_9] : memref<480x4xf32, #tpu.memory_space<vmem>>, vector<480x4xf32>
    tpu.vector_store %arg7[%c0_8, %c0_9], %13 {strides = array<i32>} : memref<480x4xf32, #tpu.memory_space<vmem>>, vector<480x4xf32>,
    %15 = vector.extract_strided_slice %12 {offsets = [0, 0], sizes = [16, 4], strides = [1, 1]} : vector<256x4xf32> to vector<16x4xf32>
    %c48 = arith.constant 48 : index
    %c0_10 = arith.constant 0 : index
    %16 = vector.load %arg7[%c48, %c0_10] : memref<480x4xf32, #tpu.memory_space<vmem>>, vector<16x4xf32>
    tpu.vector_store %arg7[%c48, %c0_10], %15 {strides = array<i32>} : memref<480x4xf32, #tpu.memory_space<vmem>>, vector<16x4xf32>,
    %17 = vector.extract_strided_slice %12 {offsets = [16, 0], sizes = [16, 4], strides = [1, 1]} : vector<256x4xf32> to vector<16x4xf32>
    %c72 = arith.constant 72 : index
    %c0_11 = arith.constant 0 : index
    %18 = vector.load %arg7[%c72, %c0_11] : memref<480x4xf32, #tpu.memory_space<vmem>>, vector<16x4xf32>
    tpu.vector_store %arg7[%c72, %c0_11], %17 {strides = array<i32>} : memref<480x4xf32, #tpu.memory_space<vmem>>, vector<16x4xf32>,
    %19 = vector.extract_strided_slice %12 {offsets = [32, 0], sizes = [16, 4], strides = [1, 1]} : vector<256x4xf32> to vector<16x4xf32>
    %c96 = arith.constant 96 : index
    %c0_12 = arith.constant 0 : index
    %20 = vector.load %arg7[%c96, %c0_12] : memref<480x4xf32, #tpu.memory_space<vmem>>, vector<16x4xf32>
    tpu.vector_store %arg7[%c96, %c0_12], %19 {strides = array<i32>} : memref<480x4xf32, #tpu.memory_space<vmem>>, vector<16x4xf32>,
    %21 = vector.extract_strided_slice %12 {offsets = [48, 0], sizes = [16, 4], strides = [1, 1]} : vector<256x4xf32> to vector<16x4xf32>
    %c120 = arith.constant 120 : index
    %c0_13 = arith.constant 0 : index
    %22 = vector.load %arg7[%c120, %c0_13] : memref<480x4xf32, #tpu.memory_space<vmem>>, vector<16x4xf32>
    tpu.vector_store %arg7[%c120, %c0_13], %21 {strides = array<i32>} : memref<480x4xf32, #tpu.memory_space<vmem>>, vector<16x4xf32>,
    %23 = vector.extract_strided_slice %12 {offsets = [64, 0], sizes = [16, 4], strides = [1, 1]} : vector<256x4xf32> to vector<16x4xf32>
    %c144 = arith.constant 144 : index
    %c0_14 = arith.constant 0 : index
    %24 = vector.load %arg7[%c144, %c0_14] : memref<480x4xf32, #tpu.memory_space<vmem>>, vector<16x4xf32>
    tpu.vector_store %arg7[%c144, %c0_14], %23 {strides = array<i32>} : memref<480x4xf32, #tpu.memory_space<vmem>>, vector<16x4xf32>,
    %25 = vector.extract_strided_slice %12 {offsets = [80, 0], sizes = [16, 4], strides = [1, 1]} : vector<256x4xf32> to vector<16x4xf32>
    %c168 = arith.constant 168 : index
    %c0_15 = arith.constant 0 : index
    %26 = vector.load %arg7[%c168, %c0_15] : memref<480x4xf32, #tpu.memory_space<vmem>>, vector<16x4xf32>
    tpu.vector_store %arg7[%c168, %c0_15], %25 {strides = array<i32>} : memref<480x4xf32, #tpu.memory_space<vmem>>, vector<16x4xf32>,
    %27 = vector.extract_strided_slice %12 {offsets = [96, 0], sizes = [16, 4], strides = [1, 1]} : vector<256x4xf32> to vector<16x4xf32>
    %c192 = arith.constant 192 : index
    %c0_16 = arith.constant 0 : index
    %28 = vector.load %arg7[%c192, %c0_16] : memref<480x4xf32, #tpu.memory_space<vmem>>, vector<16x4xf32>
    tpu.vector_store %arg7[%c192, %c0_16], %27 {strides = array<i32>} : memref<480x4xf32, #tpu.memory_space<vmem>>, vector<16x4xf32>,
    %29 = vector.extract_strided_slice %12 {offsets = [112, 0], sizes = [16, 4], strides = [1, 1]} : vector<256x4xf32> to vector<16x4xf32>
    %c216 = arith.constant 216 : index
    %c0_17 = arith.constant 0 : index
    %30 = vector.load %arg7[%c216, %c0_17] : memref<480x4xf32, #tpu.memory_space<vmem>>, vector<16x4xf32>
    tpu.vector_store %arg7[%c216, %c0_17], %29 {strides = array<i32>} : memref<480x4xf32, #tpu.memory_space<vmem>>, vector<16x4xf32>,
    %31 = vector.extract_strided_slice %12 {offsets = [128, 0], sizes = [16, 4], strides = [1, 1]} : vector<256x4xf32> to vector<16x4xf32>
    %c240 = arith.constant 240 : index
    %c0_18 = arith.constant 0 : index
    %32 = vector.load %arg7[%c240, %c0_18] : memref<480x4xf32, #tpu.memory_space<vmem>>, vector<16x4xf32>
    tpu.vector_store %arg7[%c240, %c0_18], %31 {strides = array<i32>} : memref<480x4xf32, #tpu.memory_space<vmem>>, vector<16x4xf32>,
    %33 = vector.extract_strided_slice %12 {offsets = [144, 0], sizes = [16, 4], strides = [1, 1]} : vector<256x4xf32> to vector<16x4xf32>
    %c264 = arith.constant 264 : index
    %c0_19 = arith.constant 0 : index
    %34 = vector.load %arg7[%c264, %c0_19] : memref<480x4xf32, #tpu.memory_space<vmem>>, vector<16x4xf32>
    tpu.vector_store %arg7[%c264, %c0_19], %33 {strides = array<i32>} : memref<480x4xf32, #tpu.memory_space<vmem>>, vector<16x4xf32>,
    %35 = vector.extract_strided_slice %12 {offsets = [160, 0], sizes = [16, 4], strides = [1, 1]} : vector<256x4xf32> to vector<16x4xf32>
    %c288 = arith.constant 288 : index
    %c0_20 = arith.constant 0 : index
    %36 = vector.load %arg7[%c288, %c0_20] : memref<480x4xf32, #tpu.memory_space<vmem>>, vector<16x4xf32>
    tpu.vector_store %arg7[%c288, %c0_20], %35 {strides = array<i32>} : memref<480x4xf32, #tpu.memory_space<vmem>>, vector<16x4xf32>,
    %37 = vector.extract_strided_slice %12 {offsets = [176, 0], sizes = [16, 4], strides = [1, 1]} : vector<256x4xf32> to vector<16x4xf32>
    %c312 = arith.constant 312 : index
    %c0_21 = arith.constant 0 : index
    %38 = vector.load %arg7[%c312, %c0_21] : memref<480x4xf32, #tpu.memory_space<vmem>>, vector<16x4xf32>
    tpu.vector_store %arg7[%c312, %c0_21], %37 {strides = array<i32>} : memref<480x4xf32, #tpu.memory_space<vmem>>, vector<16x4xf32>,
    %39 = vector.extract_strided_slice %12 {offsets = [192, 0], sizes = [16, 4], strides = [1, 1]} : vector<256x4xf32> to vector<16x4xf32>
    %c336 = arith.constant 336 : index
    %c0_22 = arith.constant 0 : index
    %40 = vector.load %arg7[%c336, %c0_22] : memref<480x4xf32, #tpu.memory_space<vmem>>, vector<16x4xf32>
    tpu.vector_store %arg7[%c336, %c0_22], %39 {strides = array<i32>} : memref<480x4xf32, #tpu.memory_space<vmem>>, vector<16x4xf32>,
    %41 = vector.extract_strided_slice %12 {offsets = [208, 0], sizes = [16, 4], strides = [1, 1]} : vector<256x4xf32> to vector<16x4xf32>
    %c360 = arith.constant 360 : index
    %c0_23 = arith.constant 0 : index
    %42 = vector.load %arg7[%c360, %c0_23] : memref<480x4xf32, #tpu.memory_space<vmem>>, vector<16x4xf32>
    tpu.vector_store %arg7[%c360, %c0_23], %41 {strides = array<i32>} : memref<480x4xf32, #tpu.memory_space<vmem>>, vector<16x4xf32>,
    %43 = vector.extract_strided_slice %12 {offsets = [224, 0], sizes = [16, 4], strides = [1, 1]} : vector<256x4xf32> to vector<16x4xf32>
    %c384 = arith.constant 384 : index
    %c0_24 = arith.constant 0 : index
    %44 = vector.load %arg7[%c384, %c0_24] : memref<480x4xf32, #tpu.memory_space<vmem>>, vector<16x4xf32>
    tpu.vector_store %arg7[%c384, %c0_24], %43 {strides = array<i32>} : memref<480x4xf32, #tpu.memory_space<vmem>>, vector<16x4xf32>,
    %45 = vector.extract_strided_slice %12 {offsets = [240, 0], sizes = [16, 4], strides = [1, 1]} : vector<256x4xf32> to vector<16x4xf32>
    %c408 = arith.constant 408 : index
    %c0_25 = arith.constant 0 : index
    %46 = vector.load %arg7[%c408, %c0_25] : memref<480x4xf32, #tpu.memory_space<vmem>>, vector<16x4xf32>
    tpu.vector_store %arg7[%c408, %c0_25], %45 {strides = array<i32>} : memref<480x4xf32, #tpu.memory_space<vmem>>, vector<16x4xf32>,
    %c23 = arith.constant 23 : index
    %c0_26 = arith.constant 0 : index
    %47 = vector.load %arg7[%c23, %c0_26] : memref<480x4xf32, #tpu.memory_space<vmem>>, vector<384x4xf32>
    %c0_27 = arith.constant 0 : index
    %c0_28 = arith.constant 0 : index
    %c0_29 = arith.constant 0 : index
    %48 = vector.load %arg4[%c0_27, %c0_28, %c0_29] : memref<9x4x4xf32, #tpu.memory_space<vmem>>, vector<1x4x4xf32>
    %49 = vector.shape_cast %48 : vector<1x4x4xf32> to vector<4x4xf32>
    %cst_30 = arith.constant dense<0.000000e+00> : vector<384x4xf32>
    %50 = tpu.matmul %47, %49, %cst_30 {dimension_numbers = #tpu.dot_dimension_numbers<[1], [0], [0], [1], [0, 0, 1, 1], [], []>} : vector<384x4xf32>, vector<4x4xf32>, vector<384x4xf32> -> vector<384x4xf32>
    %c24 = arith.constant 24 : index
    %c0_31 = arith.constant 0 : index
    %51 = vector.load %arg7[%c24, %c0_31] : memref<480x4xf32, #tpu.memory_space<vmem>>, vector<384x4xf32>
    %c1 = arith.constant 1 : index
    %c0_32 = arith.constant 0 : index
    %c0_33 = arith.constant 0 : index
    %52 = vector.load %arg4[%c1, %c0_32, %c0_33] : memref<9x4x4xf32, #tpu.memory_space<vmem>>, vector<1x4x4xf32>
    %53 = vector.shape_cast %52 : vector<1x4x4xf32> to vector<4x4xf32>
    %cst_34 = arith.constant dense<0.000000e+00> : vector<384x4xf32>
    %54 = tpu.matmul %51, %53, %cst_34 {dimension_numbers = #tpu.dot_dimension_numbers<[1], [0], [0], [1], [0, 0, 1, 1], [], []>} : vector<384x4xf32>, vector<4x4xf32>, vector<384x4xf32> -> vector<384x4xf32>
    %55 = arith.addf %50, %54 : vector<384x4xf32>
    %c25 = arith.constant 25 : index
    %c0_35 = arith.constant 0 : index
    %56 = vector.load %arg7[%c25, %c0_35] : memref<480x4xf32, #tpu.memory_space<vmem>>, vector<384x4xf32>
    %c2 = arith.constant 2 : index
    %c0_36 = arith.constant 0 : index
    %c0_37 = arith.constant 0 : index
    %57 = vector.load %arg4[%c2, %c0_36, %c0_37] : memref<9x4x4xf32, #tpu.memory_space<vmem>>, vector<1x4x4xf32>
    %58 = vector.shape_cast %57 : vector<1x4x4xf32> to vector<4x4xf32>
    %cst_38 = arith.constant dense<0.000000e+00> : vector<384x4xf32>
    %59 = tpu.matmul %56, %58, %cst_38 {dimension_numbers = #tpu.dot_dimension_numbers<[1], [0], [0], [1], [0, 0, 1, 1], [], []>} : vector<384x4xf32>, vector<4x4xf32>, vector<384x4xf32> -> vector<384x4xf32>
    %60 = arith.addf %55, %59 : vector<384x4xf32>
    %c0_39 = arith.constant 0 : index
    %c0_40 = arith.constant 0 : index
    %61 = vector.load %arg8[%c0_39, %c0_40] : memref<384x4xf32, #tpu.memory_space<vmem>>, vector<384x4xf32>
    tpu.vector_store %arg8[%c0_39, %c0_40], %60 {strides = array<i32>} : memref<384x4xf32, #tpu.memory_space<vmem>>, vector<384x4xf32>,
    %c47 = arith.constant 47 : index
    %c0_41 = arith.constant 0 : index
    %62 = vector.load %arg7[%c47, %c0_41] : memref<480x4xf32, #tpu.memory_space<vmem>>, vector<384x4xf32>
    %c3 = arith.constant 3 : index
    %c0_42 = arith.constant 0 : index
    %c0_43 = arith.constant 0 : index
    %63 = vector.load %arg4[%c3, %c0_42, %c0_43] : memref<9x4x4xf32, #tpu.memory_space<vmem>>, vector<1x4x4xf32>
    %64 = vector.shape_cast %63 : vector<1x4x4xf32> to vector<4x4xf32>
    %cst_44 = arith.constant dense<0.000000e+00> : vector<384x4xf32>
    %65 = tpu.matmul %62, %64, %cst_44 {dimension_numbers = #tpu.dot_dimension_numbers<[1], [0], [0], [1], [0, 0, 1, 1], [], []>} : vector<384x4xf32>, vector<4x4xf32>, vector<384x4xf32> -> vector<384x4xf32>
    %c48_45 = arith.constant 48 : index
    %c0_46 = arith.constant 0 : index
    %66 = vector.load %arg7[%c48_45, %c0_46] : memref<480x4xf32, #tpu.memory_space<vmem>>, vector<384x4xf32>
    %c4 = arith.constant 4 : index
    %c0_47 = arith.constant 0 : index
    %c0_48 = arith.constant 0 : index
    %67 = vector.load %arg4[%c4, %c0_47, %c0_48] : memref<9x4x4xf32, #tpu.memory_space<vmem>>, vector<1x4x4xf32>
    %68 = vector.shape_cast %67 : vector<1x4x4xf32> to vector<4x4xf32>
    %cst_49 = arith.constant dense<0.000000e+00> : vector<384x4xf32>
    %69 = tpu.matmul %66, %68, %cst_49 {dimension_numbers = #tpu.dot_dimension_numbers<[1], [0], [0], [1], [0, 0, 1, 1], [], []>} : vector<384x4xf32>, vector<4x4xf32>, vector<384x4xf32> -> vector<384x4xf32>
    %70 = arith.addf %65, %69 : vector<384x4xf32>
    %c49 = arith.constant 49 : index
    %c0_50 = arith.constant 0 : index
    %71 = vector.load %arg7[%c49, %c0_50] : memref<480x4xf32, #tpu.memory_space<vmem>>, vector<384x4xf32>
    %c5 = arith.constant 5 : index
    %c0_51 = arith.constant 0 : index
    %c0_52 = arith.constant 0 : index
    %72 = vector.load %arg4[%c5, %c0_51, %c0_52] : memref<9x4x4xf32, #tpu.memory_space<vmem>>, vector<1x4x4xf32>
    %73 = vector.shape_cast %72 : vector<1x4x4xf32> to vector<4x4xf32>
    %cst_53 = arith.constant dense<0.000000e+00> : vector<384x4xf32>
    %74 = tpu.matmul %71, %73, %cst_53 {dimension_numbers = #tpu.dot_dimension_numbers<[1], [0], [0], [1], [0, 0, 1, 1], [], []>} : vector<384x4xf32>, vector<4x4xf32>, vector<384x4xf32> -> vector<384x4xf32>
    %75 = arith.addf %70, %74 : vector<384x4xf32>
    %c0_54 = arith.constant 0 : index
    %c0_55 = arith.constant 0 : index
    %76 = vector.load %arg8[%c0_54, %c0_55] : memref<384x4xf32, #tpu.memory_space<vmem>>, vector<384x4xf32>
    %77 = arith.addf %76, %75 : vector<384x4xf32>
    %c0_56 = arith.constant 0 : index
    %c0_57 = arith.constant 0 : index
    %78 = vector.load %arg8[%c0_56, %c0_57] : memref<384x4xf32, #tpu.memory_space<vmem>>, vector<384x4xf32>
    tpu.vector_store %arg8[%c0_56, %c0_57], %77 {strides = array<i32>} : memref<384x4xf32, #tpu.memory_space<vmem>>, vector<384x4xf32>,
    %c71 = arith.constant 71 : index
    %c0_58 = arith.constant 0 : index
    %79 = vector.load %arg7[%c71, %c0_58] : memref<480x4xf32, #tpu.memory_space<vmem>>, vector<384x4xf32>
    %c6 = arith.constant 6 : index
    %c0_59 = arith.constant 0 : index
    %c0_60 = arith.constant 0 : index
    %80 = vector.load %arg4[%c6, %c0_59, %c0_60] : memref<9x4x4xf32, #tpu.memory_space<vmem>>, vector<1x4x4xf32>
    %81 = vector.shape_cast %80 : vector<1x4x4xf32> to vector<4x4xf32>
    %cst_61 = arith.constant dense<0.000000e+00> : vector<384x4xf32>
    %82 = tpu.matmul %79, %81, %cst_61 {dimension_numbers = #tpu.dot_dimension_numbers<[1], [0], [0], [1], [0, 0, 1, 1], [], []>} : vector<384x4xf32>, vector<4x4xf32>, vector<384x4xf32> -> vector<384x4xf32>
    %c72_62 = arith.constant 72 : index
    %c0_63 = arith.constant 0 : index
    %83 = vector.load %arg7[%c72_62, %c0_63] : memref<480x4xf32, #tpu.memory_space<vmem>>, vector<384x4xf32>
    %c7 = arith.constant 7 : index
    %c0_64 = arith.constant 0 : index
    %c0_65 = arith.constant 0 : index
    %84 = vector.load %arg4[%c7, %c0_64, %c0_65] : memref<9x4x4xf32, #tpu.memory_space<vmem>>, vector<1x4x4xf32>
    %85 = vector.shape_cast %84 : vector<1x4x4xf32> to vector<4x4xf32>
    %cst_66 = arith.constant dense<0.000000e+00> : vector<384x4xf32>
    %86 = tpu.matmul %83, %85, %cst_66 {dimension_numbers = #tpu.dot_dimension_numbers<[1], [0], [0], [1], [0, 0, 1, 1], [], []>} : vector<384x4xf32>, vector<4x4xf32>, vector<384x4xf32> -> vector<384x4xf32>
    %87 = arith.addf %82, %86 : vector<384x4xf32>
    %c73 = arith.constant 73 : index
    %c0_67 = arith.constant 0 : index
    %88 = vector.load %arg7[%c73, %c0_67] : memref<480x4xf32, #tpu.memory_space<vmem>>, vector<384x4xf32>
    %c8 = arith.constant 8 : index
    %c0_68 = arith.constant 0 : index
    %c0_69 = arith.constant 0 : index
    %89 = vector.load %arg4[%c8, %c0_68, %c0_69] : memref<9x4x4xf32, #tpu.memory_space<vmem>>, vector<1x4x4xf32>
    %90 = vector.shape_cast %89 : vector<1x4x4xf32> to vector<4x4xf32>
    %cst_70 = arith.constant dense<0.000000e+00> : vector<384x4xf32>
    %91 = tpu.matmul %88, %90, %cst_70 {dimension_numbers = #tpu.dot_dimension_numbers<[1], [0], [0], [1], [0, 0, 1, 1], [], []>} : vector<384x4xf32>, vector<4x4xf32>, vector<384x4xf32> -> vector<384x4xf32>
    %92 = arith.addf %87, %91 : vector<384x4xf32>
    %c0_71 = arith.constant 0 : index
    %c0_72 = arith.constant 0 : index
    %93 = vector.load %arg8[%c0_71, %c0_72] : memref<384x4xf32, #tpu.memory_space<vmem>>, vector<384x4xf32>
    %94 = arith.addf %93, %92 : vector<384x4xf32>
    %c0_73 = arith.constant 0 : index
    %c0_74 = arith.constant 0 : index
    %95 = vector.load %arg8[%c0_73, %c0_74] : memref<384x4xf32, #tpu.memory_space<vmem>>, vector<384x4xf32>
    tpu.vector_store %arg8[%c0_73, %c0_74], %94 {strides = array<i32>} : memref<384x4xf32, #tpu.memory_space<vmem>>, vector<384x4xf32>,
    %c0_75 = arith.constant 0 : index
    %c0_76 = arith.constant 0 : index
    %96 = vector.load %arg8[%c0_75, %c0_76] : memref<384x4xf32, #tpu.memory_space<vmem>>, vector<384x4xf32>
    %c0_77 = arith.constant 0 : index
    %c0_78 = arith.constant 0 : index
    %97 = vector.load %arg5[%c0_77, %c0_78] : memref<1x4xf32, #tpu.memory_space<vmem>>, vector<1x4xf32>
    %98 = vector.broadcast %97 : vector<1x4xf32> to vector<384x4xf32>
    %99 = arith.addf %96, %98 : vector<384x4xf32>
    %100 = arith.negf %99 : vector<384x4xf32>
    %101 = math.exp %100 : vector<384x4xf32>
    %cst_79 = arith.constant 1.000000e+00 : f32
    %102 = vector.broadcast %cst_79 : f32 to vector<384x4xf32>
    %103 = arith.addf %102, %101 : vector<384x4xf32>
    %104 = arith.divf %102, %103 : vector<384x4xf32>
    %105 = arith.mulf %99, %104 : vector<384x4xf32>
    %106 = vector.shape_cast %105 : vector<384x4xf32> to vector<16x24x4xf32>
    %107 = vector.extract_strided_slice %106 {offsets = [0, 0, 0], sizes = [16, 16, 4], strides = [1, 1, 1]} : vector<16x24x4xf32> to vector<16x16x4xf32>
    %108 = vector.shape_cast %107 : vector<16x16x4xf32> to vector<256x4xf32>
    %109 = arith.addf %108, %1 : vector<256x4xf32>
    %c0_80 = arith.constant 0 : index
    %c0_81 = arith.constant 0 : index
    %c0_82 = arith.constant 0 : index
    %110 = vector.load %arg6[%c0_80, %c0_81, %c0_82] : memref<1x256x4xf32, #tpu.memory_space<vmem>>, vector<1x256x4xf32>
    %111 = vector.shape_cast %110 : vector<1x256x4xf32> to vector<256x4xf32>
    %112 = vector.shape_cast %109 : vector<256x4xf32> to vector<1x256x4xf32>
    tpu.vector_store %arg6[%c0_80, %c0_81, %c0_82], %112 {strides = array<i32>} : memref<1x256x4xf32, #tpu.memory_space<vmem>>, vector<1x256x4xf32>,
    return
  }
  func.func @transform_0(%arg0: i32) -> (i32, i32, i32) {
    %c0_i32 = arith.constant 0 : i32
    %c0_i32_0 = arith.constant 0 : i32
    %c0_i32_1 = arith.constant 0 : i32
    return %arg0, %c0_i32, %c0_i32_0 : i32, i32, i32
  }
  func.func @transform_1(%arg0: i32) -> (i32, i32) {
    %c0_i32 = arith.constant 0 : i32
    %c0_i32_0 = arith.constant 0 : i32
    %c0_i32_1 = arith.constant 0 : i32
    return %c0_i32, %c0_i32_0 : i32, i32
  }
  func.func @transform_2(%arg0: i32) -> (i32, i32) {
    %c0_i32 = arith.constant 0 : i32
    %c0_i32_0 = arith.constant 0 : i32
    %c0_i32_1 = arith.constant 0 : i32
    return %c0_i32, %c0_i32_0 : i32, i32
  }
  func.func @transform_3(%arg0: i32) -> (i32, i32, i32) {
    %c0_i32 = arith.constant 0 : i32
    %c0_i32_0 = arith.constant 0 : i32
    %c0_i32_1 = arith.constant 0 : i32
    %c0_i32_2 = arith.constant 0 : i32
    return %c0_i32, %c0_i32_0, %c0_i32_1 : i32, i32, i32
  }
  func.func @transform_4(%arg0: i32) -> (i32, i32) {
    %c0_i32 = arith.constant 0 : i32
    %c0_i32_0 = arith.constant 0 : i32
    %c0_i32_1 = arith.constant 0 : i32
    return %c0_i32, %c0_i32_0 : i32, i32
  }
  func.func @transform_5(%arg0: i32) -> (i32, i32, i32) {
    %c0_i32 = arith.constant 0 : i32
    %c0_i32_0 = arith.constant 0 : i32
    %c0_i32_1 = arith.constant 0 : i32
    return %arg0, %c0_i32, %c0_i32_0 : i32, i32, i32
  }
}

</mosaic_0001>

<llo_original>
// kernel: _lambda_.5
$region0: #{_lambda_.5}
  #allocation0 [shape = 'u32[]', space=smem, size = 0x4, offset = 0x4, fixed_abs, tag = 'smem constant byte address 0x4 - core index']
  #allocation1 [shape = 'u32[72,128]{1,0:T(1,128)}', space=vmem, size = 0x9000, scoped, tag = 'internal scratch']
  %s0 = inlined_call_operand.vmem [shape: f32[512,4], index: 0, kind: input, shape index: {}]
  %s1 = inlined_call_operand.vmem [shape: f32[512,4], index: 1, kind: input, shape index: {}]
  %s2 = inlined_call_operand.vmem [shape: f32[4,8], index: 2, kind: input, shape index: {}]
  %s3 = inlined_call_operand.vmem [shape: f32[4,8], index: 3, kind: input, shape index: {}]
  %s4 = inlined_call_operand.vmem [shape: f32[1,8], index: 4, kind: input, shape index: {}]
  %s5 = inlined_call_operand.vmem [shape: f32[512,8], index: 5, kind: output, shape index: {}]
  %s6 = sld [smem:[#allocation0]]
  $region53: #{_lambda_.5} parent=0
    _
  %s8 = ssub.s32 1, %s6
  %s9 = scalar_select 0, %s8, %s6
  loop: start=0, step=1, limit=4
  $region2: #{_lambda_.5} parent=0 // loop_pre_header
    _
  $region3: #{_lambda_.5} parent=0 // loop_header
    %s11 = sphi 0, %s15
    %p12 = scmp.ge.s32.totalorder %s11, 4
    %s21 = sphi 0, %s23
    %s24 = sphi 0, %s21
    %s25 = sphi 0, %s24
    %s41 = sphi 0, %s25
    %s47 = sphi 0, %s49
    %s50 = sphi 0, %s47
    %s51 = sphi 0, %s50
    %s67 = sphi 0, %s51
    %s71 = sphi 0, %s71
    %s73 = sphi 0, %s71
    %s74 = sphi 0, %s73
    %s88 = sphi 0, %s74
    %s92 = sphi 0, %s92
    %s94 = sphi 0, %s92
    %s95 = sphi 0, %s94
    %s109 = sphi 0, %s95
    %s113 = sphi 0, %s113
    %s115 = sphi 0, %s113
    %s116 = sphi 0, %s115
    %s130 = sphi 0, %s116
    %s136 = sphi 0, %s138
    %s139 = sphi 0, %s136
    %s140 = sphi 0, %s139
    %s156 = sphi 0, %s140
  $region4: #{_lambda_.5} parent=0 // loop_header_branch
    %14 = sbr.rel (%p12) target = $region8
  $region5: #{_lambda_.5} parent=0 // loop_body
    %s16 = ssub.s32 %s11, 1
    %s17 = ssub.s32 %s11, 2
    %s18 = sadd.s32 %s11, 1
    %s19 = ssub.s32 %s11, %s18
    %p20 = scmp.eq.s32.totalorder %s19, 0
    %s22 = sadd.s32 %s21, 1
    %s23 = scalar_select %p20, %s21, %s22
    %p26 = pneg %p20
    %p27 = scmp.eq.s32.totalorder %s11, 1
    %p28 = por %p26, %p27
    %p29 = scmp.ne.s32.totalorder %s21, %s24
    %p30 = scmp.eq.s32.totalorder %s11, 0
    %p31 = por %p29, %p30
    %p32 = scmp.ne.s32.totalorder %s21, %s24
    %p33 = scmp.eq.s32.totalorder %s16, 1
    %p34 = por %p32, %p33
    %p35 = scmp.ne.s32.totalorder %s24, %s25
    %p36 = scmp.eq.s32.totalorder %s16, 0
    %p37 = por %p35, %p36
    %p38 = scmp.ne.s32.totalorder %s24, %s25
    %p39 = scmp.eq.s32.totalorder %s17, 1
    %p40 = por %p38, %p39
    %p42 = scmp.ne.s32.totalorder %s25, %s41
    %p43 = scmp.eq.s32.totalorder %s17, 0
    %p44 = por %p42, %p43
    %s45 = ssub.s32 %s11, %s18
    %p46 = scmp.eq.s32.totalorder %s45, 0
    %s48 = sadd.s32 %s47, 1
    %s49 = scalar_select %p46, %s47, %s48
    %p52 = pneg %p46
    %p53 = scmp.eq.s32.totalorder %s11, 1
    %p54 = por %p52, %p53
    %p55 = scmp.ne.s32.totalorder %s47, %s50
    %p56 = scmp.eq.s32.totalorder %s11, 0
    %p57 = por %p55, %p56
    %p58 = scmp.ne.s32.totalorder %s47, %s50
    %p59 = scmp.eq.s32.totalorder %s16, 1
    %p60 = por %p58, %p59
    %p61 = scmp.ne.s32.totalorder %s50, %s51
    %p62 = scmp.eq.s32.totalorder %s16, 0
    %p63 = por %p61, %p62
    %p64 = scmp.ne.s32.totalorder %s50, %s51
    %p65 = scmp.eq.s32.totalorder %s17, 1
    %p66 = por %p64, %p65
    %p68 = scmp.ne.s32.totalorder %s51, %s67
    %p69 = scmp.eq.s32.totalorder %s17, 0
    %p70 = por %p68, %p69
    %s72 = sadd.s32 %s71, 1
    %p75 = scmp.eq.s32.totalorder %s11, 1
    %p76 = scmp.ne.s32.totalorder %s71, %s73
    %p77 = scmp.eq.s32.totalorder %s11, 0
    %p78 = por %p76, %p77
    %p79 = scmp.ne.s32.totalorder %s71, %s73
    %p80 = scmp.eq.s32.totalorder %s16, 1
    %p81 = por %p79, %p80
    %p82 = scmp.ne.s32.totalorder %s73, %s74
    %p83 = scmp.eq.s32.totalorder %s16, 0
    %p84 = por %p82, %p83
    %p85 = scmp.ne.s32.totalorder %s73, %s74
    %p86 = scmp.eq.s32.totalorder %s17, 1
    %p87 = por %p85, %p86
    %p89 = scmp.ne.s32.totalorder %s74, %s88
    %p90 = scmp.eq.s32.totalorder %s17, 0
    %p91 = por %p89, %p90
    %s93 = sadd.s32 %s92, 1
    %p96 = scmp.eq.s32.totalorder %s11, 1
    %p97 = scmp.ne.s32.totalorder %s92, %s94
    %p98 = scmp.eq.s32.totalorder %s11, 0
    %p99 = por %p97, %p98
    %p100 = scmp.ne.s32.totalorder %s92, %s94
    %p101 = scmp.eq.s32.totalorder %s16, 1
    %p102 = por %p100, %p101
    %p103 = scmp.ne.s32.totalorder %s94, %s95
    %p104 = scmp.eq.s32.totalorder %s16, 0
    %p105 = por %p103, %p104
    %p106 = scmp.ne.s32.totalorder %s94, %s95
    %p107 = scmp.eq.s32.totalorder %s17, 1
    %p108 = por %p106, %p107
    %p110 = scmp.ne.s32.totalorder %s95, %s109
    %p111 = scmp.eq.s32.totalorder %s17, 0
    %p112 = por %p110, %p111
    %s114 = sadd.s32 %s113, 1
    %p117 = scmp.eq.s32.totalorder %s11, 1
    %p118 = scmp.ne.s32.totalorder %s113, %s115
    %p119 = scmp.eq.s32.totalorder %s11, 0
    %p120 = por %p118, %p119
    %p121 = scmp.ne.s32.totalorder %s113, %s115
    %p122 = scmp.eq.s32.totalorder %s16, 1
    %p123 = por %p121, %p122
    %p124 = scmp.ne.s32.totalorder %s115, %s116
    %p125 = scmp.eq.s32.totalorder %s16, 0
    %p126 = por %p124, %p125
    %p127 = scmp.ne.s32.totalorder %s115, %s116
    %p128 = scmp.eq.s32.totalorder %s17, 1
    %p129 = por %p127, %p128
    %p131 = scmp.ne.s32.totalorder %s116, %s130
    %p132 = scmp.eq.s32.totalorder %s17, 0
    %p133 = por %p131, %p132
    %s134 = ssub.s32 %s11, %s18
    %p135 = scmp.eq.s32.totalorder %s134, 0
    %s137 = sadd.s32 %s136, 1
    %s138 = scalar_select %p135, %s136, %s137
    %p141 = pneg %p135
    %p142 = scmp.eq.s32.totalorder %s11, 1
    %p143 = por %p141, %p142
    %p144 = scmp.ne.s32.totalorder %s136, %s139
    %p145 = scmp.eq.s32.totalorder %s11, 0
    %p146 = por %p144, %p145
    %p147 = scmp.ne.s32.totalorder %s136, %s139
    %p148 = scmp.eq.s32.totalorder %s16, 1
    %p149 = por %p147, %p148
    %p150 = scmp.ne.s32.totalorder %s139, %s140
    %p151 = scmp.eq.s32.totalorder %s16, 0
    %p152 = por %p150, %p151
    %p153 = scmp.ne.s32.totalorder %s139, %s140
    %p154 = scmp.eq.s32.totalorder %s17, 1
    %p155 = por %p153, %p154
    %p157 = scmp.ne.s32.totalorder %s140, %s156
    %p158 = scmp.eq.s32.totalorder %s17, 0
    %p159 = por %p157, %p158
    %p160 = scmp.le.s32.totalorder 1, %s11
    %p161 = scmp.lt.s32.totalorder %s11, 3
    %p162 = pnand %p160, %p161
    %p163 = pneg %p162
    // Predicated region
    $region9: #{_lambda_.5} parent=5 // pred_check
      _
    $region10: #{_lambda_.5} parent=5 // pred_check_branch
      %165 = sbr.rel (%p162) target = $region12
    $region11: #{_lambda_.5} parent=5 // pred_region
      %s166 = ssub.s32 %s11, 1
      // Predicated region
      $region13: #{_lambda_.5} parent=11 // pred_check
        %p167 = pneg %p84
      $region14: #{_lambda_.5} parent=11 // pred_check_branch
        %169 = sbr.rel (%p167) target = $region16
      $region15: #{_lambda_.5} parent=11 // pred_region
        _
      $region16: #{_lambda_.5} parent=11 // pred_fallthru
        _
      // Predicated region
      $region17: #{_lambda_.5} parent=11 // pred_check
        %p170 = pneg %p105
      $region18: #{_lambda_.5} parent=11 // pred_check_branch
        %172 = sbr.rel (%p170) target = $region20
      $region19: #{_lambda_.5} parent=11 // pred_region
        _
      $region20: #{_lambda_.5} parent=11 // pred_fallthru
        _
      // Predicated region
      $region21: #{_lambda_.5} parent=11 // pred_check
        %p173 = pneg %p126
      $region22: #{_lambda_.5} parent=11 // pred_check_branch
        %175 = sbr.rel (%p173) target = $region24
      $region23: #{_lambda_.5} parent=11 // pred_region
        _
      $region24: #{_lambda_.5} parent=11 // pred_fallthru
        _
    $region12: #{_lambda_.5} parent=5 // pred_fallthru
      _
    %p176 = scmp.lt.s32.totalorder %s11, 2
    // Predicated region
    $region25: #{_lambda_.5} parent=5 // pred_check
      %p177 = pneg %p176
    $region26: #{_lambda_.5} parent=5 // pred_check_branch
      %179 = sbr.rel (%p177) target = $region28
    $region27: #{_lambda_.5} parent=5 // pred_region
      // Predicated region
      $region29: #{_lambda_.5} parent=27 // pred_check
        %p180 = pneg %p31
      $region30: #{_lambda_.5} parent=27 // pred_check_branch
        %182 = sbr.rel (%p180) target = $region32
      $region31: #{_lambda_.5} parent=27 // pred_region
        %s183 = smul.u32 32, %s11
        %p184 = scmp.lt.s32.totalorder %s183, 63
        %s185 = scalar_select %p184, %s183, 63
        %s186 = smul.addr %s185, 8
        %s187 = scalar_lea.vmem %s0, %s186
        %s188 = smul.u32 32, %s11
      $region32: #{_lambda_.5} parent=27 // pred_fallthru
        _
      // Predicated region
      $region33: #{_lambda_.5} parent=27 // pred_check
        %p189 = pneg %p57
      $region34: #{_lambda_.5} parent=27 // pred_check_branch
        %191 = sbr.rel (%p189) target = $region36
      $region35: #{_lambda_.5} parent=27 // pred_region
        %s192 = smul.u32 32, %s11
        %p193 = scmp.lt.s32.totalorder %s192, 63
        %s194 = scalar_select %p193, %s192, 63
        %s195 = smul.addr %s194, 8
        %s196 = scalar_lea.vmem %s1, %s195
        %s197 = smul.u32 32, %s11
      $region36: #{_lambda_.5} parent=27 // pred_fallthru
        _
    $region28: #{_lambda_.5} parent=5 // pred_fallthru
      _
    %p198 = scmp.le.s32.totalorder 1, %s11
    %p199 = scmp.lt.s32.totalorder %s11, 3
    %p200 = pnand %p198, %p199
    %p201 = pneg %p200
    // Predicated region
    $region37: #{_lambda_.5} parent=5 // pred_check
      _
    $region38: #{_lambda_.5} parent=5 // pred_check_branch
      %203 = sbr.rel (%p200) target = $region40
    $region39: #{_lambda_.5} parent=5 // pred_region
      %s204 = ssub.s32 %s11, 1
      %s205 = smul.u32 32, %s16
      %p206 = scmp.lt.s32.totalorder %s205, 63
      %s207 = scalar_select %p206, %s205, 63
      %s208 = smul.addr %s207, 8
      %s209 = scalar_lea.vmem %s0, %s208
      %p210 = pneg %p37
      %p211 = pneg %p34
      %s212 = smul.u32 32, %s16
      %p213 = scmp.lt.s32.totalorder %s212, 63
      %s214 = scalar_select %p213, %s212, 63
      %s215 = smul.addr %s214, 8
      %s216 = scalar_lea.vmem %s1, %s215
      %p217 = pneg %p63
      %p218 = pneg %p60
      %p219 = pneg %p84
      %p220 = pneg %p81
      %p221 = pneg %p105
      %p222 = pneg %p102
      %p223 = pneg %p126
      %p224 = pneg %p123
      %p225 = pneg %p152
      %p226 = pneg %p149
      %s227 = smul.u32 32, %s16
      %p228 = scmp.lt.s32.totalorder %s227, 63
      %s229 = scalar_select %p228, %s227, 63
      %s230 = smul.addr %s229, 8
      %s231 = scalar_lea.vmem %s5, %s230
      %s232 = smul.u32 32, %s16
      %p233 = scmp.lt.s32.totalorder %s232, 63
      %s234 = scalar_select %p233, %s232, 63
      %s235 = smul.addr %s234, 8
      %s236 = scalar_lea.vmem %s0, %s235
      %s237 = smul.u32 32, %s16
      %s238 = smul.u32 32, %s16
      %p239 = scmp.lt.s32.totalorder %s238, 63
      %s240 = scalar_select %p239, %s238, 63
      %s241 = smul.addr %s240, 8
      %s242 = scalar_lea.vmem %s1, %s241
      %s243 = smul.u32 32, %s16
      %s244 = smul.u32 32, %s16
      %p245 = scmp.lt.s32.totalorder %s244, 63
      %s246 = scalar_select %p245, %s244, 63
      %s247 = smul.addr %s246, 8
      %s248 = scalar_lea.vmem %s5, %s247
      %s249 = smul.u32 32, %s16
      %v250 = vld [vmem:[%s236] sm:$0xff]
      %v251 = vld [vmem:[%s236 + $0x8] sm:$0xff]
      %v252 = vld [vmem:[%s236 + $0x10] sm:$0xff]
      %v253 = vld [vmem:[%s236 + $0x18] sm:$0xff]
      %v254 = vld [vmem:[%s236 + $0x20] sm:$0xff]
      %v255 = vld [vmem:[%s236 + $0x28] sm:$0xff]
      %v256 = vld [vmem:[%s236 + $0x30] sm:$0xff]
      %v257 = vld [vmem:[%s236 + $0x38] sm:$0xff]
      %v258 = vld [vmem:[%s236 + $0x40] sm:$0xff]
      %v259 = vld [vmem:[%s236 + $0x48] sm:$0xff]
      %v260 = vld [vmem:[%s236 + $0x50] sm:$0xff]
      %v261 = vld [vmem:[%s236 + $0x58] sm:$0xff]
      %v262 = vld [vmem:[%s236 + $0x60] sm:$0xff]
      %v263 = vld [vmem:[%s236 + $0x68] sm:$0xff]
      %v264 = vld [vmem:[%s236 + $0x70] sm:$0xff]
      %v265 = vld [vmem:[%s236 + $0x78] sm:$0xff]
      %v266 = vld [vmem:[%s236 + $0x80] sm:$0xff]
      %v267 = vld [vmem:[%s236 + $0x88] sm:$0xff]
      %v268 = vld [vmem:[%s236 + $0x90] sm:$0xff]
      %v269 = vld [vmem:[%s236 + $0x98] sm:$0xff]
      %v270 = vld [vmem:[%s236 + $0xa0] sm:$0xff]
      %v271 = vld [vmem:[%s236 + $0xa8] sm:$0xff]
      %v272 = vld [vmem:[%s236 + $0xb0] sm:$0xff]
      %v273 = vld [vmem:[%s236 + $0xb8] sm:$0xff]
      %v274 = vld [vmem:[%s236 + $0xc0] sm:$0xff]
      %v275 = vld [vmem:[%s236 + $0xc8] sm:$0xff]
      %v276 = vld [vmem:[%s236 + $0xd0] sm:$0xff]
      %v277 = vld [vmem:[%s236 + $0xd8] sm:$0xff]
      %v278 = vld [vmem:[%s236 + $0xe0] sm:$0xff]
      %v279 = vld [vmem:[%s236 + $0xe8] sm:$0xff]
      %v280 = vld [vmem:[%s236 + $0xf0] sm:$0xff]
      %v281 = vld [vmem:[%s236 + $0xf8] sm:$0xff]
      %v282 = vld [vmem:[%s2] sm:$0xf]
      %v283 = vld [vmem:[%s242] sm:$0xff]
      %v284 = vld [vmem:[%s242 + $0x8] sm:$0xff]
      %v285 = vld [vmem:[%s242 + $0x10] sm:$0xff]
      %v286 = vld [vmem:[%s242 + $0x18] sm:$0xff]
      %v287 = vld [vmem:[%s242 + $0x20] sm:$0xff]
      %v288 = vld [vmem:[%s242 + $0x28] sm:$0xff]
      %v289 = vld [vmem:[%s242 + $0x30] sm:$0xff]
      %v290 = vld [vmem:[%s242 + $0x38] sm:$0xff]
      %v291 = vld [vmem:[%s242 + $0x40] sm:$0xff]
      %v292 = vld [vmem:[%s242 + $0x48] sm:$0xff]
      %v293 = vld [vmem:[%s242 + $0x50] sm:$0xff]
      %v294 = vld [vmem:[%s242 + $0x58] sm:$0xff]
      %v295 = vld [vmem:[%s242 + $0x60] sm:$0xff]
      %v296 = vld [vmem:[%s242 + $0x68] sm:$0xff]
      %v297 = vld [vmem:[%s242 + $0x70] sm:$0xff]
      %v298 = vld [vmem:[%s242 + $0x78] sm:$0xff]
      %v299 = vld [vmem:[%s242 + $0x80] sm:$0xff]
      %v300 = vld [vmem:[%s242 + $0x88] sm:$0xff]
      %v301 = vld [vmem:[%s242 + $0x90] sm:$0xff]
      %v302 = vld [vmem:[%s242 + $0x98] sm:$0xff]
      %v303 = vld [vmem:[%s242 + $0xa0] sm:$0xff]
      %v304 = vld [vmem:[%s242 + $0xa8] sm:$0xff]
      %v305 = vld [vmem:[%s242 + $0xb0] sm:$0xff]
      %v306 = vld [vmem:[%s242 + $0xb8] sm:$0xff]
      %v307 = vld [vmem:[%s242 + $0xc0] sm:$0xff]
      %v308 = vld [vmem:[%s242 + $0xc8] sm:$0xff]
      %v309 = vld [vmem:[%s242 + $0xd0] sm:$0xff]
      %v310 = vld [vmem:[%s242 + $0xd8] sm:$0xff]
      %v311 = vld [vmem:[%s242 + $0xe0] sm:$0xff]
      %v312 = vld [vmem:[%s242 + $0xe8] sm:$0xff]
      %v313 = vld [vmem:[%s242 + $0xf0] sm:$0xff]
      %v314 = vld [vmem:[%s242 + $0xf8] sm:$0xff]
      %v315 = vld [vmem:[%s3] sm:$0xf]
      %vm316 = vcmask 31744
      %v318 = vsel %vm316, %v283, 0
      %v321 = vsel %vm316, %v284, 0
      %v324 = vsel %vm316, %v285, 0
      %v327 = vsel %vm316, %v286, 0
      %v330 = vsel %vm316, %v287, 0
      %v333 = vsel %vm316, %v288, 0
      %v336 = vsel %vm316, %v289, 0
      %v339 = vsel %vm316, %v290, 0
      %v342 = vsel %vm316, %v291, 0
      %v345 = vsel %vm316, %v292, 0
      %v348 = vsel %vm316, %v293, 0
      %v351 = vsel %vm316, %v294, 0
      %v354 = vsel %vm316, %v295, 0
      %v357 = vsel %vm316, %v296, 0
      %v360 = vsel %vm316, %v297, 0
      %v363 = vsel %vm316, %v298, 0
      %v366 = vsel %vm316, %v299, 0
      %v369 = vsel %vm316, %v300, 0
      %v372 = vsel %vm316, %v301, 0
      %v375 = vsel %vm316, %v302, 0
      %v378 = vsel %vm316, %v303, 0
      %v381 = vsel %vm316, %v304, 0
      %v384 = vsel %vm316, %v305, 0
      %v387 = vsel %vm316, %v306, 0
      %v390 = vsel %vm316, %v307, 0
      %v393 = vsel %vm316, %v308, 0
      %v396 = vsel %vm316, %v309, 0
      %v399 = vsel %vm316, %v310, 0
      %v402 = vsel %vm316, %v311, 0
      %v405 = vsel %vm316, %v312, 0
      %v408 = vsel %vm316, %v313, 0
      %v411 = vsel %vm316, %v314, 0
      %vm413 = vcmask 1043456
      %v415 = vsel %vm413, %v315, 0
      %417 = vmatpush.msra.mxu0 0.0
      %418 = vmatpush.msra.mxu0 0.0
      %419 = vmatpush.msra.mxu0 0.0
      %420 = vmatpush.msra.mxu0 0.0
      %421 = vmatpush.msra.mxu0 0.0
      %422 = vmatpush.msra.mxu0 0.0
      %423 = vmatpush.msra.mxu0 0.0
      %424 = vmatpush.msra.mxu0 0.0
      %425 = vmatpush.msra.mxu0 0.0
      %426 = vmatpush.msra.mxu0 0.0
      %427 = vmatpush.msra.mxu0 0.0
      %428 = vmatpush.msra.mxu0 0.0
      %429 = vmatpush.msra.mxu0 0.0
      %430 = vmatpush.msra.mxu0 0.0
      %431 = vmatpush.msra.mxu0 0.0
      %432 = vmatpush.msra.mxu0 %v415
      %433 = vmatmul.f32.gmra.mxu0 %v318
      %v434 = vpop.f32.mrf.mxu0
      %v435 = vadd.f32 0.0, %v434
      %436 = vmatmul.f32.gmra.mxu0 %v321
      %v437 = vpop.f32.mrf.mxu0
      %v438 = vadd.f32 0.0, %v437
      %439 = vmatmul.f32.gmra.mxu0 %v324
      %v440 = vpop.f32.mrf.mxu0
      %v441 = vadd.f32 0.0, %v440
      %442 = vmatmul.f32.gmra.mxu0 %v327
      %v443 = vpop.f32.mrf.mxu0
      %v444 = vadd.f32 0.0, %v443
      %445 = vmatmul.f32.gmra.mxu0 %v330
      %v446 = vpop.f32.mrf.mxu0
      %v447 = vadd.f32 0.0, %v446
      %448 = vmatmul.f32.gmra.mxu0 %v333
      %v449 = vpop.f32.mrf.mxu0
      %v450 = vadd.f32 0.0, %v449
      %451 = vmatmul.f32.gmra.mxu0 %v336
      %v452 = vpop.f32.mrf.mxu0
      %v453 = vadd.f32 0.0, %v452
      %454 = vmatmul.f32.gmra.mxu0 %v339
      %v455 = vpop.f32.mrf.mxu0
      %v456 = vadd.f32 0.0, %v455
      %457 = vmatmul.f32.gmra.mxu0 %v342
      %v458 = vpop.f32.mrf.mxu0
      %v459 = vadd.f32 0.0, %v458
      %460 = vmatmul.f32.gmra.mxu0 %v345
      %v461 = vpop.f32.mrf.mxu0
      %v462 = vadd.f32 0.0, %v461
      %463 = vmatmul.f32.gmra.mxu0 %v348
      %v464 = vpop.f32.mrf.mxu0
      %v465 = vadd.f32 0.0, %v464
      %466 = vmatmul.f32.gmra.mxu0 %v351
      %v467 = vpop.f32.mrf.mxu0
      %v468 = vadd.f32 0.0, %v467
      %469 = vmatmul.f32.gmra.mxu0 %v354
      %v470 = vpop.f32.mrf.mxu0
      %v471 = vadd.f32 0.0, %v470
      %472 = vmatmul.f32.gmra.mxu0 %v357
      %v473 = vpop.f32.mrf.mxu0
      %v474 = vadd.f32 0.0, %v473
      %475 = vmatmul.f32.gmra.mxu0 %v360
      %v476 = vpop.f32.mrf.mxu0
      %v477 = vadd.f32 0.0, %v476
      %478 = vmatmul.f32.gmra.mxu0 %v363
      %v479 = vpop.f32.mrf.mxu0
      %v480 = vadd.f32 0.0, %v479
      %481 = vmatmul.f32.gmra.mxu0 %v366
      %v482 = vpop.f32.mrf.mxu0
      %v483 = vadd.f32 0.0, %v482
      %484 = vmatmul.f32.gmra.mxu0 %v369
      %v485 = vpop.f32.mrf.mxu0
      %v486 = vadd.f32 0.0, %v485
      %487 = vmatmul.f32.gmra.mxu0 %v372
      %v488 = vpop.f32.mrf.mxu0
      %v489 = vadd.f32 0.0, %v488
      %490 = vmatmul.f32.gmra.mxu0 %v375
      %v491 = vpop.f32.mrf.mxu0
      %v492 = vadd.f32 0.0, %v491
      %493 = vmatmul.f32.gmra.mxu0 %v378
      %v494 = vpop.f32.mrf.mxu0
      %v495 = vadd.f32 0.0, %v494
      %496 = vmatmul.f32.gmra.mxu0 %v381
      %v497 = vpop.f32.mrf.mxu0
      %v498 = vadd.f32 0.0, %v497
      %499 = vmatmul.f32.gmra.mxu0 %v384
      %v500 = vpop.f32.mrf.mxu0
      %v501 = vadd.f32 0.0, %v500
      %502 = vmatmul.f32.gmra.mxu0 %v387
      %v503 = vpop.f32.mrf.mxu0
      %v504 = vadd.f32 0.0, %v503
      %505 = vmatmul.f32.gmra.mxu0 %v390
      %v506 = vpop.f32.mrf.mxu0
      %v507 = vadd.f32 0.0, %v506
      %508 = vmatmul.f32.gmra.mxu0 %v393
      %v509 = vpop.f32.mrf.mxu0
      %v510 = vadd.f32 0.0, %v509
      %511 = vmatmul.f32.gmra.mxu0 %v396
      %v512 = vpop.f32.mrf.mxu0
      %v513 = vadd.f32 0.0, %v512
      %514 = vmatmul.f32.gmra.mxu0 %v399
      %v515 = vpop.f32.mrf.mxu0
      %v516 = vadd.f32 0.0, %v515
      %517 = vmatmul.f32.gmra.mxu0 %v402
      %v518 = vpop.f32.mrf.mxu0
      %v519 = vadd.f32 0.0, %v518
      %520 = vmatmul.f32.gmra.mxu0 %v405
      %v521 = vpop.f32.mrf.mxu0
      %v522 = vadd.f32 0.0, %v521
      %523 = vmatmul.f32.gmra.mxu0 %v408
      %v524 = vpop.f32.mrf.mxu0
      %v525 = vadd.f32 0.0, %v524
      %526 = vmatmul.f32.gmra.mxu0 %v411
      %v527 = vpop.f32.mrf.mxu0
      %v528 = vadd.f32 0.0, %v527
      %529 = vdwg.mxu0
      %v531 = vsel %vm316, %v250, 0
      %v534 = vsel %vm316, %v251, 0
      %v537 = vsel %vm316, %v252, 0
      %v540 = vsel %vm316, %v253, 0
      %v543 = vsel %vm316, %v254, 0
      %v546 = vsel %vm316, %v255, 0
      %v549 = vsel %vm316, %v256, 0
      %v552 = vsel %vm316, %v257, 0
      %v555 = vsel %vm316, %v258, 0
      %v558 = vsel %vm316, %v259, 0
      %v561 = vsel %vm316, %v260, 0
      %v564 = vsel %vm316, %v261, 0
      %v567 = vsel %vm316, %v262, 0
      %v570 = vsel %vm316, %v263, 0
      %v573 = vsel %vm316, %v264, 0
      %v576 = vsel %vm316, %v265, 0
      %v579 = vsel %vm316, %v266, 0
      %v582 = vsel %vm316, %v267, 0
      %v585 = vsel %vm316, %v268, 0
      %v588 = vsel %vm316, %v269, 0
      %v591 = vsel %vm316, %v270, 0
      %v594 = vsel %vm316, %v271, 0
      %v597 = vsel %vm316, %v272, 0
      %v600 = vsel %vm316, %v273, 0
      %v603 = vsel %vm316, %v274, 0
      %v606 = vsel %vm316, %v275, 0
      %v609 = vsel %vm316, %v276, 0
      %v612 = vsel %vm316, %v277, 0
      %v615 = vsel %vm316, %v278, 0
      %v618 = vsel %vm316, %v279, 0
      %v621 = vsel %vm316, %v280, 0
      %v624 = vsel %vm316, %v281, 0
      %v627 = vsel %vm413, %v282, 0
      %629 = vmatpush.msra.mxu0 0.0
      %630 = vmatpush.msra.mxu0 0.0
      %631 = vmatpush.msra.mxu0 0.0
      %632 = vmatpush.msra.mxu0 0.0
      %633 = vmatpush.msra.mxu0 0.0
      %634 = vmatpush.msra.mxu0 0.0
      %635 = vmatpush.msra.mxu0 0.0
      %636 = vmatpush.msra.mxu0 0.0
      %637 = vmatpush.msra.mxu0 0.0
      %638 = vmatpush.msra.mxu0 0.0
      %639 = vmatpush.msra.mxu0 0.0
      %640 = vmatpush.msra.mxu0 0.0
      %641 = vmatpush.msra.mxu0 0.0
      %642 = vmatpush.msra.mxu0 0.0
      %643 = vmatpush.msra.mxu0 0.0
      %644 = vmatpush.msra.mxu0 %v627
      %645 = vmatmul.f32.gmra.mxu0 %v531
      %v646 = vpop.f32.mrf.mxu0
      %v647 = vadd.f32 %v435, %v646
      %648 = vmatmul.f32.gmra.mxu0 %v534
      %v649 = vpop.f32.mrf.mxu0
      %v650 = vadd.f32 %v438, %v649
      %651 = vmatmul.f32.gmra.mxu0 %v537
      %v652 = vpop.f32.mrf.mxu0
      %v653 = vadd.f32 %v441, %v652
      %654 = vmatmul.f32.gmra.mxu0 %v540
      %v655 = vpop.f32.mrf.mxu0
      %v656 = vadd.f32 %v444, %v655
      %657 = vmatmul.f32.gmra.mxu0 %v543
      %v658 = vpop.f32.mrf.mxu0
      %v659 = vadd.f32 %v447, %v658
      %660 = vmatmul.f32.gmra.mxu0 %v546
      %v661 = vpop.f32.mrf.mxu0
      %v662 = vadd.f32 %v450, %v661
      %663 = vmatmul.f32.gmra.mxu0 %v549
      %v664 = vpop.f32.mrf.mxu0
      %v665 = vadd.f32 %v453, %v664
      %666 = vmatmul.f32.gmra.mxu0 %v552
      %v667 = vpop.f32.mrf.mxu0
      %v668 = vadd.f32 %v456, %v667
      %669 = vmatmul.f32.gmra.mxu0 %v555
      %v670 = vpop.f32.mrf.mxu0
      %v671 = vadd.f32 %v459, %v670
      %672 = vmatmul.f32.gmra.mxu0 %v558
      %v673 = vpop.f32.mrf.mxu0
      %v674 = vadd.f32 %v462, %v673
      %675 = vmatmul.f32.gmra.mxu0 %v561
      %v676 = vpop.f32.mrf.mxu0
      %v677 = vadd.f32 %v465, %v676
      %678 = vmatmul.f32.gmra.mxu0 %v564
      %v679 = vpop.f32.mrf.mxu0
      %v680 = vadd.f32 %v468, %v679
      %681 = vmatmul.f32.gmra.mxu0 %v567
      %v682 = vpop.f32.mrf.mxu0
      %v683 = vadd.f32 %v471, %v682
      %684 = vmatmul.f32.gmra.mxu0 %v570
      %v685 = vpop.f32.mrf.mxu0
      %v686 = vadd.f32 %v474, %v685
      %687 = vmatmul.f32.gmra.mxu0 %v573
      %v688 = vpop.f32.mrf.mxu0
      %v689 = vadd.f32 %v477, %v688
      %690 = vmatmul.f32.gmra.mxu0 %v576
      %v691 = vpop.f32.mrf.mxu0
      %v692 = vadd.f32 %v480, %v691
      %693 = vmatmul.f32.gmra.mxu0 %v579
      %v694 = vpop.f32.mrf.mxu0
      %v695 = vadd.f32 %v483, %v694
      %696 = vmatmul.f32.gmra.mxu0 %v582
      %v697 = vpop.f32.mrf.mxu0
      %v698 = vadd.f32 %v486, %v697
      %699 = vmatmul.f32.gmra.mxu0 %v585
      %v700 = vpop.f32.mrf.mxu0
      %v701 = vadd.f32 %v489, %v700
      %702 = vmatmul.f32.gmra.mxu0 %v588
      %v703 = vpop.f32.mrf.mxu0
      %v704 = vadd.f32 %v492, %v703
      %705 = vmatmul.f32.gmra.mxu0 %v591
      %v706 = vpop.f32.mrf.mxu0
      %v707 = vadd.f32 %v495, %v706
      %708 = vmatmul.f32.gmra.mxu0 %v594
      %v709 = vpop.f32.mrf.mxu0
      %v710 = vadd.f32 %v498, %v709
      %711 = vmatmul.f32.gmra.mxu0 %v597
      %v712 = vpop.f32.mrf.mxu0
      %v713 = vadd.f32 %v501, %v712
      %714 = vmatmul.f32.gmra.mxu0 %v600
      %v715 = vpop.f32.mrf.mxu0
      %v716 = vadd.f32 %v504, %v715
      %717 = vmatmul.f32.gmra.mxu0 %v603
      %v718 = vpop.f32.mrf.mxu0
      %v719 = vadd.f32 %v507, %v718
      %720 = vmatmul.f32.gmra.mxu0 %v606
      %v721 = vpop.f32.mrf.mxu0
      %v722 = vadd.f32 %v510, %v721
      %723 = vmatmul.f32.gmra.mxu0 %v609
      %v724 = vpop.f32.mrf.mxu0
      %v725 = vadd.f32 %v513, %v724
      %726 = vmatmul.f32.gmra.mxu0 %v612
      %v727 = vpop.f32.mrf.mxu0
      %v728 = vadd.f32 %v516, %v727
      %729 = vmatmul.f32.gmra.mxu0 %v615
      %v730 = vpop.f32.mrf.mxu0
      %v731 = vadd.f32 %v519, %v730
      %732 = vmatmul.f32.gmra.mxu0 %v618
      %v733 = vpop.f32.mrf.mxu0
      %v734 = vadd.f32 %v522, %v733
      %735 = vmatmul.f32.gmra.mxu0 %v621
      %v736 = vpop.f32.mrf.mxu0
      %v737 = vadd.f32 %v525, %v736
      %738 = vmatmul.f32.gmra.mxu0 %v624
      %v739 = vpop.f32.mrf.mxu0
      %v740 = vadd.f32 %v528, %v739
      %741 = vdwg.mxu0
      %v742 = vld [vmem:[%s4] sm:$0x1]
      %v744 = vperm.slane %v742, 0
      %v746 = vadd.f32 %v647, %v744
      %v747 = vadd.f32 %v650, %v744
      %v748 = vadd.f32 %v653, %v744
      %v749 = vadd.f32 %v656, %v744
      %v750 = vadd.f32 %v659, %v744
      %v751 = vadd.f32 %v662, %v744
      %v752 = vadd.f32 %v665, %v744
      %v753 = vadd.f32 %v668, %v744
      %v754 = vadd.f32 %v671, %v744
      %v755 = vadd.f32 %v674, %v744
      %v756 = vadd.f32 %v677, %v744
      %v757 = vadd.f32 %v680, %v744
      %v758 = vadd.f32 %v683, %v744
      %v759 = vadd.f32 %v686, %v744
      %v760 = vadd.f32 %v689, %v744
      %v761 = vadd.f32 %v692, %v744
      %v762 = vadd.f32 %v695, %v744
      %v763 = vadd.f32 %v698, %v744
      %v764 = vadd.f32 %v701, %v744
      %v765 = vadd.f32 %v704, %v744
      %v766 = vadd.f32 %v707, %v744
      %v767 = vadd.f32 %v710, %v744
      %v768 = vadd.f32 %v713, %v744
      %v769 = vadd.f32 %v716, %v744
      %v770 = vadd.f32 %v719, %v744
      %v771 = vadd.f32 %v722, %v744
      %v772 = vadd.f32 %v725, %v744
      %v773 = vadd.f32 %v728, %v744
      %v774 = vadd.f32 %v731, %v744
      %v775 = vadd.f32 %v734, %v744
      %v776 = vadd.f32 %v737, %v744
      %v777 = vadd.f32 %v740, %v744
      %v778 = vxor.u32 %v746, 2147483648
      %v779 = vxor.u32 %v747, 2147483648
      %v780 = vxor.u32 %v748, 2147483648
      %v781 = vxor.u32 %v749, 2147483648
      %v782 = vxor.u32 %v750, 2147483648
      %v783 = vxor.u32 %v751, 2147483648
      %v784 = vxor.u32 %v752, 2147483648
      %v785 = vxor.u32 %v753, 2147483648
      %v786 = vxor.u32 %v754, 2147483648
      %v787 = vxor.u32 %v755, 2147483648
      %v788 = vxor.u32 %v756, 2147483648
      %v789 = vxor.u32 %v757, 2147483648
      %v790 = vxor.u32 %v758, 2147483648
      %v791 = vxor.u32 %v759, 2147483648
      %v792 = vxor.u32 %v760, 2147483648
      %v793 = vxor.u32 %v761, 2147483648
      %v794 = vxor.u32 %v762, 2147483648
      %v795 = vxor.u32 %v763, 2147483648
      %v796 = vxor.u32 %v764, 2147483648
      %v797 = vxor.u32 %v765, 2147483648
      %v798 = vxor.u32 %v766, 2147483648
      %v799 = vxor.u32 %v767, 2147483648
      %v800 = vxor.u32 %v768, 2147483648
      %v801 = vxor.u32 %v769, 2147483648
      %v802 = vxor.u32 %v770, 2147483648
      %v803 = vxor.u32 %v771, 2147483648
      %v804 = vxor.u32 %v772, 2147483648
      %v805 = vxor.u32 %v773, 2147483648
      %v806 = vxor.u32 %v774, 2147483648
      %v807 = vxor.u32 %v775, 2147483648
      %v808 = vxor.u32 %v776, 2147483648
      %v809 = vxor.u32 %v777, 2147483648
      %v810 = vmul.f32 %v778, 1.442695
      %v811 = vpow.pop %v810
      %v812 = vmul.f32 %v779, 1.442695
      %v813 = vpow.pop %v812
      %v814 = vmul.f32 %v780, 1.442695
      %v815 = vpow.pop %v814
      %v816 = vmul.f32 %v781, 1.442695
      %v817 = vpow.pop %v816
      %v818 = vmul.f32 %v782, 1.442695
      %v819 = vpow.pop %v818
      %v820 = vmul.f32 %v783, 1.442695
      %v821 = vpow.pop %v820
      %v822 = vmul.f32 %v784, 1.442695
      %v823 = vpow.pop %v822
      %v824 = vmul.f32 %v785, 1.442695
      %v825 = vpow.pop %v824
      %v826 = vmul.f32 %v786, 1.442695
      %v827 = vpow.pop %v826
      %v828 = vmul.f32 %v787, 1.442695
      %v829 = vpow.pop %v828
      %v830 = vmul.f32 %v788, 1.442695
      %v831 = vpow.pop %v830
      %v832 = vmul.f32 %v789, 1.442695
      %v833 = vpow.pop %v832
      %v834 = vmul.f32 %v790, 1.442695
      %v835 = vpow.pop %v834
      %v836 = vmul.f32 %v791, 1.442695
      %v837 = vpow.pop %v836
      %v838 = vmul.f32 %v792, 1.442695
      %v839 = vpow.pop %v838
      %v840 = vmul.f32 %v793, 1.442695
      %v841 = vpow.pop %v840
      %v842 = vmul.f32 %v794, 1.442695
      %v843 = vpow.pop %v842
      %v844 = vmul.f32 %v795, 1.442695
      %v845 = vpow.pop %v844
      %v846 = vmul.f32 %v796, 1.442695
      %v847 = vpow.pop %v846
      %v848 = vmul.f32 %v797, 1.442695
      %v849 = vpow.pop %v848
      %v850 = vmul.f32 %v798, 1.442695
      %v851 = vpow.pop %v850
      %v852 = vmul.f32 %v799, 1.442695
      %v853 = vpow.pop %v852
      %v854 = vmul.f32 %v800, 1.442695
      %v855 = vpow.pop %v854
      %v856 = vmul.f32 %v801, 1.442695
      %v857 = vpow.pop %v856
      %v858 = vmul.f32 %v802, 1.442695
      %v859 = vpow.pop %v858
      %v860 = vmul.f32 %v803, 1.442695
      %v861 = vpow.pop %v860
      %v862 = vmul.f32 %v804, 1.442695
      %v863 = vpow.pop %v862
      %v864 = vmul.f32 %v805, 1.442695
      %v865 = vpow.pop %v864
      %v866 = vmul.f32 %v806, 1.442695
      %v867 = vpow.pop %v866
      %v868 = vmul.f32 %v807, 1.442695
      %v869 = vpow.pop %v868
      %v870 = vmul.f32 %v808, 1.442695
      %v871 = vpow.pop %v870
      %v872 = vmul.f32 %v809, 1.442695
      %v873 = vpow.pop %v872
      %v874 = vadd.f32 %v811, 1.0
      %v875 = vadd.f32 %v813, 1.0
      %v876 = vadd.f32 %v815, 1.0
      %v877 = vadd.f32 %v817, 1.0
      %v878 = vadd.f32 %v819, 1.0
      %v879 = vadd.f32 %v821, 1.0
      %v880 = vadd.f32 %v823, 1.0
      %v881 = vadd.f32 %v825, 1.0
      %v882 = vadd.f32 %v827, 1.0
      %v883 = vadd.f32 %v829, 1.0
      %v884 = vadd.f32 %v831, 1.0
      %v885 = vadd.f32 %v833, 1.0
      %v886 = vadd.f32 %v835, 1.0
      %v887 = vadd.f32 %v837, 1.0
      %v888 = vadd.f32 %v839, 1.0
      %v889 = vadd.f32 %v841, 1.0
      %v890 = vadd.f32 %v843, 1.0
      %v891 = vadd.f32 %v845, 1.0
      %v892 = vadd.f32 %v847, 1.0
      %v893 = vadd.f32 %v849, 1.0
      %v894 = vadd.f32 %v851, 1.0
      %v895 = vadd.f32 %v853, 1.0
      %v896 = vadd.f32 %v855, 1.0
      %v897 = vadd.f32 %v857, 1.0
      %v898 = vadd.f32 %v859, 1.0
      %v899 = vadd.f32 %v861, 1.0
      %v900 = vadd.f32 %v863, 1.0
      %v901 = vadd.f32 %v865, 1.0
      %v902 = vadd.f32 %v867, 1.0
      %v903 = vadd.f32 %v869, 1.0
      %v904 = vadd.f32 %v871, 1.0
      %v905 = vadd.f32 %v873, 1.0
      %v906 = vrcp.pop %v874
      %v907 = vmul.f32 %v874, %v906
      %v908 = vsub.f32 1.0, %v907
      %v909 = vmul.f32 %v906, %v908
      %v910 = vadd.f32 %v906, %v909
      %vm911 = vweird.f32 %v874
      %vm912 = vweird.f32 %v906
      %vm913 = vmor %vm911, %vm912
      %v914 = vsel %vm913, %v906, %v910
      %v915 = vand.u32 2147483647, %v874
      %vm916 = vcmp.eq.f32.partialorder %v915, 8.507059e+37
      %v917 = vand.u32 %v874, 2147483648
      %v918 = vor.u32 1.1754944e-38, %v917
      %v919 = vsel %vm916, %v918, %v914
      %v920 = vmul.f32 1.0, %v919
      %v921 = vrcp.pop %v875
      %v922 = vmul.f32 %v875, %v921
      %v923 = vsub.f32 1.0, %v922
      %v924 = vmul.f32 %v921, %v923
      %v925 = vadd.f32 %v921, %v924
      %vm926 = vweird.f32 %v875
      %vm927 = vweird.f32 %v921
      %vm928 = vmor %vm926, %vm927
      %v929 = vsel %vm928, %v921, %v925
      %v930 = vand.u32 2147483647, %v875
      %vm931 = vcmp.eq.f32.partialorder %v930, 8.507059e+37
      %v932 = vand.u32 %v875, 2147483648
      %v933 = vor.u32 1.1754944e-38, %v932
      %v934 = vsel %vm931, %v933, %v929
      %v935 = vmul.f32 1.0, %v934
      %v936 = vrcp.pop %v876
      %v937 = vmul.f32 %v876, %v936
      %v938 = vsub.f32 1.0, %v937
      %v939 = vmul.f32 %v936, %v938
      %v940 = vadd.f32 %v936, %v939
      %vm941 = vweird.f32 %v876
      %vm942 = vweird.f32 %v936
      %vm943 = vmor %vm941, %vm942
      %v944 = vsel %vm943, %v936, %v940
      %v945 = vand.u32 2147483647, %v876
      %vm946 = vcmp.eq.f32.partialorder %v945, 8.507059e+37
      %v947 = vand.u32 %v876, 2147483648
      %v948 = vor.u32 1.1754944e-38, %v947
      %v949 = vsel %vm946, %v948, %v944
      %v950 = vmul.f32 1.0, %v949
      %v951 = vrcp.pop %v877
      %v952 = vmul.f32 %v877, %v951
      %v953 = vsub.f32 1.0, %v952
      %v954 = vmul.f32 %v951, %v953
      %v955 = vadd.f32 %v951, %v954
      %vm956 = vweird.f32 %v877
      %vm957 = vweird.f32 %v951
      %vm958 = vmor %vm956, %vm957
      %v959 = vsel %vm958, %v951, %v955
      %v960 = vand.u32 2147483647, %v877
      %vm961 = vcmp.eq.f32.partialorder %v960, 8.507059e+37
      %v962 = vand.u32 %v877, 2147483648
      %v963 = vor.u32 1.1754944e-38, %v962
      %v964 = vsel %vm961, %v963, %v959
      %v965 = vmul.f32 1.0, %v964
      %v966 = vrcp.pop %v878
      %v967 = vmul.f32 %v878, %v966
      %v968 = vsub.f32 1.0, %v967
      %v969 = vmul.f32 %v966, %v968
      %v970 = vadd.f32 %v966, %v969
      %vm971 = vweird.f32 %v878
      %vm972 = vweird.f32 %v966
      %vm973 = vmor %vm971, %vm972
      %v974 = vsel %vm973, %v966, %v970
      %v975 = vand.u32 2147483647, %v878
      %vm976 = vcmp.eq.f32.partialorder %v975, 8.507059e+37
      %v977 = vand.u32 %v878, 2147483648
      %v978 = vor.u32 1.1754944e-38, %v977
      %v979 = vsel %vm976, %v978, %v974
      %v980 = vmul.f32 1.0, %v979
      %v981 = vrcp.pop %v879
      %v982 = vmul.f32 %v879, %v981
      %v983 = vsub.f32 1.0, %v982
      %v984 = vmul.f32 %v981, %v983
      %v985 = vadd.f32 %v981, %v984
      %vm986 = vweird.f32 %v879
      %vm987 = vweird.f32 %v981
      %vm988 = vmor %vm986, %vm987
      %v989 = vsel %vm988, %v981, %v985
      %v990 = vand.u32 2147483647, %v879
      %vm991 = vcmp.eq.f32.partialorder %v990, 8.507059e+37
      %v992 = vand.u32 %v879, 2147483648
      %v993 = vor.u32 1.1754944e-38, %v992
      %v994 = vsel %vm991, %v993, %v989
      %v995 = vmul.f32 1.0, %v994
      %v996 = vrcp.pop %v880
      %v997 = vmul.f32 %v880, %v996
      %v998 = vsub.f32 1.0, %v997
      %v999 = vmul.f32 %v996, %v998
      %v1000 = vadd.f32 %v996, %v999
      %vm1001 = vweird.f32 %v880
      %vm1002 = vweird.f32 %v996
      %vm1003 = vmor %vm1001, %vm1002
      %v1004 = vsel %vm1003, %v996, %v1000
      %v1005 = vand.u32 2147483647, %v880
      %vm1006 = vcmp.eq.f32.partialorder %v1005, 8.507059e+37
      %v1007 = vand.u32 %v880, 2147483648
      %v1008 = vor.u32 1.1754944e-38, %v1007
      %v1009 = vsel %vm1006, %v1008, %v1004
      %v1010 = vmul.f32 1.0, %v1009
      %v1011 = vrcp.pop %v881
      %v1012 = vmul.f32 %v881, %v1011
      %v1013 = vsub.f32 1.0, %v1012
      %v1014 = vmul.f32 %v1011, %v1013
      %v1015 = vadd.f32 %v1011, %v1014
      %vm1016 = vweird.f32 %v881
      %vm1017 = vweird.f32 %v1011
      %vm1018 = vmor %vm1016, %vm1017
      %v1019 = vsel %vm1018, %v1011, %v1015
      %v1020 = vand.u32 2147483647, %v881
      %vm1021 = vcmp.eq.f32.partialorder %v1020, 8.507059e+37
      %v1022 = vand.u32 %v881, 2147483648
      %v1023 = vor.u32 1.1754944e-38, %v1022
      %v1024 = vsel %vm1021, %v1023, %v1019
      %v1025 = vmul.f32 1.0, %v1024
      %v1026 = vrcp.pop %v882
      %v1027 = vmul.f32 %v882, %v1026
      %v1028 = vsub.f32 1.0, %v1027
      %v1029 = vmul.f32 %v1026, %v1028
      %v1030 = vadd.f32 %v1026, %v1029
      %vm1031 = vweird.f32 %v882
      %vm1032 = vweird.f32 %v1026
      %vm1033 = vmor %vm1031, %vm1032
      %v1034 = vsel %vm1033, %v1026, %v1030
      %v1035 = vand.u32 2147483647, %v882
      %vm1036 = vcmp.eq.f32.partialorder %v1035, 8.507059e+37
      %v1037 = vand.u32 %v882, 2147483648
      %v1038 = vor.u32 1.1754944e-38, %v1037
      %v1039 = vsel %vm1036, %v1038, %v1034
      %v1040 = vmul.f32 1.0, %v1039
      %v1041 = vrcp.pop %v883
      %v1042 = vmul.f32 %v883, %v1041
      %v1043 = vsub.f32 1.0, %v1042
      %v1044 = vmul.f32 %v1041, %v1043
      %v1045 = vadd.f32 %v1041, %v1044
      %vm1046 = vweird.f32 %v883
      %vm1047 = vweird.f32 %v1041
      %vm1048 = vmor %vm1046, %vm1047
      %v1049 = vsel %vm1048, %v1041, %v1045
      %v1050 = vand.u32 2147483647, %v883
      %vm1051 = vcmp.eq.f32.partialorder %v1050, 8.507059e+37
      %v1052 = vand.u32 %v883, 2147483648
      %v1053 = vor.u32 1.1754944e-38, %v1052
      %v1054 = vsel %vm1051, %v1053, %v1049
      %v1055 = vmul.f32 1.0, %v1054
      %v1056 = vrcp.pop %v884
      %v1057 = vmul.f32 %v884, %v1056
      %v1058 = vsub.f32 1.0, %v1057
      %v1059 = vmul.f32 %v1056, %v1058
      %v1060 = vadd.f32 %v1056, %v1059
      %vm1061 = vweird.f32 %v884
      %vm1062 = vweird.f32 %v1056
      %vm1063 = vmor %vm1061, %vm1062
      %v1064 = vsel %vm1063, %v1056, %v1060
      %v1065 = vand.u32 2147483647, %v884
      %vm1066 = vcmp.eq.f32.partialorder %v1065, 8.507059e+37
      %v1067 = vand.u32 %v884, 2147483648
      %v1068 = vor.u32 1.1754944e-38, %v1067
      %v1069 = vsel %vm1066, %v1068, %v1064
      %v1070 = vmul.f32 1.0, %v1069
      %v1071 = vrcp.pop %v885
      %v1072 = vmul.f32 %v885, %v1071
      %v1073 = vsub.f32 1.0, %v1072
      %v1074 = vmul.f32 %v1071, %v1073
      %v1075 = vadd.f32 %v1071, %v1074
      %vm1076 = vweird.f32 %v885
      %vm1077 = vweird.f32 %v1071
      %vm1078 = vmor %vm1076, %vm1077
      %v1079 = vsel %vm1078, %v1071, %v1075
      %v1080 = vand.u32 2147483647, %v885
      %vm1081 = vcmp.eq.f32.partialorder %v1080, 8.507059e+37
      %v1082 = vand.u32 %v885, 2147483648
      %v1083 = vor.u32 1.1754944e-38, %v1082
      %v1084 = vsel %vm1081, %v1083, %v1079
      %v1085 = vmul.f32 1.0, %v1084
      %v1086 = vrcp.pop %v886
      %v1087 = vmul.f32 %v886, %v1086
      %v1088 = vsub.f32 1.0, %v1087
      %v1089 = vmul.f32 %v1086, %v1088
      %v1090 = vadd.f32 %v1086, %v1089
      %vm1091 = vweird.f32 %v886
      %vm1092 = vweird.f32 %v1086
      %vm1093 = vmor %vm1091, %vm1092
      %v1094 = vsel %vm1093, %v1086, %v1090
      %v1095 = vand.u32 2147483647, %v886
      %vm1096 = vcmp.eq.f32.partialorder %v1095, 8.507059e+37
      %v1097 = vand.u32 %v886, 2147483648
      %v1098 = vor.u32 1.1754944e-38, %v1097
      %v1099 = vsel %vm1096, %v1098, %v1094
      %v1100 = vmul.f32 1.0, %v1099
      %v1101 = vrcp.pop %v887
      %v1102 = vmul.f32 %v887, %v1101
      %v1103 = vsub.f32 1.0, %v1102
      %v1104 = vmul.f32 %v1101, %v1103
      %v1105 = vadd.f32 %v1101, %v1104
      %vm1106 = vweird.f32 %v887
      %vm1107 = vweird.f32 %v1101
      %vm1108 = vmor %vm1106, %vm1107
      %v1109 = vsel %vm1108, %v1101, %v1105
      %v1110 = vand.u32 2147483647, %v887
      %vm1111 = vcmp.eq.f32.partialorder %v1110, 8.507059e+37
      %v1112 = vand.u32 %v887, 2147483648
      %v1113 = vor.u32 1.1754944e-38, %v1112
      %v1114 = vsel %vm1111, %v1113, %v1109
      %v1115 = vmul.f32 1.0, %v1114
      %v1116 = vrcp.pop %v888
      %v1117 = vmul.f32 %v888, %v1116
      %v1118 = vsub.f32 1.0, %v1117
      %v1119 = vmul.f32 %v1116, %v1118
      %v1120 = vadd.f32 %v1116, %v1119
      %vm1121 = vweird.f32 %v888
      %vm1122 = vweird.f32 %v1116
      %vm1123 = vmor %vm1121, %vm1122
      %v1124 = vsel %vm1123, %v1116, %v1120
      %v1125 = vand.u32 2147483647, %v888
      %vm1126 = vcmp.eq.f32.partialorder %v1125, 8.507059e+37
      %v1127 = vand.u32 %v888, 2147483648
      %v1128 = vor.u32 1.1754944e-38, %v1127
      %v1129 = vsel %vm1126, %v1128, %v1124
      %v1130 = vmul.f32 1.0, %v1129
      %v1131 = vrcp.pop %v889
      %v1132 = vmul.f32 %v889, %v1131
      %v1133 = vsub.f32 1.0, %v1132
      %v1134 = vmul.f32 %v1131, %v1133
      %v1135 = vadd.f32 %v1131, %v1134
      %vm1136 = vweird.f32 %v889
      %vm1137 = vweird.f32 %v1131
      %vm1138 = vmor %vm1136, %vm1137
      %v1139 = vsel %vm1138, %v1131, %v1135
      %v1140 = vand.u32 2147483647, %v889
      %vm1141 = vcmp.eq.f32.partialorder %v1140, 8.507059e+37
      %v1142 = vand.u32 %v889, 2147483648
      %v1143 = vor.u32 1.1754944e-38, %v1142
      %v1144 = vsel %vm1141, %v1143, %v1139
      %v1145 = vmul.f32 1.0, %v1144
      %v1146 = vrcp.pop %v890
      %v1147 = vmul.f32 %v890, %v1146
      %v1148 = vsub.f32 1.0, %v1147
      %v1149 = vmul.f32 %v1146, %v1148
      %v1150 = vadd.f32 %v1146, %v1149
      %vm1151 = vweird.f32 %v890
      %vm1152 = vweird.f32 %v1146
      %vm1153 = vmor %vm1151, %vm1152
      %v1154 = vsel %vm1153, %v1146, %v1150
      %v1155 = vand.u32 2147483647, %v890
      %vm1156 = vcmp.eq.f32.partialorder %v1155, 8.507059e+37
      %v1157 = vand.u32 %v890, 2147483648
      %v1158 = vor.u32 1.1754944e-38, %v1157
      %v1159 = vsel %vm1156, %v1158, %v1154
      %v1160 = vmul.f32 1.0, %v1159
      %v1161 = vrcp.pop %v891
      %v1162 = vmul.f32 %v891, %v1161
      %v1163 = vsub.f32 1.0, %v1162
      %v1164 = vmul.f32 %v1161, %v1163
      %v1165 = vadd.f32 %v1161, %v1164
      %vm1166 = vweird.f32 %v891
      %vm1167 = vweird.f32 %v1161
      %vm1168 = vmor %vm1166, %vm1167
      %v1169 = vsel %vm1168, %v1161, %v1165
      %v1170 = vand.u32 2147483647, %v891
      %vm1171 = vcmp.eq.f32.partialorder %v1170, 8.507059e+37
      %v1172 = vand.u32 %v891, 2147483648
      %v1173 = vor.u32 1.1754944e-38, %v1172
      %v1174 = vsel %vm1171, %v1173, %v1169
      %v1175 = vmul.f32 1.0, %v1174
      %v1176 = vrcp.pop %v892
      %v1177 = vmul.f32 %v892, %v1176
      %v1178 = vsub.f32 1.0, %v1177
      %v1179 = vmul.f32 %v1176, %v1178
      %v1180 = vadd.f32 %v1176, %v1179
      %vm1181 = vweird.f32 %v892
      %vm1182 = vweird.f32 %v1176
      %vm1183 = vmor %vm1181, %vm1182
      %v1184 = vsel %vm1183, %v1176, %v1180
      %v1185 = vand.u32 2147483647, %v892
      %vm1186 = vcmp.eq.f32.partialorder %v1185, 8.507059e+37
      %v1187 = vand.u32 %v892, 2147483648
      %v1188 = vor.u32 1.1754944e-38, %v1187
      %v1189 = vsel %vm1186, %v1188, %v1184
      %v1190 = vmul.f32 1.0, %v1189
      %v1191 = vrcp.pop %v893
      %v1192 = vmul.f32 %v893, %v1191
      %v1193 = vsub.f32 1.0, %v1192
      %v1194 = vmul.f32 %v1191, %v1193
      %v1195 = vadd.f32 %v1191, %v1194
      %vm1196 = vweird.f32 %v893
      %vm1197 = vweird.f32 %v1191
      %vm1198 = vmor %vm1196, %vm1197
      %v1199 = vsel %vm1198, %v1191, %v1195
      %v1200 = vand.u32 2147483647, %v893
      %vm1201 = vcmp.eq.f32.partialorder %v1200, 8.507059e+37
      %v1202 = vand.u32 %v893, 2147483648
      %v1203 = vor.u32 1.1754944e-38, %v1202
      %v1204 = vsel %vm1201, %v1203, %v1199
      %v1205 = vmul.f32 1.0, %v1204
      %v1206 = vrcp.pop %v894
      %v1207 = vmul.f32 %v894, %v1206
      %v1208 = vsub.f32 1.0, %v1207
      %v1209 = vmul.f32 %v1206, %v1208
      %v1210 = vadd.f32 %v1206, %v1209
      %vm1211 = vweird.f32 %v894
      %vm1212 = vweird.f32 %v1206
      %vm1213 = vmor %vm1211, %vm1212
      %v1214 = vsel %vm1213, %v1206, %v1210
      %v1215 = vand.u32 2147483647, %v894
      %vm1216 = vcmp.eq.f32.partialorder %v1215, 8.507059e+37
      %v1217 = vand.u32 %v894, 2147483648
      %v1218 = vor.u32 1.1754944e-38, %v1217
      %v1219 = vsel %vm1216, %v1218, %v1214
      %v1220 = vmul.f32 1.0, %v1219
      %v1221 = vrcp.pop %v895
      %v1222 = vmul.f32 %v895, %v1221
      %v1223 = vsub.f32 1.0, %v1222
      %v1224 = vmul.f32 %v1221, %v1223
      %v1225 = vadd.f32 %v1221, %v1224
      %vm1226 = vweird.f32 %v895
      %vm1227 = vweird.f32 %v1221
      %vm1228 = vmor %vm1226, %vm1227
      %v1229 = vsel %vm1228, %v1221, %v1225
      %v1230 = vand.u32 2147483647, %v895
      %vm1231 = vcmp.eq.f32.partialorder %v1230, 8.507059e+37
      %v1232 = vand.u32 %v895, 2147483648
      %v1233 = vor.u32 1.1754944e-38, %v1232
      %v1234 = vsel %vm1231, %v1233, %v1229
      %v1235 = vmul.f32 1.0, %v1234
      %v1236 = vrcp.pop %v896
      %v1237 = vmul.f32 %v896, %v1236
      %v1238 = vsub.f32 1.0, %v1237
      %v1239 = vmul.f32 %v1236, %v1238
      %v1240 = vadd.f32 %v1236, %v1239
      %vm1241 = vweird.f32 %v896
      %vm1242 = vweird.f32 %v1236
      %vm1243 = vmor %vm1241, %vm1242
      %v1244 = vsel %vm1243, %v1236, %v1240
      %v1245 = vand.u32 2147483647, %v896
      %vm1246 = vcmp.eq.f32.partialorder %v1245, 8.507059e+37
      %v1247 = vand.u32 %v896, 2147483648
      %v1248 = vor.u32 1.1754944e-38, %v1247
      %v1249 = vsel %vm1246, %v1248, %v1244
      %v1250 = vmul.f32 1.0, %v1249
      %v1251 = vrcp.pop %v897
      %v1252 = vmul.f32 %v897, %v1251
      %v1253 = vsub.f32 1.0, %v1252
      %v1254 = vmul.f32 %v1251, %v1253
      %v1255 = vadd.f32 %v1251, %v1254
      %vm1256 = vweird.f32 %v897
      %vm1257 = vweird.f32 %v1251
      %vm1258 = vmor %vm1256, %vm1257
      %v1259 = vsel %vm1258, %v1251, %v1255
      %v1260 = vand.u32 2147483647, %v897
      %vm1261 = vcmp.eq.f32.partialorder %v1260, 8.507059e+37
      %v1262 = vand.u32 %v897, 2147483648
      %v1263 = vor.u32 1.1754944e-38, %v1262
      %v1264 = vsel %vm1261, %v1263, %v1259
      %v1265 = vmul.f32 1.0, %v1264
      %v1266 = vrcp.pop %v898
      %v1267 = vmul.f32 %v898, %v1266
      %v1268 = vsub.f32 1.0, %v1267
      %v1269 = vmul.f32 %v1266, %v1268
      %v1270 = vadd.f32 %v1266, %v1269
      %vm1271 = vweird.f32 %v898
      %vm1272 = vweird.f32 %v1266
      %vm1273 = vmor %vm1271, %vm1272
      %v1274 = vsel %vm1273, %v1266, %v1270
      %v1275 = vand.u32 2147483647, %v898
      %vm1276 = vcmp.eq.f32.partialorder %v1275, 8.507059e+37
      %v1277 = vand.u32 %v898, 2147483648
      %v1278 = vor.u32 1.1754944e-38, %v1277
      %v1279 = vsel %vm1276, %v1278, %v1274
      %v1280 = vmul.f32 1.0, %v1279
      %v1281 = vrcp.pop %v899
      %v1282 = vmul.f32 %v899, %v1281
      %v1283 = vsub.f32 1.0, %v1282
      %v1284 = vmul.f32 %v1281, %v1283
      %v1285 = vadd.f32 %v1281, %v1284
      %vm1286 = vweird.f32 %v899
      %vm1287 = vweird.f32 %v1281
      %vm1288 = vmor %vm1286, %vm1287
      %v1289 = vsel %vm1288, %v1281, %v1285
      %v1290 = vand.u32 2147483647, %v899
      %vm1291 = vcmp.eq.f32.partialorder %v1290, 8.507059e+37
      %v1292 = vand.u32 %v899, 2147483648
      %v1293 = vor.u32 1.1754944e-38, %v1292
      %v1294 = vsel %vm1291, %v1293, %v1289
      %v1295 = vmul.f32 1.0, %v1294
      %v1296 = vrcp.pop %v900
      %v1297 = vmul.f32 %v900, %v1296
      %v1298 = vsub.f32 1.0, %v1297
      %v1299 = vmul.f32 %v1296, %v1298
      %v1300 = vadd.f32 %v1296, %v1299
      %vm1301 = vweird.f32 %v900
      %vm1302 = vweird.f32 %v1296
      %vm1303 = vmor %vm1301, %vm1302
      %v1304 = vsel %vm1303, %v1296, %v1300
      %v1305 = vand.u32 2147483647, %v900
      %vm1306 = vcmp.eq.f32.partialorder %v1305, 8.507059e+37
      %v1307 = vand.u32 %v900, 2147483648
      %v1308 = vor.u32 1.1754944e-38, %v1307
      %v1309 = vsel %vm1306, %v1308, %v1304
      %v1310 = vmul.f32 1.0, %v1309
      %v1311 = vrcp.pop %v901
      %v1312 = vmul.f32 %v901, %v1311
      %v1313 = vsub.f32 1.0, %v1312
      %v1314 = vmul.f32 %v1311, %v1313
      %v1315 = vadd.f32 %v1311, %v1314
      %vm1316 = vweird.f32 %v901
      %vm1317 = vweird.f32 %v1311
      %vm1318 = vmor %vm1316, %vm1317
      %v1319 = vsel %vm1318, %v1311, %v1315
      %v1320 = vand.u32 2147483647, %v901
      %vm1321 = vcmp.eq.f32.partialorder %v1320, 8.507059e+37
      %v1322 = vand.u32 %v901, 2147483648
      %v1323 = vor.u32 1.1754944e-38, %v1322
      %v1324 = vsel %vm1321, %v1323, %v1319
      %v1325 = vmul.f32 1.0, %v1324
      %v1326 = vrcp.pop %v902
      %v1327 = vmul.f32 %v902, %v1326
      %v1328 = vsub.f32 1.0, %v1327
      %v1329 = vmul.f32 %v1326, %v1328
      %v1330 = vadd.f32 %v1326, %v1329
      %vm1331 = vweird.f32 %v902
      %vm1332 = vweird.f32 %v1326
      %vm1333 = vmor %vm1331, %vm1332
      %v1334 = vsel %vm1333, %v1326, %v1330
      %v1335 = vand.u32 2147483647, %v902
      %vm1336 = vcmp.eq.f32.partialorder %v1335, 8.507059e+37
      %v1337 = vand.u32 %v902, 2147483648
      %v1338 = vor.u32 1.1754944e-38, %v1337
      %v1339 = vsel %vm1336, %v1338, %v1334
      %v1340 = vmul.f32 1.0, %v1339
      %v1341 = vrcp.pop %v903
      %v1342 = vmul.f32 %v903, %v1341
      %v1343 = vsub.f32 1.0, %v1342
      %v1344 = vmul.f32 %v1341, %v1343
      %v1345 = vadd.f32 %v1341, %v1344
      %vm1346 = vweird.f32 %v903
      %vm1347 = vweird.f32 %v1341
      %vm1348 = vmor %vm1346, %vm1347
      %v1349 = vsel %vm1348, %v1341, %v1345
      %v1350 = vand.u32 2147483647, %v903
      %vm1351 = vcmp.eq.f32.partialorder %v1350, 8.507059e+37
      %v1352 = vand.u32 %v903, 2147483648
      %v1353 = vor.u32 1.1754944e-38, %v1352
      %v1354 = vsel %vm1351, %v1353, %v1349
      %v1355 = vmul.f32 1.0, %v1354
      %v1356 = vrcp.pop %v904
      %v1357 = vmul.f32 %v904, %v1356
      %v1358 = vsub.f32 1.0, %v1357
      %v1359 = vmul.f32 %v1356, %v1358
      %v1360 = vadd.f32 %v1356, %v1359
      %vm1361 = vweird.f32 %v904
      %vm1362 = vweird.f32 %v1356
      %vm1363 = vmor %vm1361, %vm1362
      %v1364 = vsel %vm1363, %v1356, %v1360
      %v1365 = vand.u32 2147483647, %v904
      %vm1366 = vcmp.eq.f32.partialorder %v1365, 8.507059e+37
      %v1367 = vand.u32 %v904, 2147483648
      %v1368 = vor.u32 1.1754944e-38, %v1367
      %v1369 = vsel %vm1366, %v1368, %v1364
      %v1370 = vmul.f32 1.0, %v1369
      %v1371 = vrcp.pop %v905
      %v1372 = vmul.f32 %v905, %v1371
      %v1373 = vsub.f32 1.0, %v1372
      %v1374 = vmul.f32 %v1371, %v1373
      %v1375 = vadd.f32 %v1371, %v1374
      %vm1376 = vweird.f32 %v905
      %vm1377 = vweird.f32 %v1371
      %vm1378 = vmor %vm1376, %vm1377
      %v1379 = vsel %vm1378, %v1371, %v1375
      %v1380 = vand.u32 2147483647, %v905
      %vm1381 = vcmp.eq.f32.partialorder %v1380, 8.507059e+37
      %v1382 = vand.u32 %v905, 2147483648
      %v1383 = vor.u32 1.1754944e-38, %v1382
      %v1384 = vsel %vm1381, %v1383, %v1379
      %v1385 = vmul.f32 1.0, %v1384
      %v1386 = vmul.f32 %v746, %v920
      %v1387 = vmul.f32 %v747, %v935
      %v1388 = vmul.f32 %v748, %v950
      %v1389 = vmul.f32 %v749, %v965
      %v1390 = vmul.f32 %v750, %v980
      %v1391 = vmul.f32 %v751, %v995
      %v1392 = vmul.f32 %v752, %v1010
      %v1393 = vmul.f32 %v753, %v1025
      %v1394 = vmul.f32 %v754, %v1040
      %v1395 = vmul.f32 %v755, %v1055
      %v1396 = vmul.f32 %v756, %v1070
      %v1397 = vmul.f32 %v757, %v1085
      %v1398 = vmul.f32 %v758, %v1100
      %v1399 = vmul.f32 %v759, %v1115
      %v1400 = vmul.f32 %v760, %v1130
      %v1401 = vmul.f32 %v761, %v1145
      %v1402 = vmul.f32 %v762, %v1160
      %v1403 = vmul.f32 %v763, %v1175
      %v1404 = vmul.f32 %v764, %v1190
      %v1405 = vmul.f32 %v765, %v1205
      %v1406 = vmul.f32 %v766, %v1220
      %v1407 = vmul.f32 %v767, %v1235
      %v1408 = vmul.f32 %v768, %v1250
      %v1409 = vmul.f32 %v769, %v1265
      %v1410 = vmul.f32 %v770, %v1280
      %v1411 = vmul.f32 %v771, %v1295
      %v1412 = vmul.f32 %v772, %v1310
      %v1413 = vmul.f32 %v773, %v1325
      %v1414 = vmul.f32 %v774, %v1340
      %v1415 = vmul.f32 %v775, %v1355
      %v1416 = vmul.f32 %v776, %v1370
      %v1417 = vmul.f32 %v777, %v1385
      %vm1418 = vcmask 64512
      %1419 = vst.msk [vmem:[%s248] sm:$0xff] %vm1418, %v1386
      %1420 = vst.msk [vmem:[%s248 + $0x8] sm:$0xff] %vm1418, %v1387
      %1421 = vst.msk [vmem:[%s248 + $0x10] sm:$0xff] %vm1418, %v1388
      %1422 = vst.msk [vmem:[%s248 + $0x18] sm:$0xff] %vm1418, %v1389
      %1423 = vst.msk [vmem:[%s248 + $0x20] sm:$0xff] %vm1418, %v1390
      %1424 = vst.msk [vmem:[%s248 + $0x28] sm:$0xff] %vm1418, %v1391
      %1425 = vst.msk [vmem:[%s248 + $0x30] sm:$0xff] %vm1418, %v1392
      %1426 = vst.msk [vmem:[%s248 + $0x38] sm:$0xff] %vm1418, %v1393
      %1427 = vst.msk [vmem:[%s248 + $0x40] sm:$0xff] %vm1418, %v1394
      %1428 = vst.msk [vmem:[%s248 + $0x48] sm:$0xff] %vm1418, %v1395
      %1429 = vst.msk [vmem:[%s248 + $0x50] sm:$0xff] %vm1418, %v1396
      %1430 = vst.msk [vmem:[%s248 + $0x58] sm:$0xff] %vm1418, %v1397
      %1431 = vst.msk [vmem:[%s248 + $0x60] sm:$0xff] %vm1418, %v1398
      %1432 = vst.msk [vmem:[%s248 + $0x68] sm:$0xff] %vm1418, %v1399
      %1433 = vst.msk [vmem:[%s248 + $0x70] sm:$0xff] %vm1418, %v1400
      %1434 = vst.msk [vmem:[%s248 + $0x78] sm:$0xff] %vm1418, %v1401
      %1435 = vst.msk [vmem:[%s248 + $0x80] sm:$0xff] %vm1418, %v1402
      %1436 = vst.msk [vmem:[%s248 + $0x88] sm:$0xff] %vm1418, %v1403
      %1437 = vst.msk [vmem:[%s248 + $0x90] sm:$0xff] %vm1418, %v1404
      %1438 = vst.msk [vmem:[%s248 + $0x98] sm:$0xff] %vm1418, %v1405
      %1439 = vst.msk [vmem:[%s248 + $0xa0] sm:$0xff] %vm1418, %v1406
      %1440 = vst.msk [vmem:[%s248 + $0xa8] sm:$0xff] %vm1418, %v1407
      %1441 = vst.msk [vmem:[%s248 + $0xb0] sm:$0xff] %vm1418, %v1408
      %1442 = vst.msk [vmem:[%s248 + $0xb8] sm:$0xff] %vm1418, %v1409
      %1443 = vst.msk [vmem:[%s248 + $0xc0] sm:$0xff] %vm1418, %v1410
      %1444 = vst.msk [vmem:[%s248 + $0xc8] sm:$0xff] %vm1418, %v1411
      %1445 = vst.msk [vmem:[%s248 + $0xd0] sm:$0xff] %vm1418, %v1412
      %1446 = vst.msk [vmem:[%s248 + $0xd8] sm:$0xff] %vm1418, %v1413
      %1447 = vst.msk [vmem:[%s248 + $0xe0] sm:$0xff] %vm1418, %v1414
      %1448 = vst.msk [vmem:[%s248 + $0xe8] sm:$0xff] %vm1418, %v1415
      %1449 = vst.msk [vmem:[%s248 + $0xf0] sm:$0xff] %vm1418, %v1416
      %1450 = vst.msk [vmem:[%s248 + $0xf8] sm:$0xff] %vm1418, %v1417
      %s1451 = smul.u32 32, %s16
      %p1452 = scmp.lt.s32.totalorder %s1451, 63
      %s1453 = scalar_select %p1452, %s1451, 63
      %s1454 = smul.addr %s1453, 8
      %s1455 = scalar_lea.vmem %s5, %s1454
      // Predicated region
      $region41: #{_lambda_.5} parent=39 // pred_check
        %p1456 = pneg %p149
      $region42: #{_lambda_.5} parent=39 // pred_check_branch
        %1458 = sbr.rel (%p1456) target = $region44
      $region43: #{_lambda_.5} parent=39 // pred_region
        %s1459 = smul.u32 32, %s16
      $region44: #{_lambda_.5} parent=39 // pred_fallthru
        _
    $region40: #{_lambda_.5} parent=5 // pred_fallthru
      _
    %p1460 = scmp.le.s32.totalorder 2, %s11
    // Predicated region
    $region45: #{_lambda_.5} parent=5 // pred_check
      %p1461 = pneg %p1460
    $region46: #{_lambda_.5} parent=5 // pred_check_branch
      %1463 = sbr.rel (%p1461) target = $region48
    $region47: #{_lambda_.5} parent=5 // pred_region
      %s1464 = ssub.s32 %s11, 2
      // Predicated region
      $region49: #{_lambda_.5} parent=47 // pred_check
        %p1465 = pneg %p155
      $region50: #{_lambda_.5} parent=47 // pred_check_branch
        %1467 = sbr.rel (%p1465) target = $region52
      $region51: #{_lambda_.5} parent=47 // pred_region
        %s1468 = smul.u32 32, %s17
        %p1469 = scmp.lt.s32.totalorder %s1468, 63
        %s1470 = scalar_select %p1469, %s1468, 63
        %s1471 = smul.addr %s1470, 8
        %s1472 = scalar_lea.vmem %s5, %s1471
      $region52: #{_lambda_.5} parent=47 // pred_fallthru
        _
    $region48: #{_lambda_.5} parent=5 // pred_fallthru
      _
  $region6: #{_lambda_.5} parent=0 // loop_footer
    %s15 = sadd.s32 1, %s11
  $region7: #{_lambda_.5} parent=0 // loop_footer_branch
    %10 = sbr.rel target = $region3
  $region8: #{_lambda_.5} parent=0 // loop_exit
    _

// kernel: _lambda_.3
$region0: #{_lambda_.3}
  #allocation0 [shape = 'u32[]', space=smem, size = 0x4, offset = 0x4, fixed_abs, tag = 'smem constant byte address 0x4 - core index']
  #allocation1 [shape = 'u32[72,128]{1,0:T(1,128)}', space=vmem, size = 0x9000, scoped, tag = 'internal scratch']
  %s0 = inlined_call_operand.vmem [shape: f32[512,8], index: 0, kind: input, shape index: {}]
  %s1 = inlined_call_operand.vmem [shape: f32[8,4], index: 1, kind: input, shape index: {}]
  %s2 = inlined_call_operand.vmem [shape: f32[1,4], index: 2, kind: input, shape index: {}]
  %s3 = inlined_call_operand.vmem [shape: f32[8,4], index: 3, kind: input, shape index: {}]
  %s4 = inlined_call_operand.vmem [shape: f32[1,4], index: 4, kind: input, shape index: {}]
  %s5 = inlined_call_operand.vmem [shape: f32[512,4], index: 5, kind: output, shape index: {0}]
  %s6 = inlined_call_operand.vmem [shape: f32[512,4], index: 6, kind: output, shape index: {1}]
  %7 = xla_tuple %s5, %s6
  %s8 = sld [smem:[#allocation0]]
  $region61: #{_lambda_.3} parent=0
    _
  %s10 = ssub.s32 1, %s8
  %s11 = scalar_select 0, %s10, %s8
  loop: start=0, step=1, limit=4
  $region2: #{_lambda_.3} parent=0 // loop_pre_header
    _
  $region3: #{_lambda_.3} parent=0 // loop_header
    %s13 = sphi 0, %s17
    %p14 = scmp.ge.s32.totalorder %s13, 4
    %s23 = sphi 0, %s25
    %s26 = sphi 0, %s23
    %s27 = sphi 0, %s26
    %s43 = sphi 0, %s27
    %s47 = sphi 0, %s47
    %s49 = sphi 0, %s47
    %s50 = sphi 0, %s49
    %s64 = sphi 0, %s50
    %s68 = sphi 0, %s68
    %s70 = sphi 0, %s68
    %s71 = sphi 0, %s70
    %s85 = sphi 0, %s71
    %s89 = sphi 0, %s89
    %s91 = sphi 0, %s89
    %s92 = sphi 0, %s91
    %s106 = sphi 0, %s92
    %s110 = sphi 0, %s110
    %s112 = sphi 0, %s110
    %s113 = sphi 0, %s112
    %s127 = sphi 0, %s113
    %s133 = sphi 0, %s135
    %s136 = sphi 0, %s133
    %s137 = sphi 0, %s136
    %s153 = sphi 0, %s137
    %s159 = sphi 0, %s161
    %s162 = sphi 0, %s159
    %s163 = sphi 0, %s162
    %s179 = sphi 0, %s163
  $region4: #{_lambda_.3} parent=0 // loop_header_branch
    %16 = sbr.rel (%p14) target = $region8
  $region5: #{_lambda_.3} parent=0 // loop_body
    %s18 = ssub.s32 %s13, 1
    %s19 = ssub.s32 %s13, 2
    %s20 = sadd.s32 %s13, 1
    %s21 = ssub.s32 %s13, %s20
    %p22 = scmp.eq.s32.totalorder %s21, 0
    %s24 = sadd.s32 %s23, 1
    %s25 = scalar_select %p22, %s23, %s24
    %p28 = pneg %p22
    %p29 = scmp.eq.s32.totalorder %s13, 1
    %p30 = por %p28, %p29
    %p31 = scmp.ne.s32.totalorder %s23, %s26
    %p32 = scmp.eq.s32.totalorder %s13, 0
    %p33 = por %p31, %p32
    %p34 = scmp.ne.s32.totalorder %s23, %s26
    %p35 = scmp.eq.s32.totalorder %s18, 1
    %p36 = por %p34, %p35
    %p37 = scmp.ne.s32.totalorder %s26, %s27
    %p38 = scmp.eq.s32.totalorder %s18, 0
    %p39 = por %p37, %p38
    %p40 = scmp.ne.s32.totalorder %s26, %s27
    %p41 = scmp.eq.s32.totalorder %s19, 1
    %p42 = por %p40, %p41
    %p44 = scmp.ne.s32.totalorder %s27, %s43
    %p45 = scmp.eq.s32.totalorder %s19, 0
    %p46 = por %p44, %p45
    %s48 = sadd.s32 %s47, 1
    %p51 = scmp.eq.s32.totalorder %s13, 1
    %p52 = scmp.ne.s32.totalorder %s47, %s49
    %p53 = scmp.eq.s32.totalorder %s13, 0
    %p54 = por %p52, %p53
    %p55 = scmp.ne.s32.totalorder %s47, %s49
    %p56 = scmp.eq.s32.totalorder %s18, 1
    %p57 = por %p55, %p56
    %p58 = scmp.ne.s32.totalorder %s49, %s50
    %p59 = scmp.eq.s32.totalorder %s18, 0
    %p60 = por %p58, %p59
    %p61 = scmp.ne.s32.totalorder %s49, %s50
    %p62 = scmp.eq.s32.totalorder %s19, 1
    %p63 = por %p61, %p62
    %p65 = scmp.ne.s32.totalorder %s50, %s64
    %p66 = scmp.eq.s32.totalorder %s19, 0
    %p67 = por %p65, %p66
    %s69 = sadd.s32 %s68, 1
    %p72 = scmp.eq.s32.totalorder %s13, 1
    %p73 = scmp.ne.s32.totalorder %s68, %s70
    %p74 = scmp.eq.s32.totalorder %s13, 0
    %p75 = por %p73, %p74
    %p76 = scmp.ne.s32.totalorder %s68, %s70
    %p77 = scmp.eq.s32.totalorder %s18, 1
    %p78 = por %p76, %p77
    %p79 = scmp.ne.s32.totalorder %s70, %s71
    %p80 = scmp.eq.s32.totalorder %s18, 0
    %p81 = por %p79, %p80
    %p82 = scmp.ne.s32.totalorder %s70, %s71
    %p83 = scmp.eq.s32.totalorder %s19, 1
    %p84 = por %p82, %p83
    %p86 = scmp.ne.s32.totalorder %s71, %s85
    %p87 = scmp.eq.s32.totalorder %s19, 0
    %p88 = por %p86, %p87
    %s90 = sadd.s32 %s89, 1
    %p93 = scmp.eq.s32.totalorder %s13, 1
    %p94 = scmp.ne.s32.totalorder %s89, %s91
    %p95 = scmp.eq.s32.totalorder %s13, 0
    %p96 = por %p94, %p95
    %p97 = scmp.ne.s32.totalorder %s89, %s91
    %p98 = scmp.eq.s32.totalorder %s18, 1
    %p99 = por %p97, %p98
    %p100 = scmp.ne.s32.totalorder %s91, %s92
    %p101 = scmp.eq.s32.totalorder %s18, 0
    %p102 = por %p100, %p101
    %p103 = scmp.ne.s32.totalorder %s91, %s92
    %p104 = scmp.eq.s32.totalorder %s19, 1
    %p105 = por %p103, %p104
    %p107 = scmp.ne.s32.totalorder %s92, %s106
    %p108 = scmp.eq.s32.totalorder %s19, 0
    %p109 = por %p107, %p108
    %s111 = sadd.s32 %s110, 1
    %p114 = scmp.eq.s32.totalorder %s13, 1
    %p115 = scmp.ne.s32.totalorder %s110, %s112
    %p116 = scmp.eq.s32.totalorder %s13, 0
    %p117 = por %p115, %p116
    %p118 = scmp.ne.s32.totalorder %s110, %s112
    %p119 = scmp.eq.s32.totalorder %s18, 1
    %p120 = por %p118, %p119
    %p121 = scmp.ne.s32.totalorder %s112, %s113
    %p122 = scmp.eq.s32.totalorder %s18, 0
    %p123 = por %p121, %p122
    %p124 = scmp.ne.s32.totalorder %s112, %s113
    %p125 = scmp.eq.s32.totalorder %s19, 1
    %p126 = por %p124, %p125
    %p128 = scmp.ne.s32.totalorder %s113, %s127
    %p129 = scmp.eq.s32.totalorder %s19, 0
    %p130 = por %p128, %p129
    %s131 = ssub.s32 %s13, %s20
    %p132 = scmp.eq.s32.totalorder %s131, 0
    %s134 = sadd.s32 %s133, 1
    %s135 = scalar_select %p132, %s133, %s134
    %p138 = pneg %p132
    %p139 = scmp.eq.s32.totalorder %s13, 1
    %p140 = por %p138, %p139
    %p141 = scmp.ne.s32.totalorder %s133, %s136
    %p142 = scmp.eq.s32.totalorder %s13, 0
    %p143 = por %p141, %p142
    %p144 = scmp.ne.s32.totalorder %s133, %s136
    %p145 = scmp.eq.s32.totalorder %s18, 1
    %p146 = por %p144, %p145
    %p147 = scmp.ne.s32.totalorder %s136, %s137
    %p148 = scmp.eq.s32.totalorder %s18, 0
    %p149 = por %p147, %p148
    %p150 = scmp.ne.s32.totalorder %s136, %s137
    %p151 = scmp.eq.s32.totalorder %s19, 1
    %p152 = por %p150, %p151
    %p154 = scmp.ne.s32.totalorder %s137, %s153
    %p155 = scmp.eq.s32.totalorder %s19, 0
    %p156 = por %p154, %p155
    %s157 = ssub.s32 %s13, %s20
    %p158 = scmp.eq.s32.totalorder %s157, 0
    %s160 = sadd.s32 %s159, 1
    %s161 = scalar_select %p158, %s159, %s160
    %p164 = pneg %p158
    %p165 = scmp.eq.s32.totalorder %s13, 1
    %p166 = por %p164, %p165
    %p167 = scmp.ne.s32.totalorder %s159, %s162
    %p168 = scmp.eq.s32.totalorder %s13, 0
    %p169 = por %p167, %p168
    %p170 = scmp.ne.s32.totalorder %s159, %s162
    %p171 = scmp.eq.s32.totalorder %s18, 1
    %p172 = por %p170, %p171
    %p173 = scmp.ne.s32.totalorder %s162, %s163
    %p174 = scmp.eq.s32.totalorder %s18, 0
    %p175 = por %p173, %p174
    %p176 = scmp.ne.s32.totalorder %s162, %s163
    %p177 = scmp.eq.s32.totalorder %s19, 1
    %p178 = por %p176, %p177
    %p180 = scmp.ne.s32.totalorder %s163, %s179
    %p181 = scmp.eq.s32.totalorder %s19, 0
    %p182 = por %p180, %p181
    %p183 = scmp.le.s32.totalorder 1, %s13
    %p184 = scmp.lt.s32.totalorder %s13, 3
    %p185 = pnand %p183, %p184
    %p186 = pneg %p185
    // Predicated region
    $region9: #{_lambda_.3} parent=5 // pred_check
      _
    $region10: #{_lambda_.3} parent=5 // pred_check_branch
      %188 = sbr.rel (%p185) target = $region12
    $region11: #{_lambda_.3} parent=5 // pred_region
      %s189 = ssub.s32 %s13, 1
      // Predicated region
      $region13: #{_lambda_.3} parent=11 // pred_check
        %p190 = pneg %p60
      $region14: #{_lambda_.3} parent=11 // pred_check_branch
        %192 = sbr.rel (%p190) target = $region16
      $region15: #{_lambda_.3} parent=11 // pred_region
        _
      $region16: #{_lambda_.3} parent=11 // pred_fallthru
        _
      // Predicated region
      $region17: #{_lambda_.3} parent=11 // pred_check
        %p193 = pneg %p81
      $region18: #{_lambda_.3} parent=11 // pred_check_branch
        %195 = sbr.rel (%p193) target = $region20
      $region19: #{_lambda_.3} parent=11 // pred_region
        _
      $region20: #{_lambda_.3} parent=11 // pred_fallthru
        _
      // Predicated region
      $region21: #{_lambda_.3} parent=11 // pred_check
        %p196 = pneg %p102
      $region22: #{_lambda_.3} parent=11 // pred_check_branch
        %198 = sbr.rel (%p196) target = $region24
      $region23: #{_lambda_.3} parent=11 // pred_region
        _
      $region24: #{_lambda_.3} parent=11 // pred_fallthru
        _
      // Predicated region
      $region25: #{_lambda_.3} parent=11 // pred_check
        %p199 = pneg %p123
      $region26: #{_lambda_.3} parent=11 // pred_check_branch
        %201 = sbr.rel (%p199) target = $region28
      $region27: #{_lambda_.3} parent=11 // pred_region
        _
      $region28: #{_lambda_.3} parent=11 // pred_fallthru
        _
    $region12: #{_lambda_.3} parent=5 // pred_fallthru
      _
    %p202 = scmp.lt.s32.totalorder %s13, 2
    // Predicated region
    $region29: #{_lambda_.3} parent=5 // pred_check
      %p203 = pneg %p202
    $region30: #{_lambda_.3} parent=5 // pred_check_branch
      %205 = sbr.rel (%p203) target = $region32
    $region31: #{_lambda_.3} parent=5 // pred_region
      // Predicated region
      $region33: #{_lambda_.3} parent=31 // pred_check
        %p206 = pneg %p33
      $region34: #{_lambda_.3} parent=31 // pred_check_branch
        %208 = sbr.rel (%p206) target = $region36
      $region35: #{_lambda_.3} parent=31 // pred_region
        %s209 = smul.u32 32, %s13
        %p210 = scmp.lt.s32.totalorder %s209, 63
        %s211 = scalar_select %p210, %s209, 63
        %s212 = smul.addr %s211, 8
        %s213 = scalar_lea.vmem %s0, %s212
        %s214 = smul.u32 32, %s13
      $region36: #{_lambda_.3} parent=31 // pred_fallthru
        _
    $region32: #{_lambda_.3} parent=5 // pred_fallthru
      _
    %p215 = scmp.le.s32.totalorder 1, %s13
    %p216 = scmp.lt.s32.totalorder %s13, 3
    %p217 = pnand %p215, %p216
    %p218 = pneg %p217
    // Predicated region
    $region37: #{_lambda_.3} parent=5 // pred_check
      _
    $region38: #{_lambda_.3} parent=5 // pred_check_branch
      %220 = sbr.rel (%p217) target = $region40
    $region39: #{_lambda_.3} parent=5 // pred_region
      %s221 = ssub.s32 %s13, 1
      %s222 = smul.u32 32, %s18
      %p223 = scmp.lt.s32.totalorder %s222, 63
      %s224 = scalar_select %p223, %s222, 63
      %s225 = smul.addr %s224, 8
      %s226 = scalar_lea.vmem %s0, %s225
      %p227 = pneg %p39
      %p228 = pneg %p36
      %p229 = pneg %p60
      %p230 = pneg %p57
      %p231 = pneg %p81
      %p232 = pneg %p78
      %p233 = pneg %p102
      %p234 = pneg %p99
      %p235 = pneg %p123
      %p236 = pneg %p120
      %p237 = pneg %p149
      %p238 = pneg %p146
      %s239 = smul.u32 32, %s18
      %p240 = scmp.lt.s32.totalorder %s239, 63
      %s241 = scalar_select %p240, %s239, 63
      %s242 = smul.addr %s241, 8
      %s243 = scalar_lea.vmem %s5, %s242
      %p244 = pneg %p175
      %p245 = pneg %p172
      %s246 = smul.u32 32, %s18
      %p247 = scmp.lt.s32.totalorder %s246, 63
      %s248 = scalar_select %p247, %s246, 63
      %s249 = smul.addr %s248, 8
      %s250 = scalar_lea.vmem %s6, %s249
      %s251 = smul.u32 32, %s18
      %p252 = scmp.lt.s32.totalorder %s251, 63
      %s253 = scalar_select %p252, %s251, 63
      %s254 = smul.addr %s253, 8
      %s255 = scalar_lea.vmem %s0, %s254
      %s256 = smul.u32 32, %s18
      %s257 = smul.u32 32, %s18
      %p258 = scmp.lt.s32.totalorder %s257, 63
      %s259 = scalar_select %p258, %s257, 63
      %s260 = smul.addr %s259, 8
      %s261 = scalar_lea.vmem %s5, %s260
      %s262 = smul.u32 32, %s18
      %s263 = smul.u32 32, %s18
      %p264 = scmp.lt.s32.totalorder %s263, 63
      %s265 = scalar_select %p264, %s263, 63
      %s266 = smul.addr %s265, 8
      %s267 = scalar_lea.vmem %s6, %s266
      %s268 = smul.u32 32, %s18
      %v269 = vld [vmem:[%s255] sm:$0xff]
      %v270 = vld [vmem:[%s255 + $0x8] sm:$0xff]
      %v271 = vld [vmem:[%s255 + $0x10] sm:$0xff]
      %v272 = vld [vmem:[%s255 + $0x18] sm:$0xff]
      %v273 = vld [vmem:[%s255 + $0x20] sm:$0xff]
      %v274 = vld [vmem:[%s255 + $0x28] sm:$0xff]
      %v275 = vld [vmem:[%s255 + $0x30] sm:$0xff]
      %v276 = vld [vmem:[%s255 + $0x38] sm:$0xff]
      %v277 = vld [vmem:[%s255 + $0x40] sm:$0xff]
      %v278 = vld [vmem:[%s255 + $0x48] sm:$0xff]
      %v279 = vld [vmem:[%s255 + $0x50] sm:$0xff]
      %v280 = vld [vmem:[%s255 + $0x58] sm:$0xff]
      %v281 = vld [vmem:[%s255 + $0x60] sm:$0xff]
      %v282 = vld [vmem:[%s255 + $0x68] sm:$0xff]
      %v283 = vld [vmem:[%s255 + $0x70] sm:$0xff]
      %v284 = vld [vmem:[%s255 + $0x78] sm:$0xff]
      %v285 = vld [vmem:[%s255 + $0x80] sm:$0xff]
      %v286 = vld [vmem:[%s255 + $0x88] sm:$0xff]
      %v287 = vld [vmem:[%s255 + $0x90] sm:$0xff]
      %v288 = vld [vmem:[%s255 + $0x98] sm:$0xff]
      %v289 = vld [vmem:[%s255 + $0xa0] sm:$0xff]
      %v290 = vld [vmem:[%s255 + $0xa8] sm:$0xff]
      %v291 = vld [vmem:[%s255 + $0xb0] sm:$0xff]
      %v292 = vld [vmem:[%s255 + $0xb8] sm:$0xff]
      %v293 = vld [vmem:[%s255 + $0xc0] sm:$0xff]
      %v294 = vld [vmem:[%s255 + $0xc8] sm:$0xff]
      %v295 = vld [vmem:[%s255 + $0xd0] sm:$0xff]
      %v296 = vld [vmem:[%s255 + $0xd8] sm:$0xff]
      %v297 = vld [vmem:[%s255 + $0xe0] sm:$0xff]
      %v298 = vld [vmem:[%s255 + $0xe8] sm:$0xff]
      %v299 = vld [vmem:[%s255 + $0xf0] sm:$0xff]
      %v300 = vld [vmem:[%s255 + $0xf8] sm:$0xff]
      %v301 = vld [vmem:[%s1] sm:$0xff]
      %v302 = vld [vmem:[%s2] sm:$0x1]
      %v304 = vperm.slane %v302, 0
      %vm306 = vcmask 64512
      %v308 = vsel %vm306, %v269, 0
      %v311 = vsel %vm306, %v270, 0
      %v314 = vsel %vm306, %v271, 0
      %v317 = vsel %vm306, %v272, 0
      %v320 = vsel %vm306, %v273, 0
      %v323 = vsel %vm306, %v274, 0
      %v326 = vsel %vm306, %v275, 0
      %v329 = vsel %vm306, %v276, 0
      %v332 = vsel %vm306, %v277, 0
      %v335 = vsel %vm306, %v278, 0
      %v338 = vsel %vm306, %v279, 0
      %v341 = vsel %vm306, %v280, 0
      %v344 = vsel %vm306, %v281, 0
      %v347 = vsel %vm306, %v282, 0
      %v350 = vsel %vm306, %v283, 0
      %v353 = vsel %vm306, %v284, 0
      %v356 = vsel %vm306, %v285, 0
      %v359 = vsel %vm306, %v286, 0
      %v362 = vsel %vm306, %v287, 0
      %v365 = vsel %vm306, %v288, 0
      %v368 = vsel %vm306, %v289, 0
      %v371 = vsel %vm306, %v290, 0
      %v374 = vsel %vm306, %v291, 0
      %v377 = vsel %vm306, %v292, 0
      %v380 = vsel %vm306, %v293, 0
      %v383 = vsel %vm306, %v294, 0
      %v386 = vsel %vm306, %v295, 0
      %v389 = vsel %vm306, %v296, 0
      %v392 = vsel %vm306, %v297, 0
      %v395 = vsel %vm306, %v298, 0
      %v398 = vsel %vm306, %v299, 0
      %v401 = vsel %vm306, %v300, 0
      %403 = vmatpush.msra.mxu0 0.0
      %404 = vmatpush.msra.mxu0 0.0
      %405 = vmatpush.msra.mxu0 0.0
      %406 = vmatpush.msra.mxu0 0.0
      %407 = vmatpush.msra.mxu0 0.0
      %408 = vmatpush.msra.mxu0 0.0
      %409 = vmatpush.msra.mxu0 0.0
      %410 = vmatpush.msra.mxu0 0.0
      %411 = vmatpush.msra.mxu0 0.0
      %412 = vmatpush.msra.mxu0 0.0
      %413 = vmatpush.msra.mxu0 0.0
      %414 = vmatpush.msra.mxu0 0.0
      %415 = vmatpush.msra.mxu0 0.0
      %416 = vmatpush.msra.mxu0 0.0
      %417 = vmatpush.msra.mxu0 0.0
      %418 = vmatpush.msra.mxu0 %v301
      %419 = vmatmul.f32.gmra.mxu0 %v308
      %v420 = vpop.f32.mrf.mxu0
      %v421 = vadd.f32 %v304, %v420
      %422 = vmatmul.f32.gmra.mxu0 %v311
      %v423 = vpop.f32.mrf.mxu0
      %v424 = vadd.f32 %v304, %v423
      %425 = vmatmul.f32.gmra.mxu0 %v314
      %v426 = vpop.f32.mrf.mxu0
      %v427 = vadd.f32 %v304, %v426
      %428 = vmatmul.f32.gmra.mxu0 %v317
      %v429 = vpop.f32.mrf.mxu0
      %v430 = vadd.f32 %v304, %v429
      %431 = vmatmul.f32.gmra.mxu0 %v320
      %v432 = vpop.f32.mrf.mxu0
      %v433 = vadd.f32 %v304, %v432
      %434 = vmatmul.f32.gmra.mxu0 %v323
      %v435 = vpop.f32.mrf.mxu0
      %v436 = vadd.f32 %v304, %v435
      %437 = vmatmul.f32.gmra.mxu0 %v326
      %v438 = vpop.f32.mrf.mxu0
      %v439 = vadd.f32 %v304, %v438
      %440 = vmatmul.f32.gmra.mxu0 %v329
      %v441 = vpop.f32.mrf.mxu0
      %v442 = vadd.f32 %v304, %v441
      %443 = vmatmul.f32.gmra.mxu0 %v332
      %v444 = vpop.f32.mrf.mxu0
      %v445 = vadd.f32 %v304, %v444
      %446 = vmatmul.f32.gmra.mxu0 %v335
      %v447 = vpop.f32.mrf.mxu0
      %v448 = vadd.f32 %v304, %v447
      %449 = vmatmul.f32.gmra.mxu0 %v338
      %v450 = vpop.f32.mrf.mxu0
      %v451 = vadd.f32 %v304, %v450
      %452 = vmatmul.f32.gmra.mxu0 %v341
      %v453 = vpop.f32.mrf.mxu0
      %v454 = vadd.f32 %v304, %v453
      %455 = vmatmul.f32.gmra.mxu0 %v344
      %v456 = vpop.f32.mrf.mxu0
      %v457 = vadd.f32 %v304, %v456
      %458 = vmatmul.f32.gmra.mxu0 %v347
      %v459 = vpop.f32.mrf.mxu0
      %v460 = vadd.f32 %v304, %v459
      %461 = vmatmul.f32.gmra.mxu0 %v350
      %v462 = vpop.f32.mrf.mxu0
      %v463 = vadd.f32 %v304, %v462
      %464 = vmatmul.f32.gmra.mxu0 %v353
      %v465 = vpop.f32.mrf.mxu0
      %v466 = vadd.f32 %v304, %v465
      %467 = vmatmul.f32.gmra.mxu0 %v356
      %v468 = vpop.f32.mrf.mxu0
      %v469 = vadd.f32 %v304, %v468
      %470 = vmatmul.f32.gmra.mxu0 %v359
      %v471 = vpop.f32.mrf.mxu0
      %v472 = vadd.f32 %v304, %v471
      %473 = vmatmul.f32.gmra.mxu0 %v362
      %v474 = vpop.f32.mrf.mxu0
      %v475 = vadd.f32 %v304, %v474
      %476 = vmatmul.f32.gmra.mxu0 %v365
      %v477 = vpop.f32.mrf.mxu0
      %v478 = vadd.f32 %v304, %v477
      %479 = vmatmul.f32.gmra.mxu0 %v368
      %v480 = vpop.f32.mrf.mxu0
      %v481 = vadd.f32 %v304, %v480
      %482 = vmatmul.f32.gmra.mxu0 %v371
      %v483 = vpop.f32.mrf.mxu0
      %v484 = vadd.f32 %v304, %v483
      %485 = vmatmul.f32.gmra.mxu0 %v374
      %v486 = vpop.f32.mrf.mxu0
      %v487 = vadd.f32 %v304, %v486
      %488 = vmatmul.f32.gmra.mxu0 %v377
      %v489 = vpop.f32.mrf.mxu0
      %v490 = vadd.f32 %v304, %v489
      %491 = vmatmul.f32.gmra.mxu0 %v380
      %v492 = vpop.f32.mrf.mxu0
      %v493 = vadd.f32 %v304, %v492
      %494 = vmatmul.f32.gmra.mxu0 %v383
      %v495 = vpop.f32.mrf.mxu0
      %v496 = vadd.f32 %v304, %v495
      %497 = vmatmul.f32.gmra.mxu0 %v386
      %v498 = vpop.f32.mrf.mxu0
      %v499 = vadd.f32 %v304, %v498
      %500 = vmatmul.f32.gmra.mxu0 %v389
      %v501 = vpop.f32.mrf.mxu0
      %v502 = vadd.f32 %v304, %v501
      %503 = vmatmul.f32.gmra.mxu0 %v392
      %v504 = vpop.f32.mrf.mxu0
      %v505 = vadd.f32 %v304, %v504
      %506 = vmatmul.f32.gmra.mxu0 %v395
      %v507 = vpop.f32.mrf.mxu0
      %v508 = vadd.f32 %v304, %v507
      %509 = vmatmul.f32.gmra.mxu0 %v398
      %v510 = vpop.f32.mrf.mxu0
      %v511 = vadd.f32 %v304, %v510
      %512 = vmatmul.f32.gmra.mxu0 %v401
      %v513 = vpop.f32.mrf.mxu0
      %v514 = vadd.f32 %v304, %v513
      %515 = vdwg.mxu0
      %v516 = vxor.u32 %v421, 2147483648
      %v517 = vxor.u32 %v424, 2147483648
      %v518 = vxor.u32 %v427, 2147483648
      %v519 = vxor.u32 %v430, 2147483648
      %v520 = vxor.u32 %v433, 2147483648
      %v521 = vxor.u32 %v436, 2147483648
      %v522 = vxor.u32 %v439, 2147483648
      %v523 = vxor.u32 %v442, 2147483648
      %v524 = vxor.u32 %v445, 2147483648
      %v525 = vxor.u32 %v448, 2147483648
      %v526 = vxor.u32 %v451, 2147483648
      %v527 = vxor.u32 %v454, 2147483648
      %v528 = vxor.u32 %v457, 2147483648
      %v529 = vxor.u32 %v460, 2147483648
      %v530 = vxor.u32 %v463, 2147483648
      %v531 = vxor.u32 %v466, 2147483648
      %v532 = vxor.u32 %v469, 2147483648
      %v533 = vxor.u32 %v472, 2147483648
      %v534 = vxor.u32 %v475, 2147483648
      %v535 = vxor.u32 %v478, 2147483648
      %v536 = vxor.u32 %v481, 2147483648
      %v537 = vxor.u32 %v484, 2147483648
      %v538 = vxor.u32 %v487, 2147483648
      %v539 = vxor.u32 %v490, 2147483648
      %v540 = vxor.u32 %v493, 2147483648
      %v541 = vxor.u32 %v496, 2147483648
      %v542 = vxor.u32 %v499, 2147483648
      %v543 = vxor.u32 %v502, 2147483648
      %v544 = vxor.u32 %v505, 2147483648
      %v545 = vxor.u32 %v508, 2147483648
      %v546 = vxor.u32 %v511, 2147483648
      %v547 = vxor.u32 %v514, 2147483648
      %v548 = vmul.f32 %v516, 1.442695
      %v549 = vpow.pop %v548
      %v550 = vmul.f32 %v517, 1.442695
      %v551 = vpow.pop %v550
      %v552 = vmul.f32 %v518, 1.442695
      %v553 = vpow.pop %v552
      %v554 = vmul.f32 %v519, 1.442695
      %v555 = vpow.pop %v554
      %v556 = vmul.f32 %v520, 1.442695
      %v557 = vpow.pop %v556
      %v558 = vmul.f32 %v521, 1.442695
      %v559 = vpow.pop %v558
      %v560 = vmul.f32 %v522, 1.442695
      %v561 = vpow.pop %v560
      %v562 = vmul.f32 %v523, 1.442695
      %v563 = vpow.pop %v562
      %v564 = vmul.f32 %v524, 1.442695
      %v565 = vpow.pop %v564
      %v566 = vmul.f32 %v525, 1.442695
      %v567 = vpow.pop %v566
      %v568 = vmul.f32 %v526, 1.442695
      %v569 = vpow.pop %v568
      %v570 = vmul.f32 %v527, 1.442695
      %v571 = vpow.pop %v570
      %v572 = vmul.f32 %v528, 1.442695
      %v573 = vpow.pop %v572
      %v574 = vmul.f32 %v529, 1.442695
      %v575 = vpow.pop %v574
      %v576 = vmul.f32 %v530, 1.442695
      %v577 = vpow.pop %v576
      %v578 = vmul.f32 %v531, 1.442695
      %v579 = vpow.pop %v578
      %v580 = vmul.f32 %v532, 1.442695
      %v581 = vpow.pop %v580
      %v582 = vmul.f32 %v533, 1.442695
      %v583 = vpow.pop %v582
      %v584 = vmul.f32 %v534, 1.442695
      %v585 = vpow.pop %v584
      %v586 = vmul.f32 %v535, 1.442695
      %v587 = vpow.pop %v586
      %v588 = vmul.f32 %v536, 1.442695
      %v589 = vpow.pop %v588
      %v590 = vmul.f32 %v537, 1.442695
      %v591 = vpow.pop %v590
      %v592 = vmul.f32 %v538, 1.442695
      %v593 = vpow.pop %v592
      %v594 = vmul.f32 %v539, 1.442695
      %v595 = vpow.pop %v594
      %v596 = vmul.f32 %v540, 1.442695
      %v597 = vpow.pop %v596
      %v598 = vmul.f32 %v541, 1.442695
      %v599 = vpow.pop %v598
      %v600 = vmul.f32 %v542, 1.442695
      %v601 = vpow.pop %v600
      %v602 = vmul.f32 %v543, 1.442695
      %v603 = vpow.pop %v602
      %v604 = vmul.f32 %v544, 1.442695
      %v605 = vpow.pop %v604
      %v606 = vmul.f32 %v545, 1.442695
      %v607 = vpow.pop %v606
      %v608 = vmul.f32 %v546, 1.442695
      %v609 = vpow.pop %v608
      %v610 = vmul.f32 %v547, 1.442695
      %v611 = vpow.pop %v610
      %v612 = vadd.f32 %v549, 1.0
      %v613 = vadd.f32 %v551, 1.0
      %v614 = vadd.f32 %v553, 1.0
      %v615 = vadd.f32 %v555, 1.0
      %v616 = vadd.f32 %v557, 1.0
      %v617 = vadd.f32 %v559, 1.0
      %v618 = vadd.f32 %v561, 1.0
      %v619 = vadd.f32 %v563, 1.0
      %v620 = vadd.f32 %v565, 1.0
      %v621 = vadd.f32 %v567, 1.0
      %v622 = vadd.f32 %v569, 1.0
      %v623 = vadd.f32 %v571, 1.0
      %v624 = vadd.f32 %v573, 1.0
      %v625 = vadd.f32 %v575, 1.0
      %v626 = vadd.f32 %v577, 1.0
      %v627 = vadd.f32 %v579, 1.0
      %v628 = vadd.f32 %v581, 1.0
      %v629 = vadd.f32 %v583, 1.0
      %v630 = vadd.f32 %v585, 1.0
      %v631 = vadd.f32 %v587, 1.0
      %v632 = vadd.f32 %v589, 1.0
      %v633 = vadd.f32 %v591, 1.0
      %v634 = vadd.f32 %v593, 1.0
      %v635 = vadd.f32 %v595, 1.0
      %v636 = vadd.f32 %v597, 1.0
      %v637 = vadd.f32 %v599, 1.0
      %v638 = vadd.f32 %v601, 1.0
      %v639 = vadd.f32 %v603, 1.0
      %v640 = vadd.f32 %v605, 1.0
      %v641 = vadd.f32 %v607, 1.0
      %v642 = vadd.f32 %v609, 1.0
      %v643 = vadd.f32 %v611, 1.0
      %v644 = vrcp.pop %v612
      %v645 = vmul.f32 %v612, %v644
      %v646 = vsub.f32 1.0, %v645
      %v647 = vmul.f32 %v644, %v646
      %v648 = vadd.f32 %v644, %v647
      %vm649 = vweird.f32 %v612
      %vm650 = vweird.f32 %v644
      %vm651 = vmor %vm649, %vm650
      %v652 = vsel %vm651, %v644, %v648
      %v653 = vand.u32 2147483647, %v612
      %vm654 = vcmp.eq.f32.partialorder %v653, 8.507059e+37
      %v655 = vand.u32 %v612, 2147483648
      %v656 = vor.u32 1.1754944e-38, %v655
      %v657 = vsel %vm654, %v656, %v652
      %v658 = vmul.f32 1.0, %v657
      %v659 = vrcp.pop %v613
      %v660 = vmul.f32 %v613, %v659
      %v661 = vsub.f32 1.0, %v660
      %v662 = vmul.f32 %v659, %v661
      %v663 = vadd.f32 %v659, %v662
      %vm664 = vweird.f32 %v613
      %vm665 = vweird.f32 %v659
      %vm666 = vmor %vm664, %vm665
      %v667 = vsel %vm666, %v659, %v663
      %v668 = vand.u32 2147483647, %v613
      %vm669 = vcmp.eq.f32.partialorder %v668, 8.507059e+37
      %v670 = vand.u32 %v613, 2147483648
      %v671 = vor.u32 1.1754944e-38, %v670
      %v672 = vsel %vm669, %v671, %v667
      %v673 = vmul.f32 1.0, %v672
      %v674 = vrcp.pop %v614
      %v675 = vmul.f32 %v614, %v674
      %v676 = vsub.f32 1.0, %v675
      %v677 = vmul.f32 %v674, %v676
      %v678 = vadd.f32 %v674, %v677
      %vm679 = vweird.f32 %v614
      %vm680 = vweird.f32 %v674
      %vm681 = vmor %vm679, %vm680
      %v682 = vsel %vm681, %v674, %v678
      %v683 = vand.u32 2147483647, %v614
      %vm684 = vcmp.eq.f32.partialorder %v683, 8.507059e+37
      %v685 = vand.u32 %v614, 2147483648
      %v686 = vor.u32 1.1754944e-38, %v685
      %v687 = vsel %vm684, %v686, %v682
      %v688 = vmul.f32 1.0, %v687
      %v689 = vrcp.pop %v615
      %v690 = vmul.f32 %v615, %v689
      %v691 = vsub.f32 1.0, %v690
      %v692 = vmul.f32 %v689, %v691
      %v693 = vadd.f32 %v689, %v692
      %vm694 = vweird.f32 %v615
      %vm695 = vweird.f32 %v689
      %vm696 = vmor %vm694, %vm695
      %v697 = vsel %vm696, %v689, %v693
      %v698 = vand.u32 2147483647, %v615
      %vm699 = vcmp.eq.f32.partialorder %v698, 8.507059e+37
      %v700 = vand.u32 %v615, 2147483648
      %v701 = vor.u32 1.1754944e-38, %v700
      %v702 = vsel %vm699, %v701, %v697
      %v703 = vmul.f32 1.0, %v702
      %v704 = vrcp.pop %v616
      %v705 = vmul.f32 %v616, %v704
      %v706 = vsub.f32 1.0, %v705
      %v707 = vmul.f32 %v704, %v706
      %v708 = vadd.f32 %v704, %v707
      %vm709 = vweird.f32 %v616
      %vm710 = vweird.f32 %v704
      %vm711 = vmor %vm709, %vm710
      %v712 = vsel %vm711, %v704, %v708
      %v713 = vand.u32 2147483647, %v616
      %vm714 = vcmp.eq.f32.partialorder %v713, 8.507059e+37
      %v715 = vand.u32 %v616, 2147483648
      %v716 = vor.u32 1.1754944e-38, %v715
      %v717 = vsel %vm714, %v716, %v712
      %v718 = vmul.f32 1.0, %v717
      %v719 = vrcp.pop %v617
      %v720 = vmul.f32 %v617, %v719
      %v721 = vsub.f32 1.0, %v720
      %v722 = vmul.f32 %v719, %v721
      %v723 = vadd.f32 %v719, %v722
      %vm724 = vweird.f32 %v617
      %vm725 = vweird.f32 %v719
      %vm726 = vmor %vm724, %vm725
      %v727 = vsel %vm726, %v719, %v723
      %v728 = vand.u32 2147483647, %v617
      %vm729 = vcmp.eq.f32.partialorder %v728, 8.507059e+37
      %v730 = vand.u32 %v617, 2147483648
      %v731 = vor.u32 1.1754944e-38, %v730
      %v732 = vsel %vm729, %v731, %v727
      %v733 = vmul.f32 1.0, %v732
      %v734 = vrcp.pop %v618
      %v735 = vmul.f32 %v618, %v734
      %v736 = vsub.f32 1.0, %v735
      %v737 = vmul.f32 %v734, %v736
      %v738 = vadd.f32 %v734, %v737
      %vm739 = vweird.f32 %v618
      %vm740 = vweird.f32 %v734
      %vm741 = vmor %vm739, %vm740
      %v742 = vsel %vm741, %v734, %v738
      %v743 = vand.u32 2147483647, %v618
      %vm744 = vcmp.eq.f32.partialorder %v743, 8.507059e+37
      %v745 = vand.u32 %v618, 2147483648
      %v746 = vor.u32 1.1754944e-38, %v745
      %v747 = vsel %vm744, %v746, %v742
      %v748 = vmul.f32 1.0, %v747
      %v749 = vrcp.pop %v619
      %v750 = vmul.f32 %v619, %v749
      %v751 = vsub.f32 1.0, %v750
      %v752 = vmul.f32 %v749, %v751
      %v753 = vadd.f32 %v749, %v752
      %vm754 = vweird.f32 %v619
      %vm755 = vweird.f32 %v749
      %vm756 = vmor %vm754, %vm755
      %v757 = vsel %vm756, %v749, %v753
      %v758 = vand.u32 2147483647, %v619
      %vm759 = vcmp.eq.f32.partialorder %v758, 8.507059e+37
      %v760 = vand.u32 %v619, 2147483648
      %v761 = vor.u32 1.1754944e-38, %v760
      %v762 = vsel %vm759, %v761, %v757
      %v763 = vmul.f32 1.0, %v762
      %v764 = vrcp.pop %v620
      %v765 = vmul.f32 %v620, %v764
      %v766 = vsub.f32 1.0, %v765
      %v767 = vmul.f32 %v764, %v766
      %v768 = vadd.f32 %v764, %v767
      %vm769 = vweird.f32 %v620
      %vm770 = vweird.f32 %v764
      %vm771 = vmor %vm769, %vm770
      %v772 = vsel %vm771, %v764, %v768
      %v773 = vand.u32 2147483647, %v620
      %vm774 = vcmp.eq.f32.partialorder %v773, 8.507059e+37
      %v775 = vand.u32 %v620, 2147483648
      %v776 = vor.u32 1.1754944e-38, %v775
      %v777 = vsel %vm774, %v776, %v772
      %v778 = vmul.f32 1.0, %v777
      %v779 = vrcp.pop %v621
      %v780 = vmul.f32 %v621, %v779
      %v781 = vsub.f32 1.0, %v780
      %v782 = vmul.f32 %v779, %v781
      %v783 = vadd.f32 %v779, %v782
      %vm784 = vweird.f32 %v621
      %vm785 = vweird.f32 %v779
      %vm786 = vmor %vm784, %vm785
      %v787 = vsel %vm786, %v779, %v783
      %v788 = vand.u32 2147483647, %v621
      %vm789 = vcmp.eq.f32.partialorder %v788, 8.507059e+37
      %v790 = vand.u32 %v621, 2147483648
      %v791 = vor.u32 1.1754944e-38, %v790
      %v792 = vsel %vm789, %v791, %v787
      %v793 = vmul.f32 1.0, %v792
      %v794 = vrcp.pop %v622
      %v795 = vmul.f32 %v622, %v794
      %v796 = vsub.f32 1.0, %v795
      %v797 = vmul.f32 %v794, %v796
      %v798 = vadd.f32 %v794, %v797
      %vm799 = vweird.f32 %v622
      %vm800 = vweird.f32 %v794
      %vm801 = vmor %vm799, %vm800
      %v802 = vsel %vm801, %v794, %v798
      %v803 = vand.u32 2147483647, %v622
      %vm804 = vcmp.eq.f32.partialorder %v803, 8.507059e+37
      %v805 = vand.u32 %v622, 2147483648
      %v806 = vor.u32 1.1754944e-38, %v805
      %v807 = vsel %vm804, %v806, %v802
      %v808 = vmul.f32 1.0, %v807
      %v809 = vrcp.pop %v623
      %v810 = vmul.f32 %v623, %v809
      %v811 = vsub.f32 1.0, %v810
      %v812 = vmul.f32 %v809, %v811
      %v813 = vadd.f32 %v809, %v812
      %vm814 = vweird.f32 %v623
      %vm815 = vweird.f32 %v809
      %vm816 = vmor %vm814, %vm815
      %v817 = vsel %vm816, %v809, %v813
      %v818 = vand.u32 2147483647, %v623
      %vm819 = vcmp.eq.f32.partialorder %v818, 8.507059e+37
      %v820 = vand.u32 %v623, 2147483648
      %v821 = vor.u32 1.1754944e-38, %v820
      %v822 = vsel %vm819, %v821, %v817
      %v823 = vmul.f32 1.0, %v822
      %v824 = vrcp.pop %v624
      %v825 = vmul.f32 %v624, %v824
      %v826 = vsub.f32 1.0, %v825
      %v827 = vmul.f32 %v824, %v826
      %v828 = vadd.f32 %v824, %v827
      %vm829 = vweird.f32 %v624
      %vm830 = vweird.f32 %v824
      %vm831 = vmor %vm829, %vm830
      %v832 = vsel %vm831, %v824, %v828
      %v833 = vand.u32 2147483647, %v624
      %vm834 = vcmp.eq.f32.partialorder %v833, 8.507059e+37
      %v835 = vand.u32 %v624, 2147483648
      %v836 = vor.u32 1.1754944e-38, %v835
      %v837 = vsel %vm834, %v836, %v832
      %v838 = vmul.f32 1.0, %v837
      %v839 = vrcp.pop %v625
      %v840 = vmul.f32 %v625, %v839
      %v841 = vsub.f32 1.0, %v840
      %v842 = vmul.f32 %v839, %v841
      %v843 = vadd.f32 %v839, %v842
      %vm844 = vweird.f32 %v625
      %vm845 = vweird.f32 %v839
      %vm846 = vmor %vm844, %vm845
      %v847 = vsel %vm846, %v839, %v843
      %v848 = vand.u32 2147483647, %v625
      %vm849 = vcmp.eq.f32.partialorder %v848, 8.507059e+37
      %v850 = vand.u32 %v625, 2147483648
      %v851 = vor.u32 1.1754944e-38, %v850
      %v852 = vsel %vm849, %v851, %v847
      %v853 = vmul.f32 1.0, %v852
      %v854 = vrcp.pop %v626
      %v855 = vmul.f32 %v626, %v854
      %v856 = vsub.f32 1.0, %v855
      %v857 = vmul.f32 %v854, %v856
      %v858 = vadd.f32 %v854, %v857
      %vm859 = vweird.f32 %v626
      %vm860 = vweird.f32 %v854
      %vm861 = vmor %vm859, %vm860
      %v862 = vsel %vm861, %v854, %v858
      %v863 = vand.u32 2147483647, %v626
      %vm864 = vcmp.eq.f32.partialorder %v863, 8.507059e+37
      %v865 = vand.u32 %v626, 2147483648
      %v866 = vor.u32 1.1754944e-38, %v865
      %v867 = vsel %vm864, %v866, %v862
      %v868 = vmul.f32 1.0, %v867
      %v869 = vrcp.pop %v627
      %v870 = vmul.f32 %v627, %v869
      %v871 = vsub.f32 1.0, %v870
      %v872 = vmul.f32 %v869, %v871
      %v873 = vadd.f32 %v869, %v872
      %vm874 = vweird.f32 %v627
      %vm875 = vweird.f32 %v869
      %vm876 = vmor %vm874, %vm875
      %v877 = vsel %vm876, %v869, %v873
      %v878 = vand.u32 2147483647, %v627
      %vm879 = vcmp.eq.f32.partialorder %v878, 8.507059e+37
      %v880 = vand.u32 %v627, 2147483648
      %v881 = vor.u32 1.1754944e-38, %v880
      %v882 = vsel %vm879, %v881, %v877
      %v883 = vmul.f32 1.0, %v882
      %v884 = vrcp.pop %v628
      %v885 = vmul.f32 %v628, %v884
      %v886 = vsub.f32 1.0, %v885
      %v887 = vmul.f32 %v884, %v886
      %v888 = vadd.f32 %v884, %v887
      %vm889 = vweird.f32 %v628
      %vm890 = vweird.f32 %v884
      %vm891 = vmor %vm889, %vm890
      %v892 = vsel %vm891, %v884, %v888
      %v893 = vand.u32 2147483647, %v628
      %vm894 = vcmp.eq.f32.partialorder %v893, 8.507059e+37
      %v895 = vand.u32 %v628, 2147483648
      %v896 = vor.u32 1.1754944e-38, %v895
      %v897 = vsel %vm894, %v896, %v892
      %v898 = vmul.f32 1.0, %v897
      %v899 = vrcp.pop %v629
      %v900 = vmul.f32 %v629, %v899
      %v901 = vsub.f32 1.0, %v900
      %v902 = vmul.f32 %v899, %v901
      %v903 = vadd.f32 %v899, %v902
      %vm904 = vweird.f32 %v629
      %vm905 = vweird.f32 %v899
      %vm906 = vmor %vm904, %vm905
      %v907 = vsel %vm906, %v899, %v903
      %v908 = vand.u32 2147483647, %v629
      %vm909 = vcmp.eq.f32.partialorder %v908, 8.507059e+37
      %v910 = vand.u32 %v629, 2147483648
      %v911 = vor.u32 1.1754944e-38, %v910
      %v912 = vsel %vm909, %v911, %v907
      %v913 = vmul.f32 1.0, %v912
      %v914 = vrcp.pop %v630
      %v915 = vmul.f32 %v630, %v914
      %v916 = vsub.f32 1.0, %v915
      %v917 = vmul.f32 %v914, %v916
      %v918 = vadd.f32 %v914, %v917
      %vm919 = vweird.f32 %v630
      %vm920 = vweird.f32 %v914
      %vm921 = vmor %vm919, %vm920
      %v922 = vsel %vm921, %v914, %v918
      %v923 = vand.u32 2147483647, %v630
      %vm924 = vcmp.eq.f32.partialorder %v923, 8.507059e+37
      %v925 = vand.u32 %v630, 2147483648
      %v926 = vor.u32 1.1754944e-38, %v925
      %v927 = vsel %vm924, %v926, %v922
      %v928 = vmul.f32 1.0, %v927
      %v929 = vrcp.pop %v631
      %v930 = vmul.f32 %v631, %v929
      %v931 = vsub.f32 1.0, %v930
      %v932 = vmul.f32 %v929, %v931
      %v933 = vadd.f32 %v929, %v932
      %vm934 = vweird.f32 %v631
      %vm935 = vweird.f32 %v929
      %vm936 = vmor %vm934, %vm935
      %v937 = vsel %vm936, %v929, %v933
      %v938 = vand.u32 2147483647, %v631
      %vm939 = vcmp.eq.f32.partialorder %v938, 8.507059e+37
      %v940 = vand.u32 %v631, 2147483648
      %v941 = vor.u32 1.1754944e-38, %v940
      %v942 = vsel %vm939, %v941, %v937
      %v943 = vmul.f32 1.0, %v942
      %v944 = vrcp.pop %v632
      %v945 = vmul.f32 %v632, %v944
      %v946 = vsub.f32 1.0, %v945
      %v947 = vmul.f32 %v944, %v946
      %v948 = vadd.f32 %v944, %v947
      %vm949 = vweird.f32 %v632
      %vm950 = vweird.f32 %v944
      %vm951 = vmor %vm949, %vm950
      %v952 = vsel %vm951, %v944, %v948
      %v953 = vand.u32 2147483647, %v632
      %vm954 = vcmp.eq.f32.partialorder %v953, 8.507059e+37
      %v955 = vand.u32 %v632, 2147483648
      %v956 = vor.u32 1.1754944e-38, %v955
      %v957 = vsel %vm954, %v956, %v952
      %v958 = vmul.f32 1.0, %v957
      %v959 = vrcp.pop %v633
      %v960 = vmul.f32 %v633, %v959
      %v961 = vsub.f32 1.0, %v960
      %v962 = vmul.f32 %v959, %v961
      %v963 = vadd.f32 %v959, %v962
      %vm964 = vweird.f32 %v633
      %vm965 = vweird.f32 %v959
      %vm966 = vmor %vm964, %vm965
      %v967 = vsel %vm966, %v959, %v963
      %v968 = vand.u32 2147483647, %v633
      %vm969 = vcmp.eq.f32.partialorder %v968, 8.507059e+37
      %v970 = vand.u32 %v633, 2147483648
      %v971 = vor.u32 1.1754944e-38, %v970
      %v972 = vsel %vm969, %v971, %v967
      %v973 = vmul.f32 1.0, %v972
      %v974 = vrcp.pop %v634
      %v975 = vmul.f32 %v634, %v974
      %v976 = vsub.f32 1.0, %v975
      %v977 = vmul.f32 %v974, %v976
      %v978 = vadd.f32 %v974, %v977
      %vm979 = vweird.f32 %v634
      %vm980 = vweird.f32 %v974
      %vm981 = vmor %vm979, %vm980
      %v982 = vsel %vm981, %v974, %v978
      %v983 = vand.u32 2147483647, %v634
      %vm984 = vcmp.eq.f32.partialorder %v983, 8.507059e+37
      %v985 = vand.u32 %v634, 2147483648
      %v986 = vor.u32 1.1754944e-38, %v985
      %v987 = vsel %vm984, %v986, %v982
      %v988 = vmul.f32 1.0, %v987
      %v989 = vrcp.pop %v635
      %v990 = vmul.f32 %v635, %v989
      %v991 = vsub.f32 1.0, %v990
      %v992 = vmul.f32 %v989, %v991
      %v993 = vadd.f32 %v989, %v992
      %vm994 = vweird.f32 %v635
      %vm995 = vweird.f32 %v989
      %vm996 = vmor %vm994, %vm995
      %v997 = vsel %vm996, %v989, %v993
      %v998 = vand.u32 2147483647, %v635
      %vm999 = vcmp.eq.f32.partialorder %v998, 8.507059e+37
      %v1000 = vand.u32 %v635, 2147483648
      %v1001 = vor.u32 1.1754944e-38, %v1000
      %v1002 = vsel %vm999, %v1001, %v997
      %v1003 = vmul.f32 1.0, %v1002
      %v1004 = vrcp.pop %v636
      %v1005 = vmul.f32 %v636, %v1004
      %v1006 = vsub.f32 1.0, %v1005
      %v1007 = vmul.f32 %v1004, %v1006
      %v1008 = vadd.f32 %v1004, %v1007
      %vm1009 = vweird.f32 %v636
      %vm1010 = vweird.f32 %v1004
      %vm1011 = vmor %vm1009, %vm1010
      %v1012 = vsel %vm1011, %v1004, %v1008
      %v1013 = vand.u32 2147483647, %v636
      %vm1014 = vcmp.eq.f32.partialorder %v1013, 8.507059e+37
      %v1015 = vand.u32 %v636, 2147483648
      %v1016 = vor.u32 1.1754944e-38, %v1015
      %v1017 = vsel %vm1014, %v1016, %v1012
      %v1018 = vmul.f32 1.0, %v1017
      %v1019 = vrcp.pop %v637
      %v1020 = vmul.f32 %v637, %v1019
      %v1021 = vsub.f32 1.0, %v1020
      %v1022 = vmul.f32 %v1019, %v1021
      %v1023 = vadd.f32 %v1019, %v1022
      %vm1024 = vweird.f32 %v637
      %vm1025 = vweird.f32 %v1019
      %vm1026 = vmor %vm1024, %vm1025
      %v1027 = vsel %vm1026, %v1019, %v1023
      %v1028 = vand.u32 2147483647, %v637
      %vm1029 = vcmp.eq.f32.partialorder %v1028, 8.507059e+37
      %v1030 = vand.u32 %v637, 2147483648
      %v1031 = vor.u32 1.1754944e-38, %v1030
      %v1032 = vsel %vm1029, %v1031, %v1027
      %v1033 = vmul.f32 1.0, %v1032
      %v1034 = vrcp.pop %v638
      %v1035 = vmul.f32 %v638, %v1034
      %v1036 = vsub.f32 1.0, %v1035
      %v1037 = vmul.f32 %v1034, %v1036
      %v1038 = vadd.f32 %v1034, %v1037
      %vm1039 = vweird.f32 %v638
      %vm1040 = vweird.f32 %v1034
      %vm1041 = vmor %vm1039, %vm1040
      %v1042 = vsel %vm1041, %v1034, %v1038
      %v1043 = vand.u32 2147483647, %v638
      %vm1044 = vcmp.eq.f32.partialorder %v1043, 8.507059e+37
      %v1045 = vand.u32 %v638, 2147483648
      %v1046 = vor.u32 1.1754944e-38, %v1045
      %v1047 = vsel %vm1044, %v1046, %v1042
      %v1048 = vmul.f32 1.0, %v1047
      %v1049 = vrcp.pop %v639
      %v1050 = vmul.f32 %v639, %v1049
      %v1051 = vsub.f32 1.0, %v1050
      %v1052 = vmul.f32 %v1049, %v1051
      %v1053 = vadd.f32 %v1049, %v1052
      %vm1054 = vweird.f32 %v639
      %vm1055 = vweird.f32 %v1049
      %vm1056 = vmor %vm1054, %vm1055
      %v1057 = vsel %vm1056, %v1049, %v1053
      %v1058 = vand.u32 2147483647, %v639
      %vm1059 = vcmp.eq.f32.partialorder %v1058, 8.507059e+37
      %v1060 = vand.u32 %v639, 2147483648
      %v1061 = vor.u32 1.1754944e-38, %v1060
      %v1062 = vsel %vm1059, %v1061, %v1057
      %v1063 = vmul.f32 1.0, %v1062
      %v1064 = vrcp.pop %v640
      %v1065 = vmul.f32 %v640, %v1064
      %v1066 = vsub.f32 1.0, %v1065
      %v1067 = vmul.f32 %v1064, %v1066
      %v1068 = vadd.f32 %v1064, %v1067
      %vm1069 = vweird.f32 %v640
      %vm1070 = vweird.f32 %v1064
      %vm1071 = vmor %vm1069, %vm1070
      %v1072 = vsel %vm1071, %v1064, %v1068
      %v1073 = vand.u32 2147483647, %v640
      %vm1074 = vcmp.eq.f32.partialorder %v1073, 8.507059e+37
      %v1075 = vand.u32 %v640, 2147483648
      %v1076 = vor.u32 1.1754944e-38, %v1075
      %v1077 = vsel %vm1074, %v1076, %v1072
      %v1078 = vmul.f32 1.0, %v1077
      %v1079 = vrcp.pop %v641
      %v1080 = vmul.f32 %v641, %v1079
      %v1081 = vsub.f32 1.0, %v1080
      %v1082 = vmul.f32 %v1079, %v1081
      %v1083 = vadd.f32 %v1079, %v1082
      %vm1084 = vweird.f32 %v641
      %vm1085 = vweird.f32 %v1079
      %vm1086 = vmor %vm1084, %vm1085
      %v1087 = vsel %vm1086, %v1079, %v1083
      %v1088 = vand.u32 2147483647, %v641
      %vm1089 = vcmp.eq.f32.partialorder %v1088, 8.507059e+37
      %v1090 = vand.u32 %v641, 2147483648
      %v1091 = vor.u32 1.1754944e-38, %v1090
      %v1092 = vsel %vm1089, %v1091, %v1087
      %v1093 = vmul.f32 1.0, %v1092
      %v1094 = vrcp.pop %v642
      %v1095 = vmul.f32 %v642, %v1094
      %v1096 = vsub.f32 1.0, %v1095
      %v1097 = vmul.f32 %v1094, %v1096
      %v1098 = vadd.f32 %v1094, %v1097
      %vm1099 = vweird.f32 %v642
      %vm1100 = vweird.f32 %v1094
      %vm1101 = vmor %vm1099, %vm1100
      %v1102 = vsel %vm1101, %v1094, %v1098
      %v1103 = vand.u32 2147483647, %v642
      %vm1104 = vcmp.eq.f32.partialorder %v1103, 8.507059e+37
      %v1105 = vand.u32 %v642, 2147483648
      %v1106 = vor.u32 1.1754944e-38, %v1105
      %v1107 = vsel %vm1104, %v1106, %v1102
      %v1108 = vmul.f32 1.0, %v1107
      %v1109 = vrcp.pop %v643
      %v1110 = vmul.f32 %v643, %v1109
      %v1111 = vsub.f32 1.0, %v1110
      %v1112 = vmul.f32 %v1109, %v1111
      %v1113 = vadd.f32 %v1109, %v1112
      %vm1114 = vweird.f32 %v643
      %vm1115 = vweird.f32 %v1109
      %vm1116 = vmor %vm1114, %vm1115
      %v1117 = vsel %vm1116, %v1109, %v1113
      %v1118 = vand.u32 2147483647, %v643
      %vm1119 = vcmp.eq.f32.partialorder %v1118, 8.507059e+37
      %v1120 = vand.u32 %v643, 2147483648
      %v1121 = vor.u32 1.1754944e-38, %v1120
      %v1122 = vsel %vm1119, %v1121, %v1117
      %v1123 = vmul.f32 1.0, %v1122
      %v1124 = vmul.f32 %v421, %v658
      %v1125 = vmul.f32 %v424, %v673
      %v1126 = vmul.f32 %v427, %v688
      %v1127 = vmul.f32 %v430, %v703
      %v1128 = vmul.f32 %v433, %v718
      %v1129 = vmul.f32 %v436, %v733
      %v1130 = vmul.f32 %v439, %v748
      %v1131 = vmul.f32 %v442, %v763
      %v1132 = vmul.f32 %v445, %v778
      %v1133 = vmul.f32 %v448, %v793
      %v1134 = vmul.f32 %v451, %v808
      %v1135 = vmul.f32 %v454, %v823
      %v1136 = vmul.f32 %v457, %v838
      %v1137 = vmul.f32 %v460, %v853
      %v1138 = vmul.f32 %v463, %v868
      %v1139 = vmul.f32 %v466, %v883
      %v1140 = vmul.f32 %v469, %v898
      %v1141 = vmul.f32 %v472, %v913
      %v1142 = vmul.f32 %v475, %v928
      %v1143 = vmul.f32 %v478, %v943
      %v1144 = vmul.f32 %v481, %v958
      %v1145 = vmul.f32 %v484, %v973
      %v1146 = vmul.f32 %v487, %v988
      %v1147 = vmul.f32 %v490, %v1003
      %v1148 = vmul.f32 %v493, %v1018
      %v1149 = vmul.f32 %v496, %v1033
      %v1150 = vmul.f32 %v499, %v1048
      %v1151 = vmul.f32 %v502, %v1063
      %v1152 = vmul.f32 %v505, %v1078
      %v1153 = vmul.f32 %v508, %v1093
      %v1154 = vmul.f32 %v511, %v1108
      %v1155 = vmul.f32 %v514, %v1123
      %vm1156 = vcmask 31744
      %1157 = vst.msk [vmem:[%s261] sm:$0xff] %vm1156, %v1124
      %1158 = vst.msk [vmem:[%s261 + $0x8] sm:$0xff] %vm1156, %v1125
      %1159 = vst.msk [vmem:[%s261 + $0x10] sm:$0xff] %vm1156, %v1126
      %1160 = vst.msk [vmem:[%s261 + $0x18] sm:$0xff] %vm1156, %v1127
      %1161 = vst.msk [vmem:[%s261 + $0x20] sm:$0xff] %vm1156, %v1128
      %1162 = vst.msk [vmem:[%s261 + $0x28] sm:$0xff] %vm1156, %v1129
      %1163 = vst.msk [vmem:[%s261 + $0x30] sm:$0xff] %vm1156, %v1130
      %1164 = vst.msk [vmem:[%s261 + $0x38] sm:$0xff] %vm1156, %v1131
      %1165 = vst.msk [vmem:[%s261 + $0x40] sm:$0xff] %vm1156, %v1132
      %1166 = vst.msk [vmem:[%s261 + $0x48] sm:$0xff] %vm1156, %v1133
      %1167 = vst.msk [vmem:[%s261 + $0x50] sm:$0xff] %vm1156, %v1134
      %1168 = vst.msk [vmem:[%s261 + $0x58] sm:$0xff] %vm1156, %v1135
      %1169 = vst.msk [vmem:[%s261 + $0x60] sm:$0xff] %vm1156, %v1136
      %1170 = vst.msk [vmem:[%s261 + $0x68] sm:$0xff] %vm1156, %v1137
      %1171 = vst.msk [vmem:[%s261 + $0x70] sm:$0xff] %vm1156, %v1138
      %1172 = vst.msk [vmem:[%s261 + $0x78] sm:$0xff] %vm1156, %v1139
      %1173 = vst.msk [vmem:[%s261 + $0x80] sm:$0xff] %vm1156, %v1140
      %1174 = vst.msk [vmem:[%s261 + $0x88] sm:$0xff] %vm1156, %v1141
      %1175 = vst.msk [vmem:[%s261 + $0x90] sm:$0xff] %vm1156, %v1142
      %1176 = vst.msk [vmem:[%s261 + $0x98] sm:$0xff] %vm1156, %v1143
      %1177 = vst.msk [vmem:[%s261 + $0xa0] sm:$0xff] %vm1156, %v1144
      %1178 = vst.msk [vmem:[%s261 + $0xa8] sm:$0xff] %vm1156, %v1145
      %1179 = vst.msk [vmem:[%s261 + $0xb0] sm:$0xff] %vm1156, %v1146
      %1180 = vst.msk [vmem:[%s261 + $0xb8] sm:$0xff] %vm1156, %v1147
      %1181 = vst.msk [vmem:[%s261 + $0xc0] sm:$0xff] %vm1156, %v1148
      %1182 = vst.msk [vmem:[%s261 + $0xc8] sm:$0xff] %vm1156, %v1149
      %1183 = vst.msk [vmem:[%s261 + $0xd0] sm:$0xff] %vm1156, %v1150
      %1184 = vst.msk [vmem:[%s261 + $0xd8] sm:$0xff] %vm1156, %v1151
      %1185 = vst.msk [vmem:[%s261 + $0xe0] sm:$0xff] %vm1156, %v1152
      %1186 = vst.msk [vmem:[%s261 + $0xe8] sm:$0xff] %vm1156, %v1153
      %1187 = vst.msk [vmem:[%s261 + $0xf0] sm:$0xff] %vm1156, %v1154
      %1188 = vst.msk [vmem:[%s261 + $0xf8] sm:$0xff] %vm1156, %v1155
      %v1189 = vld [vmem:[%s3] sm:$0xff]
      %v1190 = vld [vmem:[%s4] sm:$0x1]
      %v1192 = vperm.slane %v1190, 0
      %1194 = vmatpush.msra.mxu0 0.0
      %1195 = vmatpush.msra.mxu0 0.0
      %1196 = vmatpush.msra.mxu0 0.0
      %1197 = vmatpush.msra.mxu0 0.0
      %1198 = vmatpush.msra.mxu0 0.0
      %1199 = vmatpush.msra.mxu0 0.0
      %1200 = vmatpush.msra.mxu0 0.0
      %1201 = vmatpush.msra.mxu0 0.0
      %1202 = vmatpush.msra.mxu0 0.0
      %1203 = vmatpush.msra.mxu0 0.0
      %1204 = vmatpush.msra.mxu0 0.0
      %1205 = vmatpush.msra.mxu0 0.0
      %1206 = vmatpush.msra.mxu0 0.0
      %1207 = vmatpush.msra.mxu0 0.0
      %1208 = vmatpush.msra.mxu0 0.0
      %1209 = vmatpush.msra.mxu0 %v1189
      %1210 = vmatmul.f32.gmra.mxu0 %v308
      %v1211 = vpop.f32.mrf.mxu0
      %v1212 = vadd.f32 %v1192, %v1211
      %1213 = vmatmul.f32.gmra.mxu0 %v311
      %v1214 = vpop.f32.mrf.mxu0
      %v1215 = vadd.f32 %v1192, %v1214
      %1216 = vmatmul.f32.gmra.mxu0 %v314
      %v1217 = vpop.f32.mrf.mxu0
      %v1218 = vadd.f32 %v1192, %v1217
      %1219 = vmatmul.f32.gmra.mxu0 %v317
      %v1220 = vpop.f32.mrf.mxu0
      %v1221 = vadd.f32 %v1192, %v1220
      %1222 = vmatmul.f32.gmra.mxu0 %v320
      %v1223 = vpop.f32.mrf.mxu0
      %v1224 = vadd.f32 %v1192, %v1223
      %1225 = vmatmul.f32.gmra.mxu0 %v323
      %v1226 = vpop.f32.mrf.mxu0
      %v1227 = vadd.f32 %v1192, %v1226
      %1228 = vmatmul.f32.gmra.mxu0 %v326
      %v1229 = vpop.f32.mrf.mxu0
      %v1230 = vadd.f32 %v1192, %v1229
      %1231 = vmatmul.f32.gmra.mxu0 %v329
      %v1232 = vpop.f32.mrf.mxu0
      %v1233 = vadd.f32 %v1192, %v1232
      %1234 = vmatmul.f32.gmra.mxu0 %v332
      %v1235 = vpop.f32.mrf.mxu0
      %v1236 = vadd.f32 %v1192, %v1235
      %1237 = vmatmul.f32.gmra.mxu0 %v335
      %v1238 = vpop.f32.mrf.mxu0
      %v1239 = vadd.f32 %v1192, %v1238
      %1240 = vmatmul.f32.gmra.mxu0 %v338
      %v1241 = vpop.f32.mrf.mxu0
      %v1242 = vadd.f32 %v1192, %v1241
      %1243 = vmatmul.f32.gmra.mxu0 %v341
      %v1244 = vpop.f32.mrf.mxu0
      %v1245 = vadd.f32 %v1192, %v1244
      %1246 = vmatmul.f32.gmra.mxu0 %v344
      %v1247 = vpop.f32.mrf.mxu0
      %v1248 = vadd.f32 %v1192, %v1247
      %1249 = vmatmul.f32.gmra.mxu0 %v347
      %v1250 = vpop.f32.mrf.mxu0
      %v1251 = vadd.f32 %v1192, %v1250
      %1252 = vmatmul.f32.gmra.mxu0 %v350
      %v1253 = vpop.f32.mrf.mxu0
      %v1254 = vadd.f32 %v1192, %v1253
      %1255 = vmatmul.f32.gmra.mxu0 %v353
      %v1256 = vpop.f32.mrf.mxu0
      %v1257 = vadd.f32 %v1192, %v1256
      %1258 = vmatmul.f32.gmra.mxu0 %v356
      %v1259 = vpop.f32.mrf.mxu0
      %v1260 = vadd.f32 %v1192, %v1259
      %1261 = vmatmul.f32.gmra.mxu0 %v359
      %v1262 = vpop.f32.mrf.mxu0
      %v1263 = vadd.f32 %v1192, %v1262
      %1264 = vmatmul.f32.gmra.mxu0 %v362
      %v1265 = vpop.f32.mrf.mxu0
      %v1266 = vadd.f32 %v1192, %v1265
      %1267 = vmatmul.f32.gmra.mxu0 %v365
      %v1268 = vpop.f32.mrf.mxu0
      %v1269 = vadd.f32 %v1192, %v1268
      %1270 = vmatmul.f32.gmra.mxu0 %v368
      %v1271 = vpop.f32.mrf.mxu0
      %v1272 = vadd.f32 %v1192, %v1271
      %1273 = vmatmul.f32.gmra.mxu0 %v371
      %v1274 = vpop.f32.mrf.mxu0
      %v1275 = vadd.f32 %v1192, %v1274
      %1276 = vmatmul.f32.gmra.mxu0 %v374
      %v1277 = vpop.f32.mrf.mxu0
      %v1278 = vadd.f32 %v1192, %v1277
      %1279 = vmatmul.f32.gmra.mxu0 %v377
      %v1280 = vpop.f32.mrf.mxu0
      %v1281 = vadd.f32 %v1192, %v1280
      %1282 = vmatmul.f32.gmra.mxu0 %v380
      %v1283 = vpop.f32.mrf.mxu0
      %v1284 = vadd.f32 %v1192, %v1283
      %1285 = vmatmul.f32.gmra.mxu0 %v383
      %v1286 = vpop.f32.mrf.mxu0
      %v1287 = vadd.f32 %v1192, %v1286
      %1288 = vmatmul.f32.gmra.mxu0 %v386
      %v1289 = vpop.f32.mrf.mxu0
      %v1290 = vadd.f32 %v1192, %v1289
      %1291 = vmatmul.f32.gmra.mxu0 %v389
      %v1292 = vpop.f32.mrf.mxu0
      %v1293 = vadd.f32 %v1192, %v1292
      %1294 = vmatmul.f32.gmra.mxu0 %v392
      %v1295 = vpop.f32.mrf.mxu0
      %v1296 = vadd.f32 %v1192, %v1295
      %1297 = vmatmul.f32.gmra.mxu0 %v395
      %v1298 = vpop.f32.mrf.mxu0
      %v1299 = vadd.f32 %v1192, %v1298
      %1300 = vmatmul.f32.gmra.mxu0 %v398
      %v1301 = vpop.f32.mrf.mxu0
      %v1302 = vadd.f32 %v1192, %v1301
      %1303 = vmatmul.f32.gmra.mxu0 %v401
      %v1304 = vpop.f32.mrf.mxu0
      %v1305 = vadd.f32 %v1192, %v1304
      %1306 = vdwg.mxu0
      %v1307 = vxor.u32 %v1212, 2147483648
      %v1308 = vxor.u32 %v1215, 2147483648
      %v1309 = vxor.u32 %v1218, 2147483648
      %v1310 = vxor.u32 %v1221, 2147483648
      %v1311 = vxor.u32 %v1224, 2147483648
      %v1312 = vxor.u32 %v1227, 2147483648
      %v1313 = vxor.u32 %v1230, 2147483648
      %v1314 = vxor.u32 %v1233, 2147483648
      %v1315 = vxor.u32 %v1236, 2147483648
      %v1316 = vxor.u32 %v1239, 2147483648
      %v1317 = vxor.u32 %v1242, 2147483648
      %v1318 = vxor.u32 %v1245, 2147483648
      %v1319 = vxor.u32 %v1248, 2147483648
      %v1320 = vxor.u32 %v1251, 2147483648
      %v1321 = vxor.u32 %v1254, 2147483648
      %v1322 = vxor.u32 %v1257, 2147483648
      %v1323 = vxor.u32 %v1260, 2147483648
      %v1324 = vxor.u32 %v1263, 2147483648
      %v1325 = vxor.u32 %v1266, 2147483648
      %v1326 = vxor.u32 %v1269, 2147483648
      %v1327 = vxor.u32 %v1272, 2147483648
      %v1328 = vxor.u32 %v1275, 2147483648
      %v1329 = vxor.u32 %v1278, 2147483648
      %v1330 = vxor.u32 %v1281, 2147483648
      %v1331 = vxor.u32 %v1284, 2147483648
      %v1332 = vxor.u32 %v1287, 2147483648
      %v1333 = vxor.u32 %v1290, 2147483648
      %v1334 = vxor.u32 %v1293, 2147483648
      %v1335 = vxor.u32 %v1296, 2147483648
      %v1336 = vxor.u32 %v1299, 2147483648
      %v1337 = vxor.u32 %v1302, 2147483648
      %v1338 = vxor.u32 %v1305, 2147483648
      %v1339 = vmul.f32 %v1307, 1.442695
      %v1340 = vpow.pop %v1339
      %v1341 = vmul.f32 %v1308, 1.442695
      %v1342 = vpow.pop %v1341
      %v1343 = vmul.f32 %v1309, 1.442695
      %v1344 = vpow.pop %v1343
      %v1345 = vmul.f32 %v1310, 1.442695
      %v1346 = vpow.pop %v1345
      %v1347 = vmul.f32 %v1311, 1.442695
      %v1348 = vpow.pop %v1347
      %v1349 = vmul.f32 %v1312, 1.442695
      %v1350 = vpow.pop %v1349
      %v1351 = vmul.f32 %v1313, 1.442695
      %v1352 = vpow.pop %v1351
      %v1353 = vmul.f32 %v1314, 1.442695
      %v1354 = vpow.pop %v1353
      %v1355 = vmul.f32 %v1315, 1.442695
      %v1356 = vpow.pop %v1355
      %v1357 = vmul.f32 %v1316, 1.442695
      %v1358 = vpow.pop %v1357
      %v1359 = vmul.f32 %v1317, 1.442695
      %v1360 = vpow.pop %v1359
      %v1361 = vmul.f32 %v1318, 1.442695
      %v1362 = vpow.pop %v1361
      %v1363 = vmul.f32 %v1319, 1.442695
      %v1364 = vpow.pop %v1363
      %v1365 = vmul.f32 %v1320, 1.442695
      %v1366 = vpow.pop %v1365
      %v1367 = vmul.f32 %v1321, 1.442695
      %v1368 = vpow.pop %v1367
      %v1369 = vmul.f32 %v1322, 1.442695
      %v1370 = vpow.pop %v1369
      %v1371 = vmul.f32 %v1323, 1.442695
      %v1372 = vpow.pop %v1371
      %v1373 = vmul.f32 %v1324, 1.442695
      %v1374 = vpow.pop %v1373
      %v1375 = vmul.f32 %v1325, 1.442695
      %v1376 = vpow.pop %v1375
      %v1377 = vmul.f32 %v1326, 1.442695
      %v1378 = vpow.pop %v1377
      %v1379 = vmul.f32 %v1327, 1.442695
      %v1380 = vpow.pop %v1379
      %v1381 = vmul.f32 %v1328, 1.442695
      %v1382 = vpow.pop %v1381
      %v1383 = vmul.f32 %v1329, 1.442695
      %v1384 = vpow.pop %v1383
      %v1385 = vmul.f32 %v1330, 1.442695
      %v1386 = vpow.pop %v1385
      %v1387 = vmul.f32 %v1331, 1.442695
      %v1388 = vpow.pop %v1387
      %v1389 = vmul.f32 %v1332, 1.442695
      %v1390 = vpow.pop %v1389
      %v1391 = vmul.f32 %v1333, 1.442695
      %v1392 = vpow.pop %v1391
      %v1393 = vmul.f32 %v1334, 1.442695
      %v1394 = vpow.pop %v1393
      %v1395 = vmul.f32 %v1335, 1.442695
      %v1396 = vpow.pop %v1395
      %v1397 = vmul.f32 %v1336, 1.442695
      %v1398 = vpow.pop %v1397
      %v1399 = vmul.f32 %v1337, 1.442695
      %v1400 = vpow.pop %v1399
      %v1401 = vmul.f32 %v1338, 1.442695
      %v1402 = vpow.pop %v1401
      %v1403 = vadd.f32 %v1340, 1.0
      %v1404 = vadd.f32 %v1342, 1.0
      %v1405 = vadd.f32 %v1344, 1.0
      %v1406 = vadd.f32 %v1346, 1.0
      %v1407 = vadd.f32 %v1348, 1.0
      %v1408 = vadd.f32 %v1350, 1.0
      %v1409 = vadd.f32 %v1352, 1.0
      %v1410 = vadd.f32 %v1354, 1.0
      %v1411 = vadd.f32 %v1356, 1.0
      %v1412 = vadd.f32 %v1358, 1.0
      %v1413 = vadd.f32 %v1360, 1.0
      %v1414 = vadd.f32 %v1362, 1.0
      %v1415 = vadd.f32 %v1364, 1.0
      %v1416 = vadd.f32 %v1366, 1.0
      %v1417 = vadd.f32 %v1368, 1.0
      %v1418 = vadd.f32 %v1370, 1.0
      %v1419 = vadd.f32 %v1372, 1.0
      %v1420 = vadd.f32 %v1374, 1.0
      %v1421 = vadd.f32 %v1376, 1.0
      %v1422 = vadd.f32 %v1378, 1.0
      %v1423 = vadd.f32 %v1380, 1.0
      %v1424 = vadd.f32 %v1382, 1.0
      %v1425 = vadd.f32 %v1384, 1.0
      %v1426 = vadd.f32 %v1386, 1.0
      %v1427 = vadd.f32 %v1388, 1.0
      %v1428 = vadd.f32 %v1390, 1.0
      %v1429 = vadd.f32 %v1392, 1.0
      %v1430 = vadd.f32 %v1394, 1.0
      %v1431 = vadd.f32 %v1396, 1.0
      %v1432 = vadd.f32 %v1398, 1.0
      %v1433 = vadd.f32 %v1400, 1.0
      %v1434 = vadd.f32 %v1402, 1.0
      %v1435 = vrcp.pop %v1403
      %v1436 = vmul.f32 %v1403, %v1435
      %v1437 = vsub.f32 1.0, %v1436
      %v1438 = vmul.f32 %v1435, %v1437
      %v1439 = vadd.f32 %v1435, %v1438
      %vm1440 = vweird.f32 %v1403
      %vm1441 = vweird.f32 %v1435
      %vm1442 = vmor %vm1440, %vm1441
      %v1443 = vsel %vm1442, %v1435, %v1439
      %v1444 = vand.u32 2147483647, %v1403
      %vm1445 = vcmp.eq.f32.partialorder %v1444, 8.507059e+37
      %v1446 = vand.u32 %v1403, 2147483648
      %v1447 = vor.u32 1.1754944e-38, %v1446
      %v1448 = vsel %vm1445, %v1447, %v1443
      %v1449 = vmul.f32 1.0, %v1448
      %v1450 = vrcp.pop %v1404
      %v1451 = vmul.f32 %v1404, %v1450
      %v1452 = vsub.f32 1.0, %v1451
      %v1453 = vmul.f32 %v1450, %v1452
      %v1454 = vadd.f32 %v1450, %v1453
      %vm1455 = vweird.f32 %v1404
      %vm1456 = vweird.f32 %v1450
      %vm1457 = vmor %vm1455, %vm1456
      %v1458 = vsel %vm1457, %v1450, %v1454
      %v1459 = vand.u32 2147483647, %v1404
      %vm1460 = vcmp.eq.f32.partialorder %v1459, 8.507059e+37
      %v1461 = vand.u32 %v1404, 2147483648
      %v1462 = vor.u32 1.1754944e-38, %v1461
      %v1463 = vsel %vm1460, %v1462, %v1458
      %v1464 = vmul.f32 1.0, %v1463
      %v1465 = vrcp.pop %v1405
      %v1466 = vmul.f32 %v1405, %v1465
      %v1467 = vsub.f32 1.0, %v1466
      %v1468 = vmul.f32 %v1465, %v1467
      %v1469 = vadd.f32 %v1465, %v1468
      %vm1470 = vweird.f32 %v1405
      %vm1471 = vweird.f32 %v1465
      %vm1472 = vmor %vm1470, %vm1471
      %v1473 = vsel %vm1472, %v1465, %v1469
      %v1474 = vand.u32 2147483647, %v1405
      %vm1475 = vcmp.eq.f32.partialorder %v1474, 8.507059e+37
      %v1476 = vand.u32 %v1405, 2147483648
      %v1477 = vor.u32 1.1754944e-38, %v1476
      %v1478 = vsel %vm1475, %v1477, %v1473
      %v1479 = vmul.f32 1.0, %v1478
      %v1480 = vrcp.pop %v1406
      %v1481 = vmul.f32 %v1406, %v1480
      %v1482 = vsub.f32 1.0, %v1481
      %v1483 = vmul.f32 %v1480, %v1482
      %v1484 = vadd.f32 %v1480, %v1483
      %vm1485 = vweird.f32 %v1406
      %vm1486 = vweird.f32 %v1480
      %vm1487 = vmor %vm1485, %vm1486
      %v1488 = vsel %vm1487, %v1480, %v1484
      %v1489 = vand.u32 2147483647, %v1406
      %vm1490 = vcmp.eq.f32.partialorder %v1489, 8.507059e+37
      %v1491 = vand.u32 %v1406, 2147483648
      %v1492 = vor.u32 1.1754944e-38, %v1491
      %v1493 = vsel %vm1490, %v1492, %v1488
      %v1494 = vmul.f32 1.0, %v1493
      %v1495 = vrcp.pop %v1407
      %v1496 = vmul.f32 %v1407, %v1495
      %v1497 = vsub.f32 1.0, %v1496
      %v1498 = vmul.f32 %v1495, %v1497
      %v1499 = vadd.f32 %v1495, %v1498
      %vm1500 = vweird.f32 %v1407
      %vm1501 = vweird.f32 %v1495
      %vm1502 = vmor %vm1500, %vm1501
      %v1503 = vsel %vm1502, %v1495, %v1499
      %v1504 = vand.u32 2147483647, %v1407
      %vm1505 = vcmp.eq.f32.partialorder %v1504, 8.507059e+37
      %v1506 = vand.u32 %v1407, 2147483648
      %v1507 = vor.u32 1.1754944e-38, %v1506
      %v1508 = vsel %vm1505, %v1507, %v1503
      %v1509 = vmul.f32 1.0, %v1508
      %v1510 = vrcp.pop %v1408
      %v1511 = vmul.f32 %v1408, %v1510
      %v1512 = vsub.f32 1.0, %v1511
      %v1513 = vmul.f32 %v1510, %v1512
      %v1514 = vadd.f32 %v1510, %v1513
      %vm1515 = vweird.f32 %v1408
      %vm1516 = vweird.f32 %v1510
      %vm1517 = vmor %vm1515, %vm1516
      %v1518 = vsel %vm1517, %v1510, %v1514
      %v1519 = vand.u32 2147483647, %v1408
      %vm1520 = vcmp.eq.f32.partialorder %v1519, 8.507059e+37
      %v1521 = vand.u32 %v1408, 2147483648
      %v1522 = vor.u32 1.1754944e-38, %v1521
      %v1523 = vsel %vm1520, %v1522, %v1518
      %v1524 = vmul.f32 1.0, %v1523
      %v1525 = vrcp.pop %v1409
      %v1526 = vmul.f32 %v1409, %v1525
      %v1527 = vsub.f32 1.0, %v1526
      %v1528 = vmul.f32 %v1525, %v1527
      %v1529 = vadd.f32 %v1525, %v1528
      %vm1530 = vweird.f32 %v1409
      %vm1531 = vweird.f32 %v1525
      %vm1532 = vmor %vm1530, %vm1531
      %v1533 = vsel %vm1532, %v1525, %v1529
      %v1534 = vand.u32 2147483647, %v1409
      %vm1535 = vcmp.eq.f32.partialorder %v1534, 8.507059e+37
      %v1536 = vand.u32 %v1409, 2147483648
      %v1537 = vor.u32 1.1754944e-38, %v1536
      %v1538 = vsel %vm1535, %v1537, %v1533
      %v1539 = vmul.f32 1.0, %v1538
      %v1540 = vrcp.pop %v1410
      %v1541 = vmul.f32 %v1410, %v1540
      %v1542 = vsub.f32 1.0, %v1541
      %v1543 = vmul.f32 %v1540, %v1542
      %v1544 = vadd.f32 %v1540, %v1543
      %vm1545 = vweird.f32 %v1410
      %vm1546 = vweird.f32 %v1540
      %vm1547 = vmor %vm1545, %vm1546
      %v1548 = vsel %vm1547, %v1540, %v1544
      %v1549 = vand.u32 2147483647, %v1410
      %vm1550 = vcmp.eq.f32.partialorder %v1549, 8.507059e+37
      %v1551 = vand.u32 %v1410, 2147483648
      %v1552 = vor.u32 1.1754944e-38, %v1551
      %v1553 = vsel %vm1550, %v1552, %v1548
      %v1554 = vmul.f32 1.0, %v1553
      %v1555 = vrcp.pop %v1411
      %v1556 = vmul.f32 %v1411, %v1555
      %v1557 = vsub.f32 1.0, %v1556
      %v1558 = vmul.f32 %v1555, %v1557
      %v1559 = vadd.f32 %v1555, %v1558
      %vm1560 = vweird.f32 %v1411
      %vm1561 = vweird.f32 %v1555
      %vm1562 = vmor %vm1560, %vm1561
      %v1563 = vsel %vm1562, %v1555, %v1559
      %v1564 = vand.u32 2147483647, %v1411
      %vm1565 = vcmp.eq.f32.partialorder %v1564, 8.507059e+37
      %v1566 = vand.u32 %v1411, 2147483648
      %v1567 = vor.u32 1.1754944e-38, %v1566
      %v1568 = vsel %vm1565, %v1567, %v1563
      %v1569 = vmul.f32 1.0, %v1568
      %v1570 = vrcp.pop %v1412
      %v1571 = vmul.f32 %v1412, %v1570
      %v1572 = vsub.f32 1.0, %v1571
      %v1573 = vmul.f32 %v1570, %v1572
      %v1574 = vadd.f32 %v1570, %v1573
      %vm1575 = vweird.f32 %v1412
      %vm1576 = vweird.f32 %v1570
      %vm1577 = vmor %vm1575, %vm1576
      %v1578 = vsel %vm1577, %v1570, %v1574
      %v1579 = vand.u32 2147483647, %v1412
      %vm1580 = vcmp.eq.f32.partialorder %v1579, 8.507059e+37
      %v1581 = vand.u32 %v1412, 2147483648
      %v1582 = vor.u32 1.1754944e-38, %v1581
      %v1583 = vsel %vm1580, %v1582, %v1578
      %v1584 = vmul.f32 1.0, %v1583
      %v1585 = vrcp.pop %v1413
      %v1586 = vmul.f32 %v1413, %v1585
      %v1587 = vsub.f32 1.0, %v1586
      %v1588 = vmul.f32 %v1585, %v1587
      %v1589 = vadd.f32 %v1585, %v1588
      %vm1590 = vweird.f32 %v1413
      %vm1591 = vweird.f32 %v1585
      %vm1592 = vmor %vm1590, %vm1591
      %v1593 = vsel %vm1592, %v1585, %v1589
      %v1594 = vand.u32 2147483647, %v1413
      %vm1595 = vcmp.eq.f32.partialorder %v1594, 8.507059e+37
      %v1596 = vand.u32 %v1413, 2147483648
      %v1597 = vor.u32 1.1754944e-38, %v1596
      %v1598 = vsel %vm1595, %v1597, %v1593
      %v1599 = vmul.f32 1.0, %v1598
      %v1600 = vrcp.pop %v1414
      %v1601 = vmul.f32 %v1414, %v1600
      %v1602 = vsub.f32 1.0, %v1601
      %v1603 = vmul.f32 %v1600, %v1602
      %v1604 = vadd.f32 %v1600, %v1603
      %vm1605 = vweird.f32 %v1414
      %vm1606 = vweird.f32 %v1600
      %vm1607 = vmor %vm1605, %vm1606
      %v1608 = vsel %vm1607, %v1600, %v1604
      %v1609 = vand.u32 2147483647, %v1414
      %vm1610 = vcmp.eq.f32.partialorder %v1609, 8.507059e+37
      %v1611 = vand.u32 %v1414, 2147483648
      %v1612 = vor.u32 1.1754944e-38, %v1611
      %v1613 = vsel %vm1610, %v1612, %v1608
      %v1614 = vmul.f32 1.0, %v1613
      %v1615 = vrcp.pop %v1415
      %v1616 = vmul.f32 %v1415, %v1615
      %v1617 = vsub.f32 1.0, %v1616
      %v1618 = vmul.f32 %v1615, %v1617
      %v1619 = vadd.f32 %v1615, %v1618
      %vm1620 = vweird.f32 %v1415
      %vm1621 = vweird.f32 %v1615
      %vm1622 = vmor %vm1620, %vm1621
      %v1623 = vsel %vm1622, %v1615, %v1619
      %v1624 = vand.u32 2147483647, %v1415
      %vm1625 = vcmp.eq.f32.partialorder %v1624, 8.507059e+37
      %v1626 = vand.u32 %v1415, 2147483648
      %v1627 = vor.u32 1.1754944e-38, %v1626
      %v1628 = vsel %vm1625, %v1627, %v1623
      %v1629 = vmul.f32 1.0, %v1628
      %v1630 = vrcp.pop %v1416
      %v1631 = vmul.f32 %v1416, %v1630
      %v1632 = vsub.f32 1.0, %v1631
      %v1633 = vmul.f32 %v1630, %v1632
      %v1634 = vadd.f32 %v1630, %v1633
      %vm1635 = vweird.f32 %v1416
      %vm1636 = vweird.f32 %v1630
      %vm1637 = vmor %vm1635, %vm1636
      %v1638 = vsel %vm1637, %v1630, %v1634
      %v1639 = vand.u32 2147483647, %v1416
      %vm1640 = vcmp.eq.f32.partialorder %v1639, 8.507059e+37
      %v1641 = vand.u32 %v1416, 2147483648
      %v1642 = vor.u32 1.1754944e-38, %v1641
      %v1643 = vsel %vm1640, %v1642, %v1638
      %v1644 = vmul.f32 1.0, %v1643
      %v1645 = vrcp.pop %v1417
      %v1646 = vmul.f32 %v1417, %v1645
      %v1647 = vsub.f32 1.0, %v1646
      %v1648 = vmul.f32 %v1645, %v1647
      %v1649 = vadd.f32 %v1645, %v1648
      %vm1650 = vweird.f32 %v1417
      %vm1651 = vweird.f32 %v1645
      %vm1652 = vmor %vm1650, %vm1651
      %v1653 = vsel %vm1652, %v1645, %v1649
      %v1654 = vand.u32 2147483647, %v1417
      %vm1655 = vcmp.eq.f32.partialorder %v1654, 8.507059e+37
      %v1656 = vand.u32 %v1417, 2147483648
      %v1657 = vor.u32 1.1754944e-38, %v1656
      %v1658 = vsel %vm1655, %v1657, %v1653
      %v1659 = vmul.f32 1.0, %v1658
      %v1660 = vrcp.pop %v1418
      %v1661 = vmul.f32 %v1418, %v1660
      %v1662 = vsub.f32 1.0, %v1661
      %v1663 = vmul.f32 %v1660, %v1662
      %v1664 = vadd.f32 %v1660, %v1663
      %vm1665 = vweird.f32 %v1418
      %vm1666 = vweird.f32 %v1660
      %vm1667 = vmor %vm1665, %vm1666
      %v1668 = vsel %vm1667, %v1660, %v1664
      %v1669 = vand.u32 2147483647, %v1418
      %vm1670 = vcmp.eq.f32.partialorder %v1669, 8.507059e+37
      %v1671 = vand.u32 %v1418, 2147483648
      %v1672 = vor.u32 1.1754944e-38, %v1671
      %v1673 = vsel %vm1670, %v1672, %v1668
      %v1674 = vmul.f32 1.0, %v1673
      %v1675 = vrcp.pop %v1419
      %v1676 = vmul.f32 %v1419, %v1675
      %v1677 = vsub.f32 1.0, %v1676
      %v1678 = vmul.f32 %v1675, %v1677
      %v1679 = vadd.f32 %v1675, %v1678
      %vm1680 = vweird.f32 %v1419
      %vm1681 = vweird.f32 %v1675
      %vm1682 = vmor %vm1680, %vm1681
      %v1683 = vsel %vm1682, %v1675, %v1679
      %v1684 = vand.u32 2147483647, %v1419
      %vm1685 = vcmp.eq.f32.partialorder %v1684, 8.507059e+37
      %v1686 = vand.u32 %v1419, 2147483648
      %v1687 = vor.u32 1.1754944e-38, %v1686
      %v1688 = vsel %vm1685, %v1687, %v1683
      %v1689 = vmul.f32 1.0, %v1688
      %v1690 = vrcp.pop %v1420
      %v1691 = vmul.f32 %v1420, %v1690
      %v1692 = vsub.f32 1.0, %v1691
      %v1693 = vmul.f32 %v1690, %v1692
      %v1694 = vadd.f32 %v1690, %v1693
      %vm1695 = vweird.f32 %v1420
      %vm1696 = vweird.f32 %v1690
      %vm1697 = vmor %vm1695, %vm1696
      %v1698 = vsel %vm1697, %v1690, %v1694
      %v1699 = vand.u32 2147483647, %v1420
      %vm1700 = vcmp.eq.f32.partialorder %v1699, 8.507059e+37
      %v1701 = vand.u32 %v1420, 2147483648
      %v1702 = vor.u32 1.1754944e-38, %v1701
      %v1703 = vsel %vm1700, %v1702, %v1698
      %v1704 = vmul.f32 1.0, %v1703
      %v1705 = vrcp.pop %v1421
      %v1706 = vmul.f32 %v1421, %v1705
      %v1707 = vsub.f32 1.0, %v1706
      %v1708 = vmul.f32 %v1705, %v1707
      %v1709 = vadd.f32 %v1705, %v1708
      %vm1710 = vweird.f32 %v1421
      %vm1711 = vweird.f32 %v1705
      %vm1712 = vmor %vm1710, %vm1711
      %v1713 = vsel %vm1712, %v1705, %v1709
      %v1714 = vand.u32 2147483647, %v1421
      %vm1715 = vcmp.eq.f32.partialorder %v1714, 8.507059e+37
      %v1716 = vand.u32 %v1421, 2147483648
      %v1717 = vor.u32 1.1754944e-38, %v1716
      %v1718 = vsel %vm1715, %v1717, %v1713
      %v1719 = vmul.f32 1.0, %v1718
      %v1720 = vrcp.pop %v1422
      %v1721 = vmul.f32 %v1422, %v1720
      %v1722 = vsub.f32 1.0, %v1721
      %v1723 = vmul.f32 %v1720, %v1722
      %v1724 = vadd.f32 %v1720, %v1723
      %vm1725 = vweird.f32 %v1422
      %vm1726 = vweird.f32 %v1720
      %vm1727 = vmor %vm1725, %vm1726
      %v1728 = vsel %vm1727, %v1720, %v1724
      %v1729 = vand.u32 2147483647, %v1422
      %vm1730 = vcmp.eq.f32.partialorder %v1729, 8.507059e+37
      %v1731 = vand.u32 %v1422, 2147483648
      %v1732 = vor.u32 1.1754944e-38, %v1731
      %v1733 = vsel %vm1730, %v1732, %v1728
      %v1734 = vmul.f32 1.0, %v1733
      %v1735 = vrcp.pop %v1423
      %v1736 = vmul.f32 %v1423, %v1735
      %v1737 = vsub.f32 1.0, %v1736
      %v1738 = vmul.f32 %v1735, %v1737
      %v1739 = vadd.f32 %v1735, %v1738
      %vm1740 = vweird.f32 %v1423
      %vm1741 = vweird.f32 %v1735
      %vm1742 = vmor %vm1740, %vm1741
      %v1743 = vsel %vm1742, %v1735, %v1739
      %v1744 = vand.u32 2147483647, %v1423
      %vm1745 = vcmp.eq.f32.partialorder %v1744, 8.507059e+37
      %v1746 = vand.u32 %v1423, 2147483648
      %v1747 = vor.u32 1.1754944e-38, %v1746
      %v1748 = vsel %vm1745, %v1747, %v1743
      %v1749 = vmul.f32 1.0, %v1748
      %v1750 = vrcp.pop %v1424
      %v1751 = vmul.f32 %v1424, %v1750
      %v1752 = vsub.f32 1.0, %v1751
      %v1753 = vmul.f32 %v1750, %v1752
      %v1754 = vadd.f32 %v1750, %v1753
      %vm1755 = vweird.f32 %v1424
      %vm1756 = vweird.f32 %v1750
      %vm1757 = vmor %vm1755, %vm1756
      %v1758 = vsel %vm1757, %v1750, %v1754
      %v1759 = vand.u32 2147483647, %v1424
      %vm1760 = vcmp.eq.f32.partialorder %v1759, 8.507059e+37
      %v1761 = vand.u32 %v1424, 2147483648
      %v1762 = vor.u32 1.1754944e-38, %v1761
      %v1763 = vsel %vm1760, %v1762, %v1758
      %v1764 = vmul.f32 1.0, %v1763
      %v1765 = vrcp.pop %v1425
      %v1766 = vmul.f32 %v1425, %v1765
      %v1767 = vsub.f32 1.0, %v1766
      %v1768 = vmul.f32 %v1765, %v1767
      %v1769 = vadd.f32 %v1765, %v1768
      %vm1770 = vweird.f32 %v1425
      %vm1771 = vweird.f32 %v1765
      %vm1772 = vmor %vm1770, %vm1771
      %v1773 = vsel %vm1772, %v1765, %v1769
      %v1774 = vand.u32 2147483647, %v1425
      %vm1775 = vcmp.eq.f32.partialorder %v1774, 8.507059e+37
      %v1776 = vand.u32 %v1425, 2147483648
      %v1777 = vor.u32 1.1754944e-38, %v1776
      %v1778 = vsel %vm1775, %v1777, %v1773
      %v1779 = vmul.f32 1.0, %v1778
      %v1780 = vrcp.pop %v1426
      %v1781 = vmul.f32 %v1426, %v1780
      %v1782 = vsub.f32 1.0, %v1781
      %v1783 = vmul.f32 %v1780, %v1782
      %v1784 = vadd.f32 %v1780, %v1783
      %vm1785 = vweird.f32 %v1426
      %vm1786 = vweird.f32 %v1780
      %vm1787 = vmor %vm1785, %vm1786
      %v1788 = vsel %vm1787, %v1780, %v1784
      %v1789 = vand.u32 2147483647, %v1426
      %vm1790 = vcmp.eq.f32.partialorder %v1789, 8.507059e+37
      %v1791 = vand.u32 %v1426, 2147483648
      %v1792 = vor.u32 1.1754944e-38, %v1791
      %v1793 = vsel %vm1790, %v1792, %v1788
      %v1794 = vmul.f32 1.0, %v1793
      %v1795 = vrcp.pop %v1427
      %v1796 = vmul.f32 %v1427, %v1795
      %v1797 = vsub.f32 1.0, %v1796
      %v1798 = vmul.f32 %v1795, %v1797
      %v1799 = vadd.f32 %v1795, %v1798
      %vm1800 = vweird.f32 %v1427
      %vm1801 = vweird.f32 %v1795
      %vm1802 = vmor %vm1800, %vm1801
      %v1803 = vsel %vm1802, %v1795, %v1799
      %v1804 = vand.u32 2147483647, %v1427
      %vm1805 = vcmp.eq.f32.partialorder %v1804, 8.507059e+37
      %v1806 = vand.u32 %v1427, 2147483648
      %v1807 = vor.u32 1.1754944e-38, %v1806
      %v1808 = vsel %vm1805, %v1807, %v1803
      %v1809 = vmul.f32 1.0, %v1808
      %v1810 = vrcp.pop %v1428
      %v1811 = vmul.f32 %v1428, %v1810
      %v1812 = vsub.f32 1.0, %v1811
      %v1813 = vmul.f32 %v1810, %v1812
      %v1814 = vadd.f32 %v1810, %v1813
      %vm1815 = vweird.f32 %v1428
      %vm1816 = vweird.f32 %v1810
      %vm1817 = vmor %vm1815, %vm1816
      %v1818 = vsel %vm1817, %v1810, %v1814
      %v1819 = vand.u32 2147483647, %v1428
      %vm1820 = vcmp.eq.f32.partialorder %v1819, 8.507059e+37
      %v1821 = vand.u32 %v1428, 2147483648
      %v1822 = vor.u32 1.1754944e-38, %v1821
      %v1823 = vsel %vm1820, %v1822, %v1818
      %v1824 = vmul.f32 1.0, %v1823
      %v1825 = vrcp.pop %v1429
      %v1826 = vmul.f32 %v1429, %v1825
      %v1827 = vsub.f32 1.0, %v1826
      %v1828 = vmul.f32 %v1825, %v1827
      %v1829 = vadd.f32 %v1825, %v1828
      %vm1830 = vweird.f32 %v1429
      %vm1831 = vweird.f32 %v1825
      %vm1832 = vmor %vm1830, %vm1831
      %v1833 = vsel %vm1832, %v1825, %v1829
      %v1834 = vand.u32 2147483647, %v1429
      %vm1835 = vcmp.eq.f32.partialorder %v1834, 8.507059e+37
      %v1836 = vand.u32 %v1429, 2147483648
      %v1837 = vor.u32 1.1754944e-38, %v1836
      %v1838 = vsel %vm1835, %v1837, %v1833
      %v1839 = vmul.f32 1.0, %v1838
      %v1840 = vrcp.pop %v1430
      %v1841 = vmul.f32 %v1430, %v1840
      %v1842 = vsub.f32 1.0, %v1841
      %v1843 = vmul.f32 %v1840, %v1842
      %v1844 = vadd.f32 %v1840, %v1843
      %vm1845 = vweird.f32 %v1430
      %vm1846 = vweird.f32 %v1840
      %vm1847 = vmor %vm1845, %vm1846
      %v1848 = vsel %vm1847, %v1840, %v1844
      %v1849 = vand.u32 2147483647, %v1430
      %vm1850 = vcmp.eq.f32.partialorder %v1849, 8.507059e+37
      %v1851 = vand.u32 %v1430, 2147483648
      %v1852 = vor.u32 1.1754944e-38, %v1851
      %v1853 = vsel %vm1850, %v1852, %v1848
      %v1854 = vmul.f32 1.0, %v1853
      %v1855 = vrcp.pop %v1431
      %v1856 = vmul.f32 %v1431, %v1855
      %v1857 = vsub.f32 1.0, %v1856
      %v1858 = vmul.f32 %v1855, %v1857
      %v1859 = vadd.f32 %v1855, %v1858
      %vm1860 = vweird.f32 %v1431
      %vm1861 = vweird.f32 %v1855
      %vm1862 = vmor %vm1860, %vm1861
      %v1863 = vsel %vm1862, %v1855, %v1859
      %v1864 = vand.u32 2147483647, %v1431
      %vm1865 = vcmp.eq.f32.partialorder %v1864, 8.507059e+37
      %v1866 = vand.u32 %v1431, 2147483648
      %v1867 = vor.u32 1.1754944e-38, %v1866
      %v1868 = vsel %vm1865, %v1867, %v1863
      %v1869 = vmul.f32 1.0, %v1868
      %v1870 = vrcp.pop %v1432
      %v1871 = vmul.f32 %v1432, %v1870
      %v1872 = vsub.f32 1.0, %v1871
      %v1873 = vmul.f32 %v1870, %v1872
      %v1874 = vadd.f32 %v1870, %v1873
      %vm1875 = vweird.f32 %v1432
      %vm1876 = vweird.f32 %v1870
      %vm1877 = vmor %vm1875, %vm1876
      %v1878 = vsel %vm1877, %v1870, %v1874
      %v1879 = vand.u32 2147483647, %v1432
      %vm1880 = vcmp.eq.f32.partialorder %v1879, 8.507059e+37
      %v1881 = vand.u32 %v1432, 2147483648
      %v1882 = vor.u32 1.1754944e-38, %v1881
      %v1883 = vsel %vm1880, %v1882, %v1878
      %v1884 = vmul.f32 1.0, %v1883
      %v1885 = vrcp.pop %v1433
      %v1886 = vmul.f32 %v1433, %v1885
      %v1887 = vsub.f32 1.0, %v1886
      %v1888 = vmul.f32 %v1885, %v1887
      %v1889 = vadd.f32 %v1885, %v1888
      %vm1890 = vweird.f32 %v1433
      %vm1891 = vweird.f32 %v1885
      %vm1892 = vmor %vm1890, %vm1891
      %v1893 = vsel %vm1892, %v1885, %v1889
      %v1894 = vand.u32 2147483647, %v1433
      %vm1895 = vcmp.eq.f32.partialorder %v1894, 8.507059e+37
      %v1896 = vand.u32 %v1433, 2147483648
      %v1897 = vor.u32 1.1754944e-38, %v1896
      %v1898 = vsel %vm1895, %v1897, %v1893
      %v1899 = vmul.f32 1.0, %v1898
      %v1900 = vrcp.pop %v1434
      %v1901 = vmul.f32 %v1434, %v1900
      %v1902 = vsub.f32 1.0, %v1901
      %v1903 = vmul.f32 %v1900, %v1902
      %v1904 = vadd.f32 %v1900, %v1903
      %vm1905 = vweird.f32 %v1434
      %vm1906 = vweird.f32 %v1900
      %vm1907 = vmor %vm1905, %vm1906
      %v1908 = vsel %vm1907, %v1900, %v1904
      %v1909 = vand.u32 2147483647, %v1434
      %vm1910 = vcmp.eq.f32.partialorder %v1909, 8.507059e+37
      %v1911 = vand.u32 %v1434, 2147483648
      %v1912 = vor.u32 1.1754944e-38, %v1911
      %v1913 = vsel %vm1910, %v1912, %v1908
      %v1914 = vmul.f32 1.0, %v1913
      %v1915 = vmul.f32 %v1212, %v1449
      %v1916 = vmul.f32 %v1215, %v1464
      %v1917 = vmul.f32 %v1218, %v1479
      %v1918 = vmul.f32 %v1221, %v1494
      %v1919 = vmul.f32 %v1224, %v1509
      %v1920 = vmul.f32 %v1227, %v1524
      %v1921 = vmul.f32 %v1230, %v1539
      %v1922 = vmul.f32 %v1233, %v1554
      %v1923 = vmul.f32 %v1236, %v1569
      %v1924 = vmul.f32 %v1239, %v1584
      %v1925 = vmul.f32 %v1242, %v1599
      %v1926 = vmul.f32 %v1245, %v1614
      %v1927 = vmul.f32 %v1248, %v1629
      %v1928 = vmul.f32 %v1251, %v1644
      %v1929 = vmul.f32 %v1254, %v1659
      %v1930 = vmul.f32 %v1257, %v1674
      %v1931 = vmul.f32 %v1260, %v1689
      %v1932 = vmul.f32 %v1263, %v1704
      %v1933 = vmul.f32 %v1266, %v1719
      %v1934 = vmul.f32 %v1269, %v1734
      %v1935 = vmul.f32 %v1272, %v1749
      %v1936 = vmul.f32 %v1275, %v1764
      %v1937 = vmul.f32 %v1278, %v1779
      %v1938 = vmul.f32 %v1281, %v1794
      %v1939 = vmul.f32 %v1284, %v1809
      %v1940 = vmul.f32 %v1287, %v1824
      %v1941 = vmul.f32 %v1290, %v1839
      %v1942 = vmul.f32 %v1293, %v1854
      %v1943 = vmul.f32 %v1296, %v1869
      %v1944 = vmul.f32 %v1299, %v1884
      %v1945 = vmul.f32 %v1302, %v1899
      %v1946 = vmul.f32 %v1305, %v1914
      %1947 = vst.msk [vmem:[%s267] sm:$0xff] %vm1156, %v1915
      %1948 = vst.msk [vmem:[%s267 + $0x8] sm:$0xff] %vm1156, %v1916
      %1949 = vst.msk [vmem:[%s267 + $0x10] sm:$0xff] %vm1156, %v1917
      %1950 = vst.msk [vmem:[%s267 + $0x18] sm:$0xff] %vm1156, %v1918
      %1951 = vst.msk [vmem:[%s267 + $0x20] sm:$0xff] %vm1156, %v1919
      %1952 = vst.msk [vmem:[%s267 + $0x28] sm:$0xff] %vm1156, %v1920
      %1953 = vst.msk [vmem:[%s267 + $0x30] sm:$0xff] %vm1156, %v1921
      %1954 = vst.msk [vmem:[%s267 + $0x38] sm:$0xff] %vm1156, %v1922
      %1955 = vst.msk [vmem:[%s267 + $0x40] sm:$0xff] %vm1156, %v1923
      %1956 = vst.msk [vmem:[%s267 + $0x48] sm:$0xff] %vm1156, %v1924
      %1957 = vst.msk [vmem:[%s267 + $0x50] sm:$0xff] %vm1156, %v1925
      %1958 = vst.msk [vmem:[%s267 + $0x58] sm:$0xff] %vm1156, %v1926
      %1959 = vst.msk [vmem:[%s267 + $0x60] sm:$0xff] %vm1156, %v1927
      %1960 = vst.msk [vmem:[%s267 + $0x68] sm:$0xff] %vm1156, %v1928
      %1961 = vst.msk [vmem:[%s267 + $0x70] sm:$0xff] %vm1156, %v1929
      %1962 = vst.msk [vmem:[%s267 + $0x78] sm:$0xff] %vm1156, %v1930
      %1963 = vst.msk [vmem:[%s267 + $0x80] sm:$0xff] %vm1156, %v1931
      %1964 = vst.msk [vmem:[%s267 + $0x88] sm:$0xff] %vm1156, %v1932
      %1965 = vst.msk [vmem:[%s267 + $0x90] sm:$0xff] %vm1156, %v1933
      %1966 = vst.msk [vmem:[%s267 + $0x98] sm:$0xff] %vm1156, %v1934
      %1967 = vst.msk [vmem:[%s267 + $0xa0] sm:$0xff] %vm1156, %v1935
      %1968 = vst.msk [vmem:[%s267 + $0xa8] sm:$0xff] %vm1156, %v1936
      %1969 = vst.msk [vmem:[%s267 + $0xb0] sm:$0xff] %vm1156, %v1937
      %1970 = vst.msk [vmem:[%s267 + $0xb8] sm:$0xff] %vm1156, %v1938
      %1971 = vst.msk [vmem:[%s267 + $0xc0] sm:$0xff] %vm1156, %v1939
      %1972 = vst.msk [vmem:[%s267 + $0xc8] sm:$0xff] %vm1156, %v1940
      %1973 = vst.msk [vmem:[%s267 + $0xd0] sm:$0xff] %vm1156, %v1941
      %1974 = vst.msk [vmem:[%s267 + $0xd8] sm:$0xff] %vm1156, %v1942
      %1975 = vst.msk [vmem:[%s267 + $0xe0] sm:$0xff] %vm1156, %v1943
      %1976 = vst.msk [vmem:[%s267 + $0xe8] sm:$0xff] %vm1156, %v1944
      %1977 = vst.msk [vmem:[%s267 + $0xf0] sm:$0xff] %vm1156, %v1945
      %1978 = vst.msk [vmem:[%s267 + $0xf8] sm:$0xff] %vm1156, %v1946
      %s1979 = smul.u32 32, %s18
      %p1980 = scmp.lt.s32.totalorder %s1979, 63
      %s1981 = scalar_select %p1980, %s1979, 63
      %s1982 = smul.addr %s1981, 8
      %s1983 = scalar_lea.vmem %s5, %s1982
      %s1984 = smul.u32 32, %s18
      %p1985 = scmp.lt.s32.totalorder %s1984, 63
      %s1986 = scalar_select %p1985, %s1984, 63
      %s1987 = smul.addr %s1986, 8
      %s1988 = scalar_lea.vmem %s6, %s1987
      // Predicated region
      $region41: #{_lambda_.3} parent=39 // pred_check
        %p1989 = pneg %p146
      $region42: #{_lambda_.3} parent=39 // pred_check_branch
        %1991 = sbr.rel (%p1989) target = $region44
      $region43: #{_lambda_.3} parent=39 // pred_region
        %s1992 = smul.u32 32, %s18
      $region44: #{_lambda_.3} parent=39 // pred_fallthru
        _
      // Predicated region
      $region45: #{_lambda_.3} parent=39 // pred_check
        %p1993 = pneg %p172
      $region46: #{_lambda_.3} parent=39 // pred_check_branch
        %1995 = sbr.rel (%p1993) target = $region48
      $region47: #{_lambda_.3} parent=39 // pred_region
        %s1996 = smul.u32 32, %s18
      $region48: #{_lambda_.3} parent=39 // pred_fallthru
        _
    $region40: #{_lambda_.3} parent=5 // pred_fallthru
      _
    %p1997 = scmp.le.s32.totalorder 2, %s13
    // Predicated region
    $region49: #{_lambda_.3} parent=5 // pred_check
      %p1998 = pneg %p1997
    $region50: #{_lambda_.3} parent=5 // pred_check_branch
      %2000 = sbr.rel (%p1998) target = $region52
    $region51: #{_lambda_.3} parent=5 // pred_region
      %s2001 = ssub.s32 %s13, 2
      // Predicated region
      $region53: #{_lambda_.3} parent=51 // pred_check
        %p2002 = pneg %p152
      $region54: #{_lambda_.3} parent=51 // pred_check_branch
        %2004 = sbr.rel (%p2002) target = $region56
      $region55: #{_lambda_.3} parent=51 // pred_region
        %s2005 = smul.u32 32, %s19
        %p2006 = scmp.lt.s32.totalorder %s2005, 63
        %s2007 = scalar_select %p2006, %s2005, 63
        %s2008 = smul.addr %s2007, 8
        %s2009 = scalar_lea.vmem %s5, %s2008
      $region56: #{_lambda_.3} parent=51 // pred_fallthru
        _
      // Predicated region
      $region57: #{_lambda_.3} parent=51 // pred_check
        %p2010 = pneg %p178
      $region58: #{_lambda_.3} parent=51 // pred_check_branch
        %2012 = sbr.rel (%p2010) target = $region60
      $region59: #{_lambda_.3} parent=51 // pred_region
        %s2013 = smul.u32 32, %s19
        %p2014 = scmp.lt.s32.totalorder %s2013, 63
        %s2015 = scalar_select %p2014, %s2013, 63
        %s2016 = smul.addr %s2015, 8
        %s2017 = scalar_lea.vmem %s6, %s2016
      $region60: #{_lambda_.3} parent=51 // pred_fallthru
        _
    $region52: #{_lambda_.3} parent=5 // pred_fallthru
      _
  $region6: #{_lambda_.3} parent=0 // loop_footer
    %s17 = sadd.s32 1, %s13
  $region7: #{_lambda_.3} parent=0 // loop_footer_branch
    %12 = sbr.rel target = $region3
  $region8: #{_lambda_.3} parent=0 // loop_exit
    _

// kernel: _lambda_.4
$region0: #{_lambda_.4}
  #allocation0 [shape = 'u32[]', space=smem, size = 0x4, offset = 0x4, fixed_abs, tag = 'smem constant byte address 0x4 - core index']
  #allocation1 [shape = 'u32[72,128]{1,0:T(1,128)}', space=vmem, size = 0x9000, scoped, tag = 'internal scratch']
  #allocation2 [shape = 'f32[480,4]{1,0:T(8,128)}', space=vmem, size = 0x3c000, scoped, tag = 'scratch operand']
  #allocation3 [shape = 'f32[384,4]{1,0:T(8,128)}', space=vmem, size = 0x30000, scoped, tag = 'scratch operand']
  %s0 = inlined_call_operand.vmem [shape: f32[2,256,4], index: 0, kind: input, shape index: {}]
  %s1 = inlined_call_operand.vmem [shape: f32[4,4], index: 1, kind: input, shape index: {}]
  %s2 = inlined_call_operand.vmem [shape: f32[1,4], index: 2, kind: input, shape index: {}]
  %s3 = inlined_call_operand.vmem [shape: f32[9,4,4], index: 3, kind: input, shape index: {}]
  %s4 = inlined_call_operand.vmem [shape: f32[1,4], index: 4, kind: input, shape index: {}]
  %s5 = inlined_call_operand.vmem [shape: f32[2,256,4], index: 5, kind: output, shape index: {}]
  %s6 = sld [smem:[#allocation0]]
  $region53: #{_lambda_.4} parent=0
    _
  %s8 = ssub.s32 1, %s6
  %s9 = scalar_select 0, %s8, %s6
  loop: start=0, step=1, limit=4
  $region2: #{_lambda_.4} parent=0 // loop_pre_header
    _
  $region3: #{_lambda_.4} parent=0 // loop_header
    %s11 = sphi 0, %s15
    %p12 = scmp.ge.s32.totalorder %s11, 4
    %s21 = sphi 0, %s23
    %s24 = sphi 0, %s21
    %s25 = sphi 0, %s24
    %s41 = sphi 0, %s25
    %s45 = sphi 0, %s45
    %s47 = sphi 0, %s45
    %s48 = sphi 0, %s47
    %s62 = sphi 0, %s48
    %s66 = sphi 0, %s66
    %s68 = sphi 0, %s66
    %s69 = sphi 0, %s68
    %s83 = sphi 0, %s69
    %s87 = sphi 0, %s87
    %s89 = sphi 0, %s87
    %s90 = sphi 0, %s89
    %s104 = sphi 0, %s90
    %s108 = sphi 0, %s108
    %s110 = sphi 0, %s108
    %s111 = sphi 0, %s110
    %s125 = sphi 0, %s111
    %s131 = sphi 0, %s133
    %s134 = sphi 0, %s131
    %s135 = sphi 0, %s134
    %s151 = sphi 0, %s135
  $region4: #{_lambda_.4} parent=0 // loop_header_branch
    %14 = sbr.rel (%p12) target = $region8
  $region5: #{_lambda_.4} parent=0 // loop_body
    %s16 = ssub.s32 %s11, 1
    %s17 = ssub.s32 %s11, 2
    %s18 = sadd.s32 %s11, 1
    %s19 = ssub.s32 %s11, %s18
    %p20 = scmp.eq.s32.totalorder %s19, 0
    %s22 = sadd.s32 %s21, 1
    %s23 = scalar_select %p20, %s21, %s22
    %p26 = pneg %p20
    %p27 = scmp.eq.s32.totalorder %s11, 1
    %p28 = por %p26, %p27
    %p29 = scmp.ne.s32.totalorder %s21, %s24
    %p30 = scmp.eq.s32.totalorder %s11, 0
    %p31 = por %p29, %p30
    %p32 = scmp.ne.s32.totalorder %s21, %s24
    %p33 = scmp.eq.s32.totalorder %s16, 1
    %p34 = por %p32, %p33
    %p35 = scmp.ne.s32.totalorder %s24, %s25
    %p36 = scmp.eq.s32.totalorder %s16, 0
    %p37 = por %p35, %p36
    %p38 = scmp.ne.s32.totalorder %s24, %s25
    %p39 = scmp.eq.s32.totalorder %s17, 1
    %p40 = por %p38, %p39
    %p42 = scmp.ne.s32.totalorder %s25, %s41
    %p43 = scmp.eq.s32.totalorder %s17, 0
    %p44 = por %p42, %p43
    %s46 = sadd.s32 %s45, 1
    %p49 = scmp.eq.s32.totalorder %s11, 1
    %p50 = scmp.ne.s32.totalorder %s45, %s47
    %p51 = scmp.eq.s32.totalorder %s11, 0
    %p52 = por %p50, %p51
    %p53 = scmp.ne.s32.totalorder %s45, %s47
    %p54 = scmp.eq.s32.totalorder %s16, 1
    %p55 = por %p53, %p54
    %p56 = scmp.ne.s32.totalorder %s47, %s48
    %p57 = scmp.eq.s32.totalorder %s16, 0
    %p58 = por %p56, %p57
    %p59 = scmp.ne.s32.totalorder %s47, %s48
    %p60 = scmp.eq.s32.totalorder %s17, 1
    %p61 = por %p59, %p60
    %p63 = scmp.ne.s32.totalorder %s48, %s62
    %p64 = scmp.eq.s32.totalorder %s17, 0
    %p65 = por %p63, %p64
    %s67 = sadd.s32 %s66, 1
    %p70 = scmp.eq.s32.totalorder %s11, 1
    %p71 = scmp.ne.s32.totalorder %s66, %s68
    %p72 = scmp.eq.s32.totalorder %s11, 0
    %p73 = por %p71, %p72
    %p74 = scmp.ne.s32.totalorder %s66, %s68
    %p75 = scmp.eq.s32.totalorder %s16, 1
    %p76 = por %p74, %p75
    %p77 = scmp.ne.s32.totalorder %s68, %s69
    %p78 = scmp.eq.s32.totalorder %s16, 0
    %p79 = por %p77, %p78
    %p80 = scmp.ne.s32.totalorder %s68, %s69
    %p81 = scmp.eq.s32.totalorder %s17, 1
    %p82 = por %p80, %p81
    %p84 = scmp.ne.s32.totalorder %s69, %s83
    %p85 = scmp.eq.s32.totalorder %s17, 0
    %p86 = por %p84, %p85
    %s88 = sadd.s32 %s87, 1
    %p91 = scmp.eq.s32.totalorder %s11, 1
    %p92 = scmp.ne.s32.totalorder %s87, %s89
    %p93 = scmp.eq.s32.totalorder %s11, 0
    %p94 = por %p92, %p93
    %p95 = scmp.ne.s32.totalorder %s87, %s89
    %p96 = scmp.eq.s32.totalorder %s16, 1
    %p97 = por %p95, %p96
    %p98 = scmp.ne.s32.totalorder %s89, %s90
    %p99 = scmp.eq.s32.totalorder %s16, 0
    %p100 = por %p98, %p99
    %p101 = scmp.ne.s32.totalorder %s89, %s90
    %p102 = scmp.eq.s32.totalorder %s17, 1
    %p103 = por %p101, %p102
    %p105 = scmp.ne.s32.totalorder %s90, %s104
    %p106 = scmp.eq.s32.totalorder %s17, 0
    %p107 = por %p105, %p106
    %s109 = sadd.s32 %s108, 1
    %p112 = scmp.eq.s32.totalorder %s11, 1
    %p113 = scmp.ne.s32.totalorder %s108, %s110
    %p114 = scmp.eq.s32.totalorder %s11, 0
    %p115 = por %p113, %p114
    %p116 = scmp.ne.s32.totalorder %s108, %s110
    %p117 = scmp.eq.s32.totalorder %s16, 1
    %p118 = por %p116, %p117
    %p119 = scmp.ne.s32.totalorder %s110, %s111
    %p120 = scmp.eq.s32.totalorder %s16, 0
    %p121 = por %p119, %p120
    %p122 = scmp.ne.s32.totalorder %s110, %s111
    %p123 = scmp.eq.s32.totalorder %s17, 1
    %p124 = por %p122, %p123
    %p126 = scmp.ne.s32.totalorder %s111, %s125
    %p127 = scmp.eq.s32.totalorder %s17, 0
    %p128 = por %p126, %p127
    %s129 = ssub.s32 %s11, %s18
    %p130 = scmp.eq.s32.totalorder %s129, 0
    %s132 = sadd.s32 %s131, 1
    %s133 = scalar_select %p130, %s131, %s132
    %p136 = pneg %p130
    %p137 = scmp.eq.s32.totalorder %s11, 1
    %p138 = por %p136, %p137
    %p139 = scmp.ne.s32.totalorder %s131, %s134
    %p140 = scmp.eq.s32.totalorder %s11, 0
    %p141 = por %p139, %p140
    %p142 = scmp.ne.s32.totalorder %s131, %s134
    %p143 = scmp.eq.s32.totalorder %s16, 1
    %p144 = por %p142, %p143
    %p145 = scmp.ne.s32.totalorder %s134, %s135
    %p146 = scmp.eq.s32.totalorder %s16, 0
    %p147 = por %p145, %p146
    %p148 = scmp.ne.s32.totalorder %s134, %s135
    %p149 = scmp.eq.s32.totalorder %s17, 1
    %p150 = por %p148, %p149
    %p152 = scmp.ne.s32.totalorder %s135, %s151
    %p153 = scmp.eq.s32.totalorder %s17, 0
    %p154 = por %p152, %p153
    %p155 = scmp.le.s32.totalorder 1, %s11
    %p156 = scmp.lt.s32.totalorder %s11, 3
    %p157 = pnand %p155, %p156
    %p158 = pneg %p157
    // Predicated region
    $region9: #{_lambda_.4} parent=5 // pred_check
      _
    $region10: #{_lambda_.4} parent=5 // pred_check_branch
      %160 = sbr.rel (%p157) target = $region12
    $region11: #{_lambda_.4} parent=5 // pred_region
      %s161 = ssub.s32 %s11, 1
      // Predicated region
      $region13: #{_lambda_.4} parent=11 // pred_check
        %p162 = pneg %p58
      $region14: #{_lambda_.4} parent=11 // pred_check_branch
        %164 = sbr.rel (%p162) target = $region16
      $region15: #{_lambda_.4} parent=11 // pred_region
        _
      $region16: #{_lambda_.4} parent=11 // pred_fallthru
        _
      // Predicated region
      $region17: #{_lambda_.4} parent=11 // pred_check
        %p165 = pneg %p79
      $region18: #{_lambda_.4} parent=11 // pred_check_branch
        %167 = sbr.rel (%p165) target = $region20
      $region19: #{_lambda_.4} parent=11 // pred_region
        _
      $region20: #{_lambda_.4} parent=11 // pred_fallthru
        _
      // Predicated region
      $region21: #{_lambda_.4} parent=11 // pred_check
        %p168 = pneg %p100
      $region22: #{_lambda_.4} parent=11 // pred_check_branch
        %170 = sbr.rel (%p168) target = $region24
      $region23: #{_lambda_.4} parent=11 // pred_region
        _
      $region24: #{_lambda_.4} parent=11 // pred_fallthru
        _
      // Predicated region
      $region25: #{_lambda_.4} parent=11 // pred_check
        %p171 = pneg %p121
      $region26: #{_lambda_.4} parent=11 // pred_check_branch
        %173 = sbr.rel (%p171) target = $region28
      $region27: #{_lambda_.4} parent=11 // pred_region
        _
      $region28: #{_lambda_.4} parent=11 // pred_fallthru
        _
    $region12: #{_lambda_.4} parent=5 // pred_fallthru
      _
    %p174 = scmp.lt.s32.totalorder %s11, 2
    // Predicated region
    $region29: #{_lambda_.4} parent=5 // pred_check
      %p175 = pneg %p174
    $region30: #{_lambda_.4} parent=5 // pred_check_branch
      %177 = sbr.rel (%p175) target = $region32
    $region31: #{_lambda_.4} parent=5 // pred_region
      // Predicated region
      $region33: #{_lambda_.4} parent=31 // pred_check
        %p178 = pneg %p31
      $region34: #{_lambda_.4} parent=31 // pred_check_branch
        %180 = sbr.rel (%p178) target = $region36
      $region35: #{_lambda_.4} parent=31 // pred_region
        %p181 = scmp.lt.s32.totalorder %s11, 1
        %s182 = scalar_select %p181, %s11, 1
        %s183 = smul.addr %s182, 32
        %s184 = smul.addr %s183, 8
        %s185 = scalar_lea.vmem %s0, %s184
      $region36: #{_lambda_.4} parent=31 // pred_fallthru
        _
    $region32: #{_lambda_.4} parent=5 // pred_fallthru
      _
    %p186 = scmp.le.s32.totalorder 1, %s11
    %p187 = scmp.lt.s32.totalorder %s11, 3
    %p188 = pnand %p186, %p187
    %p189 = pneg %p188
    // Predicated region
    $region37: #{_lambda_.4} parent=5 // pred_check
      _
    $region38: #{_lambda_.4} parent=5 // pred_check_branch
      %191 = sbr.rel (%p188) target = $region40
    $region39: #{_lambda_.4} parent=5 // pred_region
      %s192 = ssub.s32 %s11, 1
      %p193 = scmp.lt.s32.totalorder %s16, 1
      %s194 = scalar_select %p193, %s16, 1
      %s195 = smul.addr %s194, 32
      %s196 = smul.addr %s195, 8
      %s197 = scalar_lea.vmem %s0, %s196
      %p198 = pneg %p37
      %p199 = pneg %p34
      %p200 = pneg %p58
      %p201 = pneg %p55
      %p202 = pneg %p79
      %p203 = pneg %p76
      %p204 = pneg %p100
      %p205 = pneg %p97
      %p206 = pneg %p121
      %p207 = pneg %p118
      %p208 = pneg %p147
      %p209 = pneg %p144
      %p210 = scmp.lt.s32.totalorder %s16, 1
      %s211 = scalar_select %p210, %s16, 1
      %s212 = smul.addr %s211, 32
      %s213 = smul.addr %s212, 8
      %s214 = scalar_lea.vmem %s5, %s213
      %p215 = scmp.lt.s32.totalorder %s16, 1
      %s216 = scalar_select %p215, %s16, 1
      %s217 = smul.addr %s216, 32
      %s218 = smul.addr %s217, 8
      %s219 = scalar_lea.vmem %s0, %s218
      %p220 = scmp.lt.s32.totalorder %s16, 1
      %s221 = scalar_select %p220, %s16, 1
      %s222 = smul.addr %s221, 32
      %s223 = smul.addr %s222, 8
      %s224 = scalar_lea.vmem %s5, %s223
      %v225 = vld [vmem:[%s219] sm:$0xff]
      %v226 = vld [vmem:[%s219 + $0x8] sm:$0xff]
      %v227 = vld [vmem:[%s219 + $0x10] sm:$0xff]
      %v228 = vld [vmem:[%s219 + $0x18] sm:$0xff]
      %v229 = vld [vmem:[%s219 + $0x20] sm:$0xff]
      %v230 = vld [vmem:[%s219 + $0x28] sm:$0xff]
      %v231 = vld [vmem:[%s219 + $0x30] sm:$0xff]
      %v232 = vld [vmem:[%s219 + $0x38] sm:$0xff]
      %v233 = vld [vmem:[%s219 + $0x40] sm:$0xff]
      %v234 = vld [vmem:[%s219 + $0x48] sm:$0xff]
      %v235 = vld [vmem:[%s219 + $0x50] sm:$0xff]
      %v236 = vld [vmem:[%s219 + $0x58] sm:$0xff]
      %v237 = vld [vmem:[%s219 + $0x60] sm:$0xff]
      %v238 = vld [vmem:[%s219 + $0x68] sm:$0xff]
      %v239 = vld [vmem:[%s219 + $0x70] sm:$0xff]
      %v240 = vld [vmem:[%s219 + $0x78] sm:$0xff]
      %v241 = vld [vmem:[%s219 + $0x80] sm:$0xff]
      %v242 = vld [vmem:[%s219 + $0x88] sm:$0xff]
      %v243 = vld [vmem:[%s219 + $0x90] sm:$0xff]
      %v244 = vld [vmem:[%s219 + $0x98] sm:$0xff]
      %v245 = vld [vmem:[%s219 + $0xa0] sm:$0xff]
      %v246 = vld [vmem:[%s219 + $0xa8] sm:$0xff]
      %v247 = vld [vmem:[%s219 + $0xb0] sm:$0xff]
      %v248 = vld [vmem:[%s219 + $0xb8] sm:$0xff]
      %v249 = vld [vmem:[%s219 + $0xc0] sm:$0xff]
      %v250 = vld [vmem:[%s219 + $0xc8] sm:$0xff]
      %v251 = vld [vmem:[%s219 + $0xd0] sm:$0xff]
      %v252 = vld [vmem:[%s219 + $0xd8] sm:$0xff]
      %v253 = vld [vmem:[%s219 + $0xe0] sm:$0xff]
      %v254 = vld [vmem:[%s219 + $0xe8] sm:$0xff]
      %v255 = vld [vmem:[%s219 + $0xf0] sm:$0xff]
      %v256 = vld [vmem:[%s219 + $0xf8] sm:$0xff]
      %v257 = vld [vmem:[%s1] sm:$0xf]
      %v258 = vld [vmem:[%s2] sm:$0x1]
      %v260 = vperm.slane %v258, 0
      %vm262 = vcmask 31744
      %v264 = vsel %vm262, %v225, 0
      %v267 = vsel %vm262, %v226, 0
      %v270 = vsel %vm262, %v227, 0
      %v273 = vsel %vm262, %v228, 0
      %v276 = vsel %vm262, %v229, 0
      %v279 = vsel %vm262, %v230, 0
      %v282 = vsel %vm262, %v231, 0
      %v285 = vsel %vm262, %v232, 0
      %v288 = vsel %vm262, %v233, 0
      %v291 = vsel %vm262, %v234, 0
      %v294 = vsel %vm262, %v235, 0
      %v297 = vsel %vm262, %v236, 0
      %v300 = vsel %vm262, %v237, 0
      %v303 = vsel %vm262, %v238, 0
      %v306 = vsel %vm262, %v239, 0
      %v309 = vsel %vm262, %v240, 0
      %v312 = vsel %vm262, %v241, 0
      %v315 = vsel %vm262, %v242, 0
      %v318 = vsel %vm262, %v243, 0
      %v321 = vsel %vm262, %v244, 0
      %v324 = vsel %vm262, %v245, 0
      %v327 = vsel %vm262, %v246, 0
      %v330 = vsel %vm262, %v247, 0
      %v333 = vsel %vm262, %v248, 0
      %v336 = vsel %vm262, %v249, 0
      %v339 = vsel %vm262, %v250, 0
      %v342 = vsel %vm262, %v251, 0
      %v345 = vsel %vm262, %v252, 0
      %v348 = vsel %vm262, %v253, 0
      %v351 = vsel %vm262, %v254, 0
      %v354 = vsel %vm262, %v255, 0
      %v357 = vsel %vm262, %v256, 0
      %vm359 = vcmask 1043456
      %v361 = vsel %vm359, %v257, 0
      %363 = vmatpush.msra.mxu0 0.0
      %364 = vmatpush.msra.mxu0 0.0
      %365 = vmatpush.msra.mxu0 0.0
      %366 = vmatpush.msra.mxu0 0.0
      %367 = vmatpush.msra.mxu0 0.0
      %368 = vmatpush.msra.mxu0 0.0
      %369 = vmatpush.msra.mxu0 0.0
      %370 = vmatpush.msra.mxu0 0.0
      %371 = vmatpush.msra.mxu0 0.0
      %372 = vmatpush.msra.mxu0 0.0
      %373 = vmatpush.msra.mxu0 0.0
      %374 = vmatpush.msra.mxu0 0.0
      %375 = vmatpush.msra.mxu0 0.0
      %376 = vmatpush.msra.mxu0 0.0
      %377 = vmatpush.msra.mxu0 0.0
      %378 = vmatpush.msra.mxu0 %v361
      %379 = vmatmul.f32.gmra.mxu0 %v264
      %v380 = vpop.f32.mrf.mxu0
      %v381 = vadd.f32 %v260, %v380
      %382 = vmatmul.f32.gmra.mxu0 %v267
      %v383 = vpop.f32.mrf.mxu0
      %v384 = vadd.f32 %v260, %v383
      %385 = vmatmul.f32.gmra.mxu0 %v270
      %v386 = vpop.f32.mrf.mxu0
      %v387 = vadd.f32 %v260, %v386
      %388 = vmatmul.f32.gmra.mxu0 %v273
      %v389 = vpop.f32.mrf.mxu0
      %v390 = vadd.f32 %v260, %v389
      %391 = vmatmul.f32.gmra.mxu0 %v276
      %v392 = vpop.f32.mrf.mxu0
      %v393 = vadd.f32 %v260, %v392
      %394 = vmatmul.f32.gmra.mxu0 %v279
      %v395 = vpop.f32.mrf.mxu0
      %v396 = vadd.f32 %v260, %v395
      %397 = vmatmul.f32.gmra.mxu0 %v282
      %v398 = vpop.f32.mrf.mxu0
      %v399 = vadd.f32 %v260, %v398
      %400 = vmatmul.f32.gmra.mxu0 %v285
      %v401 = vpop.f32.mrf.mxu0
      %v402 = vadd.f32 %v260, %v401
      %403 = vmatmul.f32.gmra.mxu0 %v288
      %v404 = vpop.f32.mrf.mxu0
      %v405 = vadd.f32 %v260, %v404
      %406 = vmatmul.f32.gmra.mxu0 %v291
      %v407 = vpop.f32.mrf.mxu0
      %v408 = vadd.f32 %v260, %v407
      %409 = vmatmul.f32.gmra.mxu0 %v294
      %v410 = vpop.f32.mrf.mxu0
      %v411 = vadd.f32 %v260, %v410
      %412 = vmatmul.f32.gmra.mxu0 %v297
      %v413 = vpop.f32.mrf.mxu0
      %v414 = vadd.f32 %v260, %v413
      %415 = vmatmul.f32.gmra.mxu0 %v300
      %v416 = vpop.f32.mrf.mxu0
      %v417 = vadd.f32 %v260, %v416
      %418 = vmatmul.f32.gmra.mxu0 %v303
      %v419 = vpop.f32.mrf.mxu0
      %v420 = vadd.f32 %v260, %v419
      %421 = vmatmul.f32.gmra.mxu0 %v306
      %v422 = vpop.f32.mrf.mxu0
      %v423 = vadd.f32 %v260, %v422
      %424 = vmatmul.f32.gmra.mxu0 %v309
      %v425 = vpop.f32.mrf.mxu0
      %v426 = vadd.f32 %v260, %v425
      %427 = vmatmul.f32.gmra.mxu0 %v312
      %v428 = vpop.f32.mrf.mxu0
      %v429 = vadd.f32 %v260, %v428
      %430 = vmatmul.f32.gmra.mxu0 %v315
      %v431 = vpop.f32.mrf.mxu0
      %v432 = vadd.f32 %v260, %v431
      %433 = vmatmul.f32.gmra.mxu0 %v318
      %v434 = vpop.f32.mrf.mxu0
      %v435 = vadd.f32 %v260, %v434
      %436 = vmatmul.f32.gmra.mxu0 %v321
      %v437 = vpop.f32.mrf.mxu0
      %v438 = vadd.f32 %v260, %v437
      %439 = vmatmul.f32.gmra.mxu0 %v324
      %v440 = vpop.f32.mrf.mxu0
      %v441 = vadd.f32 %v260, %v440
      %442 = vmatmul.f32.gmra.mxu0 %v327
      %v443 = vpop.f32.mrf.mxu0
      %v444 = vadd.f32 %v260, %v443
      %445 = vmatmul.f32.gmra.mxu0 %v330
      %v446 = vpop.f32.mrf.mxu0
      %v447 = vadd.f32 %v260, %v446
      %448 = vmatmul.f32.gmra.mxu0 %v333
      %v449 = vpop.f32.mrf.mxu0
      %v450 = vadd.f32 %v260, %v449
      %451 = vmatmul.f32.gmra.mxu0 %v336
      %v452 = vpop.f32.mrf.mxu0
      %v453 = vadd.f32 %v260, %v452
      %454 = vmatmul.f32.gmra.mxu0 %v339
      %v455 = vpop.f32.mrf.mxu0
      %v456 = vadd.f32 %v260, %v455
      %457 = vmatmul.f32.gmra.mxu0 %v342
      %v458 = vpop.f32.mrf.mxu0
      %v459 = vadd.f32 %v260, %v458
      %460 = vmatmul.f32.gmra.mxu0 %v345
      %v461 = vpop.f32.mrf.mxu0
      %v462 = vadd.f32 %v260, %v461
      %463 = vmatmul.f32.gmra.mxu0 %v348
      %v464 = vpop.f32.mrf.mxu0
      %v465 = vadd.f32 %v260, %v464
      %466 = vmatmul.f32.gmra.mxu0 %v351
      %v467 = vpop.f32.mrf.mxu0
      %v468 = vadd.f32 %v260, %v467
      %469 = vmatmul.f32.gmra.mxu0 %v354
      %v470 = vpop.f32.mrf.mxu0
      %v471 = vadd.f32 %v260, %v470
      %472 = vmatmul.f32.gmra.mxu0 %v357
      %v473 = vpop.f32.mrf.mxu0
      %v474 = vadd.f32 %v260, %v473
      %475 = vdwg.mxu0
      %v476 = vxor.u32 %v381, 2147483648
      %v477 = vxor.u32 %v384, 2147483648
      %v478 = vxor.u32 %v387, 2147483648
      %v479 = vxor.u32 %v390, 2147483648
      %v480 = vxor.u32 %v393, 2147483648
      %v481 = vxor.u32 %v396, 2147483648
      %v482 = vxor.u32 %v399, 2147483648
      %v483 = vxor.u32 %v402, 2147483648
      %v484 = vxor.u32 %v405, 2147483648
      %v485 = vxor.u32 %v408, 2147483648
      %v486 = vxor.u32 %v411, 2147483648
      %v487 = vxor.u32 %v414, 2147483648
      %v488 = vxor.u32 %v417, 2147483648
      %v489 = vxor.u32 %v420, 2147483648
      %v490 = vxor.u32 %v423, 2147483648
      %v491 = vxor.u32 %v426, 2147483648
      %v492 = vxor.u32 %v429, 2147483648
      %v493 = vxor.u32 %v432, 2147483648
      %v494 = vxor.u32 %v435, 2147483648
      %v495 = vxor.u32 %v438, 2147483648
      %v496 = vxor.u32 %v441, 2147483648
      %v497 = vxor.u32 %v444, 2147483648
      %v498 = vxor.u32 %v447, 2147483648
      %v499 = vxor.u32 %v450, 2147483648
      %v500 = vxor.u32 %v453, 2147483648
      %v501 = vxor.u32 %v456, 2147483648
      %v502 = vxor.u32 %v459, 2147483648
      %v503 = vxor.u32 %v462, 2147483648
      %v504 = vxor.u32 %v465, 2147483648
      %v505 = vxor.u32 %v468, 2147483648
      %v506 = vxor.u32 %v471, 2147483648
      %v507 = vxor.u32 %v474, 2147483648
      %v508 = vmul.f32 %v476, 1.442695
      %v509 = vpow.pop %v508
      %v510 = vmul.f32 %v477, 1.442695
      %v511 = vpow.pop %v510
      %v512 = vmul.f32 %v478, 1.442695
      %v513 = vpow.pop %v512
      %v514 = vmul.f32 %v479, 1.442695
      %v515 = vpow.pop %v514
      %v516 = vmul.f32 %v480, 1.442695
      %v517 = vpow.pop %v516
      %v518 = vmul.f32 %v481, 1.442695
      %v519 = vpow.pop %v518
      %v520 = vmul.f32 %v482, 1.442695
      %v521 = vpow.pop %v520
      %v522 = vmul.f32 %v483, 1.442695
      %v523 = vpow.pop %v522
      %v524 = vmul.f32 %v484, 1.442695
      %v525 = vpow.pop %v524
      %v526 = vmul.f32 %v485, 1.442695
      %v527 = vpow.pop %v526
      %v528 = vmul.f32 %v486, 1.442695
      %v529 = vpow.pop %v528
      %v530 = vmul.f32 %v487, 1.442695
      %v531 = vpow.pop %v530
      %v532 = vmul.f32 %v488, 1.442695
      %v533 = vpow.pop %v532
      %v534 = vmul.f32 %v489, 1.442695
      %v535 = vpow.pop %v534
      %v536 = vmul.f32 %v490, 1.442695
      %v537 = vpow.pop %v536
      %v538 = vmul.f32 %v491, 1.442695
      %v539 = vpow.pop %v538
      %v540 = vmul.f32 %v492, 1.442695
      %v541 = vpow.pop %v540
      %v542 = vmul.f32 %v493, 1.442695
      %v543 = vpow.pop %v542
      %v544 = vmul.f32 %v494, 1.442695
      %v545 = vpow.pop %v544
      %v546 = vmul.f32 %v495, 1.442695
      %v547 = vpow.pop %v546
      %v548 = vmul.f32 %v496, 1.442695
      %v549 = vpow.pop %v548
      %v550 = vmul.f32 %v497, 1.442695
      %v551 = vpow.pop %v550
      %v552 = vmul.f32 %v498, 1.442695
      %v553 = vpow.pop %v552
      %v554 = vmul.f32 %v499, 1.442695
      %v555 = vpow.pop %v554
      %v556 = vmul.f32 %v500, 1.442695
      %v557 = vpow.pop %v556
      %v558 = vmul.f32 %v501, 1.442695
      %v559 = vpow.pop %v558
      %v560 = vmul.f32 %v502, 1.442695
      %v561 = vpow.pop %v560
      %v562 = vmul.f32 %v503, 1.442695
      %v563 = vpow.pop %v562
      %v564 = vmul.f32 %v504, 1.442695
      %v565 = vpow.pop %v564
      %v566 = vmul.f32 %v505, 1.442695
      %v567 = vpow.pop %v566
      %v568 = vmul.f32 %v506, 1.442695
      %v569 = vpow.pop %v568
      %v570 = vmul.f32 %v507, 1.442695
      %v571 = vpow.pop %v570
      %v572 = vadd.f32 %v509, 1.0
      %v573 = vadd.f32 %v511, 1.0
      %v574 = vadd.f32 %v513, 1.0
      %v575 = vadd.f32 %v515, 1.0
      %v576 = vadd.f32 %v517, 1.0
      %v577 = vadd.f32 %v519, 1.0
      %v578 = vadd.f32 %v521, 1.0
      %v579 = vadd.f32 %v523, 1.0
      %v580 = vadd.f32 %v525, 1.0
      %v581 = vadd.f32 %v527, 1.0
      %v582 = vadd.f32 %v529, 1.0
      %v583 = vadd.f32 %v531, 1.0
      %v584 = vadd.f32 %v533, 1.0
      %v585 = vadd.f32 %v535, 1.0
      %v586 = vadd.f32 %v537, 1.0
      %v587 = vadd.f32 %v539, 1.0
      %v588 = vadd.f32 %v541, 1.0
      %v589 = vadd.f32 %v543, 1.0
      %v590 = vadd.f32 %v545, 1.0
      %v591 = vadd.f32 %v547, 1.0
      %v592 = vadd.f32 %v549, 1.0
      %v593 = vadd.f32 %v551, 1.0
      %v594 = vadd.f32 %v553, 1.0
      %v595 = vadd.f32 %v555, 1.0
      %v596 = vadd.f32 %v557, 1.0
      %v597 = vadd.f32 %v559, 1.0
      %v598 = vadd.f32 %v561, 1.0
      %v599 = vadd.f32 %v563, 1.0
      %v600 = vadd.f32 %v565, 1.0
      %v601 = vadd.f32 %v567, 1.0
      %v602 = vadd.f32 %v569, 1.0
      %v603 = vadd.f32 %v571, 1.0
      %v604 = vrcp.pop %v572
      %v605 = vmul.f32 %v572, %v604
      %v606 = vsub.f32 1.0, %v605
      %v607 = vmul.f32 %v604, %v606
      %v608 = vadd.f32 %v604, %v607
      %vm609 = vweird.f32 %v572
      %vm610 = vweird.f32 %v604
      %vm611 = vmor %vm609, %vm610
      %v612 = vsel %vm611, %v604, %v608
      %v613 = vand.u32 2147483647, %v572
      %vm614 = vcmp.eq.f32.partialorder %v613, 8.507059e+37
      %v615 = vand.u32 %v572, 2147483648
      %v616 = vor.u32 1.1754944e-38, %v615
      %v617 = vsel %vm614, %v616, %v612
      %v618 = vmul.f32 1.0, %v617
      %v619 = vrcp.pop %v573
      %v620 = vmul.f32 %v573, %v619
      %v621 = vsub.f32 1.0, %v620
      %v622 = vmul.f32 %v619, %v621
      %v623 = vadd.f32 %v619, %v622
      %vm624 = vweird.f32 %v573
      %vm625 = vweird.f32 %v619
      %vm626 = vmor %vm624, %vm625
      %v627 = vsel %vm626, %v619, %v623
      %v628 = vand.u32 2147483647, %v573
      %vm629 = vcmp.eq.f32.partialorder %v628, 8.507059e+37
      %v630 = vand.u32 %v573, 2147483648
      %v631 = vor.u32 1.1754944e-38, %v630
      %v632 = vsel %vm629, %v631, %v627
      %v633 = vmul.f32 1.0, %v632
      %v634 = vrcp.pop %v574
      %v635 = vmul.f32 %v574, %v634
      %v636 = vsub.f32 1.0, %v635
      %v637 = vmul.f32 %v634, %v636
      %v638 = vadd.f32 %v634, %v637
      %vm639 = vweird.f32 %v574
      %vm640 = vweird.f32 %v634
      %vm641 = vmor %vm639, %vm640
      %v642 = vsel %vm641, %v634, %v638
      %v643 = vand.u32 2147483647, %v574
      %vm644 = vcmp.eq.f32.partialorder %v643, 8.507059e+37
      %v645 = vand.u32 %v574, 2147483648
      %v646 = vor.u32 1.1754944e-38, %v645
      %v647 = vsel %vm644, %v646, %v642
      %v648 = vmul.f32 1.0, %v647
      %v649 = vrcp.pop %v575
      %v650 = vmul.f32 %v575, %v649
      %v651 = vsub.f32 1.0, %v650
      %v652 = vmul.f32 %v649, %v651
      %v653 = vadd.f32 %v649, %v652
      %vm654 = vweird.f32 %v575
      %vm655 = vweird.f32 %v649
      %vm656 = vmor %vm654, %vm655
      %v657 = vsel %vm656, %v649, %v653
      %v658 = vand.u32 2147483647, %v575
      %vm659 = vcmp.eq.f32.partialorder %v658, 8.507059e+37
      %v660 = vand.u32 %v575, 2147483648
      %v661 = vor.u32 1.1754944e-38, %v660
      %v662 = vsel %vm659, %v661, %v657
      %v663 = vmul.f32 1.0, %v662
      %v664 = vrcp.pop %v576
      %v665 = vmul.f32 %v576, %v664
      %v666 = vsub.f32 1.0, %v665
      %v667 = vmul.f32 %v664, %v666
      %v668 = vadd.f32 %v664, %v667
      %vm669 = vweird.f32 %v576
      %vm670 = vweird.f32 %v664
      %vm671 = vmor %vm669, %vm670
      %v672 = vsel %vm671, %v664, %v668
      %v673 = vand.u32 2147483647, %v576
      %vm674 = vcmp.eq.f32.partialorder %v673, 8.507059e+37
      %v675 = vand.u32 %v576, 2147483648
      %v676 = vor.u32 1.1754944e-38, %v675
      %v677 = vsel %vm674, %v676, %v672
      %v678 = vmul.f32 1.0, %v677
      %v679 = vrcp.pop %v577
      %v680 = vmul.f32 %v577, %v679
      %v681 = vsub.f32 1.0, %v680
      %v682 = vmul.f32 %v679, %v681
      %v683 = vadd.f32 %v679, %v682
      %vm684 = vweird.f32 %v577
      %vm685 = vweird.f32 %v679
      %vm686 = vmor %vm684, %vm685
      %v687 = vsel %vm686, %v679, %v683
      %v688 = vand.u32 2147483647, %v577
      %vm689 = vcmp.eq.f32.partialorder %v688, 8.507059e+37
      %v690 = vand.u32 %v577, 2147483648
      %v691 = vor.u32 1.1754944e-38, %v690
      %v692 = vsel %vm689, %v691, %v687
      %v693 = vmul.f32 1.0, %v692
      %v694 = vrcp.pop %v578
      %v695 = vmul.f32 %v578, %v694
      %v696 = vsub.f32 1.0, %v695
      %v697 = vmul.f32 %v694, %v696
      %v698 = vadd.f32 %v694, %v697
      %vm699 = vweird.f32 %v578
      %vm700 = vweird.f32 %v694
      %vm701 = vmor %vm699, %vm700
      %v702 = vsel %vm701, %v694, %v698
      %v703 = vand.u32 2147483647, %v578
      %vm704 = vcmp.eq.f32.partialorder %v703, 8.507059e+37
      %v705 = vand.u32 %v578, 2147483648
      %v706 = vor.u32 1.1754944e-38, %v705
      %v707 = vsel %vm704, %v706, %v702
      %v708 = vmul.f32 1.0, %v707
      %v709 = vrcp.pop %v579
      %v710 = vmul.f32 %v579, %v709
      %v711 = vsub.f32 1.0, %v710
      %v712 = vmul.f32 %v709, %v711
      %v713 = vadd.f32 %v709, %v712
      %vm714 = vweird.f32 %v579
      %vm715 = vweird.f32 %v709
      %vm716 = vmor %vm714, %vm715
      %v717 = vsel %vm716, %v709, %v713
      %v718 = vand.u32 2147483647, %v579
      %vm719 = vcmp.eq.f32.partialorder %v718, 8.507059e+37
      %v720 = vand.u32 %v579, 2147483648
      %v721 = vor.u32 1.1754944e-38, %v720
      %v722 = vsel %vm719, %v721, %v717
      %v723 = vmul.f32 1.0, %v722
      %v724 = vrcp.pop %v580
      %v725 = vmul.f32 %v580, %v724
      %v726 = vsub.f32 1.0, %v725
      %v727 = vmul.f32 %v724, %v726
      %v728 = vadd.f32 %v724, %v727
      %vm729 = vweird.f32 %v580
      %vm730 = vweird.f32 %v724
      %vm731 = vmor %vm729, %vm730
      %v732 = vsel %vm731, %v724, %v728
      %v733 = vand.u32 2147483647, %v580
      %vm734 = vcmp.eq.f32.partialorder %v733, 8.507059e+37
      %v735 = vand.u32 %v580, 2147483648
      %v736 = vor.u32 1.1754944e-38, %v735
      %v737 = vsel %vm734, %v736, %v732
      %v738 = vmul.f32 1.0, %v737
      %v739 = vrcp.pop %v581
      %v740 = vmul.f32 %v581, %v739
      %v741 = vsub.f32 1.0, %v740
      %v742 = vmul.f32 %v739, %v741
      %v743 = vadd.f32 %v739, %v742
      %vm744 = vweird.f32 %v581
      %vm745 = vweird.f32 %v739
      %vm746 = vmor %vm744, %vm745
      %v747 = vsel %vm746, %v739, %v743
      %v748 = vand.u32 2147483647, %v581
      %vm749 = vcmp.eq.f32.partialorder %v748, 8.507059e+37
      %v750 = vand.u32 %v581, 2147483648
      %v751 = vor.u32 1.1754944e-38, %v750
      %v752 = vsel %vm749, %v751, %v747
      %v753 = vmul.f32 1.0, %v752
      %v754 = vrcp.pop %v582
      %v755 = vmul.f32 %v582, %v754
      %v756 = vsub.f32 1.0, %v755
      %v757 = vmul.f32 %v754, %v756
      %v758 = vadd.f32 %v754, %v757
      %vm759 = vweird.f32 %v582
      %vm760 = vweird.f32 %v754
      %vm761 = vmor %vm759, %vm760
      %v762 = vsel %vm761, %v754, %v758
      %v763 = vand.u32 2147483647, %v582
      %vm764 = vcmp.eq.f32.partialorder %v763, 8.507059e+37
      %v765 = vand.u32 %v582, 2147483648
      %v766 = vor.u32 1.1754944e-38, %v765
      %v767 = vsel %vm764, %v766, %v762
      %v768 = vmul.f32 1.0, %v767
      %v769 = vrcp.pop %v583
      %v770 = vmul.f32 %v583, %v769
      %v771 = vsub.f32 1.0, %v770
      %v772 = vmul.f32 %v769, %v771
      %v773 = vadd.f32 %v769, %v772
      %vm774 = vweird.f32 %v583
      %vm775 = vweird.f32 %v769
      %vm776 = vmor %vm774, %vm775
      %v777 = vsel %vm776, %v769, %v773
      %v778 = vand.u32 2147483647, %v583
      %vm779 = vcmp.eq.f32.partialorder %v778, 8.507059e+37
      %v780 = vand.u32 %v583, 2147483648
      %v781 = vor.u32 1.1754944e-38, %v780
      %v782 = vsel %vm779, %v781, %v777
      %v783 = vmul.f32 1.0, %v782
      %v784 = vrcp.pop %v584
      %v785 = vmul.f32 %v584, %v784
      %v786 = vsub.f32 1.0, %v785
      %v787 = vmul.f32 %v784, %v786
      %v788 = vadd.f32 %v784, %v787
      %vm789 = vweird.f32 %v584
      %vm790 = vweird.f32 %v784
      %vm791 = vmor %vm789, %vm790
      %v792 = vsel %vm791, %v784, %v788
      %v793 = vand.u32 2147483647, %v584
      %vm794 = vcmp.eq.f32.partialorder %v793, 8.507059e+37
      %v795 = vand.u32 %v584, 2147483648
      %v796 = vor.u32 1.1754944e-38, %v795
      %v797 = vsel %vm794, %v796, %v792
      %v798 = vmul.f32 1.0, %v797
      %v799 = vrcp.pop %v585
      %v800 = vmul.f32 %v585, %v799
      %v801 = vsub.f32 1.0, %v800
      %v802 = vmul.f32 %v799, %v801
      %v803 = vadd.f32 %v799, %v802
      %vm804 = vweird.f32 %v585
      %vm805 = vweird.f32 %v799
      %vm806 = vmor %vm804, %vm805
      %v807 = vsel %vm806, %v799, %v803
      %v808 = vand.u32 2147483647, %v585
      %vm809 = vcmp.eq.f32.partialorder %v808, 8.507059e+37
      %v810 = vand.u32 %v585, 2147483648
      %v811 = vor.u32 1.1754944e-38, %v810
      %v812 = vsel %vm809, %v811, %v807
      %v813 = vmul.f32 1.0, %v812
      %v814 = vrcp.pop %v586
      %v815 = vmul.f32 %v586, %v814
      %v816 = vsub.f32 1.0, %v815
      %v817 = vmul.f32 %v814, %v816
      %v818 = vadd.f32 %v814, %v817
      %vm819 = vweird.f32 %v586
      %vm820 = vweird.f32 %v814
      %vm821 = vmor %vm819, %vm820
      %v822 = vsel %vm821, %v814, %v818
      %v823 = vand.u32 2147483647, %v586
      %vm824 = vcmp.eq.f32.partialorder %v823, 8.507059e+37
      %v825 = vand.u32 %v586, 2147483648
      %v826 = vor.u32 1.1754944e-38, %v825
      %v827 = vsel %vm824, %v826, %v822
      %v828 = vmul.f32 1.0, %v827
      %v829 = vrcp.pop %v587
      %v830 = vmul.f32 %v587, %v829
      %v831 = vsub.f32 1.0, %v830
      %v832 = vmul.f32 %v829, %v831
      %v833 = vadd.f32 %v829, %v832
      %vm834 = vweird.f32 %v587
      %vm835 = vweird.f32 %v829
      %vm836 = vmor %vm834, %vm835
      %v837 = vsel %vm836, %v829, %v833
      %v838 = vand.u32 2147483647, %v587
      %vm839 = vcmp.eq.f32.partialorder %v838, 8.507059e+37
      %v840 = vand.u32 %v587, 2147483648
      %v841 = vor.u32 1.1754944e-38, %v840
      %v842 = vsel %vm839, %v841, %v837
      %v843 = vmul.f32 1.0, %v842
      %v844 = vrcp.pop %v588
      %v845 = vmul.f32 %v588, %v844
      %v846 = vsub.f32 1.0, %v845
      %v847 = vmul.f32 %v844, %v846
      %v848 = vadd.f32 %v844, %v847
      %vm849 = vweird.f32 %v588
      %vm850 = vweird.f32 %v844
      %vm851 = vmor %vm849, %vm850
      %v852 = vsel %vm851, %v844, %v848
      %v853 = vand.u32 2147483647, %v588
      %vm854 = vcmp.eq.f32.partialorder %v853, 8.507059e+37
      %v855 = vand.u32 %v588, 2147483648
      %v856 = vor.u32 1.1754944e-38, %v855
      %v857 = vsel %vm854, %v856, %v852
      %v858 = vmul.f32 1.0, %v857
      %v859 = vrcp.pop %v589
      %v860 = vmul.f32 %v589, %v859
      %v861 = vsub.f32 1.0, %v860
      %v862 = vmul.f32 %v859, %v861
      %v863 = vadd.f32 %v859, %v862
      %vm864 = vweird.f32 %v589
      %vm865 = vweird.f32 %v859
      %vm866 = vmor %vm864, %vm865
      %v867 = vsel %vm866, %v859, %v863
      %v868 = vand.u32 2147483647, %v589
      %vm869 = vcmp.eq.f32.partialorder %v868, 8.507059e+37
      %v870 = vand.u32 %v589, 2147483648
      %v871 = vor.u32 1.1754944e-38, %v870
      %v872 = vsel %vm869, %v871, %v867
      %v873 = vmul.f32 1.0, %v872
      %v874 = vrcp.pop %v590
      %v875 = vmul.f32 %v590, %v874
      %v876 = vsub.f32 1.0, %v875
      %v877 = vmul.f32 %v874, %v876
      %v878 = vadd.f32 %v874, %v877
      %vm879 = vweird.f32 %v590
      %vm880 = vweird.f32 %v874
      %vm881 = vmor %vm879, %vm880
      %v882 = vsel %vm881, %v874, %v878
      %v883 = vand.u32 2147483647, %v590
      %vm884 = vcmp.eq.f32.partialorder %v883, 8.507059e+37
      %v885 = vand.u32 %v590, 2147483648
      %v886 = vor.u32 1.1754944e-38, %v885
      %v887 = vsel %vm884, %v886, %v882
      %v888 = vmul.f32 1.0, %v887
      %v889 = vrcp.pop %v591
      %v890 = vmul.f32 %v591, %v889
      %v891 = vsub.f32 1.0, %v890
      %v892 = vmul.f32 %v889, %v891
      %v893 = vadd.f32 %v889, %v892
      %vm894 = vweird.f32 %v591
      %vm895 = vweird.f32 %v889
      %vm896 = vmor %vm894, %vm895
      %v897 = vsel %vm896, %v889, %v893
      %v898 = vand.u32 2147483647, %v591
      %vm899 = vcmp.eq.f32.partialorder %v898, 8.507059e+37
      %v900 = vand.u32 %v591, 2147483648
      %v901 = vor.u32 1.1754944e-38, %v900
      %v902 = vsel %vm899, %v901, %v897
      %v903 = vmul.f32 1.0, %v902
      %v904 = vrcp.pop %v592
      %v905 = vmul.f32 %v592, %v904
      %v906 = vsub.f32 1.0, %v905
      %v907 = vmul.f32 %v904, %v906
      %v908 = vadd.f32 %v904, %v907
      %vm909 = vweird.f32 %v592
      %vm910 = vweird.f32 %v904
      %vm911 = vmor %vm909, %vm910
      %v912 = vsel %vm911, %v904, %v908
      %v913 = vand.u32 2147483647, %v592
      %vm914 = vcmp.eq.f32.partialorder %v913, 8.507059e+37
      %v915 = vand.u32 %v592, 2147483648
      %v916 = vor.u32 1.1754944e-38, %v915
      %v917 = vsel %vm914, %v916, %v912
      %v918 = vmul.f32 1.0, %v917
      %v919 = vrcp.pop %v593
      %v920 = vmul.f32 %v593, %v919
      %v921 = vsub.f32 1.0, %v920
      %v922 = vmul.f32 %v919, %v921
      %v923 = vadd.f32 %v919, %v922
      %vm924 = vweird.f32 %v593
      %vm925 = vweird.f32 %v919
      %vm926 = vmor %vm924, %vm925
      %v927 = vsel %vm926, %v919, %v923
      %v928 = vand.u32 2147483647, %v593
      %vm929 = vcmp.eq.f32.partialorder %v928, 8.507059e+37
      %v930 = vand.u32 %v593, 2147483648
      %v931 = vor.u32 1.1754944e-38, %v930
      %v932 = vsel %vm929, %v931, %v927
      %v933 = vmul.f32 1.0, %v932
      %v934 = vrcp.pop %v594
      %v935 = vmul.f32 %v594, %v934
      %v936 = vsub.f32 1.0, %v935
      %v937 = vmul.f32 %v934, %v936
      %v938 = vadd.f32 %v934, %v937
      %vm939 = vweird.f32 %v594
      %vm940 = vweird.f32 %v934
      %vm941 = vmor %vm939, %vm940
      %v942 = vsel %vm941, %v934, %v938
      %v943 = vand.u32 2147483647, %v594
      %vm944 = vcmp.eq.f32.partialorder %v943, 8.507059e+37
      %v945 = vand.u32 %v594, 2147483648
      %v946 = vor.u32 1.1754944e-38, %v945
      %v947 = vsel %vm944, %v946, %v942
      %v948 = vmul.f32 1.0, %v947
      %v949 = vrcp.pop %v595
      %v950 = vmul.f32 %v595, %v949
      %v951 = vsub.f32 1.0, %v950
      %v952 = vmul.f32 %v949, %v951
      %v953 = vadd.f32 %v949, %v952
      %vm954 = vweird.f32 %v595
      %vm955 = vweird.f32 %v949
      %vm956 = vmor %vm954, %vm955
      %v957 = vsel %vm956, %v949, %v953
      %v958 = vand.u32 2147483647, %v595
      %vm959 = vcmp.eq.f32.partialorder %v958, 8.507059e+37
      %v960 = vand.u32 %v595, 2147483648
      %v961 = vor.u32 1.1754944e-38, %v960
      %v962 = vsel %vm959, %v961, %v957
      %v963 = vmul.f32 1.0, %v962
      %v964 = vrcp.pop %v596
      %v965 = vmul.f32 %v596, %v964
      %v966 = vsub.f32 1.0, %v965
      %v967 = vmul.f32 %v964, %v966
      %v968 = vadd.f32 %v964, %v967
      %vm969 = vweird.f32 %v596
      %vm970 = vweird.f32 %v964
      %vm971 = vmor %vm969, %vm970
      %v972 = vsel %vm971, %v964, %v968
      %v973 = vand.u32 2147483647, %v596
      %vm974 = vcmp.eq.f32.partialorder %v973, 8.507059e+37
      %v975 = vand.u32 %v596, 2147483648
      %v976 = vor.u32 1.1754944e-38, %v975
      %v977 = vsel %vm974, %v976, %v972
      %v978 = vmul.f32 1.0, %v977
      %v979 = vrcp.pop %v597
      %v980 = vmul.f32 %v597, %v979
      %v981 = vsub.f32 1.0, %v980
      %v982 = vmul.f32 %v979, %v981
      %v983 = vadd.f32 %v979, %v982
      %vm984 = vweird.f32 %v597
      %vm985 = vweird.f32 %v979
      %vm986 = vmor %vm984, %vm985
      %v987 = vsel %vm986, %v979, %v983
      %v988 = vand.u32 2147483647, %v597
      %vm989 = vcmp.eq.f32.partialorder %v988, 8.507059e+37
      %v990 = vand.u32 %v597, 2147483648
      %v991 = vor.u32 1.1754944e-38, %v990
      %v992 = vsel %vm989, %v991, %v987
      %v993 = vmul.f32 1.0, %v992
      %v994 = vrcp.pop %v598
      %v995 = vmul.f32 %v598, %v994
      %v996 = vsub.f32 1.0, %v995
      %v997 = vmul.f32 %v994, %v996
      %v998 = vadd.f32 %v994, %v997
      %vm999 = vweird.f32 %v598
      %vm1000 = vweird.f32 %v994
      %vm1001 = vmor %vm999, %vm1000
      %v1002 = vsel %vm1001, %v994, %v998
      %v1003 = vand.u32 2147483647, %v598
      %vm1004 = vcmp.eq.f32.partialorder %v1003, 8.507059e+37
      %v1005 = vand.u32 %v598, 2147483648
      %v1006 = vor.u32 1.1754944e-38, %v1005
      %v1007 = vsel %vm1004, %v1006, %v1002
      %v1008 = vmul.f32 1.0, %v1007
      %v1009 = vrcp.pop %v599
      %v1010 = vmul.f32 %v599, %v1009
      %v1011 = vsub.f32 1.0, %v1010
      %v1012 = vmul.f32 %v1009, %v1011
      %v1013 = vadd.f32 %v1009, %v1012
      %vm1014 = vweird.f32 %v599
      %vm1015 = vweird.f32 %v1009
      %vm1016 = vmor %vm1014, %vm1015
      %v1017 = vsel %vm1016, %v1009, %v1013
      %v1018 = vand.u32 2147483647, %v599
      %vm1019 = vcmp.eq.f32.partialorder %v1018, 8.507059e+37
      %v1020 = vand.u32 %v599, 2147483648
      %v1021 = vor.u32 1.1754944e-38, %v1020
      %v1022 = vsel %vm1019, %v1021, %v1017
      %v1023 = vmul.f32 1.0, %v1022
      %v1024 = vrcp.pop %v600
      %v1025 = vmul.f32 %v600, %v1024
      %v1026 = vsub.f32 1.0, %v1025
      %v1027 = vmul.f32 %v1024, %v1026
      %v1028 = vadd.f32 %v1024, %v1027
      %vm1029 = vweird.f32 %v600
      %vm1030 = vweird.f32 %v1024
      %vm1031 = vmor %vm1029, %vm1030
      %v1032 = vsel %vm1031, %v1024, %v1028
      %v1033 = vand.u32 2147483647, %v600
      %vm1034 = vcmp.eq.f32.partialorder %v1033, 8.507059e+37
      %v1035 = vand.u32 %v600, 2147483648
      %v1036 = vor.u32 1.1754944e-38, %v1035
      %v1037 = vsel %vm1034, %v1036, %v1032
      %v1038 = vmul.f32 1.0, %v1037
      %v1039 = vrcp.pop %v601
      %v1040 = vmul.f32 %v601, %v1039
      %v1041 = vsub.f32 1.0, %v1040
      %v1042 = vmul.f32 %v1039, %v1041
      %v1043 = vadd.f32 %v1039, %v1042
      %vm1044 = vweird.f32 %v601
      %vm1045 = vweird.f32 %v1039
      %vm1046 = vmor %vm1044, %vm1045
      %v1047 = vsel %vm1046, %v1039, %v1043
      %v1048 = vand.u32 2147483647, %v601
      %vm1049 = vcmp.eq.f32.partialorder %v1048, 8.507059e+37
      %v1050 = vand.u32 %v601, 2147483648
      %v1051 = vor.u32 1.1754944e-38, %v1050
      %v1052 = vsel %vm1049, %v1051, %v1047
      %v1053 = vmul.f32 1.0, %v1052
      %v1054 = vrcp.pop %v602
      %v1055 = vmul.f32 %v602, %v1054
      %v1056 = vsub.f32 1.0, %v1055
      %v1057 = vmul.f32 %v1054, %v1056
      %v1058 = vadd.f32 %v1054, %v1057
      %vm1059 = vweird.f32 %v602
      %vm1060 = vweird.f32 %v1054
      %vm1061 = vmor %vm1059, %vm1060
      %v1062 = vsel %vm1061, %v1054, %v1058
      %v1063 = vand.u32 2147483647, %v602
      %vm1064 = vcmp.eq.f32.partialorder %v1063, 8.507059e+37
      %v1065 = vand.u32 %v602, 2147483648
      %v1066 = vor.u32 1.1754944e-38, %v1065
      %v1067 = vsel %vm1064, %v1066, %v1062
      %v1068 = vmul.f32 1.0, %v1067
      %v1069 = vrcp.pop %v603
      %v1070 = vmul.f32 %v603, %v1069
      %v1071 = vsub.f32 1.0, %v1070
      %v1072 = vmul.f32 %v1069, %v1071
      %v1073 = vadd.f32 %v1069, %v1072
      %vm1074 = vweird.f32 %v603
      %vm1075 = vweird.f32 %v1069
      %vm1076 = vmor %vm1074, %vm1075
      %v1077 = vsel %vm1076, %v1069, %v1073
      %v1078 = vand.u32 2147483647, %v603
      %vm1079 = vcmp.eq.f32.partialorder %v1078, 8.507059e+37
      %v1080 = vand.u32 %v603, 2147483648
      %v1081 = vor.u32 1.1754944e-38, %v1080
      %v1082 = vsel %vm1079, %v1081, %v1077
      %v1083 = vmul.f32 1.0, %v1082
      %v1084 = vmul.f32 %v381, %v618
      %v1085 = vmul.f32 %v384, %v633
      %v1086 = vmul.f32 %v387, %v648
      %v1087 = vmul.f32 %v390, %v663
      %v1088 = vmul.f32 %v393, %v678
      %v1089 = vmul.f32 %v396, %v693
      %v1090 = vmul.f32 %v399, %v708
      %v1091 = vmul.f32 %v402, %v723
      %v1092 = vmul.f32 %v405, %v738
      %v1093 = vmul.f32 %v408, %v753
      %v1094 = vmul.f32 %v411, %v768
      %v1095 = vmul.f32 %v414, %v783
      %v1096 = vmul.f32 %v417, %v798
      %v1097 = vmul.f32 %v420, %v813
      %v1098 = vmul.f32 %v423, %v828
      %v1099 = vmul.f32 %v426, %v843
      %v1100 = vmul.f32 %v429, %v858
      %v1101 = vmul.f32 %v432, %v873
      %v1102 = vmul.f32 %v435, %v888
      %v1103 = vmul.f32 %v438, %v903
      %v1104 = vmul.f32 %v441, %v918
      %v1105 = vmul.f32 %v444, %v933
      %v1106 = vmul.f32 %v447, %v948
      %v1107 = vmul.f32 %v450, %v963
      %v1108 = vmul.f32 %v453, %v978
      %v1109 = vmul.f32 %v456, %v993
      %v1110 = vmul.f32 %v459, %v1008
      %v1111 = vmul.f32 %v462, %v1023
      %v1112 = vmul.f32 %v465, %v1038
      %v1113 = vmul.f32 %v468, %v1053
      %v1114 = vmul.f32 %v471, %v1068
      %v1115 = vmul.f32 %v474, %v1083
      %1116 = vst.msk [vmem:[#allocation2] sm:$0xff] %vm262, 0.0
      %1117 = vst.msk [vmem:[#allocation2 + $0x8] sm:$0xff] %vm262, 0.0
      %1118 = vst.msk [vmem:[#allocation2 + $0x10] sm:$0xff] %vm262, 0.0
      %1119 = vst.msk [vmem:[#allocation2 + $0x18] sm:$0xff] %vm262, 0.0
      %1120 = vst.msk [vmem:[#allocation2 + $0x20] sm:$0xff] %vm262, 0.0
      %1121 = vst.msk [vmem:[#allocation2 + $0x28] sm:$0xff] %vm262, 0.0
      %1122 = vst.msk [vmem:[#allocation2 + $0x30] sm:$0xff] %vm262, 0.0
      %1123 = vst.msk [vmem:[#allocation2 + $0x38] sm:$0xff] %vm262, 0.0
      %1124 = vst.msk [vmem:[#allocation2 + $0x40] sm:$0xff] %vm262, 0.0
      %1125 = vst.msk [vmem:[#allocation2 + $0x48] sm:$0xff] %vm262, 0.0
      %1126 = vst.msk [vmem:[#allocation2 + $0x50] sm:$0xff] %vm262, 0.0
      %1127 = vst.msk [vmem:[#allocation2 + $0x58] sm:$0xff] %vm262, 0.0
      %1128 = vst.msk [vmem:[#allocation2 + $0x60] sm:$0xff] %vm262, 0.0
      %1129 = vst.msk [vmem:[#allocation2 + $0x68] sm:$0xff] %vm262, 0.0
      %1130 = vst.msk [vmem:[#allocation2 + $0x70] sm:$0xff] %vm262, 0.0
      %1131 = vst.msk [vmem:[#allocation2 + $0x78] sm:$0xff] %vm262, 0.0
      %1132 = vst.msk [vmem:[#allocation2 + $0x80] sm:$0xff] %vm262, 0.0
      %1133 = vst.msk [vmem:[#allocation2 + $0x88] sm:$0xff] %vm262, 0.0
      %1134 = vst.msk [vmem:[#allocation2 + $0x90] sm:$0xff] %vm262, 0.0
      %1135 = vst.msk [vmem:[#allocation2 + $0x98] sm:$0xff] %vm262, 0.0
      %1136 = vst.msk [vmem:[#allocation2 + $0xa0] sm:$0xff] %vm262, 0.0
      %1137 = vst.msk [vmem:[#allocation2 + $0xa8] sm:$0xff] %vm262, 0.0
      %1138 = vst.msk [vmem:[#allocation2 + $0xb0] sm:$0xff] %vm262, 0.0
      %1139 = vst.msk [vmem:[#allocation2 + $0xb8] sm:$0xff] %vm262, 0.0
      %1140 = vst.msk [vmem:[#allocation2 + $0xc0] sm:$0xff] %vm262, 0.0
      %1141 = vst.msk [vmem:[#allocation2 + $0xc8] sm:$0xff] %vm262, 0.0
      %1142 = vst.msk [vmem:[#allocation2 + $0xd0] sm:$0xff] %vm262, 0.0
      %1143 = vst.msk [vmem:[#allocation2 + $0xd8] sm:$0xff] %vm262, 0.0
      %1144 = vst.msk [vmem:[#allocation2 + $0xe0] sm:$0xff] %vm262, 0.0
      %1145 = vst.msk [vmem:[#allocation2 + $0xe8] sm:$0xff] %vm262, 0.0
      %1146 = vst.msk [vmem:[#allocation2 + $0xf0] sm:$0xff] %vm262, 0.0
      %1147 = vst.msk [vmem:[#allocation2 + $0xf8] sm:$0xff] %vm262, 0.0
      %1148 = vst.msk [vmem:[#allocation2 + $0x100] sm:$0xff] %vm262, 0.0
      %1149 = vst.msk [vmem:[#allocation2 + $0x108] sm:$0xff] %vm262, 0.0
      %1150 = vst.msk [vmem:[#allocation2 + $0x110] sm:$0xff] %vm262, 0.0
      %1151 = vst.msk [vmem:[#allocation2 + $0x118] sm:$0xff] %vm262, 0.0
      %1152 = vst.msk [vmem:[#allocation2 + $0x120] sm:$0xff] %vm262, 0.0
      %1153 = vst.msk [vmem:[#allocation2 + $0x128] sm:$0xff] %vm262, 0.0
      %1154 = vst.msk [vmem:[#allocation2 + $0x130] sm:$0xff] %vm262, 0.0
      %1155 = vst.msk [vmem:[#allocation2 + $0x138] sm:$0xff] %vm262, 0.0
      %1156 = vst.msk [vmem:[#allocation2 + $0x140] sm:$0xff] %vm262, 0.0
      %1157 = vst.msk [vmem:[#allocation2 + $0x148] sm:$0xff] %vm262, 0.0
      %1158 = vst.msk [vmem:[#allocation2 + $0x150] sm:$0xff] %vm262, 0.0
      %1159 = vst.msk [vmem:[#allocation2 + $0x158] sm:$0xff] %vm262, 0.0
      %1160 = vst.msk [vmem:[#allocation2 + $0x160] sm:$0xff] %vm262, 0.0
      %1161 = vst.msk [vmem:[#allocation2 + $0x168] sm:$0xff] %vm262, 0.0
      %1162 = vst.msk [vmem:[#allocation2 + $0x170] sm:$0xff] %vm262, 0.0
      %1163 = vst.msk [vmem:[#allocation2 + $0x178] sm:$0xff] %vm262, 0.0
      %1164 = vst.msk [vmem:[#allocation2 + $0x180] sm:$0xff] %vm262, 0.0
      %1165 = vst.msk [vmem:[#allocation2 + $0x188] sm:$0xff] %vm262, 0.0
      %1166 = vst.msk [vmem:[#allocation2 + $0x190] sm:$0xff] %vm262, 0.0
      %1167 = vst.msk [vmem:[#allocation2 + $0x198] sm:$0xff] %vm262, 0.0
      %1168 = vst.msk [vmem:[#allocation2 + $0x1a0] sm:$0xff] %vm262, 0.0
      %1169 = vst.msk [vmem:[#allocation2 + $0x1a8] sm:$0xff] %vm262, 0.0
      %1170 = vst.msk [vmem:[#allocation2 + $0x1b0] sm:$0xff] %vm262, 0.0
      %1171 = vst.msk [vmem:[#allocation2 + $0x1b8] sm:$0xff] %vm262, 0.0
      %1172 = vst.msk [vmem:[#allocation2 + $0x1c0] sm:$0xff] %vm262, 0.0
      %1173 = vst.msk [vmem:[#allocation2 + $0x1c8] sm:$0xff] %vm262, 0.0
      %1174 = vst.msk [vmem:[#allocation2 + $0x1d0] sm:$0xff] %vm262, 0.0
      %1175 = vst.msk [vmem:[#allocation2 + $0x1d8] sm:$0xff] %vm262, 0.0
      %1176 = vst.msk [vmem:[#allocation2 + $0x30] sm:$0xff] %vm262, %v1084
      %1177 = vst.msk [vmem:[#allocation2 + $0x38] sm:$0xff] %vm262, %v1085
      %1178 = vst.msk [vmem:[#allocation2 + $0x48] sm:$0xff] %vm262, %v1086
      %1179 = vst.msk [vmem:[#allocation2 + $0x50] sm:$0xff] %vm262, %v1087
      %1180 = vst.msk [vmem:[#allocation2 + $0x60] sm:$0xff] %vm262, %v1088
      %1181 = vst.msk [vmem:[#allocation2 + $0x68] sm:$0xff] %vm262, %v1089
      %1182 = vst.msk [vmem:[#allocation2 + $0x78] sm:$0xff] %vm262, %v1090
      %1183 = vst.msk [vmem:[#allocation2 + $0x80] sm:$0xff] %vm262, %v1091
      %1184 = vst.msk [vmem:[#allocation2 + $0x90] sm:$0xff] %vm262, %v1092
      %1185 = vst.msk [vmem:[#allocation2 + $0x98] sm:$0xff] %vm262, %v1093
      %1186 = vst.msk [vmem:[#allocation2 + $0xa8] sm:$0xff] %vm262, %v1094
      %1187 = vst.msk [vmem:[#allocation2 + $0xb0] sm:$0xff] %vm262, %v1095
      %1188 = vst.msk [vmem:[#allocation2 + $0xc0] sm:$0xff] %vm262, %v1096
      %1189 = vst.msk [vmem:[#allocation2 + $0xc8] sm:$0xff] %vm262, %v1097
      %1190 = vst.msk [vmem:[#allocation2 + $0xd8] sm:$0xff] %vm262, %v1098
      %1191 = vst.msk [vmem:[#allocation2 + $0xe0] sm:$0xff] %vm262, %v1099
      %1192 = vst.msk [vmem:[#allocation2 + $0xf0] sm:$0xff] %vm262, %v1100
      %1193 = vst.msk [vmem:[#allocation2 + $0xf8] sm:$0xff] %vm262, %v1101
      %1194 = vst.msk [vmem:[#allocation2 + $0x108] sm:$0xff] %vm262, %v1102
      %1195 = vst.msk [vmem:[#allocation2 + $0x110] sm:$0xff] %vm262, %v1103
      %1196 = vst.msk [vmem:[#allocation2 + $0x120] sm:$0xff] %vm262, %v1104
      %1197 = vst.msk [vmem:[#allocation2 + $0x128] sm:$0xff] %vm262, %v1105
      %1198 = vst.msk [vmem:[#allocation2 + $0x138] sm:$0xff] %vm262, %v1106
      %1199 = vst.msk [vmem:[#allocation2 + $0x140] sm:$0xff] %vm262, %v1107
      %1200 = vst.msk [vmem:[#allocation2 + $0x150] sm:$0xff] %vm262, %v1108
      %1201 = vst.msk [vmem:[#allocation2 + $0x158] sm:$0xff] %vm262, %v1109
      %1202 = vst.msk [vmem:[#allocation2 + $0x168] sm:$0xff] %vm262, %v1110
      %1203 = vst.msk [vmem:[#allocation2 + $0x170] sm:$0xff] %vm262, %v1111
      %1204 = vst.msk [vmem:[#allocation2 + $0x180] sm:$0xff] %vm262, %v1112
      %1205 = vst.msk [vmem:[#allocation2 + $0x188] sm:$0xff] %vm262, %v1113
      %1206 = vst.msk [vmem:[#allocation2 + $0x198] sm:$0xff] %vm262, %v1114
      %1207 = vst.msk [vmem:[#allocation2 + $0x1a0] sm:$0xff] %vm262, %v1115
      %v1208 = vld [vmem:[#allocation2 + $0x17] sm:$0xff]
      %v1209 = vld [vmem:[#allocation2 + $0x1f] sm:$0xff]
      %v1210 = vld [vmem:[#allocation2 + $0x27] sm:$0xff]
      %v1211 = vld [vmem:[#allocation2 + $0x2f] sm:$0xff]
      %v1212 = vld [vmem:[#allocation2 + $0x37] sm:$0xff]
      %v1213 = vld [vmem:[#allocation2 + $0x3f] sm:$0xff]
      %v1214 = vld [vmem:[#allocation2 + $0x47] sm:$0xff]
      %v1215 = vld [vmem:[#allocation2 + $0x4f] sm:$0xff]
      %v1216 = vld [vmem:[#allocation2 + $0x57] sm:$0xff]
      %v1217 = vld [vmem:[#allocation2 + $0x5f] sm:$0xff]
      %v1218 = vld [vmem:[#allocation2 + $0x67] sm:$0xff]
      %v1219 = vld [vmem:[#allocation2 + $0x6f] sm:$0xff]
      %v1220 = vld [vmem:[#allocation2 + $0x77] sm:$0xff]
      %v1221 = vld [vmem:[#allocation2 + $0x7f] sm:$0xff]
      %v1222 = vld [vmem:[#allocation2 + $0x87] sm:$0xff]
      %v1223 = vld [vmem:[#allocation2 + $0x8f] sm:$0xff]
      %v1224 = vld [vmem:[#allocation2 + $0x97] sm:$0xff]
      %v1225 = vld [vmem:[#allocation2 + $0x9f] sm:$0xff]
      %v1226 = vld [vmem:[#allocation2 + $0xa7] sm:$0xff]
      %v1227 = vld [vmem:[#allocation2 + $0xaf] sm:$0xff]
      %v1228 = vld [vmem:[#allocation2 + $0xb7] sm:$0xff]
      %v1229 = vld [vmem:[#allocation2 + $0xbf] sm:$0xff]
      %v1230 = vld [vmem:[#allocation2 + $0xc7] sm:$0xff]
      %v1231 = vld [vmem:[#allocation2 + $0xcf] sm:$0xff]
      %v1232 = vld [vmem:[#allocation2 + $0xd7] sm:$0xff]
      %v1233 = vld [vmem:[#allocation2 + $0xdf] sm:$0xff]
      %v1234 = vld [vmem:[#allocation2 + $0xe7] sm:$0xff]
      %v1235 = vld [vmem:[#allocation2 + $0xef] sm:$0xff]
      %v1236 = vld [vmem:[#allocation2 + $0xf7] sm:$0xff]
      %v1237 = vld [vmem:[#allocation2 + $0xff] sm:$0xff]
      %v1238 = vld [vmem:[#allocation2 + $0x107] sm:$0xff]
      %v1239 = vld [vmem:[#allocation2 + $0x10f] sm:$0xff]
      %v1240 = vld [vmem:[#allocation2 + $0x117] sm:$0xff]
      %v1241 = vld [vmem:[#allocation2 + $0x11f] sm:$0xff]
      %v1242 = vld [vmem:[#allocation2 + $0x127] sm:$0xff]
      %v1243 = vld [vmem:[#allocation2 + $0x12f] sm:$0xff]
      %v1244 = vld [vmem:[#allocation2 + $0x137] sm:$0xff]
      %v1245 = vld [vmem:[#allocation2 + $0x13f] sm:$0xff]
      %v1246 = vld [vmem:[#allocation2 + $0x147] sm:$0xff]
      %v1247 = vld [vmem:[#allocation2 + $0x14f] sm:$0xff]
      %v1248 = vld [vmem:[#allocation2 + $0x157] sm:$0xff]
      %v1249 = vld [vmem:[#allocation2 + $0x15f] sm:$0xff]
      %v1250 = vld [vmem:[#allocation2 + $0x167] sm:$0xff]
      %v1251 = vld [vmem:[#allocation2 + $0x16f] sm:$0xff]
      %v1252 = vld [vmem:[#allocation2 + $0x177] sm:$0xff]
      %v1253 = vld [vmem:[#allocation2 + $0x17f] sm:$0xff]
      %v1254 = vld [vmem:[#allocation2 + $0x187] sm:$0xff]
      %v1255 = vld [vmem:[#allocation2 + $0x18f] sm:$0xff]
      %v1256 = vld [vmem:[%s3] sm:$0xf]
      %v1257 = vld [vmem:[#allocation2 + $0x18] sm:$0xff]
      %v1258 = vld [vmem:[#allocation2 + $0x20] sm:$0xff]
      %v1259 = vld [vmem:[#allocation2 + $0x28] sm:$0xff]
      %v1260 = vld [vmem:[#allocation2 + $0x30] sm:$0xff]
      %v1261 = vld [vmem:[#allocation2 + $0x38] sm:$0xff]
      %v1262 = vld [vmem:[#allocation2 + $0x40] sm:$0xff]
      %v1263 = vld [vmem:[#allocation2 + $0x48] sm:$0xff]
      %v1264 = vld [vmem:[#allocation2 + $0x50] sm:$0xff]
      %v1265 = vld [vmem:[#allocation2 + $0x58] sm:$0xff]
      %v1266 = vld [vmem:[#allocation2 + $0x60] sm:$0xff]
      %v1267 = vld [vmem:[#allocation2 + $0x68] sm:$0xff]
      %v1268 = vld [vmem:[#allocation2 + $0x70] sm:$0xff]
      %v1269 = vld [vmem:[#allocation2 + $0x78] sm:$0xff]
      %v1270 = vld [vmem:[#allocation2 + $0x80] sm:$0xff]
      %v1271 = vld [vmem:[#allocation2 + $0x88] sm:$0xff]
      %v1272 = vld [vmem:[#allocation2 + $0x90] sm:$0xff]
      %v1273 = vld [vmem:[#allocation2 + $0x98] sm:$0xff]
      %v1274 = vld [vmem:[#allocation2 + $0xa0] sm:$0xff]
      %v1275 = vld [vmem:[#allocation2 + $0xa8] sm:$0xff]
      %v1276 = vld [vmem:[#allocation2 + $0xb0] sm:$0xff]
      %v1277 = vld [vmem:[#allocation2 + $0xb8] sm:$0xff]
      %v1278 = vld [vmem:[#allocation2 + $0xc0] sm:$0xff]
      %v1279 = vld [vmem:[#allocation2 + $0xc8] sm:$0xff]
      %v1280 = vld [vmem:[#allocation2 + $0xd0] sm:$0xff]
      %v1281 = vld [vmem:[#allocation2 + $0xd8] sm:$0xff]
      %v1282 = vld [vmem:[#allocation2 + $0xe0] sm:$0xff]
      %v1283 = vld [vmem:[#allocation2 + $0xe8] sm:$0xff]
      %v1284 = vld [vmem:[#allocation2 + $0xf0] sm:$0xff]
      %v1285 = vld [vmem:[#allocation2 + $0xf8] sm:$0xff]
      %v1286 = vld [vmem:[#allocation2 + $0x100] sm:$0xff]
      %v1287 = vld [vmem:[#allocation2 + $0x108] sm:$0xff]
      %v1288 = vld [vmem:[#allocation2 + $0x110] sm:$0xff]
      %v1289 = vld [vmem:[#allocation2 + $0x118] sm:$0xff]
      %v1290 = vld [vmem:[#allocation2 + $0x120] sm:$0xff]
      %v1291 = vld [vmem:[#allocation2 + $0x128] sm:$0xff]
      %v1292 = vld [vmem:[#allocation2 + $0x130] sm:$0xff]
      %v1293 = vld [vmem:[#allocation2 + $0x138] sm:$0xff]
      %v1294 = vld [vmem:[#allocation2 + $0x140] sm:$0xff]
      %v1295 = vld [vmem:[#allocation2 + $0x148] sm:$0xff]
      %v1296 = vld [vmem:[#allocation2 + $0x150] sm:$0xff]
      %v1297 = vld [vmem:[#allocation2 + $0x158] sm:$0xff]
      %v1298 = vld [vmem:[#allocation2 + $0x160] sm:$0xff]
      %v1299 = vld [vmem:[#allocation2 + $0x168] sm:$0xff]
      %v1300 = vld [vmem:[#allocation2 + $0x170] sm:$0xff]
      %v1301 = vld [vmem:[#allocation2 + $0x178] sm:$0xff]
      %v1302 = vld [vmem:[#allocation2 + $0x180] sm:$0xff]
      %v1303 = vld [vmem:[#allocation2 + $0x188] sm:$0xff]
      %v1304 = vld [vmem:[#allocation2 + $0x190] sm:$0xff]
      %s1305 = scalar_lea.vmem %s3, 4
      %v1306 = vld [vmem:[%s1305] sm:$0xf]
      %v1308 = vsel %vm262, %v1257, 0
      %v1311 = vsel %vm262, %v1258, 0
      %v1314 = vsel %vm262, %v1259, 0
      %v1317 = vsel %vm262, %v1260, 0
      %v1320 = vsel %vm262, %v1261, 0
      %v1323 = vsel %vm262, %v1262, 0
      %v1326 = vsel %vm262, %v1263, 0
      %v1329 = vsel %vm262, %v1264, 0
      %v1332 = vsel %vm262, %v1265, 0
      %v1335 = vsel %vm262, %v1266, 0
      %v1338 = vsel %vm262, %v1267, 0
      %v1341 = vsel %vm262, %v1268, 0
      %v1344 = vsel %vm262, %v1269, 0
      %v1347 = vsel %vm262, %v1270, 0
      %v1350 = vsel %vm262, %v1271, 0
      %v1353 = vsel %vm262, %v1272, 0
      %v1356 = vsel %vm262, %v1273, 0
      %v1359 = vsel %vm262, %v1274, 0
      %v1362 = vsel %vm262, %v1275, 0
      %v1365 = vsel %vm262, %v1276, 0
      %v1368 = vsel %vm262, %v1277, 0
      %v1371 = vsel %vm262, %v1278, 0
      %v1374 = vsel %vm262, %v1279, 0
      %v1377 = vsel %vm262, %v1280, 0
      %v1380 = vsel %vm262, %v1281, 0
      %v1383 = vsel %vm262, %v1282, 0
      %v1386 = vsel %vm262, %v1283, 0
      %v1389 = vsel %vm262, %v1284, 0
      %v1392 = vsel %vm262, %v1285, 0
      %v1395 = vsel %vm262, %v1286, 0
      %v1398 = vsel %vm262, %v1287, 0
      %v1401 = vsel %vm262, %v1288, 0
      %v1404 = vsel %vm262, %v1289, 0
      %v1407 = vsel %vm262, %v1290, 0
      %v1410 = vsel %vm262, %v1291, 0
      %v1413 = vsel %vm262, %v1292, 0
      %v1416 = vsel %vm262, %v1293, 0
      %v1419 = vsel %vm262, %v1294, 0
      %v1422 = vsel %vm262, %v1295, 0
      %v1425 = vsel %vm262, %v1296, 0
      %v1428 = vsel %vm262, %v1297, 0
      %v1431 = vsel %vm262, %v1298, 0
      %v1434 = vsel %vm262, %v1299, 0
      %v1437 = vsel %vm262, %v1300, 0
      %v1440 = vsel %vm262, %v1301, 0
      %v1443 = vsel %vm262, %v1302, 0
      %v1446 = vsel %vm262, %v1303, 0
      %v1449 = vsel %vm262, %v1304, 0
      %v1452 = vsel %vm359, %v1306, 0
      %1454 = vmatpush.msra.mxu0 0.0
      %1455 = vmatpush.msra.mxu0 0.0
      %1456 = vmatpush.msra.mxu0 0.0
      %1457 = vmatpush.msra.mxu0 0.0
      %1458 = vmatpush.msra.mxu0 0.0
      %1459 = vmatpush.msra.mxu0 0.0
      %1460 = vmatpush.msra.mxu0 0.0
      %1461 = vmatpush.msra.mxu0 0.0
      %1462 = vmatpush.msra.mxu0 0.0
      %1463 = vmatpush.msra.mxu0 0.0
      %1464 = vmatpush.msra.mxu0 0.0
      %1465 = vmatpush.msra.mxu0 0.0
      %1466 = vmatpush.msra.mxu0 0.0
      %1467 = vmatpush.msra.mxu0 0.0
      %1468 = vmatpush.msra.mxu0 0.0
      %1469 = vmatpush.msra.mxu0 %v1452
      %1470 = vmatmul.f32.gmra.mxu0 %v1308
      %v1471 = vpop.f32.mrf.mxu0
      %v1472 = vadd.f32 0.0, %v1471
      %1473 = vmatmul.f32.gmra.mxu0 %v1311
      %v1474 = vpop.f32.mrf.mxu0
      %v1475 = vadd.f32 0.0, %v1474
      %1476 = vmatmul.f32.gmra.mxu0 %v1314
      %v1477 = vpop.f32.mrf.mxu0
      %v1478 = vadd.f32 0.0, %v1477
      %1479 = vmatmul.f32.gmra.mxu0 %v1317
      %v1480 = vpop.f32.mrf.mxu0
      %v1481 = vadd.f32 0.0, %v1480
      %1482 = vmatmul.f32.gmra.mxu0 %v1320
      %v1483 = vpop.f32.mrf.mxu0
      %v1484 = vadd.f32 0.0, %v1483
      %1485 = vmatmul.f32.gmra.mxu0 %v1323
      %v1486 = vpop.f32.mrf.mxu0
      %v1487 = vadd.f32 0.0, %v1486
      %1488 = vmatmul.f32.gmra.mxu0 %v1326
      %v1489 = vpop.f32.mrf.mxu0
      %v1490 = vadd.f32 0.0, %v1489
      %1491 = vmatmul.f32.gmra.mxu0 %v1329
      %v1492 = vpop.f32.mrf.mxu0
      %v1493 = vadd.f32 0.0, %v1492
      %1494 = vmatmul.f32.gmra.mxu0 %v1332
      %v1495 = vpop.f32.mrf.mxu0
      %v1496 = vadd.f32 0.0, %v1495
      %1497 = vmatmul.f32.gmra.mxu0 %v1335
      %v1498 = vpop.f32.mrf.mxu0
      %v1499 = vadd.f32 0.0, %v1498
      %1500 = vmatmul.f32.gmra.mxu0 %v1338
      %v1501 = vpop.f32.mrf.mxu0
      %v1502 = vadd.f32 0.0, %v1501
      %1503 = vmatmul.f32.gmra.mxu0 %v1341
      %v1504 = vpop.f32.mrf.mxu0
      %v1505 = vadd.f32 0.0, %v1504
      %1506 = vmatmul.f32.gmra.mxu0 %v1344
      %v1507 = vpop.f32.mrf.mxu0
      %v1508 = vadd.f32 0.0, %v1507
      %1509 = vmatmul.f32.gmra.mxu0 %v1347
      %v1510 = vpop.f32.mrf.mxu0
      %v1511 = vadd.f32 0.0, %v1510
      %1512 = vmatmul.f32.gmra.mxu0 %v1350
      %v1513 = vpop.f32.mrf.mxu0
      %v1514 = vadd.f32 0.0, %v1513
      %1515 = vmatmul.f32.gmra.mxu0 %v1353
      %v1516 = vpop.f32.mrf.mxu0
      %v1517 = vadd.f32 0.0, %v1516
      %1518 = vmatmul.f32.gmra.mxu0 %v1356
      %v1519 = vpop.f32.mrf.mxu0
      %v1520 = vadd.f32 0.0, %v1519
      %1521 = vmatmul.f32.gmra.mxu0 %v1359
      %v1522 = vpop.f32.mrf.mxu0
      %v1523 = vadd.f32 0.0, %v1522
      %1524 = vmatmul.f32.gmra.mxu0 %v1362
      %v1525 = vpop.f32.mrf.mxu0
      %v1526 = vadd.f32 0.0, %v1525
      %1527 = vmatmul.f32.gmra.mxu0 %v1365
      %v1528 = vpop.f32.mrf.mxu0
      %v1529 = vadd.f32 0.0, %v1528
      %1530 = vmatmul.f32.gmra.mxu0 %v1368
      %v1531 = vpop.f32.mrf.mxu0
      %v1532 = vadd.f32 0.0, %v1531
      %1533 = vmatmul.f32.gmra.mxu0 %v1371
      %v1534 = vpop.f32.mrf.mxu0
      %v1535 = vadd.f32 0.0, %v1534
      %1536 = vmatmul.f32.gmra.mxu0 %v1374
      %v1537 = vpop.f32.mrf.mxu0
      %v1538 = vadd.f32 0.0, %v1537
      %1539 = vmatmul.f32.gmra.mxu0 %v1377
      %v1540 = vpop.f32.mrf.mxu0
      %v1541 = vadd.f32 0.0, %v1540
      %1542 = vmatmul.f32.gmra.mxu0 %v1380
      %v1543 = vpop.f32.mrf.mxu0
      %v1544 = vadd.f32 0.0, %v1543
      %1545 = vmatmul.f32.gmra.mxu0 %v1383
      %v1546 = vpop.f32.mrf.mxu0
      %v1547 = vadd.f32 0.0, %v1546
      %1548 = vmatmul.f32.gmra.mxu0 %v1386
      %v1549 = vpop.f32.mrf.mxu0
      %v1550 = vadd.f32 0.0, %v1549
      %1551 = vmatmul.f32.gmra.mxu0 %v1389
      %v1552 = vpop.f32.mrf.mxu0
      %v1553 = vadd.f32 0.0, %v1552
      %1554 = vmatmul.f32.gmra.mxu0 %v1392
      %v1555 = vpop.f32.mrf.mxu0
      %v1556 = vadd.f32 0.0, %v1555
      %1557 = vmatmul.f32.gmra.mxu0 %v1395
      %v1558 = vpop.f32.mrf.mxu0
      %v1559 = vadd.f32 0.0, %v1558
      %1560 = vmatmul.f32.gmra.mxu0 %v1398
      %v1561 = vpop.f32.mrf.mxu0
      %v1562 = vadd.f32 0.0, %v1561
      %1563 = vmatmul.f32.gmra.mxu0 %v1401
      %v1564 = vpop.f32.mrf.mxu0
      %v1565 = vadd.f32 0.0, %v1564
      %1566 = vmatmul.f32.gmra.mxu0 %v1404
      %v1567 = vpop.f32.mrf.mxu0
      %v1568 = vadd.f32 0.0, %v1567
      %1569 = vmatmul.f32.gmra.mxu0 %v1407
      %v1570 = vpop.f32.mrf.mxu0
      %v1571 = vadd.f32 0.0, %v1570
      %1572 = vmatmul.f32.gmra.mxu0 %v1410
      %v1573 = vpop.f32.mrf.mxu0
      %v1574 = vadd.f32 0.0, %v1573
      %1575 = vmatmul.f32.gmra.mxu0 %v1413
      %v1576 = vpop.f32.mrf.mxu0
      %v1577 = vadd.f32 0.0, %v1576
      %1578 = vmatmul.f32.gmra.mxu0 %v1416
      %v1579 = vpop.f32.mrf.mxu0
      %v1580 = vadd.f32 0.0, %v1579
      %1581 = vmatmul.f32.gmra.mxu0 %v1419
      %v1582 = vpop.f32.mrf.mxu0
      %v1583 = vadd.f32 0.0, %v1582
      %1584 = vmatmul.f32.gmra.mxu0 %v1422
      %v1585 = vpop.f32.mrf.mxu0
      %v1586 = vadd.f32 0.0, %v1585
      %1587 = vmatmul.f32.gmra.mxu0 %v1425
      %v1588 = vpop.f32.mrf.mxu0
      %v1589 = vadd.f32 0.0, %v1588
      %1590 = vmatmul.f32.gmra.mxu0 %v1428
      %v1591 = vpop.f32.mrf.mxu0
      %v1592 = vadd.f32 0.0, %v1591
      %1593 = vmatmul.f32.gmra.mxu0 %v1431
      %v1594 = vpop.f32.mrf.mxu0
      %v1595 = vadd.f32 0.0, %v1594
      %1596 = vmatmul.f32.gmra.mxu0 %v1434
      %v1597 = vpop.f32.mrf.mxu0
      %v1598 = vadd.f32 0.0, %v1597
      %1599 = vmatmul.f32.gmra.mxu0 %v1437
      %v1600 = vpop.f32.mrf.mxu0
      %v1601 = vadd.f32 0.0, %v1600
      %1602 = vmatmul.f32.gmra.mxu0 %v1440
      %v1603 = vpop.f32.mrf.mxu0
      %v1604 = vadd.f32 0.0, %v1603
      %1605 = vmatmul.f32.gmra.mxu0 %v1443
      %v1606 = vpop.f32.mrf.mxu0
      %v1607 = vadd.f32 0.0, %v1606
      %1608 = vmatmul.f32.gmra.mxu0 %v1446
      %v1609 = vpop.f32.mrf.mxu0
      %v1610 = vadd.f32 0.0, %v1609
      %1611 = vmatmul.f32.gmra.mxu0 %v1449
      %v1612 = vpop.f32.mrf.mxu0
      %v1613 = vadd.f32 0.0, %v1612
      %1614 = vdwg.mxu0
      %v1616 = vsel %vm262, %v1208, 0
      %v1619 = vsel %vm262, %v1209, 0
      %v1622 = vsel %vm262, %v1210, 0
      %v1625 = vsel %vm262, %v1211, 0
      %v1628 = vsel %vm262, %v1212, 0
      %v1631 = vsel %vm262, %v1213, 0
      %v1634 = vsel %vm262, %v1214, 0
      %v1637 = vsel %vm262, %v1215, 0
      %v1640 = vsel %vm262, %v1216, 0
      %v1643 = vsel %vm262, %v1217, 0
      %v1646 = vsel %vm262, %v1218, 0
      %v1649 = vsel %vm262, %v1219, 0
      %v1652 = vsel %vm262, %v1220, 0
      %v1655 = vsel %vm262, %v1221, 0
      %v1658 = vsel %vm262, %v1222, 0
      %v1661 = vsel %vm262, %v1223, 0
      %v1664 = vsel %vm262, %v1224, 0
      %v1667 = vsel %vm262, %v1225, 0
      %v1670 = vsel %vm262, %v1226, 0
      %v1673 = vsel %vm262, %v1227, 0
      %v1676 = vsel %vm262, %v1228, 0
      %v1679 = vsel %vm262, %v1229, 0
      %v1682 = vsel %vm262, %v1230, 0
      %v1685 = vsel %vm262, %v1231, 0
      %v1688 = vsel %vm262, %v1232, 0
      %v1691 = vsel %vm262, %v1233, 0
      %v1694 = vsel %vm262, %v1234, 0
      %v1697 = vsel %vm262, %v1235, 0
      %v1700 = vsel %vm262, %v1236, 0
      %v1703 = vsel %vm262, %v1237, 0
      %v1706 = vsel %vm262, %v1238, 0
      %v1709 = vsel %vm262, %v1239, 0
      %v1712 = vsel %vm262, %v1240, 0
      %v1715 = vsel %vm262, %v1241, 0
      %v1718 = vsel %vm262, %v1242, 0
      %v1721 = vsel %vm262, %v1243, 0
      %v1724 = vsel %vm262, %v1244, 0
      %v1727 = vsel %vm262, %v1245, 0
      %v1730 = vsel %vm262, %v1246, 0
      %v1733 = vsel %vm262, %v1247, 0
      %v1736 = vsel %vm262, %v1248, 0
      %v1739 = vsel %vm262, %v1249, 0
      %v1742 = vsel %vm262, %v1250, 0
      %v1745 = vsel %vm262, %v1251, 0
      %v1748 = vsel %vm262, %v1252, 0
      %v1751 = vsel %vm262, %v1253, 0
      %v1754 = vsel %vm262, %v1254, 0
      %v1757 = vsel %vm262, %v1255, 0
      %v1760 = vsel %vm359, %v1256, 0
      %1762 = vmatpush.msra.mxu0 0.0
      %1763 = vmatpush.msra.mxu0 0.0
      %1764 = vmatpush.msra.mxu0 0.0
      %1765 = vmatpush.msra.mxu0 0.0
      %1766 = vmatpush.msra.mxu0 0.0
      %1767 = vmatpush.msra.mxu0 0.0
      %1768 = vmatpush.msra.mxu0 0.0
      %1769 = vmatpush.msra.mxu0 0.0
      %1770 = vmatpush.msra.mxu0 0.0
      %1771 = vmatpush.msra.mxu0 0.0
      %1772 = vmatpush.msra.mxu0 0.0
      %1773 = vmatpush.msra.mxu0 0.0
      %1774 = vmatpush.msra.mxu0 0.0
      %1775 = vmatpush.msra.mxu0 0.0
      %1776 = vmatpush.msra.mxu0 0.0
      %1777 = vmatpush.msra.mxu0 %v1760
      %1778 = vmatmul.f32.gmra.mxu0 %v1616
      %v1779 = vpop.f32.mrf.mxu0
      %v1780 = vadd.f32 %v1472, %v1779
      %1781 = vmatmul.f32.gmra.mxu0 %v1619
      %v1782 = vpop.f32.mrf.mxu0
      %v1783 = vadd.f32 %v1475, %v1782
      %1784 = vmatmul.f32.gmra.mxu0 %v1622
      %v1785 = vpop.f32.mrf.mxu0
      %v1786 = vadd.f32 %v1478, %v1785
      %1787 = vmatmul.f32.gmra.mxu0 %v1625
      %v1788 = vpop.f32.mrf.mxu0
      %v1789 = vadd.f32 %v1481, %v1788
      %1790 = vmatmul.f32.gmra.mxu0 %v1628
      %v1791 = vpop.f32.mrf.mxu0
      %v1792 = vadd.f32 %v1484, %v1791
      %1793 = vmatmul.f32.gmra.mxu0 %v1631
      %v1794 = vpop.f32.mrf.mxu0
      %v1795 = vadd.f32 %v1487, %v1794
      %1796 = vmatmul.f32.gmra.mxu0 %v1634
      %v1797 = vpop.f32.mrf.mxu0
      %v1798 = vadd.f32 %v1490, %v1797
      %1799 = vmatmul.f32.gmra.mxu0 %v1637
      %v1800 = vpop.f32.mrf.mxu0
      %v1801 = vadd.f32 %v1493, %v1800
      %1802 = vmatmul.f32.gmra.mxu0 %v1640
      %v1803 = vpop.f32.mrf.mxu0
      %v1804 = vadd.f32 %v1496, %v1803
      %1805 = vmatmul.f32.gmra.mxu0 %v1643
      %v1806 = vpop.f32.mrf.mxu0
      %v1807 = vadd.f32 %v1499, %v1806
      %1808 = vmatmul.f32.gmra.mxu0 %v1646
      %v1809 = vpop.f32.mrf.mxu0
      %v1810 = vadd.f32 %v1502, %v1809
      %1811 = vmatmul.f32.gmra.mxu0 %v1649
      %v1812 = vpop.f32.mrf.mxu0
      %v1813 = vadd.f32 %v1505, %v1812
      %1814 = vmatmul.f32.gmra.mxu0 %v1652
      %v1815 = vpop.f32.mrf.mxu0
      %v1816 = vadd.f32 %v1508, %v1815
      %1817 = vmatmul.f32.gmra.mxu0 %v1655
      %v1818 = vpop.f32.mrf.mxu0
      %v1819 = vadd.f32 %v1511, %v1818
      %1820 = vmatmul.f32.gmra.mxu0 %v1658
      %v1821 = vpop.f32.mrf.mxu0
      %v1822 = vadd.f32 %v1514, %v1821
      %1823 = vmatmul.f32.gmra.mxu0 %v1661
      %v1824 = vpop.f32.mrf.mxu0
      %v1825 = vadd.f32 %v1517, %v1824
      %1826 = vmatmul.f32.gmra.mxu0 %v1664
      %v1827 = vpop.f32.mrf.mxu0
      %v1828 = vadd.f32 %v1520, %v1827
      %1829 = vmatmul.f32.gmra.mxu0 %v1667
      %v1830 = vpop.f32.mrf.mxu0
      %v1831 = vadd.f32 %v1523, %v1830
      %1832 = vmatmul.f32.gmra.mxu0 %v1670
      %v1833 = vpop.f32.mrf.mxu0
      %v1834 = vadd.f32 %v1526, %v1833
      %1835 = vmatmul.f32.gmra.mxu0 %v1673
      %v1836 = vpop.f32.mrf.mxu0
      %v1837 = vadd.f32 %v1529, %v1836
      %1838 = vmatmul.f32.gmra.mxu0 %v1676
      %v1839 = vpop.f32.mrf.mxu0
      %v1840 = vadd.f32 %v1532, %v1839
      %1841 = vmatmul.f32.gmra.mxu0 %v1679
      %v1842 = vpop.f32.mrf.mxu0
      %v1843 = vadd.f32 %v1535, %v1842
      %1844 = vmatmul.f32.gmra.mxu0 %v1682
      %v1845 = vpop.f32.mrf.mxu0
      %v1846 = vadd.f32 %v1538, %v1845
      %1847 = vmatmul.f32.gmra.mxu0 %v1685
      %v1848 = vpop.f32.mrf.mxu0
      %v1849 = vadd.f32 %v1541, %v1848
      %1850 = vmatmul.f32.gmra.mxu0 %v1688
      %v1851 = vpop.f32.mrf.mxu0
      %v1852 = vadd.f32 %v1544, %v1851
      %1853 = vmatmul.f32.gmra.mxu0 %v1691
      %v1854 = vpop.f32.mrf.mxu0
      %v1855 = vadd.f32 %v1547, %v1854
      %1856 = vmatmul.f32.gmra.mxu0 %v1694
      %v1857 = vpop.f32.mrf.mxu0
      %v1858 = vadd.f32 %v1550, %v1857
      %1859 = vmatmul.f32.gmra.mxu0 %v1697
      %v1860 = vpop.f32.mrf.mxu0
      %v1861 = vadd.f32 %v1553, %v1860
      %1862 = vmatmul.f32.gmra.mxu0 %v1700
      %v1863 = vpop.f32.mrf.mxu0
      %v1864 = vadd.f32 %v1556, %v1863
      %1865 = vmatmul.f32.gmra.mxu0 %v1703
      %v1866 = vpop.f32.mrf.mxu0
      %v1867 = vadd.f32 %v1559, %v1866
      %1868 = vmatmul.f32.gmra.mxu0 %v1706
      %v1869 = vpop.f32.mrf.mxu0
      %v1870 = vadd.f32 %v1562, %v1869
      %1871 = vmatmul.f32.gmra.mxu0 %v1709
      %v1872 = vpop.f32.mrf.mxu0
      %v1873 = vadd.f32 %v1565, %v1872
      %1874 = vmatmul.f32.gmra.mxu0 %v1712
      %v1875 = vpop.f32.mrf.mxu0
      %v1876 = vadd.f32 %v1568, %v1875
      %1877 = vmatmul.f32.gmra.mxu0 %v1715
      %v1878 = vpop.f32.mrf.mxu0
      %v1879 = vadd.f32 %v1571, %v1878
      %1880 = vmatmul.f32.gmra.mxu0 %v1718
      %v1881 = vpop.f32.mrf.mxu0
      %v1882 = vadd.f32 %v1574, %v1881
      %1883 = vmatmul.f32.gmra.mxu0 %v1721
      %v1884 = vpop.f32.mrf.mxu0
      %v1885 = vadd.f32 %v1577, %v1884
      %1886 = vmatmul.f32.gmra.mxu0 %v1724
      %v1887 = vpop.f32.mrf.mxu0
      %v1888 = vadd.f32 %v1580, %v1887
      %1889 = vmatmul.f32.gmra.mxu0 %v1727
      %v1890 = vpop.f32.mrf.mxu0
      %v1891 = vadd.f32 %v1583, %v1890
      %1892 = vmatmul.f32.gmra.mxu0 %v1730
      %v1893 = vpop.f32.mrf.mxu0
      %v1894 = vadd.f32 %v1586, %v1893
      %1895 = vmatmul.f32.gmra.mxu0 %v1733
      %v1896 = vpop.f32.mrf.mxu0
      %v1897 = vadd.f32 %v1589, %v1896
      %1898 = vmatmul.f32.gmra.mxu0 %v1736
      %v1899 = vpop.f32.mrf.mxu0
      %v1900 = vadd.f32 %v1592, %v1899
      %1901 = vmatmul.f32.gmra.mxu0 %v1739
      %v1902 = vpop.f32.mrf.mxu0
      %v1903 = vadd.f32 %v1595, %v1902
      %1904 = vmatmul.f32.gmra.mxu0 %v1742
      %v1905 = vpop.f32.mrf.mxu0
      %v1906 = vadd.f32 %v1598, %v1905
      %1907 = vmatmul.f32.gmra.mxu0 %v1745
      %v1908 = vpop.f32.mrf.mxu0
      %v1909 = vadd.f32 %v1601, %v1908
      %1910 = vmatmul.f32.gmra.mxu0 %v1748
      %v1911 = vpop.f32.mrf.mxu0
      %v1912 = vadd.f32 %v1604, %v1911
      %1913 = vmatmul.f32.gmra.mxu0 %v1751
      %v1914 = vpop.f32.mrf.mxu0
      %v1915 = vadd.f32 %v1607, %v1914
      %1916 = vmatmul.f32.gmra.mxu0 %v1754
      %v1917 = vpop.f32.mrf.mxu0
      %v1918 = vadd.f32 %v1610, %v1917
      %1919 = vmatmul.f32.gmra.mxu0 %v1757
      %v1920 = vpop.f32.mrf.mxu0
      %v1921 = vadd.f32 %v1613, %v1920
      %1922 = vdwg.mxu0
      %v1923 = vld [vmem:[#allocation2 + $0x19] sm:$0xff]
      %v1924 = vld [vmem:[#allocation2 + $0x21] sm:$0xff]
      %v1925 = vld [vmem:[#allocation2 + $0x29] sm:$0xff]
      %v1926 = vld [vmem:[#allocation2 + $0x31] sm:$0xff]
      %v1927 = vld [vmem:[#allocation2 + $0x39] sm:$0xff]
      %v1928 = vld [vmem:[#allocation2 + $0x41] sm:$0xff]
      %v1929 = vld [vmem:[#allocation2 + $0x49] sm:$0xff]
      %v1930 = vld [vmem:[#allocation2 + $0x51] sm:$0xff]
      %v1931 = vld [vmem:[#allocation2 + $0x59] sm:$0xff]
      %v1932 = vld [vmem:[#allocation2 + $0x61] sm:$0xff]
      %v1933 = vld [vmem:[#allocation2 + $0x69] sm:$0xff]
      %v1934 = vld [vmem:[#allocation2 + $0x71] sm:$0xff]
      %v1935 = vld [vmem:[#allocation2 + $0x79] sm:$0xff]
      %v1936 = vld [vmem:[#allocation2 + $0x81] sm:$0xff]
      %v1937 = vld [vmem:[#allocation2 + $0x89] sm:$0xff]
      %v1938 = vld [vmem:[#allocation2 + $0x91] sm:$0xff]
      %v1939 = vld [vmem:[#allocation2 + $0x99] sm:$0xff]
      %v1940 = vld [vmem:[#allocation2 + $0xa1] sm:$0xff]
      %v1941 = vld [vmem:[#allocation2 + $0xa9] sm:$0xff]
      %v1942 = vld [vmem:[#allocation2 + $0xb1] sm:$0xff]
      %v1943 = vld [vmem:[#allocation2 + $0xb9] sm:$0xff]
      %v1944 = vld [vmem:[#allocation2 + $0xc1] sm:$0xff]
      %v1945 = vld [vmem:[#allocation2 + $0xc9] sm:$0xff]
      %v1946 = vld [vmem:[#allocation2 + $0xd1] sm:$0xff]
      %v1947 = vld [vmem:[#allocation2 + $0xd9] sm:$0xff]
      %v1948 = vld [vmem:[#allocation2 + $0xe1] sm:$0xff]
      %v1949 = vld [vmem:[#allocation2 + $0xe9] sm:$0xff]
      %v1950 = vld [vmem:[#allocation2 + $0xf1] sm:$0xff]
      %v1951 = vld [vmem:[#allocation2 + $0xf9] sm:$0xff]
      %v1952 = vld [vmem:[#allocation2 + $0x101] sm:$0xff]
      %v1953 = vld [vmem:[#allocation2 + $0x109] sm:$0xff]
      %v1954 = vld [vmem:[#allocation2 + $0x111] sm:$0xff]
      %v1955 = vld [vmem:[#allocation2 + $0x119] sm:$0xff]
      %v1956 = vld [vmem:[#allocation2 + $0x121] sm:$0xff]
      %v1957 = vld [vmem:[#allocation2 + $0x129] sm:$0xff]
      %v1958 = vld [vmem:[#allocation2 + $0x131] sm:$0xff]
      %v1959 = vld [vmem:[#allocation2 + $0x139] sm:$0xff]
      %v1960 = vld [vmem:[#allocation2 + $0x141] sm:$0xff]
      %v1961 = vld [vmem:[#allocation2 + $0x149] sm:$0xff]
      %v1962 = vld [vmem:[#allocation2 + $0x151] sm:$0xff]
      %v1963 = vld [vmem:[#allocation2 + $0x159] sm:$0xff]
      %v1964 = vld [vmem:[#allocation2 + $0x161] sm:$0xff]
      %v1965 = vld [vmem:[#allocation2 + $0x169] sm:$0xff]
      %v1966 = vld [vmem:[#allocation2 + $0x171] sm:$0xff]
      %v1967 = vld [vmem:[#allocation2 + $0x179] sm:$0xff]
      %v1968 = vld [vmem:[#allocation2 + $0x181] sm:$0xff]
      %v1969 = vld [vmem:[#allocation2 + $0x189] sm:$0xff]
      %v1970 = vld [vmem:[#allocation2 + $0x191] sm:$0xff]
      %s1971 = scalar_lea.vmem %s3, 8
      %v1972 = vld [vmem:[%s1971] sm:$0xf]
      %v1974 = vsel %vm262, %v1923, 0
      %v1977 = vsel %vm262, %v1924, 0
      %v1980 = vsel %vm262, %v1925, 0
      %v1983 = vsel %vm262, %v1926, 0
      %v1986 = vsel %vm262, %v1927, 0
      %v1989 = vsel %vm262, %v1928, 0
      %v1992 = vsel %vm262, %v1929, 0
      %v1995 = vsel %vm262, %v1930, 0
      %v1998 = vsel %vm262, %v1931, 0
      %v2001 = vsel %vm262, %v1932, 0
      %v2004 = vsel %vm262, %v1933, 0
      %v2007 = vsel %vm262, %v1934, 0
      %v2010 = vsel %vm262, %v1935, 0
      %v2013 = vsel %vm262, %v1936, 0
      %v2016 = vsel %vm262, %v1937, 0
      %v2019 = vsel %vm262, %v1938, 0
      %v2022 = vsel %vm262, %v1939, 0
      %v2025 = vsel %vm262, %v1940, 0
      %v2028 = vsel %vm262, %v1941, 0
      %v2031 = vsel %vm262, %v1942, 0
      %v2034 = vsel %vm262, %v1943, 0
      %v2037 = vsel %vm262, %v1944, 0
      %v2040 = vsel %vm262, %v1945, 0
      %v2043 = vsel %vm262, %v1946, 0
      %v2046 = vsel %vm262, %v1947, 0
      %v2049 = vsel %vm262, %v1948, 0
      %v2052 = vsel %vm262, %v1949, 0
      %v2055 = vsel %vm262, %v1950, 0
      %v2058 = vsel %vm262, %v1951, 0
      %v2061 = vsel %vm262, %v1952, 0
      %v2064 = vsel %vm262, %v1953, 0
      %v2067 = vsel %vm262, %v1954, 0
      %v2070 = vsel %vm262, %v1955, 0
      %v2073 = vsel %vm262, %v1956, 0
      %v2076 = vsel %vm262, %v1957, 0
      %v2079 = vsel %vm262, %v1958, 0
      %v2082 = vsel %vm262, %v1959, 0
      %v2085 = vsel %vm262, %v1960, 0
      %v2088 = vsel %vm262, %v1961, 0
      %v2091 = vsel %vm262, %v1962, 0
      %v2094 = vsel %vm262, %v1963, 0
      %v2097 = vsel %vm262, %v1964, 0
      %v2100 = vsel %vm262, %v1965, 0
      %v2103 = vsel %vm262, %v1966, 0
      %v2106 = vsel %vm262, %v1967, 0
      %v2109 = vsel %vm262, %v1968, 0
      %v2112 = vsel %vm262, %v1969, 0
      %v2115 = vsel %vm262, %v1970, 0
      %v2118 = vsel %vm359, %v1972, 0
      %2120 = vmatpush.msra.mxu0 0.0
      %2121 = vmatpush.msra.mxu0 0.0
      %2122 = vmatpush.msra.mxu0 0.0
      %2123 = vmatpush.msra.mxu0 0.0
      %2124 = vmatpush.msra.mxu0 0.0
      %2125 = vmatpush.msra.mxu0 0.0
      %2126 = vmatpush.msra.mxu0 0.0
      %2127 = vmatpush.msra.mxu0 0.0
      %2128 = vmatpush.msra.mxu0 0.0
      %2129 = vmatpush.msra.mxu0 0.0
      %2130 = vmatpush.msra.mxu0 0.0
      %2131 = vmatpush.msra.mxu0 0.0
      %2132 = vmatpush.msra.mxu0 0.0
      %2133 = vmatpush.msra.mxu0 0.0
      %2134 = vmatpush.msra.mxu0 0.0
      %2135 = vmatpush.msra.mxu0 %v2118
      %2136 = vmatmul.f32.gmra.mxu0 %v1974
      %v2137 = vpop.f32.mrf.mxu0
      %v2138 = vadd.f32 0.0, %v2137
      %2139 = vmatmul.f32.gmra.mxu0 %v1977
      %v2140 = vpop.f32.mrf.mxu0
      %v2141 = vadd.f32 0.0, %v2140
      %2142 = vmatmul.f32.gmra.mxu0 %v1980
      %v2143 = vpop.f32.mrf.mxu0
      %v2144 = vadd.f32 0.0, %v2143
      %2145 = vmatmul.f32.gmra.mxu0 %v1983
      %v2146 = vpop.f32.mrf.mxu0
      %v2147 = vadd.f32 0.0, %v2146
      %2148 = vmatmul.f32.gmra.mxu0 %v1986
      %v2149 = vpop.f32.mrf.mxu0
      %v2150 = vadd.f32 0.0, %v2149
      %2151 = vmatmul.f32.gmra.mxu0 %v1989
      %v2152 = vpop.f32.mrf.mxu0
      %v2153 = vadd.f32 0.0, %v2152
      %2154 = vmatmul.f32.gmra.mxu0 %v1992
      %v2155 = vpop.f32.mrf.mxu0
      %v2156 = vadd.f32 0.0, %v2155
      %2157 = vmatmul.f32.gmra.mxu0 %v1995
      %v2158 = vpop.f32.mrf.mxu0
      %v2159 = vadd.f32 0.0, %v2158
      %2160 = vmatmul.f32.gmra.mxu0 %v1998
      %v2161 = vpop.f32.mrf.mxu0
      %v2162 = vadd.f32 0.0, %v2161
      %2163 = vmatmul.f32.gmra.mxu0 %v2001
      %v2164 = vpop.f32.mrf.mxu0
      %v2165 = vadd.f32 0.0, %v2164
      %2166 = vmatmul.f32.gmra.mxu0 %v2004
      %v2167 = vpop.f32.mrf.mxu0
      %v2168 = vadd.f32 0.0, %v2167
      %2169 = vmatmul.f32.gmra.mxu0 %v2007
      %v2170 = vpop.f32.mrf.mxu0
      %v2171 = vadd.f32 0.0, %v2170
      %2172 = vmatmul.f32.gmra.mxu0 %v2010
      %v2173 = vpop.f32.mrf.mxu0
      %v2174 = vadd.f32 0.0, %v2173
      %2175 = vmatmul.f32.gmra.mxu0 %v2013
      %v2176 = vpop.f32.mrf.mxu0
      %v2177 = vadd.f32 0.0, %v2176
      %2178 = vmatmul.f32.gmra.mxu0 %v2016
      %v2179 = vpop.f32.mrf.mxu0
      %v2180 = vadd.f32 0.0, %v2179
      %2181 = vmatmul.f32.gmra.mxu0 %v2019
      %v2182 = vpop.f32.mrf.mxu0
      %v2183 = vadd.f32 0.0, %v2182
      %2184 = vmatmul.f32.gmra.mxu0 %v2022
      %v2185 = vpop.f32.mrf.mxu0
      %v2186 = vadd.f32 0.0, %v2185
      %2187 = vmatmul.f32.gmra.mxu0 %v2025
      %v2188 = vpop.f32.mrf.mxu0
      %v2189 = vadd.f32 0.0, %v2188
      %2190 = vmatmul.f32.gmra.mxu0 %v2028
      %v2191 = vpop.f32.mrf.mxu0
      %v2192 = vadd.f32 0.0, %v2191
      %2193 = vmatmul.f32.gmra.mxu0 %v2031
      %v2194 = vpop.f32.mrf.mxu0
      %v2195 = vadd.f32 0.0, %v2194
      %2196 = vmatmul.f32.gmra.mxu0 %v2034
      %v2197 = vpop.f32.mrf.mxu0
      %v2198 = vadd.f32 0.0, %v2197
      %2199 = vmatmul.f32.gmra.mxu0 %v2037
      %v2200 = vpop.f32.mrf.mxu0
      %v2201 = vadd.f32 0.0, %v2200
      %2202 = vmatmul.f32.gmra.mxu0 %v2040
      %v2203 = vpop.f32.mrf.mxu0
      %v2204 = vadd.f32 0.0, %v2203
      %2205 = vmatmul.f32.gmra.mxu0 %v2043
      %v2206 = vpop.f32.mrf.mxu0
      %v2207 = vadd.f32 0.0, %v2206
      %2208 = vmatmul.f32.gmra.mxu0 %v2046
      %v2209 = vpop.f32.mrf.mxu0
      %v2210 = vadd.f32 0.0, %v2209
      %2211 = vmatmul.f32.gmra.mxu0 %v2049
      %v2212 = vpop.f32.mrf.mxu0
      %v2213 = vadd.f32 0.0, %v2212
      %2214 = vmatmul.f32.gmra.mxu0 %v2052
      %v2215 = vpop.f32.mrf.mxu0
      %v2216 = vadd.f32 0.0, %v2215
      %2217 = vmatmul.f32.gmra.mxu0 %v2055
      %v2218 = vpop.f32.mrf.mxu0
      %v2219 = vadd.f32 0.0, %v2218
      %2220 = vmatmul.f32.gmra.mxu0 %v2058
      %v2221 = vpop.f32.mrf.mxu0
      %v2222 = vadd.f32 0.0, %v2221
      %2223 = vmatmul.f32.gmra.mxu0 %v2061
      %v2224 = vpop.f32.mrf.mxu0
      %v2225 = vadd.f32 0.0, %v2224
      %2226 = vmatmul.f32.gmra.mxu0 %v2064
      %v2227 = vpop.f32.mrf.mxu0
      %v2228 = vadd.f32 0.0, %v2227
      %2229 = vmatmul.f32.gmra.mxu0 %v2067
      %v2230 = vpop.f32.mrf.mxu0
      %v2231 = vadd.f32 0.0, %v2230
      %2232 = vmatmul.f32.gmra.mxu0 %v2070
      %v2233 = vpop.f32.mrf.mxu0
      %v2234 = vadd.f32 0.0, %v2233
      %2235 = vmatmul.f32.gmra.mxu0 %v2073
      %v2236 = vpop.f32.mrf.mxu0
      %v2237 = vadd.f32 0.0, %v2236
      %2238 = vmatmul.f32.gmra.mxu0 %v2076
      %v2239 = vpop.f32.mrf.mxu0
      %v2240 = vadd.f32 0.0, %v2239
      %2241 = vmatmul.f32.gmra.mxu0 %v2079
      %v2242 = vpop.f32.mrf.mxu0
      %v2243 = vadd.f32 0.0, %v2242
      %2244 = vmatmul.f32.gmra.mxu0 %v2082
      %v2245 = vpop.f32.mrf.mxu0
      %v2246 = vadd.f32 0.0, %v2245
      %2247 = vmatmul.f32.gmra.mxu0 %v2085
      %v2248 = vpop.f32.mrf.mxu0
      %v2249 = vadd.f32 0.0, %v2248
      %2250 = vmatmul.f32.gmra.mxu0 %v2088
      %v2251 = vpop.f32.mrf.mxu0
      %v2252 = vadd.f32 0.0, %v2251
      %2253 = vmatmul.f32.gmra.mxu0 %v2091
      %v2254 = vpop.f32.mrf.mxu0
      %v2255 = vadd.f32 0.0, %v2254
      %2256 = vmatmul.f32.gmra.mxu0 %v2094
      %v2257 = vpop.f32.mrf.mxu0
      %v2258 = vadd.f32 0.0, %v2257
      %2259 = vmatmul.f32.gmra.mxu0 %v2097
      %v2260 = vpop.f32.mrf.mxu0
      %v2261 = vadd.f32 0.0, %v2260
      %2262 = vmatmul.f32.gmra.mxu0 %v2100
      %v2263 = vpop.f32.mrf.mxu0
      %v2264 = vadd.f32 0.0, %v2263
      %2265 = vmatmul.f32.gmra.mxu0 %v2103
      %v2266 = vpop.f32.mrf.mxu0
      %v2267 = vadd.f32 0.0, %v2266
      %2268 = vmatmul.f32.gmra.mxu0 %v2106
      %v2269 = vpop.f32.mrf.mxu0
      %v2270 = vadd.f32 0.0, %v2269
      %2271 = vmatmul.f32.gmra.mxu0 %v2109
      %v2272 = vpop.f32.mrf.mxu0
      %v2273 = vadd.f32 0.0, %v2272
      %2274 = vmatmul.f32.gmra.mxu0 %v2112
      %v2275 = vpop.f32.mrf.mxu0
      %v2276 = vadd.f32 0.0, %v2275
      %2277 = vmatmul.f32.gmra.mxu0 %v2115
      %v2278 = vpop.f32.mrf.mxu0
      %v2279 = vadd.f32 0.0, %v2278
      %2280 = vdwg.mxu0
      %v2281 = vadd.f32 %v1780, %v2138
      %v2282 = vadd.f32 %v1783, %v2141
      %v2283 = vadd.f32 %v1786, %v2144
      %v2284 = vadd.f32 %v1789, %v2147
      %v2285 = vadd.f32 %v1792, %v2150
      %v2286 = vadd.f32 %v1795, %v2153
      %v2287 = vadd.f32 %v1798, %v2156
      %v2288 = vadd.f32 %v1801, %v2159
      %v2289 = vadd.f32 %v1804, %v2162
      %v2290 = vadd.f32 %v1807, %v2165
      %v2291 = vadd.f32 %v1810, %v2168
      %v2292 = vadd.f32 %v1813, %v2171
      %v2293 = vadd.f32 %v1816, %v2174
      %v2294 = vadd.f32 %v1819, %v2177
      %v2295 = vadd.f32 %v1822, %v2180
      %v2296 = vadd.f32 %v1825, %v2183
      %v2297 = vadd.f32 %v1828, %v2186
      %v2298 = vadd.f32 %v1831, %v2189
      %v2299 = vadd.f32 %v1834, %v2192
      %v2300 = vadd.f32 %v1837, %v2195
      %v2301 = vadd.f32 %v1840, %v2198
      %v2302 = vadd.f32 %v1843, %v2201
      %v2303 = vadd.f32 %v1846, %v2204
      %v2304 = vadd.f32 %v1849, %v2207
      %v2305 = vadd.f32 %v1852, %v2210
      %v2306 = vadd.f32 %v1855, %v2213
      %v2307 = vadd.f32 %v1858, %v2216
      %v2308 = vadd.f32 %v1861, %v2219
      %v2309 = vadd.f32 %v1864, %v2222
      %v2310 = vadd.f32 %v1867, %v2225
      %v2311 = vadd.f32 %v1870, %v2228
      %v2312 = vadd.f32 %v1873, %v2231
      %v2313 = vadd.f32 %v1876, %v2234
      %v2314 = vadd.f32 %v1879, %v2237
      %v2315 = vadd.f32 %v1882, %v2240
      %v2316 = vadd.f32 %v1885, %v2243
      %v2317 = vadd.f32 %v1888, %v2246
      %v2318 = vadd.f32 %v1891, %v2249
      %v2319 = vadd.f32 %v1894, %v2252
      %v2320 = vadd.f32 %v1897, %v2255
      %v2321 = vadd.f32 %v1900, %v2258
      %v2322 = vadd.f32 %v1903, %v2261
      %v2323 = vadd.f32 %v1906, %v2264
      %v2324 = vadd.f32 %v1909, %v2267
      %v2325 = vadd.f32 %v1912, %v2270
      %v2326 = vadd.f32 %v1915, %v2273
      %v2327 = vadd.f32 %v1918, %v2276
      %v2328 = vadd.f32 %v1921, %v2279
      %2329 = vst.msk [vmem:[#allocation3] sm:$0xff] %vm262, %v2281
      %2330 = vst.msk [vmem:[#allocation3 + $0x8] sm:$0xff] %vm262, %v2282
      %2331 = vst.msk [vmem:[#allocation3 + $0x10] sm:$0xff] %vm262, %v2283
      %2332 = vst.msk [vmem:[#allocation3 + $0x18] sm:$0xff] %vm262, %v2284
      %2333 = vst.msk [vmem:[#allocation3 + $0x20] sm:$0xff] %vm262, %v2285
      %2334 = vst.msk [vmem:[#allocation3 + $0x28] sm:$0xff] %vm262, %v2286
      %2335 = vst.msk [vmem:[#allocation3 + $0x30] sm:$0xff] %vm262, %v2287
      %2336 = vst.msk [vmem:[#allocation3 + $0x38] sm:$0xff] %vm262, %v2288
      %2337 = vst.msk [vmem:[#allocation3 + $0x40] sm:$0xff] %vm262, %v2289
      %2338 = vst.msk [vmem:[#allocation3 + $0x48] sm:$0xff] %vm262, %v2290
      %2339 = vst.msk [vmem:[#allocation3 + $0x50] sm:$0xff] %vm262, %v2291
      %2340 = vst.msk [vmem:[#allocation3 + $0x58] sm:$0xff] %vm262, %v2292
      %2341 = vst.msk [vmem:[#allocation3 + $0x60] sm:$0xff] %vm262, %v2293
      %2342 = vst.msk [vmem:[#allocation3 + $0x68] sm:$0xff] %vm262, %v2294
      %2343 = vst.msk [vmem:[#allocation3 + $0x70] sm:$0xff] %vm262, %v2295
      %2344 = vst.msk [vmem:[#allocation3 + $0x78] sm:$0xff] %vm262, %v2296
      %2345 = vst.msk [vmem:[#allocation3 + $0x80] sm:$0xff] %vm262, %v2297
      %2346 = vst.msk [vmem:[#allocation3 + $0x88] sm:$0xff] %vm262, %v2298
      %2347 = vst.msk [vmem:[#allocation3 + $0x90] sm:$0xff] %vm262, %v2299
      %2348 = vst.msk [vmem:[#allocation3 + $0x98] sm:$0xff] %vm262, %v2300
      %2349 = vst.msk [vmem:[#allocation3 + $0xa0] sm:$0xff] %vm262, %v2301
      %2350 = vst.msk [vmem:[#allocation3 + $0xa8] sm:$0xff] %vm262, %v2302
      %2351 = vst.msk [vmem:[#allocation3 + $0xb0] sm:$0xff] %vm262, %v2303
      %2352 = vst.msk [vmem:[#allocation3 + $0xb8] sm:$0xff] %vm262, %v2304
      %2353 = vst.msk [vmem:[#allocation3 + $0xc0] sm:$0xff] %vm262, %v2305
      %2354 = vst.msk [vmem:[#allocation3 + $0xc8] sm:$0xff] %vm262, %v2306
      %2355 = vst.msk [vmem:[#allocation3 + $0xd0] sm:$0xff] %vm262, %v2307
      %2356 = vst.msk [vmem:[#allocation3 + $0xd8] sm:$0xff] %vm262, %v2308
      %2357 = vst.msk [vmem:[#allocation3 + $0xe0] sm:$0xff] %vm262, %v2309
      %2358 = vst.msk [vmem:[#allocation3 + $0xe8] sm:$0xff] %vm262, %v2310
      %2359 = vst.msk [vmem:[#allocation3 + $0xf0] sm:$0xff] %vm262, %v2311
      %2360 = vst.msk [vmem:[#allocation3 + $0xf8] sm:$0xff] %vm262, %v2312
      %2361 = vst.msk [vmem:[#allocation3 + $0x100] sm:$0xff] %vm262, %v2313
      %2362 = vst.msk [vmem:[#allocation3 + $0x108] sm:$0xff] %vm262, %v2314
      %2363 = vst.msk [vmem:[#allocation3 + $0x110] sm:$0xff] %vm262, %v2315
      %2364 = vst.msk [vmem:[#allocation3 + $0x118] sm:$0xff] %vm262, %v2316
      %2365 = vst.msk [vmem:[#allocation3 + $0x120] sm:$0xff] %vm262, %v2317
      %2366 = vst.msk [vmem:[#allocation3 + $0x128] sm:$0xff] %vm262, %v2318
      %2367 = vst.msk [vmem:[#allocation3 + $0x130] sm:$0xff] %vm262, %v2319
      %2368 = vst.msk [vmem:[#allocation3 + $0x138] sm:$0xff] %vm262, %v2320
      %2369 = vst.msk [vmem:[#allocation3 + $0x140] sm:$0xff] %vm262, %v2321
      %2370 = vst.msk [vmem:[#allocation3 + $0x148] sm:$0xff] %vm262, %v2322
      %2371 = vst.msk [vmem:[#allocation3 + $0x150] sm:$0xff] %vm262, %v2323
      %2372 = vst.msk [vmem:[#allocation3 + $0x158] sm:$0xff] %vm262, %v2324
      %2373 = vst.msk [vmem:[#allocation3 + $0x160] sm:$0xff] %vm262, %v2325
      %2374 = vst.msk [vmem:[#allocation3 + $0x168] sm:$0xff] %vm262, %v2326
      %2375 = vst.msk [vmem:[#allocation3 + $0x170] sm:$0xff] %vm262, %v2327
      %2376 = vst.msk [vmem:[#allocation3 + $0x178] sm:$0xff] %vm262, %v2328
      %v2377 = vld [vmem:[#allocation2 + $0x2f] sm:$0xff]
      %v2378 = vld [vmem:[#allocation2 + $0x37] sm:$0xff]
      %v2379 = vld [vmem:[#allocation2 + $0x3f] sm:$0xff]
      %v2380 = vld [vmem:[#allocation2 + $0x47] sm:$0xff]
      %v2381 = vld [vmem:[#allocation2 + $0x4f] sm:$0xff]
      %v2382 = vld [vmem:[#allocation2 + $0x57] sm:$0xff]
      %v2383 = vld [vmem:[#allocation2 + $0x5f] sm:$0xff]
      %v2384 = vld [vmem:[#allocation2 + $0x67] sm:$0xff]
      %v2385 = vld [vmem:[#allocation2 + $0x6f] sm:$0xff]
      %v2386 = vld [vmem:[#allocation2 + $0x77] sm:$0xff]
      %v2387 = vld [vmem:[#allocation2 + $0x7f] sm:$0xff]
      %v2388 = vld [vmem:[#allocation2 + $0x87] sm:$0xff]
      %v2389 = vld [vmem:[#allocation2 + $0x8f] sm:$0xff]
      %v2390 = vld [vmem:[#allocation2 + $0x97] sm:$0xff]
      %v2391 = vld [vmem:[#allocation2 + $0x9f] sm:$0xff]
      %v2392 = vld [vmem:[#allocation2 + $0xa7] sm:$0xff]
      %v2393 = vld [vmem:[#allocation2 + $0xaf] sm:$0xff]
      %v2394 = vld [vmem:[#allocation2 + $0xb7] sm:$0xff]
      %v2395 = vld [vmem:[#allocation2 + $0xbf] sm:$0xff]
      %v2396 = vld [vmem:[#allocation2 + $0xc7] sm:$0xff]
      %v2397 = vld [vmem:[#allocation2 + $0xcf] sm:$0xff]
      %v2398 = vld [vmem:[#allocation2 + $0xd7] sm:$0xff]
      %v2399 = vld [vmem:[#allocation2 + $0xdf] sm:$0xff]
      %v2400 = vld [vmem:[#allocation2 + $0xe7] sm:$0xff]
      %v2401 = vld [vmem:[#allocation2 + $0xef] sm:$0xff]
      %v2402 = vld [vmem:[#allocation2 + $0xf7] sm:$0xff]
      %v2403 = vld [vmem:[#allocation2 + $0xff] sm:$0xff]
      %v2404 = vld [vmem:[#allocation2 + $0x107] sm:$0xff]
      %v2405 = vld [vmem:[#allocation2 + $0x10f] sm:$0xff]
      %v2406 = vld [vmem:[#allocation2 + $0x117] sm:$0xff]
      %v2407 = vld [vmem:[#allocation2 + $0x11f] sm:$0xff]
      %v2408 = vld [vmem:[#allocation2 + $0x127] sm:$0xff]
      %v2409 = vld [vmem:[#allocation2 + $0x12f] sm:$0xff]
      %v2410 = vld [vmem:[#allocation2 + $0x137] sm:$0xff]
      %v2411 = vld [vmem:[#allocation2 + $0x13f] sm:$0xff]
      %v2412 = vld [vmem:[#allocation2 + $0x147] sm:$0xff]
      %v2413 = vld [vmem:[#allocation2 + $0x14f] sm:$0xff]
      %v2414 = vld [vmem:[#allocation2 + $0x157] sm:$0xff]
      %v2415 = vld [vmem:[#allocation2 + $0x15f] sm:$0xff]
      %v2416 = vld [vmem:[#allocation2 + $0x167] sm:$0xff]
      %v2417 = vld [vmem:[#allocation2 + $0x16f] sm:$0xff]
      %v2418 = vld [vmem:[#allocation2 + $0x177] sm:$0xff]
      %v2419 = vld [vmem:[#allocation2 + $0x17f] sm:$0xff]
      %v2420 = vld [vmem:[#allocation2 + $0x187] sm:$0xff]
      %v2421 = vld [vmem:[#allocation2 + $0x18f] sm:$0xff]
      %v2422 = vld [vmem:[#allocation2 + $0x197] sm:$0xff]
      %v2423 = vld [vmem:[#allocation2 + $0x19f] sm:$0xff]
      %v2424 = vld [vmem:[#allocation2 + $0x1a7] sm:$0xff]
      %s2425 = scalar_lea.vmem %s3, 12
      %v2426 = vld [vmem:[%s2425] sm:$0xf]
      %v2427 = vld [vmem:[#allocation2 + $0x30] sm:$0xff]
      %v2428 = vld [vmem:[#allocation2 + $0x38] sm:$0xff]
      %v2429 = vld [vmem:[#allocation2 + $0x40] sm:$0xff]
      %v2430 = vld [vmem:[#allocation2 + $0x48] sm:$0xff]
      %v2431 = vld [vmem:[#allocation2 + $0x50] sm:$0xff]
      %v2432 = vld [vmem:[#allocation2 + $0x58] sm:$0xff]
      %v2433 = vld [vmem:[#allocation2 + $0x60] sm:$0xff]
      %v2434 = vld [vmem:[#allocation2 + $0x68] sm:$0xff]
      %v2435 = vld [vmem:[#allocation2 + $0x70] sm:$0xff]
      %v2436 = vld [vmem:[#allocation2 + $0x78] sm:$0xff]
      %v2437 = vld [vmem:[#allocation2 + $0x80] sm:$0xff]
      %v2438 = vld [vmem:[#allocation2 + $0x88] sm:$0xff]
      %v2439 = vld [vmem:[#allocation2 + $0x90] sm:$0xff]
      %v2440 = vld [vmem:[#allocation2 + $0x98] sm:$0xff]
      %v2441 = vld [vmem:[#allocation2 + $0xa0] sm:$0xff]
      %v2442 = vld [vmem:[#allocation2 + $0xa8] sm:$0xff]
      %v2443 = vld [vmem:[#allocation2 + $0xb0] sm:$0xff]
      %v2444 = vld [vmem:[#allocation2 + $0xb8] sm:$0xff]
      %v2445 = vld [vmem:[#allocation2 + $0xc0] sm:$0xff]
      %v2446 = vld [vmem:[#allocation2 + $0xc8] sm:$0xff]
      %v2447 = vld [vmem:[#allocation2 + $0xd0] sm:$0xff]
      %v2448 = vld [vmem:[#allocation2 + $0xd8] sm:$0xff]
      %v2449 = vld [vmem:[#allocation2 + $0xe0] sm:$0xff]
      %v2450 = vld [vmem:[#allocation2 + $0xe8] sm:$0xff]
      %v2451 = vld [vmem:[#allocation2 + $0xf0] sm:$0xff]
      %v2452 = vld [vmem:[#allocation2 + $0xf8] sm:$0xff]
      %v2453 = vld [vmem:[#allocation2 + $0x100] sm:$0xff]
      %v2454 = vld [vmem:[#allocation2 + $0x108] sm:$0xff]
      %v2455 = vld [vmem:[#allocation2 + $0x110] sm:$0xff]
      %v2456 = vld [vmem:[#allocation2 + $0x118] sm:$0xff]
      %v2457 = vld [vmem:[#allocation2 + $0x120] sm:$0xff]
      %v2458 = vld [vmem:[#allocation2 + $0x128] sm:$0xff]
      %v2459 = vld [vmem:[#allocation2 + $0x130] sm:$0xff]
      %v2460 = vld [vmem:[#allocation2 + $0x138] sm:$0xff]
      %v2461 = vld [vmem:[#allocation2 + $0x140] sm:$0xff]
      %v2462 = vld [vmem:[#allocation2 + $0x148] sm:$0xff]
      %v2463 = vld [vmem:[#allocation2 + $0x150] sm:$0xff]
      %v2464 = vld [vmem:[#allocation2 + $0x158] sm:$0xff]
      %v2465 = vld [vmem:[#allocation2 + $0x160] sm:$0xff]
      %v2466 = vld [vmem:[#allocation2 + $0x168] sm:$0xff]
      %v2467 = vld [vmem:[#allocation2 + $0x170] sm:$0xff]
      %v2468 = vld [vmem:[#allocation2 + $0x178] sm:$0xff]
      %v2469 = vld [vmem:[#allocation2 + $0x180] sm:$0xff]
      %v2470 = vld [vmem:[#allocation2 + $0x188] sm:$0xff]
      %v2471 = vld [vmem:[#allocation2 + $0x190] sm:$0xff]
      %v2472 = vld [vmem:[#allocation2 + $0x198] sm:$0xff]
      %v2473 = vld [vmem:[#allocation2 + $0x1a0] sm:$0xff]
      %v2474 = vld [vmem:[#allocation2 + $0x1a8] sm:$0xff]
      %s2475 = scalar_lea.vmem %s3, 16
      %v2476 = vld [vmem:[%s2475] sm:$0xf]
      %v2478 = vsel %vm262, %v2427, 0
      %v2481 = vsel %vm262, %v2428, 0
      %v2484 = vsel %vm262, %v2429, 0
      %v2487 = vsel %vm262, %v2430, 0
      %v2490 = vsel %vm262, %v2431, 0
      %v2493 = vsel %vm262, %v2432, 0
      %v2496 = vsel %vm262, %v2433, 0
      %v2499 = vsel %vm262, %v2434, 0
      %v2502 = vsel %vm262, %v2435, 0
      %v2505 = vsel %vm262, %v2436, 0
      %v2508 = vsel %vm262, %v2437, 0
      %v2511 = vsel %vm262, %v2438, 0
      %v2514 = vsel %vm262, %v2439, 0
      %v2517 = vsel %vm262, %v2440, 0
      %v2520 = vsel %vm262, %v2441, 0
      %v2523 = vsel %vm262, %v2442, 0
      %v2526 = vsel %vm262, %v2443, 0
      %v2529 = vsel %vm262, %v2444, 0
      %v2532 = vsel %vm262, %v2445, 0
      %v2535 = vsel %vm262, %v2446, 0
      %v2538 = vsel %vm262, %v2447, 0
      %v2541 = vsel %vm262, %v2448, 0
      %v2544 = vsel %vm262, %v2449, 0
      %v2547 = vsel %vm262, %v2450, 0
      %v2550 = vsel %vm262, %v2451, 0
      %v2553 = vsel %vm262, %v2452, 0
      %v2556 = vsel %vm262, %v2453, 0
      %v2559 = vsel %vm262, %v2454, 0
      %v2562 = vsel %vm262, %v2455, 0
      %v2565 = vsel %vm262, %v2456, 0
      %v2568 = vsel %vm262, %v2457, 0
      %v2571 = vsel %vm262, %v2458, 0
      %v2574 = vsel %vm262, %v2459, 0
      %v2577 = vsel %vm262, %v2460, 0
      %v2580 = vsel %vm262, %v2461, 0
      %v2583 = vsel %vm262, %v2462, 0
      %v2586 = vsel %vm262, %v2463, 0
      %v2589 = vsel %vm262, %v2464, 0
      %v2592 = vsel %vm262, %v2465, 0
      %v2595 = vsel %vm262, %v2466, 0
      %v2598 = vsel %vm262, %v2467, 0
      %v2601 = vsel %vm262, %v2468, 0
      %v2604 = vsel %vm262, %v2469, 0
      %v2607 = vsel %vm262, %v2470, 0
      %v2610 = vsel %vm262, %v2471, 0
      %v2613 = vsel %vm262, %v2472, 0
      %v2616 = vsel %vm262, %v2473, 0
      %v2619 = vsel %vm262, %v2474, 0
      %v2622 = vsel %vm359, %v2476, 0
      %2624 = vmatpush.msra.mxu0 0.0
      %2625 = vmatpush.msra.mxu0 0.0
      %2626 = vmatpush.msra.mxu0 0.0
      %2627 = vmatpush.msra.mxu0 0.0
      %2628 = vmatpush.msra.mxu0 0.0
      %2629 = vmatpush.msra.mxu0 0.0
      %2630 = vmatpush.msra.mxu0 0.0
      %2631 = vmatpush.msra.mxu0 0.0
      %2632 = vmatpush.msra.mxu0 0.0
      %2633 = vmatpush.msra.mxu0 0.0
      %2634 = vmatpush.msra.mxu0 0.0
      %2635 = vmatpush.msra.mxu0 0.0
      %2636 = vmatpush.msra.mxu0 0.0
      %2637 = vmatpush.msra.mxu0 0.0
      %2638 = vmatpush.msra.mxu0 0.0
      %2639 = vmatpush.msra.mxu0 %v2622
      %2640 = vmatmul.f32.gmra.mxu0 %v2478
      %v2641 = vpop.f32.mrf.mxu0
      %v2642 = vadd.f32 0.0, %v2641
      %2643 = vmatmul.f32.gmra.mxu0 %v2481
      %v2644 = vpop.f32.mrf.mxu0
      %v2645 = vadd.f32 0.0, %v2644
      %2646 = vmatmul.f32.gmra.mxu0 %v2484
      %v2647 = vpop.f32.mrf.mxu0
      %v2648 = vadd.f32 0.0, %v2647
      %2649 = vmatmul.f32.gmra.mxu0 %v2487
      %v2650 = vpop.f32.mrf.mxu0
      %v2651 = vadd.f32 0.0, %v2650
      %2652 = vmatmul.f32.gmra.mxu0 %v2490
      %v2653 = vpop.f32.mrf.mxu0
      %v2654 = vadd.f32 0.0, %v2653
      %2655 = vmatmul.f32.gmra.mxu0 %v2493
      %v2656 = vpop.f32.mrf.mxu0
      %v2657 = vadd.f32 0.0, %v2656
      %2658 = vmatmul.f32.gmra.mxu0 %v2496
      %v2659 = vpop.f32.mrf.mxu0
      %v2660 = vadd.f32 0.0, %v2659
      %2661 = vmatmul.f32.gmra.mxu0 %v2499
      %v2662 = vpop.f32.mrf.mxu0
      %v2663 = vadd.f32 0.0, %v2662
      %2664 = vmatmul.f32.gmra.mxu0 %v2502
      %v2665 = vpop.f32.mrf.mxu0
      %v2666 = vadd.f32 0.0, %v2665
      %2667 = vmatmul.f32.gmra.mxu0 %v2505
      %v2668 = vpop.f32.mrf.mxu0
      %v2669 = vadd.f32 0.0, %v2668
      %2670 = vmatmul.f32.gmra.mxu0 %v2508
      %v2671 = vpop.f32.mrf.mxu0
      %v2672 = vadd.f32 0.0, %v2671
      %2673 = vmatmul.f32.gmra.mxu0 %v2511
      %v2674 = vpop.f32.mrf.mxu0
      %v2675 = vadd.f32 0.0, %v2674
      %2676 = vmatmul.f32.gmra.mxu0 %v2514
      %v2677 = vpop.f32.mrf.mxu0
      %v2678 = vadd.f32 0.0, %v2677
      %2679 = vmatmul.f32.gmra.mxu0 %v2517
      %v2680 = vpop.f32.mrf.mxu0
      %v2681 = vadd.f32 0.0, %v2680
      %2682 = vmatmul.f32.gmra.mxu0 %v2520
      %v2683 = vpop.f32.mrf.mxu0
      %v2684 = vadd.f32 0.0, %v2683
      %2685 = vmatmul.f32.gmra.mxu0 %v2523
      %v2686 = vpop.f32.mrf.mxu0
      %v2687 = vadd.f32 0.0, %v2686
      %2688 = vmatmul.f32.gmra.mxu0 %v2526
      %v2689 = vpop.f32.mrf.mxu0
      %v2690 = vadd.f32 0.0, %v2689
      %2691 = vmatmul.f32.gmra.mxu0 %v2529
      %v2692 = vpop.f32.mrf.mxu0
      %v2693 = vadd.f32 0.0, %v2692
      %2694 = vmatmul.f32.gmra.mxu0 %v2532
      %v2695 = vpop.f32.mrf.mxu0
      %v2696 = vadd.f32 0.0, %v2695
      %2697 = vmatmul.f32.gmra.mxu0 %v2535
      %v2698 = vpop.f32.mrf.mxu0
      %v2699 = vadd.f32 0.0, %v2698
      %2700 = vmatmul.f32.gmra.mxu0 %v2538
      %v2701 = vpop.f32.mrf.mxu0
      %v2702 = vadd.f32 0.0, %v2701
      %2703 = vmatmul.f32.gmra.mxu0 %v2541
      %v2704 = vpop.f32.mrf.mxu0
      %v2705 = vadd.f32 0.0, %v2704
      %2706 = vmatmul.f32.gmra.mxu0 %v2544
      %v2707 = vpop.f32.mrf.mxu0
      %v2708 = vadd.f32 0.0, %v2707
      %2709 = vmatmul.f32.gmra.mxu0 %v2547
      %v2710 = vpop.f32.mrf.mxu0
      %v2711 = vadd.f32 0.0, %v2710
      %2712 = vmatmul.f32.gmra.mxu0 %v2550
      %v2713 = vpop.f32.mrf.mxu0
      %v2714 = vadd.f32 0.0, %v2713
      %2715 = vmatmul.f32.gmra.mxu0 %v2553
      %v2716 = vpop.f32.mrf.mxu0
      %v2717 = vadd.f32 0.0, %v2716
      %2718 = vmatmul.f32.gmra.mxu0 %v2556
      %v2719 = vpop.f32.mrf.mxu0
      %v2720 = vadd.f32 0.0, %v2719
      %2721 = vmatmul.f32.gmra.mxu0 %v2559
      %v2722 = vpop.f32.mrf.mxu0
      %v2723 = vadd.f32 0.0, %v2722
      %2724 = vmatmul.f32.gmra.mxu0 %v2562
      %v2725 = vpop.f32.mrf.mxu0
      %v2726 = vadd.f32 0.0, %v2725
      %2727 = vmatmul.f32.gmra.mxu0 %v2565
      %v2728 = vpop.f32.mrf.mxu0
      %v2729 = vadd.f32 0.0, %v2728
      %2730 = vmatmul.f32.gmra.mxu0 %v2568
      %v2731 = vpop.f32.mrf.mxu0
      %v2732 = vadd.f32 0.0, %v2731
      %2733 = vmatmul.f32.gmra.mxu0 %v2571
      %v2734 = vpop.f32.mrf.mxu0
      %v2735 = vadd.f32 0.0, %v2734
      %2736 = vmatmul.f32.gmra.mxu0 %v2574
      %v2737 = vpop.f32.mrf.mxu0
      %v2738 = vadd.f32 0.0, %v2737
      %2739 = vmatmul.f32.gmra.mxu0 %v2577
      %v2740 = vpop.f32.mrf.mxu0
      %v2741 = vadd.f32 0.0, %v2740
      %2742 = vmatmul.f32.gmra.mxu0 %v2580
      %v2743 = vpop.f32.mrf.mxu0
      %v2744 = vadd.f32 0.0, %v2743
      %2745 = vmatmul.f32.gmra.mxu0 %v2583
      %v2746 = vpop.f32.mrf.mxu0
      %v2747 = vadd.f32 0.0, %v2746
      %2748 = vmatmul.f32.gmra.mxu0 %v2586
      %v2749 = vpop.f32.mrf.mxu0
      %v2750 = vadd.f32 0.0, %v2749
      %2751 = vmatmul.f32.gmra.mxu0 %v2589
      %v2752 = vpop.f32.mrf.mxu0
      %v2753 = vadd.f32 0.0, %v2752
      %2754 = vmatmul.f32.gmra.mxu0 %v2592
      %v2755 = vpop.f32.mrf.mxu0
      %v2756 = vadd.f32 0.0, %v2755
      %2757 = vmatmul.f32.gmra.mxu0 %v2595
      %v2758 = vpop.f32.mrf.mxu0
      %v2759 = vadd.f32 0.0, %v2758
      %2760 = vmatmul.f32.gmra.mxu0 %v2598
      %v2761 = vpop.f32.mrf.mxu0
      %v2762 = vadd.f32 0.0, %v2761
      %2763 = vmatmul.f32.gmra.mxu0 %v2601
      %v2764 = vpop.f32.mrf.mxu0
      %v2765 = vadd.f32 0.0, %v2764
      %2766 = vmatmul.f32.gmra.mxu0 %v2604
      %v2767 = vpop.f32.mrf.mxu0
      %v2768 = vadd.f32 0.0, %v2767
      %2769 = vmatmul.f32.gmra.mxu0 %v2607
      %v2770 = vpop.f32.mrf.mxu0
      %v2771 = vadd.f32 0.0, %v2770
      %2772 = vmatmul.f32.gmra.mxu0 %v2610
      %v2773 = vpop.f32.mrf.mxu0
      %v2774 = vadd.f32 0.0, %v2773
      %2775 = vmatmul.f32.gmra.mxu0 %v2613
      %v2776 = vpop.f32.mrf.mxu0
      %v2777 = vadd.f32 0.0, %v2776
      %2778 = vmatmul.f32.gmra.mxu0 %v2616
      %v2779 = vpop.f32.mrf.mxu0
      %v2780 = vadd.f32 0.0, %v2779
      %2781 = vmatmul.f32.gmra.mxu0 %v2619
      %v2782 = vpop.f32.mrf.mxu0
      %v2783 = vadd.f32 0.0, %v2782
      %2784 = vdwg.mxu0
      %v2786 = vsel %vm262, %v2377, 0
      %v2789 = vsel %vm262, %v2378, 0
      %v2792 = vsel %vm262, %v2379, 0
      %v2795 = vsel %vm262, %v2380, 0
      %v2798 = vsel %vm262, %v2381, 0
      %v2801 = vsel %vm262, %v2382, 0
      %v2804 = vsel %vm262, %v2383, 0
      %v2807 = vsel %vm262, %v2384, 0
      %v2810 = vsel %vm262, %v2385, 0
      %v2813 = vsel %vm262, %v2386, 0
      %v2816 = vsel %vm262, %v2387, 0
      %v2819 = vsel %vm262, %v2388, 0
      %v2822 = vsel %vm262, %v2389, 0
      %v2825 = vsel %vm262, %v2390, 0
      %v2828 = vsel %vm262, %v2391, 0
      %v2831 = vsel %vm262, %v2392, 0
      %v2834 = vsel %vm262, %v2393, 0
      %v2837 = vsel %vm262, %v2394, 0
      %v2840 = vsel %vm262, %v2395, 0
      %v2843 = vsel %vm262, %v2396, 0
      %v2846 = vsel %vm262, %v2397, 0
      %v2849 = vsel %vm262, %v2398, 0
      %v2852 = vsel %vm262, %v2399, 0
      %v2855 = vsel %vm262, %v2400, 0
      %v2858 = vsel %vm262, %v2401, 0
      %v2861 = vsel %vm262, %v2402, 0
      %v2864 = vsel %vm262, %v2403, 0
      %v2867 = vsel %vm262, %v2404, 0
      %v2870 = vsel %vm262, %v2405, 0
      %v2873 = vsel %vm262, %v2406, 0
      %v2876 = vsel %vm262, %v2407, 0
      %v2879 = vsel %vm262, %v2408, 0
      %v2882 = vsel %vm262, %v2409, 0
      %v2885 = vsel %vm262, %v2410, 0
      %v2888 = vsel %vm262, %v2411, 0
      %v2891 = vsel %vm262, %v2412, 0
      %v2894 = vsel %vm262, %v2413, 0
      %v2897 = vsel %vm262, %v2414, 0
      %v2900 = vsel %vm262, %v2415, 0
      %v2903 = vsel %vm262, %v2416, 0
      %v2906 = vsel %vm262, %v2417, 0
      %v2909 = vsel %vm262, %v2418, 0
      %v2912 = vsel %vm262, %v2419, 0
      %v2915 = vsel %vm262, %v2420, 0
      %v2918 = vsel %vm262, %v2421, 0
      %v2921 = vsel %vm262, %v2422, 0
      %v2924 = vsel %vm262, %v2423, 0
      %v2927 = vsel %vm262, %v2424, 0
      %v2930 = vsel %vm359, %v2426, 0
      %2932 = vmatpush.msra.mxu0 0.0
      %2933 = vmatpush.msra.mxu0 0.0
      %2934 = vmatpush.msra.mxu0 0.0
      %2935 = vmatpush.msra.mxu0 0.0
      %2936 = vmatpush.msra.mxu0 0.0
      %2937 = vmatpush.msra.mxu0 0.0
      %2938 = vmatpush.msra.mxu0 0.0
      %2939 = vmatpush.msra.mxu0 0.0
      %2940 = vmatpush.msra.mxu0 0.0
      %2941 = vmatpush.msra.mxu0 0.0
      %2942 = vmatpush.msra.mxu0 0.0
      %2943 = vmatpush.msra.mxu0 0.0
      %2944 = vmatpush.msra.mxu0 0.0
      %2945 = vmatpush.msra.mxu0 0.0
      %2946 = vmatpush.msra.mxu0 0.0
      %2947 = vmatpush.msra.mxu0 %v2930
      %2948 = vmatmul.f32.gmra.mxu0 %v2786
      %v2949 = vpop.f32.mrf.mxu0
      %v2950 = vadd.f32 %v2642, %v2949
      %2951 = vmatmul.f32.gmra.mxu0 %v2789
      %v2952 = vpop.f32.mrf.mxu0
      %v2953 = vadd.f32 %v2645, %v2952
      %2954 = vmatmul.f32.gmra.mxu0 %v2792
      %v2955 = vpop.f32.mrf.mxu0
      %v2956 = vadd.f32 %v2648, %v2955
      %2957 = vmatmul.f32.gmra.mxu0 %v2795
      %v2958 = vpop.f32.mrf.mxu0
      %v2959 = vadd.f32 %v2651, %v2958
      %2960 = vmatmul.f32.gmra.mxu0 %v2798
      %v2961 = vpop.f32.mrf.mxu0
      %v2962 = vadd.f32 %v2654, %v2961
      %2963 = vmatmul.f32.gmra.mxu0 %v2801
      %v2964 = vpop.f32.mrf.mxu0
      %v2965 = vadd.f32 %v2657, %v2964
      %2966 = vmatmul.f32.gmra.mxu0 %v2804
      %v2967 = vpop.f32.mrf.mxu0
      %v2968 = vadd.f32 %v2660, %v2967
      %2969 = vmatmul.f32.gmra.mxu0 %v2807
      %v2970 = vpop.f32.mrf.mxu0
      %v2971 = vadd.f32 %v2663, %v2970
      %2972 = vmatmul.f32.gmra.mxu0 %v2810
      %v2973 = vpop.f32.mrf.mxu0
      %v2974 = vadd.f32 %v2666, %v2973
      %2975 = vmatmul.f32.gmra.mxu0 %v2813
      %v2976 = vpop.f32.mrf.mxu0
      %v2977 = vadd.f32 %v2669, %v2976
      %2978 = vmatmul.f32.gmra.mxu0 %v2816
      %v2979 = vpop.f32.mrf.mxu0
      %v2980 = vadd.f32 %v2672, %v2979
      %2981 = vmatmul.f32.gmra.mxu0 %v2819
      %v2982 = vpop.f32.mrf.mxu0
      %v2983 = vadd.f32 %v2675, %v2982
      %2984 = vmatmul.f32.gmra.mxu0 %v2822
      %v2985 = vpop.f32.mrf.mxu0
      %v2986 = vadd.f32 %v2678, %v2985
      %2987 = vmatmul.f32.gmra.mxu0 %v2825
      %v2988 = vpop.f32.mrf.mxu0
      %v2989 = vadd.f32 %v2681, %v2988
      %2990 = vmatmul.f32.gmra.mxu0 %v2828
      %v2991 = vpop.f32.mrf.mxu0
      %v2992 = vadd.f32 %v2684, %v2991
      %2993 = vmatmul.f32.gmra.mxu0 %v2831
      %v2994 = vpop.f32.mrf.mxu0
      %v2995 = vadd.f32 %v2687, %v2994
      %2996 = vmatmul.f32.gmra.mxu0 %v2834
      %v2997 = vpop.f32.mrf.mxu0
      %v2998 = vadd.f32 %v2690, %v2997
      %2999 = vmatmul.f32.gmra.mxu0 %v2837
      %v3000 = vpop.f32.mrf.mxu0
      %v3001 = vadd.f32 %v2693, %v3000
      %3002 = vmatmul.f32.gmra.mxu0 %v2840
      %v3003 = vpop.f32.mrf.mxu0
      %v3004 = vadd.f32 %v2696, %v3003
      %3005 = vmatmul.f32.gmra.mxu0 %v2843
      %v3006 = vpop.f32.mrf.mxu0
      %v3007 = vadd.f32 %v2699, %v3006
      %3008 = vmatmul.f32.gmra.mxu0 %v2846
      %v3009 = vpop.f32.mrf.mxu0
      %v3010 = vadd.f32 %v2702, %v3009
      %3011 = vmatmul.f32.gmra.mxu0 %v2849
      %v3012 = vpop.f32.mrf.mxu0
      %v3013 = vadd.f32 %v2705, %v3012
      %3014 = vmatmul.f32.gmra.mxu0 %v2852
      %v3015 = vpop.f32.mrf.mxu0
      %v3016 = vadd.f32 %v2708, %v3015
      %3017 = vmatmul.f32.gmra.mxu0 %v2855
      %v3018 = vpop.f32.mrf.mxu0
      %v3019 = vadd.f32 %v2711, %v3018
      %3020 = vmatmul.f32.gmra.mxu0 %v2858
      %v3021 = vpop.f32.mrf.mxu0
      %v3022 = vadd.f32 %v2714, %v3021
      %3023 = vmatmul.f32.gmra.mxu0 %v2861
      %v3024 = vpop.f32.mrf.mxu0
      %v3025 = vadd.f32 %v2717, %v3024
      %3026 = vmatmul.f32.gmra.mxu0 %v2864
      %v3027 = vpop.f32.mrf.mxu0
      %v3028 = vadd.f32 %v2720, %v3027
      %3029 = vmatmul.f32.gmra.mxu0 %v2867
      %v3030 = vpop.f32.mrf.mxu0
      %v3031 = vadd.f32 %v2723, %v3030
      %3032 = vmatmul.f32.gmra.mxu0 %v2870
      %v3033 = vpop.f32.mrf.mxu0
      %v3034 = vadd.f32 %v2726, %v3033
      %3035 = vmatmul.f32.gmra.mxu0 %v2873
      %v3036 = vpop.f32.mrf.mxu0
      %v3037 = vadd.f32 %v2729, %v3036
      %3038 = vmatmul.f32.gmra.mxu0 %v2876
      %v3039 = vpop.f32.mrf.mxu0
      %v3040 = vadd.f32 %v2732, %v3039
      %3041 = vmatmul.f32.gmra.mxu0 %v2879
      %v3042 = vpop.f32.mrf.mxu0
      %v3043 = vadd.f32 %v2735, %v3042
      %3044 = vmatmul.f32.gmra.mxu0 %v2882
      %v3045 = vpop.f32.mrf.mxu0
      %v3046 = vadd.f32 %v2738, %v3045
      %3047 = vmatmul.f32.gmra.mxu0 %v2885
      %v3048 = vpop.f32.mrf.mxu0
      %v3049 = vadd.f32 %v2741, %v3048
      %3050 = vmatmul.f32.gmra.mxu0 %v2888
      %v3051 = vpop.f32.mrf.mxu0
      %v3052 = vadd.f32 %v2744, %v3051
      %3053 = vmatmul.f32.gmra.mxu0 %v2891
      %v3054 = vpop.f32.mrf.mxu0
      %v3055 = vadd.f32 %v2747, %v3054
      %3056 = vmatmul.f32.gmra.mxu0 %v2894
      %v3057 = vpop.f32.mrf.mxu0
      %v3058 = vadd.f32 %v2750, %v3057
      %3059 = vmatmul.f32.gmra.mxu0 %v2897
      %v3060 = vpop.f32.mrf.mxu0
      %v3061 = vadd.f32 %v2753, %v3060
      %3062 = vmatmul.f32.gmra.mxu0 %v2900
      %v3063 = vpop.f32.mrf.mxu0
      %v3064 = vadd.f32 %v2756, %v3063
      %3065 = vmatmul.f32.gmra.mxu0 %v2903
      %v3066 = vpop.f32.mrf.mxu0
      %v3067 = vadd.f32 %v2759, %v3066
      %3068 = vmatmul.f32.gmra.mxu0 %v2906
      %v3069 = vpop.f32.mrf.mxu0
      %v3070 = vadd.f32 %v2762, %v3069
      %3071 = vmatmul.f32.gmra.mxu0 %v2909
      %v3072 = vpop.f32.mrf.mxu0
      %v3073 = vadd.f32 %v2765, %v3072
      %3074 = vmatmul.f32.gmra.mxu0 %v2912
      %v3075 = vpop.f32.mrf.mxu0
      %v3076 = vadd.f32 %v2768, %v3075
      %3077 = vmatmul.f32.gmra.mxu0 %v2915
      %v3078 = vpop.f32.mrf.mxu0
      %v3079 = vadd.f32 %v2771, %v3078
      %3080 = vmatmul.f32.gmra.mxu0 %v2918
      %v3081 = vpop.f32.mrf.mxu0
      %v3082 = vadd.f32 %v2774, %v3081
      %3083 = vmatmul.f32.gmra.mxu0 %v2921
      %v3084 = vpop.f32.mrf.mxu0
      %v3085 = vadd.f32 %v2777, %v3084
      %3086 = vmatmul.f32.gmra.mxu0 %v2924
      %v3087 = vpop.f32.mrf.mxu0
      %v3088 = vadd.f32 %v2780, %v3087
      %3089 = vmatmul.f32.gmra.mxu0 %v2927
      %v3090 = vpop.f32.mrf.mxu0
      %v3091 = vadd.f32 %v2783, %v3090
      %3092 = vdwg.mxu0
      %v3093 = vld [vmem:[#allocation2 + $0x31] sm:$0xff]
      %v3094 = vld [vmem:[#allocation2 + $0x39] sm:$0xff]
      %v3095 = vld [vmem:[#allocation2 + $0x41] sm:$0xff]
      %v3096 = vld [vmem:[#allocation2 + $0x49] sm:$0xff]
      %v3097 = vld [vmem:[#allocation2 + $0x51] sm:$0xff]
      %v3098 = vld [vmem:[#allocation2 + $0x59] sm:$0xff]
      %v3099 = vld [vmem:[#allocation2 + $0x61] sm:$0xff]
      %v3100 = vld [vmem:[#allocation2 + $0x69] sm:$0xff]
      %v3101 = vld [vmem:[#allocation2 + $0x71] sm:$0xff]
      %v3102 = vld [vmem:[#allocation2 + $0x79] sm:$0xff]
      %v3103 = vld [vmem:[#allocation2 + $0x81] sm:$0xff]
      %v3104 = vld [vmem:[#allocation2 + $0x89] sm:$0xff]
      %v3105 = vld [vmem:[#allocation2 + $0x91] sm:$0xff]
      %v3106 = vld [vmem:[#allocation2 + $0x99] sm:$0xff]
      %v3107 = vld [vmem:[#allocation2 + $0xa1] sm:$0xff]
      %v3108 = vld [vmem:[#allocation2 + $0xa9] sm:$0xff]
      %v3109 = vld [vmem:[#allocation2 + $0xb1] sm:$0xff]
      %v3110 = vld [vmem:[#allocation2 + $0xb9] sm:$0xff]
      %v3111 = vld [vmem:[#allocation2 + $0xc1] sm:$0xff]
      %v3112 = vld [vmem:[#allocation2 + $0xc9] sm:$0xff]
      %v3113 = vld [vmem:[#allocation2 + $0xd1] sm:$0xff]
      %v3114 = vld [vmem:[#allocation2 + $0xd9] sm:$0xff]
      %v3115 = vld [vmem:[#allocation2 + $0xe1] sm:$0xff]
      %v3116 = vld [vmem:[#allocation2 + $0xe9] sm:$0xff]
      %v3117 = vld [vmem:[#allocation2 + $0xf1] sm:$0xff]
      %v3118 = vld [vmem:[#allocation2 + $0xf9] sm:$0xff]
      %v3119 = vld [vmem:[#allocation2 + $0x101] sm:$0xff]
      %v3120 = vld [vmem:[#allocation2 + $0x109] sm:$0xff]
      %v3121 = vld [vmem:[#allocation2 + $0x111] sm:$0xff]
      %v3122 = vld [vmem:[#allocation2 + $0x119] sm:$0xff]
      %v3123 = vld [vmem:[#allocation2 + $0x121] sm:$0xff]
      %v3124 = vld [vmem:[#allocation2 + $0x129] sm:$0xff]
      %v3125 = vld [vmem:[#allocation2 + $0x131] sm:$0xff]
      %v3126 = vld [vmem:[#allocation2 + $0x139] sm:$0xff]
      %v3127 = vld [vmem:[#allocation2 + $0x141] sm:$0xff]
      %v3128 = vld [vmem:[#allocation2 + $0x149] sm:$0xff]
      %v3129 = vld [vmem:[#allocation2 + $0x151] sm:$0xff]
      %v3130 = vld [vmem:[#allocation2 + $0x159] sm:$0xff]
      %v3131 = vld [vmem:[#allocation2 + $0x161] sm:$0xff]
      %v3132 = vld [vmem:[#allocation2 + $0x169] sm:$0xff]
      %v3133 = vld [vmem:[#allocation2 + $0x171] sm:$0xff]
      %v3134 = vld [vmem:[#allocation2 + $0x179] sm:$0xff]
      %v3135 = vld [vmem:[#allocation2 + $0x181] sm:$0xff]
      %v3136 = vld [vmem:[#allocation2 + $0x189] sm:$0xff]
      %v3137 = vld [vmem:[#allocation2 + $0x191] sm:$0xff]
      %v3138 = vld [vmem:[#allocation2 + $0x199] sm:$0xff]
      %v3139 = vld [vmem:[#allocation2 + $0x1a1] sm:$0xff]
      %v3140 = vld [vmem:[#allocation2 + $0x1a9] sm:$0xff]
      %s3141 = scalar_lea.vmem %s3, 20
      %v3142 = vld [vmem:[%s3141] sm:$0xf]
      %v3144 = vsel %vm262, %v3093, 0
      %v3147 = vsel %vm262, %v3094, 0
      %v3150 = vsel %vm262, %v3095, 0
      %v3153 = vsel %vm262, %v3096, 0
      %v3156 = vsel %vm262, %v3097, 0
      %v3159 = vsel %vm262, %v3098, 0
      %v3162 = vsel %vm262, %v3099, 0
      %v3165 = vsel %vm262, %v3100, 0
      %v3168 = vsel %vm262, %v3101, 0
      %v3171 = vsel %vm262, %v3102, 0
      %v3174 = vsel %vm262, %v3103, 0
      %v3177 = vsel %vm262, %v3104, 0
      %v3180 = vsel %vm262, %v3105, 0
      %v3183 = vsel %vm262, %v3106, 0
      %v3186 = vsel %vm262, %v3107, 0
      %v3189 = vsel %vm262, %v3108, 0
      %v3192 = vsel %vm262, %v3109, 0
      %v3195 = vsel %vm262, %v3110, 0
      %v3198 = vsel %vm262, %v3111, 0
      %v3201 = vsel %vm262, %v3112, 0
      %v3204 = vsel %vm262, %v3113, 0
      %v3207 = vsel %vm262, %v3114, 0
      %v3210 = vsel %vm262, %v3115, 0
      %v3213 = vsel %vm262, %v3116, 0
      %v3216 = vsel %vm262, %v3117, 0
      %v3219 = vsel %vm262, %v3118, 0
      %v3222 = vsel %vm262, %v3119, 0
      %v3225 = vsel %vm262, %v3120, 0
      %v3228 = vsel %vm262, %v3121, 0
      %v3231 = vsel %vm262, %v3122, 0
      %v3234 = vsel %vm262, %v3123, 0
      %v3237 = vsel %vm262, %v3124, 0
      %v3240 = vsel %vm262, %v3125, 0
      %v3243 = vsel %vm262, %v3126, 0
      %v3246 = vsel %vm262, %v3127, 0
      %v3249 = vsel %vm262, %v3128, 0
      %v3252 = vsel %vm262, %v3129, 0
      %v3255 = vsel %vm262, %v3130, 0
      %v3258 = vsel %vm262, %v3131, 0
      %v3261 = vsel %vm262, %v3132, 0
      %v3264 = vsel %vm262, %v3133, 0
      %v3267 = vsel %vm262, %v3134, 0
      %v3270 = vsel %vm262, %v3135, 0
      %v3273 = vsel %vm262, %v3136, 0
      %v3276 = vsel %vm262, %v3137, 0
      %v3279 = vsel %vm262, %v3138, 0
      %v3282 = vsel %vm262, %v3139, 0
      %v3285 = vsel %vm262, %v3140, 0
      %v3288 = vsel %vm359, %v3142, 0
      %3290 = vmatpush.msra.mxu0 0.0
      %3291 = vmatpush.msra.mxu0 0.0
      %3292 = vmatpush.msra.mxu0 0.0
      %3293 = vmatpush.msra.mxu0 0.0
      %3294 = vmatpush.msra.mxu0 0.0
      %3295 = vmatpush.msra.mxu0 0.0
      %3296 = vmatpush.msra.mxu0 0.0
      %3297 = vmatpush.msra.mxu0 0.0
      %3298 = vmatpush.msra.mxu0 0.0
      %3299 = vmatpush.msra.mxu0 0.0
      %3300 = vmatpush.msra.mxu0 0.0
      %3301 = vmatpush.msra.mxu0 0.0
      %3302 = vmatpush.msra.mxu0 0.0
      %3303 = vmatpush.msra.mxu0 0.0
      %3304 = vmatpush.msra.mxu0 0.0
      %3305 = vmatpush.msra.mxu0 %v3288
      %3306 = vmatmul.f32.gmra.mxu0 %v3144
      %v3307 = vpop.f32.mrf.mxu0
      %v3308 = vadd.f32 0.0, %v3307
      %3309 = vmatmul.f32.gmra.mxu0 %v3147
      %v3310 = vpop.f32.mrf.mxu0
      %v3311 = vadd.f32 0.0, %v3310
      %3312 = vmatmul.f32.gmra.mxu0 %v3150
      %v3313 = vpop.f32.mrf.mxu0
      %v3314 = vadd.f32 0.0, %v3313
      %3315 = vmatmul.f32.gmra.mxu0 %v3153
      %v3316 = vpop.f32.mrf.mxu0
      %v3317 = vadd.f32 0.0, %v3316
      %3318 = vmatmul.f32.gmra.mxu0 %v3156
      %v3319 = vpop.f32.mrf.mxu0
      %v3320 = vadd.f32 0.0, %v3319
      %3321 = vmatmul.f32.gmra.mxu0 %v3159
      %v3322 = vpop.f32.mrf.mxu0
      %v3323 = vadd.f32 0.0, %v3322
      %3324 = vmatmul.f32.gmra.mxu0 %v3162
      %v3325 = vpop.f32.mrf.mxu0
      %v3326 = vadd.f32 0.0, %v3325
      %3327 = vmatmul.f32.gmra.mxu0 %v3165
      %v3328 = vpop.f32.mrf.mxu0
      %v3329 = vadd.f32 0.0, %v3328
      %3330 = vmatmul.f32.gmra.mxu0 %v3168
      %v3331 = vpop.f32.mrf.mxu0
      %v3332 = vadd.f32 0.0, %v3331
      %3333 = vmatmul.f32.gmra.mxu0 %v3171
      %v3334 = vpop.f32.mrf.mxu0
      %v3335 = vadd.f32 0.0, %v3334
      %3336 = vmatmul.f32.gmra.mxu0 %v3174
      %v3337 = vpop.f32.mrf.mxu0
      %v3338 = vadd.f32 0.0, %v3337
      %3339 = vmatmul.f32.gmra.mxu0 %v3177
      %v3340 = vpop.f32.mrf.mxu0
      %v3341 = vadd.f32 0.0, %v3340
      %3342 = vmatmul.f32.gmra.mxu0 %v3180
      %v3343 = vpop.f32.mrf.mxu0
      %v3344 = vadd.f32 0.0, %v3343
      %3345 = vmatmul.f32.gmra.mxu0 %v3183
      %v3346 = vpop.f32.mrf.mxu0
      %v3347 = vadd.f32 0.0, %v3346
      %3348 = vmatmul.f32.gmra.mxu0 %v3186
      %v3349 = vpop.f32.mrf.mxu0
      %v3350 = vadd.f32 0.0, %v3349
      %3351 = vmatmul.f32.gmra.mxu0 %v3189
      %v3352 = vpop.f32.mrf.mxu0
      %v3353 = vadd.f32 0.0, %v3352
      %3354 = vmatmul.f32.gmra.mxu0 %v3192
      %v3355 = vpop.f32.mrf.mxu0
      %v3356 = vadd.f32 0.0, %v3355
      %3357 = vmatmul.f32.gmra.mxu0 %v3195
      %v3358 = vpop.f32.mrf.mxu0
      %v3359 = vadd.f32 0.0, %v3358
      %3360 = vmatmul.f32.gmra.mxu0 %v3198
      %v3361 = vpop.f32.mrf.mxu0
      %v3362 = vadd.f32 0.0, %v3361
      %3363 = vmatmul.f32.gmra.mxu0 %v3201
      %v3364 = vpop.f32.mrf.mxu0
      %v3365 = vadd.f32 0.0, %v3364
      %3366 = vmatmul.f32.gmra.mxu0 %v3204
      %v3367 = vpop.f32.mrf.mxu0
      %v3368 = vadd.f32 0.0, %v3367
      %3369 = vmatmul.f32.gmra.mxu0 %v3207
      %v3370 = vpop.f32.mrf.mxu0
      %v3371 = vadd.f32 0.0, %v3370
      %3372 = vmatmul.f32.gmra.mxu0 %v3210
      %v3373 = vpop.f32.mrf.mxu0
      %v3374 = vadd.f32 0.0, %v3373
      %3375 = vmatmul.f32.gmra.mxu0 %v3213
      %v3376 = vpop.f32.mrf.mxu0
      %v3377 = vadd.f32 0.0, %v3376
      %3378 = vmatmul.f32.gmra.mxu0 %v3216
      %v3379 = vpop.f32.mrf.mxu0
      %v3380 = vadd.f32 0.0, %v3379
      %3381 = vmatmul.f32.gmra.mxu0 %v3219
      %v3382 = vpop.f32.mrf.mxu0
      %v3383 = vadd.f32 0.0, %v3382
      %3384 = vmatmul.f32.gmra.mxu0 %v3222
      %v3385 = vpop.f32.mrf.mxu0
      %v3386 = vadd.f32 0.0, %v3385
      %3387 = vmatmul.f32.gmra.mxu0 %v3225
      %v3388 = vpop.f32.mrf.mxu0
      %v3389 = vadd.f32 0.0, %v3388
      %3390 = vmatmul.f32.gmra.mxu0 %v3228
      %v3391 = vpop.f32.mrf.mxu0
      %v3392 = vadd.f32 0.0, %v3391
      %3393 = vmatmul.f32.gmra.mxu0 %v3231
      %v3394 = vpop.f32.mrf.mxu0
      %v3395 = vadd.f32 0.0, %v3394
      %3396 = vmatmul.f32.gmra.mxu0 %v3234
      %v3397 = vpop.f32.mrf.mxu0
      %v3398 = vadd.f32 0.0, %v3397
      %3399 = vmatmul.f32.gmra.mxu0 %v3237
      %v3400 = vpop.f32.mrf.mxu0
      %v3401 = vadd.f32 0.0, %v3400
      %3402 = vmatmul.f32.gmra.mxu0 %v3240
      %v3403 = vpop.f32.mrf.mxu0
      %v3404 = vadd.f32 0.0, %v3403
      %3405 = vmatmul.f32.gmra.mxu0 %v3243
      %v3406 = vpop.f32.mrf.mxu0
      %v3407 = vadd.f32 0.0, %v3406
      %3408 = vmatmul.f32.gmra.mxu0 %v3246
      %v3409 = vpop.f32.mrf.mxu0
      %v3410 = vadd.f32 0.0, %v3409
      %3411 = vmatmul.f32.gmra.mxu0 %v3249
      %v3412 = vpop.f32.mrf.mxu0
      %v3413 = vadd.f32 0.0, %v3412
      %3414 = vmatmul.f32.gmra.mxu0 %v3252
      %v3415 = vpop.f32.mrf.mxu0
      %v3416 = vadd.f32 0.0, %v3415
      %3417 = vmatmul.f32.gmra.mxu0 %v3255
      %v3418 = vpop.f32.mrf.mxu0
      %v3419 = vadd.f32 0.0, %v3418
      %3420 = vmatmul.f32.gmra.mxu0 %v3258
      %v3421 = vpop.f32.mrf.mxu0
      %v3422 = vadd.f32 0.0, %v3421
      %3423 = vmatmul.f32.gmra.mxu0 %v3261
      %v3424 = vpop.f32.mrf.mxu0
      %v3425 = vadd.f32 0.0, %v3424
      %3426 = vmatmul.f32.gmra.mxu0 %v3264
      %v3427 = vpop.f32.mrf.mxu0
      %v3428 = vadd.f32 0.0, %v3427
      %3429 = vmatmul.f32.gmra.mxu0 %v3267
      %v3430 = vpop.f32.mrf.mxu0
      %v3431 = vadd.f32 0.0, %v3430
      %3432 = vmatmul.f32.gmra.mxu0 %v3270
      %v3433 = vpop.f32.mrf.mxu0
      %v3434 = vadd.f32 0.0, %v3433
      %3435 = vmatmul.f32.gmra.mxu0 %v3273
      %v3436 = vpop.f32.mrf.mxu0
      %v3437 = vadd.f32 0.0, %v3436
      %3438 = vmatmul.f32.gmra.mxu0 %v3276
      %v3439 = vpop.f32.mrf.mxu0
      %v3440 = vadd.f32 0.0, %v3439
      %3441 = vmatmul.f32.gmra.mxu0 %v3279
      %v3442 = vpop.f32.mrf.mxu0
      %v3443 = vadd.f32 0.0, %v3442
      %3444 = vmatmul.f32.gmra.mxu0 %v3282
      %v3445 = vpop.f32.mrf.mxu0
      %v3446 = vadd.f32 0.0, %v3445
      %3447 = vmatmul.f32.gmra.mxu0 %v3285
      %v3448 = vpop.f32.mrf.mxu0
      %v3449 = vadd.f32 0.0, %v3448
      %3450 = vdwg.mxu0
      %v3451 = vadd.f32 %v2950, %v3308
      %v3452 = vadd.f32 %v2953, %v3311
      %v3453 = vadd.f32 %v2956, %v3314
      %v3454 = vadd.f32 %v2959, %v3317
      %v3455 = vadd.f32 %v2962, %v3320
      %v3456 = vadd.f32 %v2965, %v3323
      %v3457 = vadd.f32 %v2968, %v3326
      %v3458 = vadd.f32 %v2971, %v3329
      %v3459 = vadd.f32 %v2974, %v3332
      %v3460 = vadd.f32 %v2977, %v3335
      %v3461 = vadd.f32 %v2980, %v3338
      %v3462 = vadd.f32 %v2983, %v3341
      %v3463 = vadd.f32 %v2986, %v3344
      %v3464 = vadd.f32 %v2989, %v3347
      %v3465 = vadd.f32 %v2992, %v3350
      %v3466 = vadd.f32 %v2995, %v3353
      %v3467 = vadd.f32 %v2998, %v3356
      %v3468 = vadd.f32 %v3001, %v3359
      %v3469 = vadd.f32 %v3004, %v3362
      %v3470 = vadd.f32 %v3007, %v3365
      %v3471 = vadd.f32 %v3010, %v3368
      %v3472 = vadd.f32 %v3013, %v3371
      %v3473 = vadd.f32 %v3016, %v3374
      %v3474 = vadd.f32 %v3019, %v3377
      %v3475 = vadd.f32 %v3022, %v3380
      %v3476 = vadd.f32 %v3025, %v3383
      %v3477 = vadd.f32 %v3028, %v3386
      %v3478 = vadd.f32 %v3031, %v3389
      %v3479 = vadd.f32 %v3034, %v3392
      %v3480 = vadd.f32 %v3037, %v3395
      %v3481 = vadd.f32 %v3040, %v3398
      %v3482 = vadd.f32 %v3043, %v3401
      %v3483 = vadd.f32 %v3046, %v3404
      %v3484 = vadd.f32 %v3049, %v3407
      %v3485 = vadd.f32 %v3052, %v3410
      %v3486 = vadd.f32 %v3055, %v3413
      %v3487 = vadd.f32 %v3058, %v3416
      %v3488 = vadd.f32 %v3061, %v3419
      %v3489 = vadd.f32 %v3064, %v3422
      %v3490 = vadd.f32 %v3067, %v3425
      %v3491 = vadd.f32 %v3070, %v3428
      %v3492 = vadd.f32 %v3073, %v3431
      %v3493 = vadd.f32 %v3076, %v3434
      %v3494 = vadd.f32 %v3079, %v3437
      %v3495 = vadd.f32 %v3082, %v3440
      %v3496 = vadd.f32 %v3085, %v3443
      %v3497 = vadd.f32 %v3088, %v3446
      %v3498 = vadd.f32 %v3091, %v3449
      %v3499 = vld [vmem:[#allocation3] sm:$0xff]
      %v3500 = vld [vmem:[#allocation3 + $0x8] sm:$0xff]
      %v3501 = vld [vmem:[#allocation3 + $0x10] sm:$0xff]
      %v3502 = vld [vmem:[#allocation3 + $0x18] sm:$0xff]
      %v3503 = vld [vmem:[#allocation3 + $0x20] sm:$0xff]
      %v3504 = vld [vmem:[#allocation3 + $0x28] sm:$0xff]
      %v3505 = vld [vmem:[#allocation3 + $0x30] sm:$0xff]
      %v3506 = vld [vmem:[#allocation3 + $0x38] sm:$0xff]
      %v3507 = vld [vmem:[#allocation3 + $0x40] sm:$0xff]
      %v3508 = vld [vmem:[#allocation3 + $0x48] sm:$0xff]
      %v3509 = vld [vmem:[#allocation3 + $0x50] sm:$0xff]
      %v3510 = vld [vmem:[#allocation3 + $0x58] sm:$0xff]
      %v3511 = vld [vmem:[#allocation3 + $0x60] sm:$0xff]
      %v3512 = vld [vmem:[#allocation3 + $0x68] sm:$0xff]
      %v3513 = vld [vmem:[#allocation3 + $0x70] sm:$0xff]
      %v3514 = vld [vmem:[#allocation3 + $0x78] sm:$0xff]
      %v3515 = vld [vmem:[#allocation3 + $0x80] sm:$0xff]
      %v3516 = vld [vmem:[#allocation3 + $0x88] sm:$0xff]
      %v3517 = vld [vmem:[#allocation3 + $0x90] sm:$0xff]
      %v3518 = vld [vmem:[#allocation3 + $0x98] sm:$0xff]
      %v3519 = vld [vmem:[#allocation3 + $0xa0] sm:$0xff]
      %v3520 = vld [vmem:[#allocation3 + $0xa8] sm:$0xff]
      %v3521 = vld [vmem:[#allocation3 + $0xb0] sm:$0xff]
      %v3522 = vld [vmem:[#allocation3 + $0xb8] sm:$0xff]
      %v3523 = vld [vmem:[#allocation3 + $0xc0] sm:$0xff]
      %v3524 = vld [vmem:[#allocation3 + $0xc8] sm:$0xff]
      %v3525 = vld [vmem:[#allocation3 + $0xd0] sm:$0xff]
      %v3526 = vld [vmem:[#allocation3 + $0xd8] sm:$0xff]
      %v3527 = vld [vmem:[#allocation3 + $0xe0] sm:$0xff]
      %v3528 = vld [vmem:[#allocation3 + $0xe8] sm:$0xff]
      %v3529 = vld [vmem:[#allocation3 + $0xf0] sm:$0xff]
      %v3530 = vld [vmem:[#allocation3 + $0xf8] sm:$0xff]
      %v3531 = vld [vmem:[#allocation3 + $0x100] sm:$0xff]
      %v3532 = vld [vmem:[#allocation3 + $0x108] sm:$0xff]
      %v3533 = vld [vmem:[#allocation3 + $0x110] sm:$0xff]
      %v3534 = vld [vmem:[#allocation3 + $0x118] sm:$0xff]
      %v3535 = vld [vmem:[#allocation3 + $0x120] sm:$0xff]
      %v3536 = vld [vmem:[#allocation3 + $0x128] sm:$0xff]
      %v3537 = vld [vmem:[#allocation3 + $0x130] sm:$0xff]
      %v3538 = vld [vmem:[#allocation3 + $0x138] sm:$0xff]
      %v3539 = vld [vmem:[#allocation3 + $0x140] sm:$0xff]
      %v3540 = vld [vmem:[#allocation3 + $0x148] sm:$0xff]
      %v3541 = vld [vmem:[#allocation3 + $0x150] sm:$0xff]
      %v3542 = vld [vmem:[#allocation3 + $0x158] sm:$0xff]
      %v3543 = vld [vmem:[#allocation3 + $0x160] sm:$0xff]
      %v3544 = vld [vmem:[#allocation3 + $0x168] sm:$0xff]
      %v3545 = vld [vmem:[#allocation3 + $0x170] sm:$0xff]
      %v3546 = vld [vmem:[#allocation3 + $0x178] sm:$0xff]
      %v3547 = vadd.f32 %v3499, %v3451
      %v3548 = vadd.f32 %v3500, %v3452
      %v3549 = vadd.f32 %v3501, %v3453
      %v3550 = vadd.f32 %v3502, %v3454
      %v3551 = vadd.f32 %v3503, %v3455
      %v3552 = vadd.f32 %v3504, %v3456
      %v3553 = vadd.f32 %v3505, %v3457
      %v3554 = vadd.f32 %v3506, %v3458
      %v3555 = vadd.f32 %v3507, %v3459
      %v3556 = vadd.f32 %v3508, %v3460
      %v3557 = vadd.f32 %v3509, %v3461
      %v3558 = vadd.f32 %v3510, %v3462
      %v3559 = vadd.f32 %v3511, %v3463
      %v3560 = vadd.f32 %v3512, %v3464
      %v3561 = vadd.f32 %v3513, %v3465
      %v3562 = vadd.f32 %v3514, %v3466
      %v3563 = vadd.f32 %v3515, %v3467
      %v3564 = vadd.f32 %v3516, %v3468
      %v3565 = vadd.f32 %v3517, %v3469
      %v3566 = vadd.f32 %v3518, %v3470
      %v3567 = vadd.f32 %v3519, %v3471
      %v3568 = vadd.f32 %v3520, %v3472
      %v3569 = vadd.f32 %v3521, %v3473
      %v3570 = vadd.f32 %v3522, %v3474
      %v3571 = vadd.f32 %v3523, %v3475
      %v3572 = vadd.f32 %v3524, %v3476
      %v3573 = vadd.f32 %v3525, %v3477
      %v3574 = vadd.f32 %v3526, %v3478
      %v3575 = vadd.f32 %v3527, %v3479
      %v3576 = vadd.f32 %v3528, %v3480
      %v3577 = vadd.f32 %v3529, %v3481
      %v3578 = vadd.f32 %v3530, %v3482
      %v3579 = vadd.f32 %v3531, %v3483
      %v3580 = vadd.f32 %v3532, %v3484
      %v3581 = vadd.f32 %v3533, %v3485
      %v3582 = vadd.f32 %v3534, %v3486
      %v3583 = vadd.f32 %v3535, %v3487
      %v3584 = vadd.f32 %v3536, %v3488
      %v3585 = vadd.f32 %v3537, %v3489
      %v3586 = vadd.f32 %v3538, %v3490
      %v3587 = vadd.f32 %v3539, %v3491
      %v3588 = vadd.f32 %v3540, %v3492
      %v3589 = vadd.f32 %v3541, %v3493
      %v3590 = vadd.f32 %v3542, %v3494
      %v3591 = vadd.f32 %v3543, %v3495
      %v3592 = vadd.f32 %v3544, %v3496
      %v3593 = vadd.f32 %v3545, %v3497
      %v3594 = vadd.f32 %v3546, %v3498
      %3595 = vst.msk [vmem:[#allocation3] sm:$0xff] %vm262, %v3547
      %3596 = vst.msk [vmem:[#allocation3 + $0x8] sm:$0xff] %vm262, %v3548
      %3597 = vst.msk [vmem:[#allocation3 + $0x10] sm:$0xff] %vm262, %v3549
      %3598 = vst.msk [vmem:[#allocation3 + $0x18] sm:$0xff] %vm262, %v3550
      %3599 = vst.msk [vmem:[#allocation3 + $0x20] sm:$0xff] %vm262, %v3551
      %3600 = vst.msk [vmem:[#allocation3 + $0x28] sm:$0xff] %vm262, %v3552
      %3601 = vst.msk [vmem:[#allocation3 + $0x30] sm:$0xff] %vm262, %v3553
      %3602 = vst.msk [vmem:[#allocation3 + $0x38] sm:$0xff] %vm262, %v3554
      %3603 = vst.msk [vmem:[#allocation3 + $0x40] sm:$0xff] %vm262, %v3555
      %3604 = vst.msk [vmem:[#allocation3 + $0x48] sm:$0xff] %vm262, %v3556
      %3605 = vst.msk [vmem:[#allocation3 + $0x50] sm:$0xff] %vm262, %v3557
      %3606 = vst.msk [vmem:[#allocation3 + $0x58] sm:$0xff] %vm262, %v3558
      %3607 = vst.msk [vmem:[#allocation3 + $0x60] sm:$0xff] %vm262, %v3559
      %3608 = vst.msk [vmem:[#allocation3 + $0x68] sm:$0xff] %vm262, %v3560
      %3609 = vst.msk [vmem:[#allocation3 + $0x70] sm:$0xff] %vm262, %v3561
      %3610 = vst.msk [vmem:[#allocation3 + $0x78] sm:$0xff] %vm262, %v3562
      %3611 = vst.msk [vmem:[#allocation3 + $0x80] sm:$0xff] %vm262, %v3563
      %3612 = vst.msk [vmem:[#allocation3 + $0x88] sm:$0xff] %vm262, %v3564
      %3613 = vst.msk [vmem:[#allocation3 + $0x90] sm:$0xff] %vm262, %v3565
      %3614 = vst.msk [vmem:[#allocation3 + $0x98] sm:$0xff] %vm262, %v3566
      %3615 = vst.msk [vmem:[#allocation3 + $0xa0] sm:$0xff] %vm262, %v3567
      %3616 = vst.msk [vmem:[#allocation3 + $0xa8] sm:$0xff] %vm262, %v3568
      %3617 = vst.msk [vmem:[#allocation3 + $0xb0] sm:$0xff] %vm262, %v3569
      %3618 = vst.msk [vmem:[#allocation3 + $0xb8] sm:$0xff] %vm262, %v3570
      %3619 = vst.msk [vmem:[#allocation3 + $0xc0] sm:$0xff] %vm262, %v3571
      %3620 = vst.msk [vmem:[#allocation3 + $0xc8] sm:$0xff] %vm262, %v3572
      %3621 = vst.msk [vmem:[#allocation3 + $0xd0] sm:$0xff] %vm262, %v3573
      %3622 = vst.msk [vmem:[#allocation3 + $0xd8] sm:$0xff] %vm262, %v3574
      %3623 = vst.msk [vmem:[#allocation3 + $0xe0] sm:$0xff] %vm262, %v3575
      %3624 = vst.msk [vmem:[#allocation3 + $0xe8] sm:$0xff] %vm262, %v3576
      %3625 = vst.msk [vmem:[#allocation3 + $0xf0] sm:$0xff] %vm262, %v3577
      %3626 = vst.msk [vmem:[#allocation3 + $0xf8] sm:$0xff] %vm262, %v3578
      %3627 = vst.msk [vmem:[#allocation3 + $0x100] sm:$0xff] %vm262, %v3579
      %3628 = vst.msk [vmem:[#allocation3 + $0x108] sm:$0xff] %vm262, %v3580
      %3629 = vst.msk [vmem:[#allocation3 + $0x110] sm:$0xff] %vm262, %v3581
      %3630 = vst.msk [vmem:[#allocation3 + $0x118] sm:$0xff] %vm262, %v3582
      %3631 = vst.msk [vmem:[#allocation3 + $0x120] sm:$0xff] %vm262, %v3583
      %3632 = vst.msk [vmem:[#allocation3 + $0x128] sm:$0xff] %vm262, %v3584
      %3633 = vst.msk [vmem:[#allocation3 + $0x130] sm:$0xff] %vm262, %v3585
      %3634 = vst.msk [vmem:[#allocation3 + $0x138] sm:$0xff] %vm262, %v3586
      %3635 = vst.msk [vmem:[#allocation3 + $0x140] sm:$0xff] %vm262, %v3587
      %3636 = vst.msk [vmem:[#allocation3 + $0x148] sm:$0xff] %vm262, %v3588
      %3637 = vst.msk [vmem:[#allocation3 + $0x150] sm:$0xff] %vm262, %v3589
      %3638 = vst.msk [vmem:[#allocation3 + $0x158] sm:$0xff] %vm262, %v3590
      %3639 = vst.msk [vmem:[#allocation3 + $0x160] sm:$0xff] %vm262, %v3591
      %3640 = vst.msk [vmem:[#allocation3 + $0x168] sm:$0xff] %vm262, %v3592
      %3641 = vst.msk [vmem:[#allocation3 + $0x170] sm:$0xff] %vm262, %v3593
      %3642 = vst.msk [vmem:[#allocation3 + $0x178] sm:$0xff] %vm262, %v3594
      %v3643 = vld [vmem:[#allocation2 + $0x47] sm:$0xff]
      %v3644 = vld [vmem:[#allocation2 + $0x4f] sm:$0xff]
      %v3645 = vld [vmem:[#allocation2 + $0x57] sm:$0xff]
      %v3646 = vld [vmem:[#allocation2 + $0x5f] sm:$0xff]
      %v3647 = vld [vmem:[#allocation2 + $0x67] sm:$0xff]
      %v3648 = vld [vmem:[#allocation2 + $0x6f] sm:$0xff]
      %v3649 = vld [vmem:[#allocation2 + $0x77] sm:$0xff]
      %v3650 = vld [vmem:[#allocation2 + $0x7f] sm:$0xff]
      %v3651 = vld [vmem:[#allocation2 + $0x87] sm:$0xff]
      %v3652 = vld [vmem:[#allocation2 + $0x8f] sm:$0xff]
      %v3653 = vld [vmem:[#allocation2 + $0x97] sm:$0xff]
      %v3654 = vld [vmem:[#allocation2 + $0x9f] sm:$0xff]
      %v3655 = vld [vmem:[#allocation2 + $0xa7] sm:$0xff]
      %v3656 = vld [vmem:[#allocation2 + $0xaf] sm:$0xff]
      %v3657 = vld [vmem:[#allocation2 + $0xb7] sm:$0xff]
      %v3658 = vld [vmem:[#allocation2 + $0xbf] sm:$0xff]
      %v3659 = vld [vmem:[#allocation2 + $0xc7] sm:$0xff]
      %v3660 = vld [vmem:[#allocation2 + $0xcf] sm:$0xff]
      %v3661 = vld [vmem:[#allocation2 + $0xd7] sm:$0xff]
      %v3662 = vld [vmem:[#allocation2 + $0xdf] sm:$0xff]
      %v3663 = vld [vmem:[#allocation2 + $0xe7] sm:$0xff]
      %v3664 = vld [vmem:[#allocation2 + $0xef] sm:$0xff]
      %v3665 = vld [vmem:[#allocation2 + $0xf7] sm:$0xff]
      %v3666 = vld [vmem:[#allocation2 + $0xff] sm:$0xff]
      %v3667 = vld [vmem:[#allocation2 + $0x107] sm:$0xff]
      %v3668 = vld [vmem:[#allocation2 + $0x10f] sm:$0xff]
      %v3669 = vld [vmem:[#allocation2 + $0x117] sm:$0xff]
      %v3670 = vld [vmem:[#allocation2 + $0x11f] sm:$0xff]
      %v3671 = vld [vmem:[#allocation2 + $0x127] sm:$0xff]
      %v3672 = vld [vmem:[#allocation2 + $0x12f] sm:$0xff]
      %v3673 = vld [vmem:[#allocation2 + $0x137] sm:$0xff]
      %v3674 = vld [vmem:[#allocation2 + $0x13f] sm:$0xff]
      %v3675 = vld [vmem:[#allocation2 + $0x147] sm:$0xff]
      %v3676 = vld [vmem:[#allocation2 + $0x14f] sm:$0xff]
      %v3677 = vld [vmem:[#allocation2 + $0x157] sm:$0xff]
      %v3678 = vld [vmem:[#allocation2 + $0x15f] sm:$0xff]
      %v3679 = vld [vmem:[#allocation2 + $0x167] sm:$0xff]
      %v3680 = vld [vmem:[#allocation2 + $0x16f] sm:$0xff]
      %v3681 = vld [vmem:[#allocation2 + $0x177] sm:$0xff]
      %v3682 = vld [vmem:[#allocation2 + $0x17f] sm:$0xff]
      %v3683 = vld [vmem:[#allocation2 + $0x187] sm:$0xff]
      %v3684 = vld [vmem:[#allocation2 + $0x18f] sm:$0xff]
      %v3685 = vld [vmem:[#allocation2 + $0x197] sm:$0xff]
      %v3686 = vld [vmem:[#allocation2 + $0x19f] sm:$0xff]
      %v3687 = vld [vmem:[#allocation2 + $0x1a7] sm:$0xff]
      %v3688 = vld [vmem:[#allocation2 + $0x1af] sm:$0xff]
      %v3689 = vld [vmem:[#allocation2 + $0x1b7] sm:$0xff]
      %v3690 = vld [vmem:[#allocation2 + $0x1bf] sm:$0xff]
      %s3691 = scalar_lea.vmem %s3, 24
      %v3692 = vld [vmem:[%s3691] sm:$0xf]
      %v3693 = vld [vmem:[#allocation2 + $0x48] sm:$0xff]
      %v3694 = vld [vmem:[#allocation2 + $0x50] sm:$0xff]
      %v3695 = vld [vmem:[#allocation2 + $0x58] sm:$0xff]
      %v3696 = vld [vmem:[#allocation2 + $0x60] sm:$0xff]
      %v3697 = vld [vmem:[#allocation2 + $0x68] sm:$0xff]
      %v3698 = vld [vmem:[#allocation2 + $0x70] sm:$0xff]
      %v3699 = vld [vmem:[#allocation2 + $0x78] sm:$0xff]
      %v3700 = vld [vmem:[#allocation2 + $0x80] sm:$0xff]
      %v3701 = vld [vmem:[#allocation2 + $0x88] sm:$0xff]
      %v3702 = vld [vmem:[#allocation2 + $0x90] sm:$0xff]
      %v3703 = vld [vmem:[#allocation2 + $0x98] sm:$0xff]
      %v3704 = vld [vmem:[#allocation2 + $0xa0] sm:$0xff]
      %v3705 = vld [vmem:[#allocation2 + $0xa8] sm:$0xff]
      %v3706 = vld [vmem:[#allocation2 + $0xb0] sm:$0xff]
      %v3707 = vld [vmem:[#allocation2 + $0xb8] sm:$0xff]
      %v3708 = vld [vmem:[#allocation2 + $0xc0] sm:$0xff]
      %v3709 = vld [vmem:[#allocation2 + $0xc8] sm:$0xff]
      %v3710 = vld [vmem:[#allocation2 + $0xd0] sm:$0xff]
      %v3711 = vld [vmem:[#allocation2 + $0xd8] sm:$0xff]
      %v3712 = vld [vmem:[#allocation2 + $0xe0] sm:$0xff]
      %v3713 = vld [vmem:[#allocation2 + $0xe8] sm:$0xff]
      %v3714 = vld [vmem:[#allocation2 + $0xf0] sm:$0xff]
      %v3715 = vld [vmem:[#allocation2 + $0xf8] sm:$0xff]
      %v3716 = vld [vmem:[#allocation2 + $0x100] sm:$0xff]
      %v3717 = vld [vmem:[#allocation2 + $0x108] sm:$0xff]
      %v3718 = vld [vmem:[#allocation2 + $0x110] sm:$0xff]
      %v3719 = vld [vmem:[#allocation2 + $0x118] sm:$0xff]
      %v3720 = vld [vmem:[#allocation2 + $0x120] sm:$0xff]
      %v3721 = vld [vmem:[#allocation2 + $0x128] sm:$0xff]
      %v3722 = vld [vmem:[#allocation2 + $0x130] sm:$0xff]
      %v3723 = vld [vmem:[#allocation2 + $0x138] sm:$0xff]
      %v3724 = vld [vmem:[#allocation2 + $0x140] sm:$0xff]
      %v3725 = vld [vmem:[#allocation2 + $0x148] sm:$0xff]
      %v3726 = vld [vmem:[#allocation2 + $0x150] sm:$0xff]
      %v3727 = vld [vmem:[#allocation2 + $0x158] sm:$0xff]
      %v3728 = vld [vmem:[#allocation2 + $0x160] sm:$0xff]
      %v3729 = vld [vmem:[#allocation2 + $0x168] sm:$0xff]
      %v3730 = vld [vmem:[#allocation2 + $0x170] sm:$0xff]
      %v3731 = vld [vmem:[#allocation2 + $0x178] sm:$0xff]
      %v3732 = vld [vmem:[#allocation2 + $0x180] sm:$0xff]
      %v3733 = vld [vmem:[#allocation2 + $0x188] sm:$0xff]
      %v3734 = vld [vmem:[#allocation2 + $0x190] sm:$0xff]
      %v3735 = vld [vmem:[#allocation2 + $0x198] sm:$0xff]
      %v3736 = vld [vmem:[#allocation2 + $0x1a0] sm:$0xff]
      %v3737 = vld [vmem:[#allocation2 + $0x1a8] sm:$0xff]
      %v3738 = vld [vmem:[#allocation2 + $0x1b0] sm:$0xff]
      %v3739 = vld [vmem:[#allocation2 + $0x1b8] sm:$0xff]
      %v3740 = vld [vmem:[#allocation2 + $0x1c0] sm:$0xff]
      %s3741 = scalar_lea.vmem %s3, 28
      %v3742 = vld [vmem:[%s3741] sm:$0xf]
      %v3744 = vsel %vm262, %v3693, 0
      %v3747 = vsel %vm262, %v3694, 0
      %v3750 = vsel %vm262, %v3695, 0
      %v3753 = vsel %vm262, %v3696, 0
      %v3756 = vsel %vm262, %v3697, 0
      %v3759 = vsel %vm262, %v3698, 0
      %v3762 = vsel %vm262, %v3699, 0
      %v3765 = vsel %vm262, %v3700, 0
      %v3768 = vsel %vm262, %v3701, 0
      %v3771 = vsel %vm262, %v3702, 0
      %v3774 = vsel %vm262, %v3703, 0
      %v3777 = vsel %vm262, %v3704, 0
      %v3780 = vsel %vm262, %v3705, 0
      %v3783 = vsel %vm262, %v3706, 0
      %v3786 = vsel %vm262, %v3707, 0
      %v3789 = vsel %vm262, %v3708, 0
      %v3792 = vsel %vm262, %v3709, 0
      %v3795 = vsel %vm262, %v3710, 0
      %v3798 = vsel %vm262, %v3711, 0
      %v3801 = vsel %vm262, %v3712, 0
      %v3804 = vsel %vm262, %v3713, 0
      %v3807 = vsel %vm262, %v3714, 0
      %v3810 = vsel %vm262, %v3715, 0
      %v3813 = vsel %vm262, %v3716, 0
      %v3816 = vsel %vm262, %v3717, 0
      %v3819 = vsel %vm262, %v3718, 0
      %v3822 = vsel %vm262, %v3719, 0
      %v3825 = vsel %vm262, %v3720, 0
      %v3828 = vsel %vm262, %v3721, 0
      %v3831 = vsel %vm262, %v3722, 0
      %v3834 = vsel %vm262, %v3723, 0
      %v3837 = vsel %vm262, %v3724, 0
      %v3840 = vsel %vm262, %v3725, 0
      %v3843 = vsel %vm262, %v3726, 0
      %v3846 = vsel %vm262, %v3727, 0
      %v3849 = vsel %vm262, %v3728, 0
      %v3852 = vsel %vm262, %v3729, 0
      %v3855 = vsel %vm262, %v3730, 0
      %v3858 = vsel %vm262, %v3731, 0
      %v3861 = vsel %vm262, %v3732, 0
      %v3864 = vsel %vm262, %v3733, 0
      %v3867 = vsel %vm262, %v3734, 0
      %v3870 = vsel %vm262, %v3735, 0
      %v3873 = vsel %vm262, %v3736, 0
      %v3876 = vsel %vm262, %v3737, 0
      %v3879 = vsel %vm262, %v3738, 0
      %v3882 = vsel %vm262, %v3739, 0
      %v3885 = vsel %vm262, %v3740, 0
      %v3888 = vsel %vm359, %v3742, 0
      %3890 = vmatpush.msra.mxu0 0.0
      %3891 = vmatpush.msra.mxu0 0.0
      %3892 = vmatpush.msra.mxu0 0.0
      %3893 = vmatpush.msra.mxu0 0.0
      %3894 = vmatpush.msra.mxu0 0.0
      %3895 = vmatpush.msra.mxu0 0.0
      %3896 = vmatpush.msra.mxu0 0.0
      %3897 = vmatpush.msra.mxu0 0.0
      %3898 = vmatpush.msra.mxu0 0.0
      %3899 = vmatpush.msra.mxu0 0.0
      %3900 = vmatpush.msra.mxu0 0.0
      %3901 = vmatpush.msra.mxu0 0.0
      %3902 = vmatpush.msra.mxu0 0.0
      %3903 = vmatpush.msra.mxu0 0.0
      %3904 = vmatpush.msra.mxu0 0.0
      %3905 = vmatpush.msra.mxu0 %v3888
      %3906 = vmatmul.f32.gmra.mxu0 %v3744
      %v3907 = vpop.f32.mrf.mxu0
      %v3908 = vadd.f32 0.0, %v3907
      %3909 = vmatmul.f32.gmra.mxu0 %v3747
      %v3910 = vpop.f32.mrf.mxu0
      %v3911 = vadd.f32 0.0, %v3910
      %3912 = vmatmul.f32.gmra.mxu0 %v3750
      %v3913 = vpop.f32.mrf.mxu0
      %v3914 = vadd.f32 0.0, %v3913
      %3915 = vmatmul.f32.gmra.mxu0 %v3753
      %v3916 = vpop.f32.mrf.mxu0
      %v3917 = vadd.f32 0.0, %v3916
      %3918 = vmatmul.f32.gmra.mxu0 %v3756
      %v3919 = vpop.f32.mrf.mxu0
      %v3920 = vadd.f32 0.0, %v3919
      %3921 = vmatmul.f32.gmra.mxu0 %v3759
      %v3922 = vpop.f32.mrf.mxu0
      %v3923 = vadd.f32 0.0, %v3922
      %3924 = vmatmul.f32.gmra.mxu0 %v3762
      %v3925 = vpop.f32.mrf.mxu0
      %v3926 = vadd.f32 0.0, %v3925
      %3927 = vmatmul.f32.gmra.mxu0 %v3765
      %v3928 = vpop.f32.mrf.mxu0
      %v3929 = vadd.f32 0.0, %v3928
      %3930 = vmatmul.f32.gmra.mxu0 %v3768
      %v3931 = vpop.f32.mrf.mxu0
      %v3932 = vadd.f32 0.0, %v3931
      %3933 = vmatmul.f32.gmra.mxu0 %v3771
      %v3934 = vpop.f32.mrf.mxu0
      %v3935 = vadd.f32 0.0, %v3934
      %3936 = vmatmul.f32.gmra.mxu0 %v3774
      %v3937 = vpop.f32.mrf.mxu0
      %v3938 = vadd.f32 0.0, %v3937
      %3939 = vmatmul.f32.gmra.mxu0 %v3777
      %v3940 = vpop.f32.mrf.mxu0
      %v3941 = vadd.f32 0.0, %v3940
      %3942 = vmatmul.f32.gmra.mxu0 %v3780
      %v3943 = vpop.f32.mrf.mxu0
      %v3944 = vadd.f32 0.0, %v3943
      %3945 = vmatmul.f32.gmra.mxu0 %v3783
      %v3946 = vpop.f32.mrf.mxu0
      %v3947 = vadd.f32 0.0, %v3946
      %3948 = vmatmul.f32.gmra.mxu0 %v3786
      %v3949 = vpop.f32.mrf.mxu0
      %v3950 = vadd.f32 0.0, %v3949
      %3951 = vmatmul.f32.gmra.mxu0 %v3789
      %v3952 = vpop.f32.mrf.mxu0
      %v3953 = vadd.f32 0.0, %v3952
      %3954 = vmatmul.f32.gmra.mxu0 %v3792
      %v3955 = vpop.f32.mrf.mxu0
      %v3956 = vadd.f32 0.0, %v3955
      %3957 = vmatmul.f32.gmra.mxu0 %v3795
      %v3958 = vpop.f32.mrf.mxu0
      %v3959 = vadd.f32 0.0, %v3958
      %3960 = vmatmul.f32.gmra.mxu0 %v3798
      %v3961 = vpop.f32.mrf.mxu0
      %v3962 = vadd.f32 0.0, %v3961
      %3963 = vmatmul.f32.gmra.mxu0 %v3801
      %v3964 = vpop.f32.mrf.mxu0
      %v3965 = vadd.f32 0.0, %v3964
      %3966 = vmatmul.f32.gmra.mxu0 %v3804
      %v3967 = vpop.f32.mrf.mxu0
      %v3968 = vadd.f32 0.0, %v3967
      %3969 = vmatmul.f32.gmra.mxu0 %v3807
      %v3970 = vpop.f32.mrf.mxu0
      %v3971 = vadd.f32 0.0, %v3970
      %3972 = vmatmul.f32.gmra.mxu0 %v3810
      %v3973 = vpop.f32.mrf.mxu0
      %v3974 = vadd.f32 0.0, %v3973
      %3975 = vmatmul.f32.gmra.mxu0 %v3813
      %v3976 = vpop.f32.mrf.mxu0
      %v3977 = vadd.f32 0.0, %v3976
      %3978 = vmatmul.f32.gmra.mxu0 %v3816
      %v3979 = vpop.f32.mrf.mxu0
      %v3980 = vadd.f32 0.0, %v3979
      %3981 = vmatmul.f32.gmra.mxu0 %v3819
      %v3982 = vpop.f32.mrf.mxu0
      %v3983 = vadd.f32 0.0, %v3982
      %3984 = vmatmul.f32.gmra.mxu0 %v3822
      %v3985 = vpop.f32.mrf.mxu0
      %v3986 = vadd.f32 0.0, %v3985
      %3987 = vmatmul.f32.gmra.mxu0 %v3825
      %v3988 = vpop.f32.mrf.mxu0
      %v3989 = vadd.f32 0.0, %v3988
      %3990 = vmatmul.f32.gmra.mxu0 %v3828
      %v3991 = vpop.f32.mrf.mxu0
      %v3992 = vadd.f32 0.0, %v3991
      %3993 = vmatmul.f32.gmra.mxu0 %v3831
      %v3994 = vpop.f32.mrf.mxu0
      %v3995 = vadd.f32 0.0, %v3994
      %3996 = vmatmul.f32.gmra.mxu0 %v3834
      %v3997 = vpop.f32.mrf.mxu0
      %v3998 = vadd.f32 0.0, %v3997
      %3999 = vmatmul.f32.gmra.mxu0 %v3837
      %v4000 = vpop.f32.mrf.mxu0
      %v4001 = vadd.f32 0.0, %v4000
      %4002 = vmatmul.f32.gmra.mxu0 %v3840
      %v4003 = vpop.f32.mrf.mxu0
      %v4004 = vadd.f32 0.0, %v4003
      %4005 = vmatmul.f32.gmra.mxu0 %v3843
      %v4006 = vpop.f32.mrf.mxu0
      %v4007 = vadd.f32 0.0, %v4006
      %4008 = vmatmul.f32.gmra.mxu0 %v3846
      %v4009 = vpop.f32.mrf.mxu0
      %v4010 = vadd.f32 0.0, %v4009
      %4011 = vmatmul.f32.gmra.mxu0 %v3849
      %v4012 = vpop.f32.mrf.mxu0
      %v4013 = vadd.f32 0.0, %v4012
      %4014 = vmatmul.f32.gmra.mxu0 %v3852
      %v4015 = vpop.f32.mrf.mxu0
      %v4016 = vadd.f32 0.0, %v4015
      %4017 = vmatmul.f32.gmra.mxu0 %v3855
      %v4018 = vpop.f32.mrf.mxu0
      %v4019 = vadd.f32 0.0, %v4018
      %4020 = vmatmul.f32.gmra.mxu0 %v3858
      %v4021 = vpop.f32.mrf.mxu0
      %v4022 = vadd.f32 0.0, %v4021
      %4023 = vmatmul.f32.gmra.mxu0 %v3861
      %v4024 = vpop.f32.mrf.mxu0
      %v4025 = vadd.f32 0.0, %v4024
      %4026 = vmatmul.f32.gmra.mxu0 %v3864
      %v4027 = vpop.f32.mrf.mxu0
      %v4028 = vadd.f32 0.0, %v4027
      %4029 = vmatmul.f32.gmra.mxu0 %v3867
      %v4030 = vpop.f32.mrf.mxu0
      %v4031 = vadd.f32 0.0, %v4030
      %4032 = vmatmul.f32.gmra.mxu0 %v3870
      %v4033 = vpop.f32.mrf.mxu0
      %v4034 = vadd.f32 0.0, %v4033
      %4035 = vmatmul.f32.gmra.mxu0 %v3873
      %v4036 = vpop.f32.mrf.mxu0
      %v4037 = vadd.f32 0.0, %v4036
      %4038 = vmatmul.f32.gmra.mxu0 %v3876
      %v4039 = vpop.f32.mrf.mxu0
      %v4040 = vadd.f32 0.0, %v4039
      %4041 = vmatmul.f32.gmra.mxu0 %v3879
      %v4042 = vpop.f32.mrf.mxu0
      %v4043 = vadd.f32 0.0, %v4042
      %4044 = vmatmul.f32.gmra.mxu0 %v3882
      %v4045 = vpop.f32.mrf.mxu0
      %v4046 = vadd.f32 0.0, %v4045
      %4047 = vmatmul.f32.gmra.mxu0 %v3885
      %v4048 = vpop.f32.mrf.mxu0
      %v4049 = vadd.f32 0.0, %v4048
      %4050 = vdwg.mxu0
      %v4052 = vsel %vm262, %v3643, 0
      %v4055 = vsel %vm262, %v3644, 0
      %v4058 = vsel %vm262, %v3645, 0
      %v4061 = vsel %vm262, %v3646, 0
      %v4064 = vsel %vm262, %v3647, 0
      %v4067 = vsel %vm262, %v3648, 0
      %v4070 = vsel %vm262, %v3649, 0
      %v4073 = vsel %vm262, %v3650, 0
      %v4076 = vsel %vm262, %v3651, 0
      %v4079 = vsel %vm262, %v3652, 0
      %v4082 = vsel %vm262, %v3653, 0
      %v4085 = vsel %vm262, %v3654, 0
      %v4088 = vsel %vm262, %v3655, 0
      %v4091 = vsel %vm262, %v3656, 0
      %v4094 = vsel %vm262, %v3657, 0
      %v4097 = vsel %vm262, %v3658, 0
      %v4100 = vsel %vm262, %v3659, 0
      %v4103 = vsel %vm262, %v3660, 0
      %v4106 = vsel %vm262, %v3661, 0
      %v4109 = vsel %vm262, %v3662, 0
      %v4112 = vsel %vm262, %v3663, 0
      %v4115 = vsel %vm262, %v3664, 0
      %v4118 = vsel %vm262, %v3665, 0
      %v4121 = vsel %vm262, %v3666, 0
      %v4124 = vsel %vm262, %v3667, 0
      %v4127 = vsel %vm262, %v3668, 0
      %v4130 = vsel %vm262, %v3669, 0
      %v4133 = vsel %vm262, %v3670, 0
      %v4136 = vsel %vm262, %v3671, 0
      %v4139 = vsel %vm262, %v3672, 0
      %v4142 = vsel %vm262, %v3673, 0
      %v4145 = vsel %vm262, %v3674, 0
      %v4148 = vsel %vm262, %v3675, 0
      %v4151 = vsel %vm262, %v3676, 0
      %v4154 = vsel %vm262, %v3677, 0
      %v4157 = vsel %vm262, %v3678, 0
      %v4160 = vsel %vm262, %v3679, 0
      %v4163 = vsel %vm262, %v3680, 0
      %v4166 = vsel %vm262, %v3681, 0
      %v4169 = vsel %vm262, %v3682, 0
      %v4172 = vsel %vm262, %v3683, 0
      %v4175 = vsel %vm262, %v3684, 0
      %v4178 = vsel %vm262, %v3685, 0
      %v4181 = vsel %vm262, %v3686, 0
      %v4184 = vsel %vm262, %v3687, 0
      %v4187 = vsel %vm262, %v3688, 0
      %v4190 = vsel %vm262, %v3689, 0
      %v4193 = vsel %vm262, %v3690, 0
      %v4196 = vsel %vm359, %v3692, 0
      %4198 = vmatpush.msra.mxu0 0.0
      %4199 = vmatpush.msra.mxu0 0.0
      %4200 = vmatpush.msra.mxu0 0.0
      %4201 = vmatpush.msra.mxu0 0.0
      %4202 = vmatpush.msra.mxu0 0.0
      %4203 = vmatpush.msra.mxu0 0.0
      %4204 = vmatpush.msra.mxu0 0.0
      %4205 = vmatpush.msra.mxu0 0.0
      %4206 = vmatpush.msra.mxu0 0.0
      %4207 = vmatpush.msra.mxu0 0.0
      %4208 = vmatpush.msra.mxu0 0.0
      %4209 = vmatpush.msra.mxu0 0.0
      %4210 = vmatpush.msra.mxu0 0.0
      %4211 = vmatpush.msra.mxu0 0.0
      %4212 = vmatpush.msra.mxu0 0.0
      %4213 = vmatpush.msra.mxu0 %v4196
      %4214 = vmatmul.f32.gmra.mxu0 %v4052
      %v4215 = vpop.f32.mrf.mxu0
      %v4216 = vadd.f32 %v3908, %v4215
      %4217 = vmatmul.f32.gmra.mxu0 %v4055
      %v4218 = vpop.f32.mrf.mxu0
      %v4219 = vadd.f32 %v3911, %v4218
      %4220 = vmatmul.f32.gmra.mxu0 %v4058
      %v4221 = vpop.f32.mrf.mxu0
      %v4222 = vadd.f32 %v3914, %v4221
      %4223 = vmatmul.f32.gmra.mxu0 %v4061
      %v4224 = vpop.f32.mrf.mxu0
      %v4225 = vadd.f32 %v3917, %v4224
      %4226 = vmatmul.f32.gmra.mxu0 %v4064
      %v4227 = vpop.f32.mrf.mxu0
      %v4228 = vadd.f32 %v3920, %v4227
      %4229 = vmatmul.f32.gmra.mxu0 %v4067
      %v4230 = vpop.f32.mrf.mxu0
      %v4231 = vadd.f32 %v3923, %v4230
      %4232 = vmatmul.f32.gmra.mxu0 %v4070
      %v4233 = vpop.f32.mrf.mxu0
      %v4234 = vadd.f32 %v3926, %v4233
      %4235 = vmatmul.f32.gmra.mxu0 %v4073
      %v4236 = vpop.f32.mrf.mxu0
      %v4237 = vadd.f32 %v3929, %v4236
      %4238 = vmatmul.f32.gmra.mxu0 %v4076
      %v4239 = vpop.f32.mrf.mxu0
      %v4240 = vadd.f32 %v3932, %v4239
      %4241 = vmatmul.f32.gmra.mxu0 %v4079
      %v4242 = vpop.f32.mrf.mxu0
      %v4243 = vadd.f32 %v3935, %v4242
      %4244 = vmatmul.f32.gmra.mxu0 %v4082
      %v4245 = vpop.f32.mrf.mxu0
      %v4246 = vadd.f32 %v3938, %v4245
      %4247 = vmatmul.f32.gmra.mxu0 %v4085
      %v4248 = vpop.f32.mrf.mxu0
      %v4249 = vadd.f32 %v3941, %v4248
      %4250 = vmatmul.f32.gmra.mxu0 %v4088
      %v4251 = vpop.f32.mrf.mxu0
      %v4252 = vadd.f32 %v3944, %v4251
      %4253 = vmatmul.f32.gmra.mxu0 %v4091
      %v4254 = vpop.f32.mrf.mxu0
      %v4255 = vadd.f32 %v3947, %v4254
      %4256 = vmatmul.f32.gmra.mxu0 %v4094
      %v4257 = vpop.f32.mrf.mxu0
      %v4258 = vadd.f32 %v3950, %v4257
      %4259 = vmatmul.f32.gmra.mxu0 %v4097
      %v4260 = vpop.f32.mrf.mxu0
      %v4261 = vadd.f32 %v3953, %v4260
      %4262 = vmatmul.f32.gmra.mxu0 %v4100
      %v4263 = vpop.f32.mrf.mxu0
      %v4264 = vadd.f32 %v3956, %v4263
      %4265 = vmatmul.f32.gmra.mxu0 %v4103
      %v4266 = vpop.f32.mrf.mxu0
      %v4267 = vadd.f32 %v3959, %v4266
      %4268 = vmatmul.f32.gmra.mxu0 %v4106
      %v4269 = vpop.f32.mrf.mxu0
      %v4270 = vadd.f32 %v3962, %v4269
      %4271 = vmatmul.f32.gmra.mxu0 %v4109
      %v4272 = vpop.f32.mrf.mxu0
      %v4273 = vadd.f32 %v3965, %v4272
      %4274 = vmatmul.f32.gmra.mxu0 %v4112
      %v4275 = vpop.f32.mrf.mxu0
      %v4276 = vadd.f32 %v3968, %v4275
      %4277 = vmatmul.f32.gmra.mxu0 %v4115
      %v4278 = vpop.f32.mrf.mxu0
      %v4279 = vadd.f32 %v3971, %v4278
      %4280 = vmatmul.f32.gmra.mxu0 %v4118
      %v4281 = vpop.f32.mrf.mxu0
      %v4282 = vadd.f32 %v3974, %v4281
      %4283 = vmatmul.f32.gmra.mxu0 %v4121
      %v4284 = vpop.f32.mrf.mxu0
      %v4285 = vadd.f32 %v3977, %v4284
      %4286 = vmatmul.f32.gmra.mxu0 %v4124
      %v4287 = vpop.f32.mrf.mxu0
      %v4288 = vadd.f32 %v3980, %v4287
      %4289 = vmatmul.f32.gmra.mxu0 %v4127
      %v4290 = vpop.f32.mrf.mxu0
      %v4291 = vadd.f32 %v3983, %v4290
      %4292 = vmatmul.f32.gmra.mxu0 %v4130
      %v4293 = vpop.f32.mrf.mxu0
      %v4294 = vadd.f32 %v3986, %v4293
      %4295 = vmatmul.f32.gmra.mxu0 %v4133
      %v4296 = vpop.f32.mrf.mxu0
      %v4297 = vadd.f32 %v3989, %v4296
      %4298 = vmatmul.f32.gmra.mxu0 %v4136
      %v4299 = vpop.f32.mrf.mxu0
      %v4300 = vadd.f32 %v3992, %v4299
      %4301 = vmatmul.f32.gmra.mxu0 %v4139
      %v4302 = vpop.f32.mrf.mxu0
      %v4303 = vadd.f32 %v3995, %v4302
      %4304 = vmatmul.f32.gmra.mxu0 %v4142
      %v4305 = vpop.f32.mrf.mxu0
      %v4306 = vadd.f32 %v3998, %v4305
      %4307 = vmatmul.f32.gmra.mxu0 %v4145
      %v4308 = vpop.f32.mrf.mxu0
      %v4309 = vadd.f32 %v4001, %v4308
      %4310 = vmatmul.f32.gmra.mxu0 %v4148
      %v4311 = vpop.f32.mrf.mxu0
      %v4312 = vadd.f32 %v4004, %v4311
      %4313 = vmatmul.f32.gmra.mxu0 %v4151
      %v4314 = vpop.f32.mrf.mxu0
      %v4315 = vadd.f32 %v4007, %v4314
      %4316 = vmatmul.f32.gmra.mxu0 %v4154
      %v4317 = vpop.f32.mrf.mxu0
      %v4318 = vadd.f32 %v4010, %v4317
      %4319 = vmatmul.f32.gmra.mxu0 %v4157
      %v4320 = vpop.f32.mrf.mxu0
      %v4321 = vadd.f32 %v4013, %v4320
      %4322 = vmatmul.f32.gmra.mxu0 %v4160
      %v4323 = vpop.f32.mrf.mxu0
      %v4324 = vadd.f32 %v4016, %v4323
      %4325 = vmatmul.f32.gmra.mxu0 %v4163
      %v4326 = vpop.f32.mrf.mxu0
      %v4327 = vadd.f32 %v4019, %v4326
      %4328 = vmatmul.f32.gmra.mxu0 %v4166
      %v4329 = vpop.f32.mrf.mxu0
      %v4330 = vadd.f32 %v4022, %v4329
      %4331 = vmatmul.f32.gmra.mxu0 %v4169
      %v4332 = vpop.f32.mrf.mxu0
      %v4333 = vadd.f32 %v4025, %v4332
      %4334 = vmatmul.f32.gmra.mxu0 %v4172
      %v4335 = vpop.f32.mrf.mxu0
      %v4336 = vadd.f32 %v4028, %v4335
      %4337 = vmatmul.f32.gmra.mxu0 %v4175
      %v4338 = vpop.f32.mrf.mxu0
      %v4339 = vadd.f32 %v4031, %v4338
      %4340 = vmatmul.f32.gmra.mxu0 %v4178
      %v4341 = vpop.f32.mrf.mxu0
      %v4342 = vadd.f32 %v4034, %v4341
      %4343 = vmatmul.f32.gmra.mxu0 %v4181
      %v4344 = vpop.f32.mrf.mxu0
      %v4345 = vadd.f32 %v4037, %v4344
      %4346 = vmatmul.f32.gmra.mxu0 %v4184
      %v4347 = vpop.f32.mrf.mxu0
      %v4348 = vadd.f32 %v4040, %v4347
      %4349 = vmatmul.f32.gmra.mxu0 %v4187
      %v4350 = vpop.f32.mrf.mxu0
      %v4351 = vadd.f32 %v4043, %v4350
      %4352 = vmatmul.f32.gmra.mxu0 %v4190
      %v4353 = vpop.f32.mrf.mxu0
      %v4354 = vadd.f32 %v4046, %v4353
      %4355 = vmatmul.f32.gmra.mxu0 %v4193
      %v4356 = vpop.f32.mrf.mxu0
      %v4357 = vadd.f32 %v4049, %v4356
      %4358 = vdwg.mxu0
      %v4359 = vld [vmem:[#allocation2 + $0x49] sm:$0xff]
      %v4360 = vld [vmem:[#allocation2 + $0x51] sm:$0xff]
      %v4361 = vld [vmem:[#allocation2 + $0x59] sm:$0xff]
      %v4362 = vld [vmem:[#allocation2 + $0x61] sm:$0xff]
      %v4363 = vld [vmem:[#allocation2 + $0x69] sm:$0xff]
      %v4364 = vld [vmem:[#allocation2 + $0x71] sm:$0xff]
      %v4365 = vld [vmem:[#allocation2 + $0x79] sm:$0xff]
      %v4366 = vld [vmem:[#allocation2 + $0x81] sm:$0xff]
      %v4367 = vld [vmem:[#allocation2 + $0x89] sm:$0xff]
      %v4368 = vld [vmem:[#allocation2 + $0x91] sm:$0xff]
      %v4369 = vld [vmem:[#allocation2 + $0x99] sm:$0xff]
      %v4370 = vld [vmem:[#allocation2 + $0xa1] sm:$0xff]
      %v4371 = vld [vmem:[#allocation2 + $0xa9] sm:$0xff]
      %v4372 = vld [vmem:[#allocation2 + $0xb1] sm:$0xff]
      %v4373 = vld [vmem:[#allocation2 + $0xb9] sm:$0xff]
      %v4374 = vld [vmem:[#allocation2 + $0xc1] sm:$0xff]
      %v4375 = vld [vmem:[#allocation2 + $0xc9] sm:$0xff]
      %v4376 = vld [vmem:[#allocation2 + $0xd1] sm:$0xff]
      %v4377 = vld [vmem:[#allocation2 + $0xd9] sm:$0xff]
      %v4378 = vld [vmem:[#allocation2 + $0xe1] sm:$0xff]
      %v4379 = vld [vmem:[#allocation2 + $0xe9] sm:$0xff]
      %v4380 = vld [vmem:[#allocation2 + $0xf1] sm:$0xff]
      %v4381 = vld [vmem:[#allocation2 + $0xf9] sm:$0xff]
      %v4382 = vld [vmem:[#allocation2 + $0x101] sm:$0xff]
      %v4383 = vld [vmem:[#allocation2 + $0x109] sm:$0xff]
      %v4384 = vld [vmem:[#allocation2 + $0x111] sm:$0xff]
      %v4385 = vld [vmem:[#allocation2 + $0x119] sm:$0xff]
      %v4386 = vld [vmem:[#allocation2 + $0x121] sm:$0xff]
      %v4387 = vld [vmem:[#allocation2 + $0x129] sm:$0xff]
      %v4388 = vld [vmem:[#allocation2 + $0x131] sm:$0xff]
      %v4389 = vld [vmem:[#allocation2 + $0x139] sm:$0xff]
      %v4390 = vld [vmem:[#allocation2 + $0x141] sm:$0xff]
      %v4391 = vld [vmem:[#allocation2 + $0x149] sm:$0xff]
      %v4392 = vld [vmem:[#allocation2 + $0x151] sm:$0xff]
      %v4393 = vld [vmem:[#allocation2 + $0x159] sm:$0xff]
      %v4394 = vld [vmem:[#allocation2 + $0x161] sm:$0xff]
      %v4395 = vld [vmem:[#allocation2 + $0x169] sm:$0xff]
      %v4396 = vld [vmem:[#allocation2 + $0x171] sm:$0xff]
      %v4397 = vld [vmem:[#allocation2 + $0x179] sm:$0xff]
      %v4398 = vld [vmem:[#allocation2 + $0x181] sm:$0xff]
      %v4399 = vld [vmem:[#allocation2 + $0x189] sm:$0xff]
      %v4400 = vld [vmem:[#allocation2 + $0x191] sm:$0xff]
      %v4401 = vld [vmem:[#allocation2 + $0x199] sm:$0xff]
      %v4402 = vld [vmem:[#allocation2 + $0x1a1] sm:$0xff]
      %v4403 = vld [vmem:[#allocation2 + $0x1a9] sm:$0xff]
      %v4404 = vld [vmem:[#allocation2 + $0x1b1] sm:$0xff]
      %v4405 = vld [vmem:[#allocation2 + $0x1b9] sm:$0xff]
      %v4406 = vld [vmem:[#allocation2 + $0x1c1] sm:$0xff]
      %s4407 = scalar_lea.vmem %s3, 32
      %v4408 = vld [vmem:[%s4407] sm:$0xf]
      %v4410 = vsel %vm262, %v4359, 0
      %v4413 = vsel %vm262, %v4360, 0
      %v4416 = vsel %vm262, %v4361, 0
      %v4419 = vsel %vm262, %v4362, 0
      %v4422 = vsel %vm262, %v4363, 0
      %v4425 = vsel %vm262, %v4364, 0
      %v4428 = vsel %vm262, %v4365, 0
      %v4431 = vsel %vm262, %v4366, 0
      %v4434 = vsel %vm262, %v4367, 0
      %v4437 = vsel %vm262, %v4368, 0
      %v4440 = vsel %vm262, %v4369, 0
      %v4443 = vsel %vm262, %v4370, 0
      %v4446 = vsel %vm262, %v4371, 0
      %v4449 = vsel %vm262, %v4372, 0
      %v4452 = vsel %vm262, %v4373, 0
      %v4455 = vsel %vm262, %v4374, 0
      %v4458 = vsel %vm262, %v4375, 0
      %v4461 = vsel %vm262, %v4376, 0
      %v4464 = vsel %vm262, %v4377, 0
      %v4467 = vsel %vm262, %v4378, 0
      %v4470 = vsel %vm262, %v4379, 0
      %v4473 = vsel %vm262, %v4380, 0
      %v4476 = vsel %vm262, %v4381, 0
      %v4479 = vsel %vm262, %v4382, 0
      %v4482 = vsel %vm262, %v4383, 0
      %v4485 = vsel %vm262, %v4384, 0
      %v4488 = vsel %vm262, %v4385, 0
      %v4491 = vsel %vm262, %v4386, 0
      %v4494 = vsel %vm262, %v4387, 0
      %v4497 = vsel %vm262, %v4388, 0
      %v4500 = vsel %vm262, %v4389, 0
      %v4503 = vsel %vm262, %v4390, 0
      %v4506 = vsel %vm262, %v4391, 0
      %v4509 = vsel %vm262, %v4392, 0
      %v4512 = vsel %vm262, %v4393, 0
      %v4515 = vsel %vm262, %v4394, 0
      %v4518 = vsel %vm262, %v4395, 0
      %v4521 = vsel %vm262, %v4396, 0
      %v4524 = vsel %vm262, %v4397, 0
      %v4527 = vsel %vm262, %v4398, 0
      %v4530 = vsel %vm262, %v4399, 0
      %v4533 = vsel %vm262, %v4400, 0
      %v4536 = vsel %vm262, %v4401, 0
      %v4539 = vsel %vm262, %v4402, 0
      %v4542 = vsel %vm262, %v4403, 0
      %v4545 = vsel %vm262, %v4404, 0
      %v4548 = vsel %vm262, %v4405, 0
      %v4551 = vsel %vm262, %v4406, 0
      %v4554 = vsel %vm359, %v4408, 0
      %4556 = vmatpush.msra.mxu0 0.0
      %4557 = vmatpush.msra.mxu0 0.0
      %4558 = vmatpush.msra.mxu0 0.0
      %4559 = vmatpush.msra.mxu0 0.0
      %4560 = vmatpush.msra.mxu0 0.0
      %4561 = vmatpush.msra.mxu0 0.0
      %4562 = vmatpush.msra.mxu0 0.0
      %4563 = vmatpush.msra.mxu0 0.0
      %4564 = vmatpush.msra.mxu0 0.0
      %4565 = vmatpush.msra.mxu0 0.0
      %4566 = vmatpush.msra.mxu0 0.0
      %4567 = vmatpush.msra.mxu0 0.0
      %4568 = vmatpush.msra.mxu0 0.0
      %4569 = vmatpush.msra.mxu0 0.0
      %4570 = vmatpush.msra.mxu0 0.0
      %4571 = vmatpush.msra.mxu0 %v4554
      %4572 = vmatmul.f32.gmra.mxu0 %v4410
      %v4573 = vpop.f32.mrf.mxu0
      %v4574 = vadd.f32 0.0, %v4573
      %4575 = vmatmul.f32.gmra.mxu0 %v4413
      %v4576 = vpop.f32.mrf.mxu0
      %v4577 = vadd.f32 0.0, %v4576
      %4578 = vmatmul.f32.gmra.mxu0 %v4416
      %v4579 = vpop.f32.mrf.mxu0
      %v4580 = vadd.f32 0.0, %v4579
      %4581 = vmatmul.f32.gmra.mxu0 %v4419
      %v4582 = vpop.f32.mrf.mxu0
      %v4583 = vadd.f32 0.0, %v4582
      %4584 = vmatmul.f32.gmra.mxu0 %v4422
      %v4585 = vpop.f32.mrf.mxu0
      %v4586 = vadd.f32 0.0, %v4585
      %4587 = vmatmul.f32.gmra.mxu0 %v4425
      %v4588 = vpop.f32.mrf.mxu0
      %v4589 = vadd.f32 0.0, %v4588
      %4590 = vmatmul.f32.gmra.mxu0 %v4428
      %v4591 = vpop.f32.mrf.mxu0
      %v4592 = vadd.f32 0.0, %v4591
      %4593 = vmatmul.f32.gmra.mxu0 %v4431
      %v4594 = vpop.f32.mrf.mxu0
      %v4595 = vadd.f32 0.0, %v4594
      %4596 = vmatmul.f32.gmra.mxu0 %v4434
      %v4597 = vpop.f32.mrf.mxu0
      %v4598 = vadd.f32 0.0, %v4597
      %4599 = vmatmul.f32.gmra.mxu0 %v4437
      %v4600 = vpop.f32.mrf.mxu0
      %v4601 = vadd.f32 0.0, %v4600
      %4602 = vmatmul.f32.gmra.mxu0 %v4440
      %v4603 = vpop.f32.mrf.mxu0
      %v4604 = vadd.f32 0.0, %v4603
      %4605 = vmatmul.f32.gmra.mxu0 %v4443
      %v4606 = vpop.f32.mrf.mxu0
      %v4607 = vadd.f32 0.0, %v4606
      %4608 = vmatmul.f32.gmra.mxu0 %v4446
      %v4609 = vpop.f32.mrf.mxu0
      %v4610 = vadd.f32 0.0, %v4609
      %4611 = vmatmul.f32.gmra.mxu0 %v4449
      %v4612 = vpop.f32.mrf.mxu0
      %v4613 = vadd.f32 0.0, %v4612
      %4614 = vmatmul.f32.gmra.mxu0 %v4452
      %v4615 = vpop.f32.mrf.mxu0
      %v4616 = vadd.f32 0.0, %v4615
      %4617 = vmatmul.f32.gmra.mxu0 %v4455
      %v4618 = vpop.f32.mrf.mxu0
      %v4619 = vadd.f32 0.0, %v4618
      %4620 = vmatmul.f32.gmra.mxu0 %v4458
      %v4621 = vpop.f32.mrf.mxu0
      %v4622 = vadd.f32 0.0, %v4621
      %4623 = vmatmul.f32.gmra.mxu0 %v4461
      %v4624 = vpop.f32.mrf.mxu0
      %v4625 = vadd.f32 0.0, %v4624
      %4626 = vmatmul.f32.gmra.mxu0 %v4464
      %v4627 = vpop.f32.mrf.mxu0
      %v4628 = vadd.f32 0.0, %v4627
      %4629 = vmatmul.f32.gmra.mxu0 %v4467
      %v4630 = vpop.f32.mrf.mxu0
      %v4631 = vadd.f32 0.0, %v4630
      %4632 = vmatmul.f32.gmra.mxu0 %v4470
      %v4633 = vpop.f32.mrf.mxu0
      %v4634 = vadd.f32 0.0, %v4633
      %4635 = vmatmul.f32.gmra.mxu0 %v4473
      %v4636 = vpop.f32.mrf.mxu0
      %v4637 = vadd.f32 0.0, %v4636
      %4638 = vmatmul.f32.gmra.mxu0 %v4476
      %v4639 = vpop.f32.mrf.mxu0
      %v4640 = vadd.f32 0.0, %v4639
      %4641 = vmatmul.f32.gmra.mxu0 %v4479
      %v4642 = vpop.f32.mrf.mxu0
      %v4643 = vadd.f32 0.0, %v4642
      %4644 = vmatmul.f32.gmra.mxu0 %v4482
      %v4645 = vpop.f32.mrf.mxu0
      %v4646 = vadd.f32 0.0, %v4645
      %4647 = vmatmul.f32.gmra.mxu0 %v4485
      %v4648 = vpop.f32.mrf.mxu0
      %v4649 = vadd.f32 0.0, %v4648
      %4650 = vmatmul.f32.gmra.mxu0 %v4488
      %v4651 = vpop.f32.mrf.mxu0
      %v4652 = vadd.f32 0.0, %v4651
      %4653 = vmatmul.f32.gmra.mxu0 %v4491
      %v4654 = vpop.f32.mrf.mxu0
      %v4655 = vadd.f32 0.0, %v4654
      %4656 = vmatmul.f32.gmra.mxu0 %v4494
      %v4657 = vpop.f32.mrf.mxu0
      %v4658 = vadd.f32 0.0, %v4657
      %4659 = vmatmul.f32.gmra.mxu0 %v4497
      %v4660 = vpop.f32.mrf.mxu0
      %v4661 = vadd.f32 0.0, %v4660
      %4662 = vmatmul.f32.gmra.mxu0 %v4500
      %v4663 = vpop.f32.mrf.mxu0
      %v4664 = vadd.f32 0.0, %v4663
      %4665 = vmatmul.f32.gmra.mxu0 %v4503
      %v4666 = vpop.f32.mrf.mxu0
      %v4667 = vadd.f32 0.0, %v4666
      %4668 = vmatmul.f32.gmra.mxu0 %v4506
      %v4669 = vpop.f32.mrf.mxu0
      %v4670 = vadd.f32 0.0, %v4669
      %4671 = vmatmul.f32.gmra.mxu0 %v4509
      %v4672 = vpop.f32.mrf.mxu0
      %v4673 = vadd.f32 0.0, %v4672
      %4674 = vmatmul.f32.gmra.mxu0 %v4512
      %v4675 = vpop.f32.mrf.mxu0
      %v4676 = vadd.f32 0.0, %v4675
      %4677 = vmatmul.f32.gmra.mxu0 %v4515
      %v4678 = vpop.f32.mrf.mxu0
      %v4679 = vadd.f32 0.0, %v4678
      %4680 = vmatmul.f32.gmra.mxu0 %v4518
      %v4681 = vpop.f32.mrf.mxu0
      %v4682 = vadd.f32 0.0, %v4681
      %4683 = vmatmul.f32.gmra.mxu0 %v4521
      %v4684 = vpop.f32.mrf.mxu0
      %v4685 = vadd.f32 0.0, %v4684
      %4686 = vmatmul.f32.gmra.mxu0 %v4524
      %v4687 = vpop.f32.mrf.mxu0
      %v4688 = vadd.f32 0.0, %v4687
      %4689 = vmatmul.f32.gmra.mxu0 %v4527
      %v4690 = vpop.f32.mrf.mxu0
      %v4691 = vadd.f32 0.0, %v4690
      %4692 = vmatmul.f32.gmra.mxu0 %v4530
      %v4693 = vpop.f32.mrf.mxu0
      %v4694 = vadd.f32 0.0, %v4693
      %4695 = vmatmul.f32.gmra.mxu0 %v4533
      %v4696 = vpop.f32.mrf.mxu0
      %v4697 = vadd.f32 0.0, %v4696
      %4698 = vmatmul.f32.gmra.mxu0 %v4536
      %v4699 = vpop.f32.mrf.mxu0
      %v4700 = vadd.f32 0.0, %v4699
      %4701 = vmatmul.f32.gmra.mxu0 %v4539
      %v4702 = vpop.f32.mrf.mxu0
      %v4703 = vadd.f32 0.0, %v4702
      %4704 = vmatmul.f32.gmra.mxu0 %v4542
      %v4705 = vpop.f32.mrf.mxu0
      %v4706 = vadd.f32 0.0, %v4705
      %4707 = vmatmul.f32.gmra.mxu0 %v4545
      %v4708 = vpop.f32.mrf.mxu0
      %v4709 = vadd.f32 0.0, %v4708
      %4710 = vmatmul.f32.gmra.mxu0 %v4548
      %v4711 = vpop.f32.mrf.mxu0
      %v4712 = vadd.f32 0.0, %v4711
      %4713 = vmatmul.f32.gmra.mxu0 %v4551
      %v4714 = vpop.f32.mrf.mxu0
      %v4715 = vadd.f32 0.0, %v4714
      %4716 = vdwg.mxu0
      %v4717 = vadd.f32 %v4216, %v4574
      %v4718 = vadd.f32 %v4219, %v4577
      %v4719 = vadd.f32 %v4222, %v4580
      %v4720 = vadd.f32 %v4225, %v4583
      %v4721 = vadd.f32 %v4228, %v4586
      %v4722 = vadd.f32 %v4231, %v4589
      %v4723 = vadd.f32 %v4234, %v4592
      %v4724 = vadd.f32 %v4237, %v4595
      %v4725 = vadd.f32 %v4240, %v4598
      %v4726 = vadd.f32 %v4243, %v4601
      %v4727 = vadd.f32 %v4246, %v4604
      %v4728 = vadd.f32 %v4249, %v4607
      %v4729 = vadd.f32 %v4252, %v4610
      %v4730 = vadd.f32 %v4255, %v4613
      %v4731 = vadd.f32 %v4258, %v4616
      %v4732 = vadd.f32 %v4261, %v4619
      %v4733 = vadd.f32 %v4264, %v4622
      %v4734 = vadd.f32 %v4267, %v4625
      %v4735 = vadd.f32 %v4270, %v4628
      %v4736 = vadd.f32 %v4273, %v4631
      %v4737 = vadd.f32 %v4276, %v4634
      %v4738 = vadd.f32 %v4279, %v4637
      %v4739 = vadd.f32 %v4282, %v4640
      %v4740 = vadd.f32 %v4285, %v4643
      %v4741 = vadd.f32 %v4288, %v4646
      %v4742 = vadd.f32 %v4291, %v4649
      %v4743 = vadd.f32 %v4294, %v4652
      %v4744 = vadd.f32 %v4297, %v4655
      %v4745 = vadd.f32 %v4300, %v4658
      %v4746 = vadd.f32 %v4303, %v4661
      %v4747 = vadd.f32 %v4306, %v4664
      %v4748 = vadd.f32 %v4309, %v4667
      %v4749 = vadd.f32 %v4312, %v4670
      %v4750 = vadd.f32 %v4315, %v4673
      %v4751 = vadd.f32 %v4318, %v4676
      %v4752 = vadd.f32 %v4321, %v4679
      %v4753 = vadd.f32 %v4324, %v4682
      %v4754 = vadd.f32 %v4327, %v4685
      %v4755 = vadd.f32 %v4330, %v4688
      %v4756 = vadd.f32 %v4333, %v4691
      %v4757 = vadd.f32 %v4336, %v4694
      %v4758 = vadd.f32 %v4339, %v4697
      %v4759 = vadd.f32 %v4342, %v4700
      %v4760 = vadd.f32 %v4345, %v4703
      %v4761 = vadd.f32 %v4348, %v4706
      %v4762 = vadd.f32 %v4351, %v4709
      %v4763 = vadd.f32 %v4354, %v4712
      %v4764 = vadd.f32 %v4357, %v4715
      %v4765 = vld [vmem:[#allocation3] sm:$0xff]
      %v4766 = vld [vmem:[#allocation3 + $0x8] sm:$0xff]
      %v4767 = vld [vmem:[#allocation3 + $0x10] sm:$0xff]
      %v4768 = vld [vmem:[#allocation3 + $0x18] sm:$0xff]
      %v4769 = vld [vmem:[#allocation3 + $0x20] sm:$0xff]
      %v4770 = vld [vmem:[#allocation3 + $0x28] sm:$0xff]
      %v4771 = vld [vmem:[#allocation3 + $0x30] sm:$0xff]
      %v4772 = vld [vmem:[#allocation3 + $0x38] sm:$0xff]
      %v4773 = vld [vmem:[#allocation3 + $0x40] sm:$0xff]
      %v4774 = vld [vmem:[#allocation3 + $0x48] sm:$0xff]
      %v4775 = vld [vmem:[#allocation3 + $0x50] sm:$0xff]
      %v4776 = vld [vmem:[#allocation3 + $0x58] sm:$0xff]
      %v4777 = vld [vmem:[#allocation3 + $0x60] sm:$0xff]
      %v4778 = vld [vmem:[#allocation3 + $0x68] sm:$0xff]
      %v4779 = vld [vmem:[#allocation3 + $0x70] sm:$0xff]
      %v4780 = vld [vmem:[#allocation3 + $0x78] sm:$0xff]
      %v4781 = vld [vmem:[#allocation3 + $0x80] sm:$0xff]
      %v4782 = vld [vmem:[#allocation3 + $0x88] sm:$0xff]
      %v4783 = vld [vmem:[#allocation3 + $0x90] sm:$0xff]
      %v4784 = vld [vmem:[#allocation3 + $0x98] sm:$0xff]
      %v4785 = vld [vmem:[#allocation3 + $0xa0] sm:$0xff]
      %v4786 = vld [vmem:[#allocation3 + $0xa8] sm:$0xff]
      %v4787 = vld [vmem:[#allocation3 + $0xb0] sm:$0xff]
      %v4788 = vld [vmem:[#allocation3 + $0xb8] sm:$0xff]
      %v4789 = vld [vmem:[#allocation3 + $0xc0] sm:$0xff]
      %v4790 = vld [vmem:[#allocation3 + $0xc8] sm:$0xff]
      %v4791 = vld [vmem:[#allocation3 + $0xd0] sm:$0xff]
      %v4792 = vld [vmem:[#allocation3 + $0xd8] sm:$0xff]
      %v4793 = vld [vmem:[#allocation3 + $0xe0] sm:$0xff]
      %v4794 = vld [vmem:[#allocation3 + $0xe8] sm:$0xff]
      %v4795 = vld [vmem:[#allocation3 + $0xf0] sm:$0xff]
      %v4796 = vld [vmem:[#allocation3 + $0xf8] sm:$0xff]
      %v4797 = vld [vmem:[#allocation3 + $0x100] sm:$0xff]
      %v4798 = vld [vmem:[#allocation3 + $0x108] sm:$0xff]
      %v4799 = vld [vmem:[#allocation3 + $0x110] sm:$0xff]
      %v4800 = vld [vmem:[#allocation3 + $0x118] sm:$0xff]
      %v4801 = vld [vmem:[#allocation3 + $0x120] sm:$0xff]
      %v4802 = vld [vmem:[#allocation3 + $0x128] sm:$0xff]
      %v4803 = vld [vmem:[#allocation3 + $0x130] sm:$0xff]
      %v4804 = vld [vmem:[#allocation3 + $0x138] sm:$0xff]
      %v4805 = vld [vmem:[#allocation3 + $0x140] sm:$0xff]
      %v4806 = vld [vmem:[#allocation3 + $0x148] sm:$0xff]
      %v4807 = vld [vmem:[#allocation3 + $0x150] sm:$0xff]
      %v4808 = vld [vmem:[#allocation3 + $0x158] sm:$0xff]
      %v4809 = vld [vmem:[#allocation3 + $0x160] sm:$0xff]
      %v4810 = vld [vmem:[#allocation3 + $0x168] sm:$0xff]
      %v4811 = vld [vmem:[#allocation3 + $0x170] sm:$0xff]
      %v4812 = vld [vmem:[#allocation3 + $0x178] sm:$0xff]
      %v4813 = vadd.f32 %v4765, %v4717
      %v4814 = vadd.f32 %v4766, %v4718
      %v4815 = vadd.f32 %v4767, %v4719
      %v4816 = vadd.f32 %v4768, %v4720
      %v4817 = vadd.f32 %v4769, %v4721
      %v4818 = vadd.f32 %v4770, %v4722
      %v4819 = vadd.f32 %v4771, %v4723
      %v4820 = vadd.f32 %v4772, %v4724
      %v4821 = vadd.f32 %v4773, %v4725
      %v4822 = vadd.f32 %v4774, %v4726
      %v4823 = vadd.f32 %v4775, %v4727
      %v4824 = vadd.f32 %v4776, %v4728
      %v4825 = vadd.f32 %v4777, %v4729
      %v4826 = vadd.f32 %v4778, %v4730
      %v4827 = vadd.f32 %v4779, %v4731
      %v4828 = vadd.f32 %v4780, %v4732
      %v4829 = vadd.f32 %v4781, %v4733
      %v4830 = vadd.f32 %v4782, %v4734
      %v4831 = vadd.f32 %v4783, %v4735
      %v4832 = vadd.f32 %v4784, %v4736
      %v4833 = vadd.f32 %v4785, %v4737
      %v4834 = vadd.f32 %v4786, %v4738
      %v4835 = vadd.f32 %v4787, %v4739
      %v4836 = vadd.f32 %v4788, %v4740
      %v4837 = vadd.f32 %v4789, %v4741
      %v4838 = vadd.f32 %v4790, %v4742
      %v4839 = vadd.f32 %v4791, %v4743
      %v4840 = vadd.f32 %v4792, %v4744
      %v4841 = vadd.f32 %v4793, %v4745
      %v4842 = vadd.f32 %v4794, %v4746
      %v4843 = vadd.f32 %v4795, %v4747
      %v4844 = vadd.f32 %v4796, %v4748
      %v4845 = vadd.f32 %v4797, %v4749
      %v4846 = vadd.f32 %v4798, %v4750
      %v4847 = vadd.f32 %v4799, %v4751
      %v4848 = vadd.f32 %v4800, %v4752
      %v4849 = vadd.f32 %v4801, %v4753
      %v4850 = vadd.f32 %v4802, %v4754
      %v4851 = vadd.f32 %v4803, %v4755
      %v4852 = vadd.f32 %v4804, %v4756
      %v4853 = vadd.f32 %v4805, %v4757
      %v4854 = vadd.f32 %v4806, %v4758
      %v4855 = vadd.f32 %v4807, %v4759
      %v4856 = vadd.f32 %v4808, %v4760
      %v4857 = vadd.f32 %v4809, %v4761
      %v4858 = vadd.f32 %v4810, %v4762
      %v4859 = vadd.f32 %v4811, %v4763
      %v4860 = vadd.f32 %v4812, %v4764
      %4861 = vst.msk [vmem:[#allocation3] sm:$0xff] %vm262, %v4813
      %4862 = vst.msk [vmem:[#allocation3 + $0x8] sm:$0xff] %vm262, %v4814
      %4863 = vst.msk [vmem:[#allocation3 + $0x10] sm:$0xff] %vm262, %v4815
      %4864 = vst.msk [vmem:[#allocation3 + $0x18] sm:$0xff] %vm262, %v4816
      %4865 = vst.msk [vmem:[#allocation3 + $0x20] sm:$0xff] %vm262, %v4817
      %4866 = vst.msk [vmem:[#allocation3 + $0x28] sm:$0xff] %vm262, %v4818
      %4867 = vst.msk [vmem:[#allocation3 + $0x30] sm:$0xff] %vm262, %v4819
      %4868 = vst.msk [vmem:[#allocation3 + $0x38] sm:$0xff] %vm262, %v4820
      %4869 = vst.msk [vmem:[#allocation3 + $0x40] sm:$0xff] %vm262, %v4821
      %4870 = vst.msk [vmem:[#allocation3 + $0x48] sm:$0xff] %vm262, %v4822
      %4871 = vst.msk [vmem:[#allocation3 + $0x50] sm:$0xff] %vm262, %v4823
      %4872 = vst.msk [vmem:[#allocation3 + $0x58] sm:$0xff] %vm262, %v4824
      %4873 = vst.msk [vmem:[#allocation3 + $0x60] sm:$0xff] %vm262, %v4825
      %4874 = vst.msk [vmem:[#allocation3 + $0x68] sm:$0xff] %vm262, %v4826
      %4875 = vst.msk [vmem:[#allocation3 + $0x70] sm:$0xff] %vm262, %v4827
      %4876 = vst.msk [vmem:[#allocation3 + $0x78] sm:$0xff] %vm262, %v4828
      %4877 = vst.msk [vmem:[#allocation3 + $0x80] sm:$0xff] %vm262, %v4829
      %4878 = vst.msk [vmem:[#allocation3 + $0x88] sm:$0xff] %vm262, %v4830
      %4879 = vst.msk [vmem:[#allocation3 + $0x90] sm:$0xff] %vm262, %v4831
      %4880 = vst.msk [vmem:[#allocation3 + $0x98] sm:$0xff] %vm262, %v4832
      %4881 = vst.msk [vmem:[#allocation3 + $0xa0] sm:$0xff] %vm262, %v4833
      %4882 = vst.msk [vmem:[#allocation3 + $0xa8] sm:$0xff] %vm262, %v4834
      %4883 = vst.msk [vmem:[#allocation3 + $0xb0] sm:$0xff] %vm262, %v4835
      %4884 = vst.msk [vmem:[#allocation3 + $0xb8] sm:$0xff] %vm262, %v4836
      %4885 = vst.msk [vmem:[#allocation3 + $0xc0] sm:$0xff] %vm262, %v4837
      %4886 = vst.msk [vmem:[#allocation3 + $0xc8] sm:$0xff] %vm262, %v4838
      %4887 = vst.msk [vmem:[#allocation3 + $0xd0] sm:$0xff] %vm262, %v4839
      %4888 = vst.msk [vmem:[#allocation3 + $0xd8] sm:$0xff] %vm262, %v4840
      %4889 = vst.msk [vmem:[#allocation3 + $0xe0] sm:$0xff] %vm262, %v4841
      %4890 = vst.msk [vmem:[#allocation3 + $0xe8] sm:$0xff] %vm262, %v4842
      %4891 = vst.msk [vmem:[#allocation3 + $0xf0] sm:$0xff] %vm262, %v4843
      %4892 = vst.msk [vmem:[#allocation3 + $0xf8] sm:$0xff] %vm262, %v4844
      %4893 = vst.msk [vmem:[#allocation3 + $0x100] sm:$0xff] %vm262, %v4845
      %4894 = vst.msk [vmem:[#allocation3 + $0x108] sm:$0xff] %vm262, %v4846
      %4895 = vst.msk [vmem:[#allocation3 + $0x110] sm:$0xff] %vm262, %v4847
      %4896 = vst.msk [vmem:[#allocation3 + $0x118] sm:$0xff] %vm262, %v4848
      %4897 = vst.msk [vmem:[#allocation3 + $0x120] sm:$0xff] %vm262, %v4849
      %4898 = vst.msk [vmem:[#allocation3 + $0x128] sm:$0xff] %vm262, %v4850
      %4899 = vst.msk [vmem:[#allocation3 + $0x130] sm:$0xff] %vm262, %v4851
      %4900 = vst.msk [vmem:[#allocation3 + $0x138] sm:$0xff] %vm262, %v4852
      %4901 = vst.msk [vmem:[#allocation3 + $0x140] sm:$0xff] %vm262, %v4853
      %4902 = vst.msk [vmem:[#allocation3 + $0x148] sm:$0xff] %vm262, %v4854
      %4903 = vst.msk [vmem:[#allocation3 + $0x150] sm:$0xff] %vm262, %v4855
      %4904 = vst.msk [vmem:[#allocation3 + $0x158] sm:$0xff] %vm262, %v4856
      %4905 = vst.msk [vmem:[#allocation3 + $0x160] sm:$0xff] %vm262, %v4857
      %4906 = vst.msk [vmem:[#allocation3 + $0x168] sm:$0xff] %vm262, %v4858
      %4907 = vst.msk [vmem:[#allocation3 + $0x170] sm:$0xff] %vm262, %v4859
      %4908 = vst.msk [vmem:[#allocation3 + $0x178] sm:$0xff] %vm262, %v4860
      %v4909 = vld [vmem:[#allocation3] sm:$0xff]
      %v4910 = vld [vmem:[#allocation3 + $0x8] sm:$0xff]
      %v4911 = vld [vmem:[#allocation3 + $0x18] sm:$0xff]
      %v4912 = vld [vmem:[#allocation3 + $0x20] sm:$0xff]
      %v4913 = vld [vmem:[#allocation3 + $0x30] sm:$0xff]
      %v4914 = vld [vmem:[#allocation3 + $0x38] sm:$0xff]
      %v4915 = vld [vmem:[#allocation3 + $0x48] sm:$0xff]
      %v4916 = vld [vmem:[#allocation3 + $0x50] sm:$0xff]
      %v4917 = vld [vmem:[#allocation3 + $0x60] sm:$0xff]
      %v4918 = vld [vmem:[#allocation3 + $0x68] sm:$0xff]
      %v4919 = vld [vmem:[#allocation3 + $0x78] sm:$0xff]
      %v4920 = vld [vmem:[#allocation3 + $0x80] sm:$0xff]
      %v4921 = vld [vmem:[#allocation3 + $0x90] sm:$0xff]
      %v4922 = vld [vmem:[#allocation3 + $0x98] sm:$0xff]
      %v4923 = vld [vmem:[#allocation3 + $0xa8] sm:$0xff]
      %v4924 = vld [vmem:[#allocation3 + $0xb0] sm:$0xff]
      %v4925 = vld [vmem:[#allocation3 + $0xc0] sm:$0xff]
      %v4926 = vld [vmem:[#allocation3 + $0xc8] sm:$0xff]
      %v4927 = vld [vmem:[#allocation3 + $0xd8] sm:$0xff]
      %v4928 = vld [vmem:[#allocation3 + $0xe0] sm:$0xff]
      %v4929 = vld [vmem:[#allocation3 + $0xf0] sm:$0xff]
      %v4930 = vld [vmem:[#allocation3 + $0xf8] sm:$0xff]
      %v4931 = vld [vmem:[#allocation3 + $0x108] sm:$0xff]
      %v4932 = vld [vmem:[#allocation3 + $0x110] sm:$0xff]
      %v4933 = vld [vmem:[#allocation3 + $0x120] sm:$0xff]
      %v4934 = vld [vmem:[#allocation3 + $0x128] sm:$0xff]
      %v4935 = vld [vmem:[#allocation3 + $0x138] sm:$0xff]
      %v4936 = vld [vmem:[#allocation3 + $0x140] sm:$0xff]
      %v4937 = vld [vmem:[#allocation3 + $0x150] sm:$0xff]
      %v4938 = vld [vmem:[#allocation3 + $0x158] sm:$0xff]
      %v4939 = vld [vmem:[#allocation3 + $0x168] sm:$0xff]
      %v4940 = vld [vmem:[#allocation3 + $0x170] sm:$0xff]
      %v4941 = vld [vmem:[%s4] sm:$0x1]
      %v4943 = vperm.slane %v4941, 0
      %v4945 = vadd.f32 %v4909, %v4943
      %v4946 = vadd.f32 %v4910, %v4943
      %v4947 = vadd.f32 %v4911, %v4943
      %v4948 = vadd.f32 %v4912, %v4943
      %v4949 = vadd.f32 %v4913, %v4943
      %v4950 = vadd.f32 %v4914, %v4943
      %v4951 = vadd.f32 %v4915, %v4943
      %v4952 = vadd.f32 %v4916, %v4943
      %v4953 = vadd.f32 %v4917, %v4943
      %v4954 = vadd.f32 %v4918, %v4943
      %v4955 = vadd.f32 %v4919, %v4943
      %v4956 = vadd.f32 %v4920, %v4943
      %v4957 = vadd.f32 %v4921, %v4943
      %v4958 = vadd.f32 %v4922, %v4943
      %v4959 = vadd.f32 %v4923, %v4943
      %v4960 = vadd.f32 %v4924, %v4943
      %v4961 = vadd.f32 %v4925, %v4943
      %v4962 = vadd.f32 %v4926, %v4943
      %v4963 = vadd.f32 %v4927, %v4943
      %v4964 = vadd.f32 %v4928, %v4943
      %v4965 = vadd.f32 %v4929, %v4943
      %v4966 = vadd.f32 %v4930, %v4943
      %v4967 = vadd.f32 %v4931, %v4943
      %v4968 = vadd.f32 %v4932, %v4943
      %v4969 = vadd.f32 %v4933, %v4943
      %v4970 = vadd.f32 %v4934, %v4943
      %v4971 = vadd.f32 %v4935, %v4943
      %v4972 = vadd.f32 %v4936, %v4943
      %v4973 = vadd.f32 %v4937, %v4943
      %v4974 = vadd.f32 %v4938, %v4943
      %v4975 = vadd.f32 %v4939, %v4943
      %v4976 = vadd.f32 %v4940, %v4943
      %v4977 = vxor.u32 %v4945, 2147483648
      %v4978 = vxor.u32 %v4946, 2147483648
      %v4979 = vxor.u32 %v4947, 2147483648
      %v4980 = vxor.u32 %v4948, 2147483648
      %v4981 = vxor.u32 %v4949, 2147483648
      %v4982 = vxor.u32 %v4950, 2147483648
      %v4983 = vxor.u32 %v4951, 2147483648
      %v4984 = vxor.u32 %v4952, 2147483648
      %v4985 = vxor.u32 %v4953, 2147483648
      %v4986 = vxor.u32 %v4954, 2147483648
      %v4987 = vxor.u32 %v4955, 2147483648
      %v4988 = vxor.u32 %v4956, 2147483648
      %v4989 = vxor.u32 %v4957, 2147483648
      %v4990 = vxor.u32 %v4958, 2147483648
      %v4991 = vxor.u32 %v4959, 2147483648
      %v4992 = vxor.u32 %v4960, 2147483648
      %v4993 = vxor.u32 %v4961, 2147483648
      %v4994 = vxor.u32 %v4962, 2147483648
      %v4995 = vxor.u32 %v4963, 2147483648
      %v4996 = vxor.u32 %v4964, 2147483648
      %v4997 = vxor.u32 %v4965, 2147483648
      %v4998 = vxor.u32 %v4966, 2147483648
      %v4999 = vxor.u32 %v4967, 2147483648
      %v5000 = vxor.u32 %v4968, 2147483648
      %v5001 = vxor.u32 %v4969, 2147483648
      %v5002 = vxor.u32 %v4970, 2147483648
      %v5003 = vxor.u32 %v4971, 2147483648
      %v5004 = vxor.u32 %v4972, 2147483648
      %v5005 = vxor.u32 %v4973, 2147483648
      %v5006 = vxor.u32 %v4974, 2147483648
      %v5007 = vxor.u32 %v4975, 2147483648
      %v5008 = vxor.u32 %v4976, 2147483648
      %v5009 = vmul.f32 %v4977, 1.442695
      %v5010 = vpow.pop %v5009
      %v5011 = vmul.f32 %v4978, 1.442695
      %v5012 = vpow.pop %v5011
      %v5013 = vmul.f32 %v4979, 1.442695
      %v5014 = vpow.pop %v5013
      %v5015 = vmul.f32 %v4980, 1.442695
      %v5016 = vpow.pop %v5015
      %v5017 = vmul.f32 %v4981, 1.442695
      %v5018 = vpow.pop %v5017
      %v5019 = vmul.f32 %v4982, 1.442695
      %v5020 = vpow.pop %v5019
      %v5021 = vmul.f32 %v4983, 1.442695
      %v5022 = vpow.pop %v5021
      %v5023 = vmul.f32 %v4984, 1.442695
      %v5024 = vpow.pop %v5023
      %v5025 = vmul.f32 %v4985, 1.442695
      %v5026 = vpow.pop %v5025
      %v5027 = vmul.f32 %v4986, 1.442695
      %v5028 = vpow.pop %v5027
      %v5029 = vmul.f32 %v4987, 1.442695
      %v5030 = vpow.pop %v5029
      %v5031 = vmul.f32 %v4988, 1.442695
      %v5032 = vpow.pop %v5031
      %v5033 = vmul.f32 %v4989, 1.442695
      %v5034 = vpow.pop %v5033
      %v5035 = vmul.f32 %v4990, 1.442695
      %v5036 = vpow.pop %v5035
      %v5037 = vmul.f32 %v4991, 1.442695
      %v5038 = vpow.pop %v5037
      %v5039 = vmul.f32 %v4992, 1.442695
      %v5040 = vpow.pop %v5039
      %v5041 = vmul.f32 %v4993, 1.442695
      %v5042 = vpow.pop %v5041
      %v5043 = vmul.f32 %v4994, 1.442695
      %v5044 = vpow.pop %v5043
      %v5045 = vmul.f32 %v4995, 1.442695
      %v5046 = vpow.pop %v5045
      %v5047 = vmul.f32 %v4996, 1.442695
      %v5048 = vpow.pop %v5047
      %v5049 = vmul.f32 %v4997, 1.442695
      %v5050 = vpow.pop %v5049
      %v5051 = vmul.f32 %v4998, 1.442695
      %v5052 = vpow.pop %v5051
      %v5053 = vmul.f32 %v4999, 1.442695
      %v5054 = vpow.pop %v5053
      %v5055 = vmul.f32 %v5000, 1.442695
      %v5056 = vpow.pop %v5055
      %v5057 = vmul.f32 %v5001, 1.442695
      %v5058 = vpow.pop %v5057
      %v5059 = vmul.f32 %v5002, 1.442695
      %v5060 = vpow.pop %v5059
      %v5061 = vmul.f32 %v5003, 1.442695
      %v5062 = vpow.pop %v5061
      %v5063 = vmul.f32 %v5004, 1.442695
      %v5064 = vpow.pop %v5063
      %v5065 = vmul.f32 %v5005, 1.442695
      %v5066 = vpow.pop %v5065
      %v5067 = vmul.f32 %v5006, 1.442695
      %v5068 = vpow.pop %v5067
      %v5069 = vmul.f32 %v5007, 1.442695
      %v5070 = vpow.pop %v5069
      %v5071 = vmul.f32 %v5008, 1.442695
      %v5072 = vpow.pop %v5071
      %v5073 = vadd.f32 %v5010, 1.0
      %v5074 = vadd.f32 %v5012, 1.0
      %v5075 = vadd.f32 %v5014, 1.0
      %v5076 = vadd.f32 %v5016, 1.0
      %v5077 = vadd.f32 %v5018, 1.0
      %v5078 = vadd.f32 %v5020, 1.0
      %v5079 = vadd.f32 %v5022, 1.0
      %v5080 = vadd.f32 %v5024, 1.0
      %v5081 = vadd.f32 %v5026, 1.0
      %v5082 = vadd.f32 %v5028, 1.0
      %v5083 = vadd.f32 %v5030, 1.0
      %v5084 = vadd.f32 %v5032, 1.0
      %v5085 = vadd.f32 %v5034, 1.0
      %v5086 = vadd.f32 %v5036, 1.0
      %v5087 = vadd.f32 %v5038, 1.0
      %v5088 = vadd.f32 %v5040, 1.0
      %v5089 = vadd.f32 %v5042, 1.0
      %v5090 = vadd.f32 %v5044, 1.0
      %v5091 = vadd.f32 %v5046, 1.0
      %v5092 = vadd.f32 %v5048, 1.0
      %v5093 = vadd.f32 %v5050, 1.0
      %v5094 = vadd.f32 %v5052, 1.0
      %v5095 = vadd.f32 %v5054, 1.0
      %v5096 = vadd.f32 %v5056, 1.0
      %v5097 = vadd.f32 %v5058, 1.0
      %v5098 = vadd.f32 %v5060, 1.0
      %v5099 = vadd.f32 %v5062, 1.0
      %v5100 = vadd.f32 %v5064, 1.0
      %v5101 = vadd.f32 %v5066, 1.0
      %v5102 = vadd.f32 %v5068, 1.0
      %v5103 = vadd.f32 %v5070, 1.0
      %v5104 = vadd.f32 %v5072, 1.0
      %v5105 = vrcp.pop %v5073
      %v5106 = vmul.f32 %v5073, %v5105
      %v5107 = vsub.f32 1.0, %v5106
      %v5108 = vmul.f32 %v5105, %v5107
      %v5109 = vadd.f32 %v5105, %v5108
      %vm5110 = vweird.f32 %v5073
      %vm5111 = vweird.f32 %v5105
      %vm5112 = vmor %vm5110, %vm5111
      %v5113 = vsel %vm5112, %v5105, %v5109
      %v5114 = vand.u32 2147483647, %v5073
      %vm5115 = vcmp.eq.f32.partialorder %v5114, 8.507059e+37
      %v5116 = vand.u32 %v5073, 2147483648
      %v5117 = vor.u32 1.1754944e-38, %v5116
      %v5118 = vsel %vm5115, %v5117, %v5113
      %v5119 = vmul.f32 1.0, %v5118
      %v5120 = vrcp.pop %v5074
      %v5121 = vmul.f32 %v5074, %v5120
      %v5122 = vsub.f32 1.0, %v5121
      %v5123 = vmul.f32 %v5120, %v5122
      %v5124 = vadd.f32 %v5120, %v5123
      %vm5125 = vweird.f32 %v5074
      %vm5126 = vweird.f32 %v5120
      %vm5127 = vmor %vm5125, %vm5126
      %v5128 = vsel %vm5127, %v5120, %v5124
      %v5129 = vand.u32 2147483647, %v5074
      %vm5130 = vcmp.eq.f32.partialorder %v5129, 8.507059e+37
      %v5131 = vand.u32 %v5074, 2147483648
      %v5132 = vor.u32 1.1754944e-38, %v5131
      %v5133 = vsel %vm5130, %v5132, %v5128
      %v5134 = vmul.f32 1.0, %v5133
      %v5135 = vrcp.pop %v5075
      %v5136 = vmul.f32 %v5075, %v5135
      %v5137 = vsub.f32 1.0, %v5136
      %v5138 = vmul.f32 %v5135, %v5137
      %v5139 = vadd.f32 %v5135, %v5138
      %vm5140 = vweird.f32 %v5075
      %vm5141 = vweird.f32 %v5135
      %vm5142 = vmor %vm5140, %vm5141
      %v5143 = vsel %vm5142, %v5135, %v5139
      %v5144 = vand.u32 2147483647, %v5075
      %vm5145 = vcmp.eq.f32.partialorder %v5144, 8.507059e+37
      %v5146 = vand.u32 %v5075, 2147483648
      %v5147 = vor.u32 1.1754944e-38, %v5146
      %v5148 = vsel %vm5145, %v5147, %v5143
      %v5149 = vmul.f32 1.0, %v5148
      %v5150 = vrcp.pop %v5076
      %v5151 = vmul.f32 %v5076, %v5150
      %v5152 = vsub.f32 1.0, %v5151
      %v5153 = vmul.f32 %v5150, %v5152
      %v5154 = vadd.f32 %v5150, %v5153
      %vm5155 = vweird.f32 %v5076
      %vm5156 = vweird.f32 %v5150
      %vm5157 = vmor %vm5155, %vm5156
      %v5158 = vsel %vm5157, %v5150, %v5154
      %v5159 = vand.u32 2147483647, %v5076
      %vm5160 = vcmp.eq.f32.partialorder %v5159, 8.507059e+37
      %v5161 = vand.u32 %v5076, 2147483648
      %v5162 = vor.u32 1.1754944e-38, %v5161
      %v5163 = vsel %vm5160, %v5162, %v5158
      %v5164 = vmul.f32 1.0, %v5163
      %v5165 = vrcp.pop %v5077
      %v5166 = vmul.f32 %v5077, %v5165
      %v5167 = vsub.f32 1.0, %v5166
      %v5168 = vmul.f32 %v5165, %v5167
      %v5169 = vadd.f32 %v5165, %v5168
      %vm5170 = vweird.f32 %v5077
      %vm5171 = vweird.f32 %v5165
      %vm5172 = vmor %vm5170, %vm5171
      %v5173 = vsel %vm5172, %v5165, %v5169
      %v5174 = vand.u32 2147483647, %v5077
      %vm5175 = vcmp.eq.f32.partialorder %v5174, 8.507059e+37
      %v5176 = vand.u32 %v5077, 2147483648
      %v5177 = vor.u32 1.1754944e-38, %v5176
      %v5178 = vsel %vm5175, %v5177, %v5173
      %v5179 = vmul.f32 1.0, %v5178
      %v5180 = vrcp.pop %v5078
      %v5181 = vmul.f32 %v5078, %v5180
      %v5182 = vsub.f32 1.0, %v5181
      %v5183 = vmul.f32 %v5180, %v5182
      %v5184 = vadd.f32 %v5180, %v5183
      %vm5185 = vweird.f32 %v5078
      %vm5186 = vweird.f32 %v5180
      %vm5187 = vmor %vm5185, %vm5186
      %v5188 = vsel %vm5187, %v5180, %v5184
      %v5189 = vand.u32 2147483647, %v5078
      %vm5190 = vcmp.eq.f32.partialorder %v5189, 8.507059e+37
      %v5191 = vand.u32 %v5078, 2147483648
      %v5192 = vor.u32 1.1754944e-38, %v5191
      %v5193 = vsel %vm5190, %v5192, %v5188
      %v5194 = vmul.f32 1.0, %v5193
      %v5195 = vrcp.pop %v5079
      %v5196 = vmul.f32 %v5079, %v5195
      %v5197 = vsub.f32 1.0, %v5196
      %v5198 = vmul.f32 %v5195, %v5197
      %v5199 = vadd.f32 %v5195, %v5198
      %vm5200 = vweird.f32 %v5079
      %vm5201 = vweird.f32 %v5195
      %vm5202 = vmor %vm5200, %vm5201
      %v5203 = vsel %vm5202, %v5195, %v5199
      %v5204 = vand.u32 2147483647, %v5079
      %vm5205 = vcmp.eq.f32.partialorder %v5204, 8.507059e+37
      %v5206 = vand.u32 %v5079, 2147483648
      %v5207 = vor.u32 1.1754944e-38, %v5206
      %v5208 = vsel %vm5205, %v5207, %v5203
      %v5209 = vmul.f32 1.0, %v5208
      %v5210 = vrcp.pop %v5080
      %v5211 = vmul.f32 %v5080, %v5210
      %v5212 = vsub.f32 1.0, %v5211
      %v5213 = vmul.f32 %v5210, %v5212
      %v5214 = vadd.f32 %v5210, %v5213
      %vm5215 = vweird.f32 %v5080
      %vm5216 = vweird.f32 %v5210
      %vm5217 = vmor %vm5215, %vm5216
      %v5218 = vsel %vm5217, %v5210, %v5214
      %v5219 = vand.u32 2147483647, %v5080
      %vm5220 = vcmp.eq.f32.partialorder %v5219, 8.507059e+37
      %v5221 = vand.u32 %v5080, 2147483648
      %v5222 = vor.u32 1.1754944e-38, %v5221
      %v5223 = vsel %vm5220, %v5222, %v5218
      %v5224 = vmul.f32 1.0, %v5223
      %v5225 = vrcp.pop %v5081
      %v5226 = vmul.f32 %v5081, %v5225
      %v5227 = vsub.f32 1.0, %v5226
      %v5228 = vmul.f32 %v5225, %v5227
      %v5229 = vadd.f32 %v5225, %v5228
      %vm5230 = vweird.f32 %v5081
      %vm5231 = vweird.f32 %v5225
      %vm5232 = vmor %vm5230, %vm5231
      %v5233 = vsel %vm5232, %v5225, %v5229
      %v5234 = vand.u32 2147483647, %v5081
      %vm5235 = vcmp.eq.f32.partialorder %v5234, 8.507059e+37
      %v5236 = vand.u32 %v5081, 2147483648
      %v5237 = vor.u32 1.1754944e-38, %v5236
      %v5238 = vsel %vm5235, %v5237, %v5233
      %v5239 = vmul.f32 1.0, %v5238
      %v5240 = vrcp.pop %v5082
      %v5241 = vmul.f32 %v5082, %v5240
      %v5242 = vsub.f32 1.0, %v5241
      %v5243 = vmul.f32 %v5240, %v5242
      %v5244 = vadd.f32 %v5240, %v5243
      %vm5245 = vweird.f32 %v5082
      %vm5246 = vweird.f32 %v5240
      %vm5247 = vmor %vm5245, %vm5246
      %v5248 = vsel %vm5247, %v5240, %v5244
      %v5249 = vand.u32 2147483647, %v5082
      %vm5250 = vcmp.eq.f32.partialorder %v5249, 8.507059e+37
      %v5251 = vand.u32 %v5082, 2147483648
      %v5252 = vor.u32 1.1754944e-38, %v5251
      %v5253 = vsel %vm5250, %v5252, %v5248
      %v5254 = vmul.f32 1.0, %v5253
      %v5255 = vrcp.pop %v5083
      %v5256 = vmul.f32 %v5083, %v5255
      %v5257 = vsub.f32 1.0, %v5256
      %v5258 = vmul.f32 %v5255, %v5257
      %v5259 = vadd.f32 %v5255, %v5258
      %vm5260 = vweird.f32 %v5083
      %vm5261 = vweird.f32 %v5255
      %vm5262 = vmor %vm5260, %vm5261
      %v5263 = vsel %vm5262, %v5255, %v5259
      %v5264 = vand.u32 2147483647, %v5083
      %vm5265 = vcmp.eq.f32.partialorder %v5264, 8.507059e+37
      %v5266 = vand.u32 %v5083, 2147483648
      %v5267 = vor.u32 1.1754944e-38, %v5266
      %v5268 = vsel %vm5265, %v5267, %v5263
      %v5269 = vmul.f32 1.0, %v5268
      %v5270 = vrcp.pop %v5084
      %v5271 = vmul.f32 %v5084, %v5270
      %v5272 = vsub.f32 1.0, %v5271
      %v5273 = vmul.f32 %v5270, %v5272
      %v5274 = vadd.f32 %v5270, %v5273
      %vm5275 = vweird.f32 %v5084
      %vm5276 = vweird.f32 %v5270
      %vm5277 = vmor %vm5275, %vm5276
      %v5278 = vsel %vm5277, %v5270, %v5274
      %v5279 = vand.u32 2147483647, %v5084
      %vm5280 = vcmp.eq.f32.partialorder %v5279, 8.507059e+37
      %v5281 = vand.u32 %v5084, 2147483648
      %v5282 = vor.u32 1.1754944e-38, %v5281
      %v5283 = vsel %vm5280, %v5282, %v5278
      %v5284 = vmul.f32 1.0, %v5283
      %v5285 = vrcp.pop %v5085
      %v5286 = vmul.f32 %v5085, %v5285
      %v5287 = vsub.f32 1.0, %v5286
      %v5288 = vmul.f32 %v5285, %v5287
      %v5289 = vadd.f32 %v5285, %v5288
      %vm5290 = vweird.f32 %v5085
      %vm5291 = vweird.f32 %v5285
      %vm5292 = vmor %vm5290, %vm5291
      %v5293 = vsel %vm5292, %v5285, %v5289
      %v5294 = vand.u32 2147483647, %v5085
      %vm5295 = vcmp.eq.f32.partialorder %v5294, 8.507059e+37
      %v5296 = vand.u32 %v5085, 2147483648
      %v5297 = vor.u32 1.1754944e-38, %v5296
      %v5298 = vsel %vm5295, %v5297, %v5293
      %v5299 = vmul.f32 1.0, %v5298
      %v5300 = vrcp.pop %v5086
      %v5301 = vmul.f32 %v5086, %v5300
      %v5302 = vsub.f32 1.0, %v5301
      %v5303 = vmul.f32 %v5300, %v5302
      %v5304 = vadd.f32 %v5300, %v5303
      %vm5305 = vweird.f32 %v5086
      %vm5306 = vweird.f32 %v5300
      %vm5307 = vmor %vm5305, %vm5306
      %v5308 = vsel %vm5307, %v5300, %v5304
      %v5309 = vand.u32 2147483647, %v5086
      %vm5310 = vcmp.eq.f32.partialorder %v5309, 8.507059e+37
      %v5311 = vand.u32 %v5086, 2147483648
      %v5312 = vor.u32 1.1754944e-38, %v5311
      %v5313 = vsel %vm5310, %v5312, %v5308
      %v5314 = vmul.f32 1.0, %v5313
      %v5315 = vrcp.pop %v5087
      %v5316 = vmul.f32 %v5087, %v5315
      %v5317 = vsub.f32 1.0, %v5316
      %v5318 = vmul.f32 %v5315, %v5317
      %v5319 = vadd.f32 %v5315, %v5318
      %vm5320 = vweird.f32 %v5087
      %vm5321 = vweird.f32 %v5315
      %vm5322 = vmor %vm5320, %vm5321
      %v5323 = vsel %vm5322, %v5315, %v5319
      %v5324 = vand.u32 2147483647, %v5087
      %vm5325 = vcmp.eq.f32.partialorder %v5324, 8.507059e+37
      %v5326 = vand.u32 %v5087, 2147483648
      %v5327 = vor.u32 1.1754944e-38, %v5326
      %v5328 = vsel %vm5325, %v5327, %v5323
      %v5329 = vmul.f32 1.0, %v5328
      %v5330 = vrcp.pop %v5088
      %v5331 = vmul.f32 %v5088, %v5330
      %v5332 = vsub.f32 1.0, %v5331
      %v5333 = vmul.f32 %v5330, %v5332
      %v5334 = vadd.f32 %v5330, %v5333
      %vm5335 = vweird.f32 %v5088
      %vm5336 = vweird.f32 %v5330
      %vm5337 = vmor %vm5335, %vm5336
      %v5338 = vsel %vm5337, %v5330, %v5334
      %v5339 = vand.u32 2147483647, %v5088
      %vm5340 = vcmp.eq.f32.partialorder %v5339, 8.507059e+37
      %v5341 = vand.u32 %v5088, 2147483648
      %v5342 = vor.u32 1.1754944e-38, %v5341
      %v5343 = vsel %vm5340, %v5342, %v5338
      %v5344 = vmul.f32 1.0, %v5343
      %v5345 = vrcp.pop %v5089
      %v5346 = vmul.f32 %v5089, %v5345
      %v5347 = vsub.f32 1.0, %v5346
      %v5348 = vmul.f32 %v5345, %v5347
      %v5349 = vadd.f32 %v5345, %v5348
      %vm5350 = vweird.f32 %v5089
      %vm5351 = vweird.f32 %v5345
      %vm5352 = vmor %vm5350, %vm5351
      %v5353 = vsel %vm5352, %v5345, %v5349
      %v5354 = vand.u32 2147483647, %v5089
      %vm5355 = vcmp.eq.f32.partialorder %v5354, 8.507059e+37
      %v5356 = vand.u32 %v5089, 2147483648
      %v5357 = vor.u32 1.1754944e-38, %v5356
      %v5358 = vsel %vm5355, %v5357, %v5353
      %v5359 = vmul.f32 1.0, %v5358
      %v5360 = vrcp.pop %v5090
      %v5361 = vmul.f32 %v5090, %v5360
      %v5362 = vsub.f32 1.0, %v5361
      %v5363 = vmul.f32 %v5360, %v5362
      %v5364 = vadd.f32 %v5360, %v5363
      %vm5365 = vweird.f32 %v5090
      %vm5366 = vweird.f32 %v5360
      %vm5367 = vmor %vm5365, %vm5366
      %v5368 = vsel %vm5367, %v5360, %v5364
      %v5369 = vand.u32 2147483647, %v5090
      %vm5370 = vcmp.eq.f32.partialorder %v5369, 8.507059e+37
      %v5371 = vand.u32 %v5090, 2147483648
      %v5372 = vor.u32 1.1754944e-38, %v5371
      %v5373 = vsel %vm5370, %v5372, %v5368
      %v5374 = vmul.f32 1.0, %v5373
      %v5375 = vrcp.pop %v5091
      %v5376 = vmul.f32 %v5091, %v5375
      %v5377 = vsub.f32 1.0, %v5376
      %v5378 = vmul.f32 %v5375, %v5377
      %v5379 = vadd.f32 %v5375, %v5378
      %vm5380 = vweird.f32 %v5091
      %vm5381 = vweird.f32 %v5375
      %vm5382 = vmor %vm5380, %vm5381
      %v5383 = vsel %vm5382, %v5375, %v5379
      %v5384 = vand.u32 2147483647, %v5091
      %vm5385 = vcmp.eq.f32.partialorder %v5384, 8.507059e+37
      %v5386 = vand.u32 %v5091, 2147483648
      %v5387 = vor.u32 1.1754944e-38, %v5386
      %v5388 = vsel %vm5385, %v5387, %v5383
      %v5389 = vmul.f32 1.0, %v5388
      %v5390 = vrcp.pop %v5092
      %v5391 = vmul.f32 %v5092, %v5390
      %v5392 = vsub.f32 1.0, %v5391
      %v5393 = vmul.f32 %v5390, %v5392
      %v5394 = vadd.f32 %v5390, %v5393
      %vm5395 = vweird.f32 %v5092
      %vm5396 = vweird.f32 %v5390
      %vm5397 = vmor %vm5395, %vm5396
      %v5398 = vsel %vm5397, %v5390, %v5394
      %v5399 = vand.u32 2147483647, %v5092
      %vm5400 = vcmp.eq.f32.partialorder %v5399, 8.507059e+37
      %v5401 = vand.u32 %v5092, 2147483648
      %v5402 = vor.u32 1.1754944e-38, %v5401
      %v5403 = vsel %vm5400, %v5402, %v5398
      %v5404 = vmul.f32 1.0, %v5403
      %v5405 = vrcp.pop %v5093
      %v5406 = vmul.f32 %v5093, %v5405
      %v5407 = vsub.f32 1.0, %v5406
      %v5408 = vmul.f32 %v5405, %v5407
      %v5409 = vadd.f32 %v5405, %v5408
      %vm5410 = vweird.f32 %v5093
      %vm5411 = vweird.f32 %v5405
      %vm5412 = vmor %vm5410, %vm5411
      %v5413 = vsel %vm5412, %v5405, %v5409
      %v5414 = vand.u32 2147483647, %v5093
      %vm5415 = vcmp.eq.f32.partialorder %v5414, 8.507059e+37
      %v5416 = vand.u32 %v5093, 2147483648
      %v5417 = vor.u32 1.1754944e-38, %v5416
      %v5418 = vsel %vm5415, %v5417, %v5413
      %v5419 = vmul.f32 1.0, %v5418
      %v5420 = vrcp.pop %v5094
      %v5421 = vmul.f32 %v5094, %v5420
      %v5422 = vsub.f32 1.0, %v5421
      %v5423 = vmul.f32 %v5420, %v5422
      %v5424 = vadd.f32 %v5420, %v5423
      %vm5425 = vweird.f32 %v5094
      %vm5426 = vweird.f32 %v5420
      %vm5427 = vmor %vm5425, %vm5426
      %v5428 = vsel %vm5427, %v5420, %v5424
      %v5429 = vand.u32 2147483647, %v5094
      %vm5430 = vcmp.eq.f32.partialorder %v5429, 8.507059e+37
      %v5431 = vand.u32 %v5094, 2147483648
      %v5432 = vor.u32 1.1754944e-38, %v5431
      %v5433 = vsel %vm5430, %v5432, %v5428
      %v5434 = vmul.f32 1.0, %v5433
      %v5435 = vrcp.pop %v5095
      %v5436 = vmul.f32 %v5095, %v5435
      %v5437 = vsub.f32 1.0, %v5436
      %v5438 = vmul.f32 %v5435, %v5437
      %v5439 = vadd.f32 %v5435, %v5438
      %vm5440 = vweird.f32 %v5095
      %vm5441 = vweird.f32 %v5435
      %vm5442 = vmor %vm5440, %vm5441
      %v5443 = vsel %vm5442, %v5435, %v5439
      %v5444 = vand.u32 2147483647, %v5095
      %vm5445 = vcmp.eq.f32.partialorder %v5444, 8.507059e+37
      %v5446 = vand.u32 %v5095, 2147483648
      %v5447 = vor.u32 1.1754944e-38, %v5446
      %v5448 = vsel %vm5445, %v5447, %v5443
      %v5449 = vmul.f32 1.0, %v5448
      %v5450 = vrcp.pop %v5096
      %v5451 = vmul.f32 %v5096, %v5450
      %v5452 = vsub.f32 1.0, %v5451
      %v5453 = vmul.f32 %v5450, %v5452
      %v5454 = vadd.f32 %v5450, %v5453
      %vm5455 = vweird.f32 %v5096
      %vm5456 = vweird.f32 %v5450
      %vm5457 = vmor %vm5455, %vm5456
      %v5458 = vsel %vm5457, %v5450, %v5454
      %v5459 = vand.u32 2147483647, %v5096
      %vm5460 = vcmp.eq.f32.partialorder %v5459, 8.507059e+37
      %v5461 = vand.u32 %v5096, 2147483648
      %v5462 = vor.u32 1.1754944e-38, %v5461
      %v5463 = vsel %vm5460, %v5462, %v5458
      %v5464 = vmul.f32 1.0, %v5463
      %v5465 = vrcp.pop %v5097
      %v5466 = vmul.f32 %v5097, %v5465
      %v5467 = vsub.f32 1.0, %v5466
      %v5468 = vmul.f32 %v5465, %v5467
      %v5469 = vadd.f32 %v5465, %v5468
      %vm5470 = vweird.f32 %v5097
      %vm5471 = vweird.f32 %v5465
      %vm5472 = vmor %vm5470, %vm5471
      %v5473 = vsel %vm5472, %v5465, %v5469
      %v5474 = vand.u32 2147483647, %v5097
      %vm5475 = vcmp.eq.f32.partialorder %v5474, 8.507059e+37
      %v5476 = vand.u32 %v5097, 2147483648
      %v5477 = vor.u32 1.1754944e-38, %v5476
      %v5478 = vsel %vm5475, %v5477, %v5473
      %v5479 = vmul.f32 1.0, %v5478
      %v5480 = vrcp.pop %v5098
      %v5481 = vmul.f32 %v5098, %v5480
      %v5482 = vsub.f32 1.0, %v5481
      %v5483 = vmul.f32 %v5480, %v5482
      %v5484 = vadd.f32 %v5480, %v5483
      %vm5485 = vweird.f32 %v5098
      %vm5486 = vweird.f32 %v5480
      %vm5487 = vmor %vm5485, %vm5486
      %v5488 = vsel %vm5487, %v5480, %v5484
      %v5489 = vand.u32 2147483647, %v5098
      %vm5490 = vcmp.eq.f32.partialorder %v5489, 8.507059e+37
      %v5491 = vand.u32 %v5098, 2147483648
      %v5492 = vor.u32 1.1754944e-38, %v5491
      %v5493 = vsel %vm5490, %v5492, %v5488
      %v5494 = vmul.f32 1.0, %v5493
      %v5495 = vrcp.pop %v5099
      %v5496 = vmul.f32 %v5099, %v5495
      %v5497 = vsub.f32 1.0, %v5496
      %v5498 = vmul.f32 %v5495, %v5497
      %v5499 = vadd.f32 %v5495, %v5498
      %vm5500 = vweird.f32 %v5099
      %vm5501 = vweird.f32 %v5495
      %vm5502 = vmor %vm5500, %vm5501
      %v5503 = vsel %vm5502, %v5495, %v5499
      %v5504 = vand.u32 2147483647, %v5099
      %vm5505 = vcmp.eq.f32.partialorder %v5504, 8.507059e+37
      %v5506 = vand.u32 %v5099, 2147483648
      %v5507 = vor.u32 1.1754944e-38, %v5506
      %v5508 = vsel %vm5505, %v5507, %v5503
      %v5509 = vmul.f32 1.0, %v5508
      %v5510 = vrcp.pop %v5100
      %v5511 = vmul.f32 %v5100, %v5510
      %v5512 = vsub.f32 1.0, %v5511
      %v5513 = vmul.f32 %v5510, %v5512
      %v5514 = vadd.f32 %v5510, %v5513
      %vm5515 = vweird.f32 %v5100
      %vm5516 = vweird.f32 %v5510
      %vm5517 = vmor %vm5515, %vm5516
      %v5518 = vsel %vm5517, %v5510, %v5514
      %v5519 = vand.u32 2147483647, %v5100
      %vm5520 = vcmp.eq.f32.partialorder %v5519, 8.507059e+37
      %v5521 = vand.u32 %v5100, 2147483648
      %v5522 = vor.u32 1.1754944e-38, %v5521
      %v5523 = vsel %vm5520, %v5522, %v5518
      %v5524 = vmul.f32 1.0, %v5523
      %v5525 = vrcp.pop %v5101
      %v5526 = vmul.f32 %v5101, %v5525
      %v5527 = vsub.f32 1.0, %v5526
      %v5528 = vmul.f32 %v5525, %v5527
      %v5529 = vadd.f32 %v5525, %v5528
      %vm5530 = vweird.f32 %v5101
      %vm5531 = vweird.f32 %v5525
      %vm5532 = vmor %vm5530, %vm5531
      %v5533 = vsel %vm5532, %v5525, %v5529
      %v5534 = vand.u32 2147483647, %v5101
      %vm5535 = vcmp.eq.f32.partialorder %v5534, 8.507059e+37
      %v5536 = vand.u32 %v5101, 2147483648
      %v5537 = vor.u32 1.1754944e-38, %v5536
      %v5538 = vsel %vm5535, %v5537, %v5533
      %v5539 = vmul.f32 1.0, %v5538
      %v5540 = vrcp.pop %v5102
      %v5541 = vmul.f32 %v5102, %v5540
      %v5542 = vsub.f32 1.0, %v5541
      %v5543 = vmul.f32 %v5540, %v5542
      %v5544 = vadd.f32 %v5540, %v5543
      %vm5545 = vweird.f32 %v5102
      %vm5546 = vweird.f32 %v5540
      %vm5547 = vmor %vm5545, %vm5546
      %v5548 = vsel %vm5547, %v5540, %v5544
      %v5549 = vand.u32 2147483647, %v5102
      %vm5550 = vcmp.eq.f32.partialorder %v5549, 8.507059e+37
      %v5551 = vand.u32 %v5102, 2147483648
      %v5552 = vor.u32 1.1754944e-38, %v5551
      %v5553 = vsel %vm5550, %v5552, %v5548
      %v5554 = vmul.f32 1.0, %v5553
      %v5555 = vrcp.pop %v5103
      %v5556 = vmul.f32 %v5103, %v5555
      %v5557 = vsub.f32 1.0, %v5556
      %v5558 = vmul.f32 %v5555, %v5557
      %v5559 = vadd.f32 %v5555, %v5558
      %vm5560 = vweird.f32 %v5103
      %vm5561 = vweird.f32 %v5555
      %vm5562 = vmor %vm5560, %vm5561
      %v5563 = vsel %vm5562, %v5555, %v5559
      %v5564 = vand.u32 2147483647, %v5103
      %vm5565 = vcmp.eq.f32.partialorder %v5564, 8.507059e+37
      %v5566 = vand.u32 %v5103, 2147483648
      %v5567 = vor.u32 1.1754944e-38, %v5566
      %v5568 = vsel %vm5565, %v5567, %v5563
      %v5569 = vmul.f32 1.0, %v5568
      %v5570 = vrcp.pop %v5104
      %v5571 = vmul.f32 %v5104, %v5570
      %v5572 = vsub.f32 1.0, %v5571
      %v5573 = vmul.f32 %v5570, %v5572
      %v5574 = vadd.f32 %v5570, %v5573
      %vm5575 = vweird.f32 %v5104
      %vm5576 = vweird.f32 %v5570
      %vm5577 = vmor %vm5575, %vm5576
      %v5578 = vsel %vm5577, %v5570, %v5574
      %v5579 = vand.u32 2147483647, %v5104
      %vm5580 = vcmp.eq.f32.partialorder %v5579, 8.507059e+37
      %v5581 = vand.u32 %v5104, 2147483648
      %v5582 = vor.u32 1.1754944e-38, %v5581
      %v5583 = vsel %vm5580, %v5582, %v5578
      %v5584 = vmul.f32 1.0, %v5583
      %v5585 = vmul.f32 %v4945, %v5119
      %v5586 = vmul.f32 %v4946, %v5134
      %v5587 = vmul.f32 %v4947, %v5149
      %v5588 = vmul.f32 %v4948, %v5164
      %v5589 = vmul.f32 %v4949, %v5179
      %v5590 = vmul.f32 %v4950, %v5194
      %v5591 = vmul.f32 %v4951, %v5209
      %v5592 = vmul.f32 %v4952, %v5224
      %v5593 = vmul.f32 %v4953, %v5239
      %v5594 = vmul.f32 %v4954, %v5254
      %v5595 = vmul.f32 %v4955, %v5269
      %v5596 = vmul.f32 %v4956, %v5284
      %v5597 = vmul.f32 %v4957, %v5299
      %v5598 = vmul.f32 %v4958, %v5314
      %v5599 = vmul.f32 %v4959, %v5329
      %v5600 = vmul.f32 %v4960, %v5344
      %v5601 = vmul.f32 %v4961, %v5359
      %v5602 = vmul.f32 %v4962, %v5374
      %v5603 = vmul.f32 %v4963, %v5389
      %v5604 = vmul.f32 %v4964, %v5404
      %v5605 = vmul.f32 %v4965, %v5419
      %v5606 = vmul.f32 %v4966, %v5434
      %v5607 = vmul.f32 %v4967, %v5449
      %v5608 = vmul.f32 %v4968, %v5464
      %v5609 = vmul.f32 %v4969, %v5479
      %v5610 = vmul.f32 %v4970, %v5494
      %v5611 = vmul.f32 %v4971, %v5509
      %v5612 = vmul.f32 %v4972, %v5524
      %v5613 = vmul.f32 %v4973, %v5539
      %v5614 = vmul.f32 %v4974, %v5554
      %v5615 = vmul.f32 %v4975, %v5569
      %v5616 = vmul.f32 %v4976, %v5584
      %v5617 = vadd.f32 %v5585, %v225
      %v5618 = vadd.f32 %v5586, %v226
      %v5619 = vadd.f32 %v5587, %v227
      %v5620 = vadd.f32 %v5588, %v228
      %v5621 = vadd.f32 %v5589, %v229
      %v5622 = vadd.f32 %v5590, %v230
      %v5623 = vadd.f32 %v5591, %v231
      %v5624 = vadd.f32 %v5592, %v232
      %v5625 = vadd.f32 %v5593, %v233
      %v5626 = vadd.f32 %v5594, %v234
      %v5627 = vadd.f32 %v5595, %v235
      %v5628 = vadd.f32 %v5596, %v236
      %v5629 = vadd.f32 %v5597, %v237
      %v5630 = vadd.f32 %v5598, %v238
      %v5631 = vadd.f32 %v5599, %v239
      %v5632 = vadd.f32 %v5600, %v240
      %v5633 = vadd.f32 %v5601, %v241
      %v5634 = vadd.f32 %v5602, %v242
      %v5635 = vadd.f32 %v5603, %v243
      %v5636 = vadd.f32 %v5604, %v244
      %v5637 = vadd.f32 %v5605, %v245
      %v5638 = vadd.f32 %v5606, %v246
      %v5639 = vadd.f32 %v5607, %v247
      %v5640 = vadd.f32 %v5608, %v248
      %v5641 = vadd.f32 %v5609, %v249
      %v5642 = vadd.f32 %v5610, %v250
      %v5643 = vadd.f32 %v5611, %v251
      %v5644 = vadd.f32 %v5612, %v252
      %v5645 = vadd.f32 %v5613, %v253
      %v5646 = vadd.f32 %v5614, %v254
      %v5647 = vadd.f32 %v5615, %v255
      %v5648 = vadd.f32 %v5616, %v256
      %5649 = vst.msk [vmem:[%s224] sm:$0xff] %vm262, %v5617
      %5650 = vst.msk [vmem:[%s224 + $0x8] sm:$0xff] %vm262, %v5618
      %5651 = vst.msk [vmem:[%s224 + $0x10] sm:$0xff] %vm262, %v5619
      %5652 = vst.msk [vmem:[%s224 + $0x18] sm:$0xff] %vm262, %v5620
      %5653 = vst.msk [vmem:[%s224 + $0x20] sm:$0xff] %vm262, %v5621
      %5654 = vst.msk [vmem:[%s224 + $0x28] sm:$0xff] %vm262, %v5622
      %5655 = vst.msk [vmem:[%s224 + $0x30] sm:$0xff] %vm262, %v5623
      %5656 = vst.msk [vmem:[%s224 + $0x38] sm:$0xff] %vm262, %v5624
      %5657 = vst.msk [vmem:[%s224 + $0x40] sm:$0xff] %vm262, %v5625
      %5658 = vst.msk [vmem:[%s224 + $0x48] sm:$0xff] %vm262, %v5626
      %5659 = vst.msk [vmem:[%s224 + $0x50] sm:$0xff] %vm262, %v5627
      %5660 = vst.msk [vmem:[%s224 + $0x58] sm:$0xff] %vm262, %v5628
      %5661 = vst.msk [vmem:[%s224 + $0x60] sm:$0xff] %vm262, %v5629
      %5662 = vst.msk [vmem:[%s224 + $0x68] sm:$0xff] %vm262, %v5630
      %5663 = vst.msk [vmem:[%s224 + $0x70] sm:$0xff] %vm262, %v5631
      %5664 = vst.msk [vmem:[%s224 + $0x78] sm:$0xff] %vm262, %v5632
      %5665 = vst.msk [vmem:[%s224 + $0x80] sm:$0xff] %vm262, %v5633
      %5666 = vst.msk [vmem:[%s224 + $0x88] sm:$0xff] %vm262, %v5634
      %5667 = vst.msk [vmem:[%s224 + $0x90] sm:$0xff] %vm262, %v5635
      %5668 = vst.msk [vmem:[%s224 + $0x98] sm:$0xff] %vm262, %v5636
      %5669 = vst.msk [vmem:[%s224 + $0xa0] sm:$0xff] %vm262, %v5637
      %5670 = vst.msk [vmem:[%s224 + $0xa8] sm:$0xff] %vm262, %v5638
      %5671 = vst.msk [vmem:[%s224 + $0xb0] sm:$0xff] %vm262, %v5639
      %5672 = vst.msk [vmem:[%s224 + $0xb8] sm:$0xff] %vm262, %v5640
      %5673 = vst.msk [vmem:[%s224 + $0xc0] sm:$0xff] %vm262, %v5641
      %5674 = vst.msk [vmem:[%s224 + $0xc8] sm:$0xff] %vm262, %v5642
      %5675 = vst.msk [vmem:[%s224 + $0xd0] sm:$0xff] %vm262, %v5643
      %5676 = vst.msk [vmem:[%s224 + $0xd8] sm:$0xff] %vm262, %v5644
      %5677 = vst.msk [vmem:[%s224 + $0xe0] sm:$0xff] %vm262, %v5645
      %5678 = vst.msk [vmem:[%s224 + $0xe8] sm:$0xff] %vm262, %v5646
      %5679 = vst.msk [vmem:[%s224 + $0xf0] sm:$0xff] %vm262, %v5647
      %5680 = vst.msk [vmem:[%s224 + $0xf8] sm:$0xff] %vm262, %v5648
      %p5681 = scmp.lt.s32.totalorder %s16, 1
      %s5682 = scalar_select %p5681, %s16, 1
      %s5683 = smul.addr %s5682, 32
      %s5684 = smul.addr %s5683, 8
      %s5685 = scalar_lea.vmem %s5, %s5684
      // Predicated region
      $region41: #{_lambda_.4} parent=39 // pred_check
        %p5686 = pneg %p144
      $region42: #{_lambda_.4} parent=39 // pred_check_branch
        %5688 = sbr.rel (%p5686) target = $region44
      $region43: #{_lambda_.4} parent=39 // pred_region
        _
      $region44: #{_lambda_.4} parent=39 // pred_fallthru
        _
    $region40: #{_lambda_.4} parent=5 // pred_fallthru
      _
    %p5689 = scmp.le.s32.totalorder 2, %s11
    // Predicated region
    $region45: #{_lambda_.4} parent=5 // pred_check
      %p5690 = pneg %p5689
    $region46: #{_lambda_.4} parent=5 // pred_check_branch
      %5692 = sbr.rel (%p5690) target = $region48
    $region47: #{_lambda_.4} parent=5 // pred_region
      %s5693 = ssub.s32 %s11, 2
      // Predicated region
      $region49: #{_lambda_.4} parent=47 // pred_check
        %p5694 = pneg %p150
      $region50: #{_lambda_.4} parent=47 // pred_check_branch
        %5696 = sbr.rel (%p5694) target = $region52
      $region51: #{_lambda_.4} parent=47 // pred_region
        %p5697 = scmp.lt.s32.totalorder %s17, 1
        %s5698 = scalar_select %p5697, %s17, 1
        %s5699 = smul.addr %s5698, 32
        %s5700 = smul.addr %s5699, 8
        %s5701 = scalar_lea.vmem %s5, %s5700
      $region52: #{_lambda_.4} parent=47 // pred_fallthru
        _
    $region48: #{_lambda_.4} parent=5 // pred_fallthru
      _
  $region6: #{_lambda_.4} parent=0 // loop_footer
    %s15 = sadd.s32 1, %s11
  $region7: #{_lambda_.4} parent=0 // loop_footer_branch
    %10 = sbr.rel target = $region3
  $region8: #{_lambda_.4} parent=0 // loop_exit
    _

</llo_original>
